<compile_context>
chip_gen: v6e
topology: v6e:2x2x1
jax: 0.10.0
libtpu: 0.0.40
codegen_flags: <defaults>
</compile_context>

<pallas_src>
import functools
import math

import jax
import jax.numpy as jnp
from jax.experimental import pallas as pl
from jax.experimental.pallas import tpu as pltpu


# --------------------------------------------------------------------------
# In-kernel helpers (plain jnp, traced inline inside the fused kernels)
# --------------------------------------------------------------------------

def _layer_norm(x, g, b, eps=1e-5):
    mean = jnp.mean(x, axis=-1, keepdims=True)
    var = jnp.mean((x - mean) ** 2, axis=-1, keepdims=True)
    return (x - mean) * jax.lax.rsqrt(var + eps) * g + b


def _attention_into(q, k, v, ctx_ref, *, B, S_q, S_kv, H, Dh, scale, causal):
    """Multi-head scaled-dot attention; writes the (B*S_q, H*Dh) context into ctx_ref.

    q: (B*S_q, H*Dh), k/v: (B*S_kv, H*Dh), rows ordered (batch, seq).
    The (B, H) loop is a static unroll over tiny VMEM-resident head tiles.
    """
    if causal:
        row = jax.lax.broadcasted_iota(jnp.int32, (S_q, S_kv), 0)
        col = jax.lax.broadcasted_iota(jnp.int32, (S_q, S_kv), 1)
        neg = jnp.where(col > row, jnp.float32(-1e30), jnp.float32(0.0))
    for b in range(B):
        for h in range(H):
            qs = q[b * S_q:(b + 1) * S_q, h * Dh:(h + 1) * Dh]
            ks = k[b * S_kv:(b + 1) * S_kv, h * Dh:(h + 1) * Dh]
            vs = v[b * S_kv:(b + 1) * S_kv, h * Dh:(h + 1) * Dh]
            s = jnp.dot(qs, ks.T, preferred_element_type=jnp.float32) * scale
            if causal:
                s = s + neg
            m = jnp.max(s, axis=-1, keepdims=True)
            p = jnp.exp(s - m)
            p = p * pl.reciprocal(jnp.sum(p, axis=-1, keepdims=True), approx=True)
            ctx = jnp.dot(p, vs, preferred_element_type=jnp.float32)
            ctx_ref[b * S_q:(b + 1) * S_q, h * Dh:(h + 1) * Dh] = ctx


# --------------------------------------------------------------------------
# Fused Pallas kernels
# --------------------------------------------------------------------------

def _embed_kernel(x_ref, w_ref, b_ref, pos_ref, o_ref):
    # Input embedding + positional-encoding add for src and tgt stacked along rows.
    y = jnp.dot(x_ref[...].astype(jnp.float32), w_ref[...],
                preferred_element_type=jnp.float32)
    o_ref[...] = (y + b_ref[...] + pos_ref[...]).astype(o_ref.dtype)


def _encoder_layer_kernel(x_ref, wqkv_ref, bqkv_ref, wo_ref, bo_ref,
                          n1g_ref, n1b_ref, w1_ref, b1_ref, w2_ref, b2_ref,
                          n2g_ref, n2b_ref, *rest,
                          B, S, H, Dh, scale, apply_final_norm):
    if apply_final_norm:
        fng_ref, fnb_ref, o_ref, ctx_ref = rest
    else:
        o_ref, ctx_ref = rest
    D = H * Dh
    x = x_ref[...].astype(jnp.float32)

    # Self-attention: one packed QKV matmul, per-head softmax, out projection.
    qkv = jnp.dot(x, wqkv_ref[...], preferred_element_type=jnp.float32) + bqkv_ref[...]
    _attention_into(qkv[:, 0:D], qkv[:, D:2 * D], qkv[:, 2 * D:3 * D], ctx_ref,
                    B=B, S_q=S, S_kv=S, H=H, Dh=Dh, scale=scale, causal=False)
    sa = jnp.dot(ctx_ref[...], wo_ref[...], preferred_element_type=jnp.float32) + bo_ref[...]
    x = _layer_norm(x + sa, n1g_ref[...], n1b_ref[...])

    # Feed-forward (ReLU) + residual + LayerNorm.
    h = jnp.maximum(jnp.dot(x, w1_ref[...], preferred_element_type=jnp.float32) + b1_ref[...], 0.0)
    h = jnp.dot(h, w2_ref[...], preferred_element_type=jnp.float32) + b2_ref[...]
    x = _layer_norm(x + h, n2g_ref[...], n2b_ref[...])

    if apply_final_norm:  # final encoder LayerNorm fused into the last layer
        x = _layer_norm(x, fng_ref[...], fnb_ref[...])
    o_ref[...] = x.astype(o_ref.dtype)


def _decoder_layer_kernel(x_ref, mem_ref,
                          sa_wqkv_ref, sa_bqkv_ref, sa_wo_ref, sa_bo_ref,
                          n1g_ref, n1b_ref,
                          ca_wqkv_ref, ca_bqkv_ref, ca_wo_ref, ca_bo_ref,
                          n2g_ref, n2b_ref,
                          w1_ref, b1_ref, w2_ref, b2_ref,
                          n3g_ref, n3b_ref,
                          o_ref, ctx_ref,
                          *, B, S, H, Dh, scale):
    D = H * Dh
    x = x_ref[...].astype(jnp.float32)
    mem = mem_ref[...].astype(jnp.float32)

    # Causal self-attention.
    qkv = jnp.dot(x, sa_wqkv_ref[...], preferred_element_type=jnp.float32) + sa_bqkv_ref[...]
    _attention_into(qkv[:, 0:D], qkv[:, D:2 * D], qkv[:, 2 * D:3 * D], ctx_ref,
                    B=B, S_q=S, S_kv=S, H=H, Dh=Dh, scale=scale, causal=True)
    sa = jnp.dot(ctx_ref[...], sa_wo_ref[...], preferred_element_type=jnp.float32) + sa_bo_ref[...]
    x = _layer_norm(x + sa, n1g_ref[...], n1b_ref[...])

    # Cross-attention over encoder memory (packed weight sliced in-kernel).
    ca_w = ca_wqkv_ref[...]
    ca_b = ca_bqkv_ref[...]
    q = jnp.dot(x, ca_w[:, 0:D], preferred_element_type=jnp.float32) + ca_b[:, 0:D]
    kv = jnp.dot(mem, ca_w[:, D:3 * D], preferred_element_type=jnp.float32) + ca_b[:, D:3 * D]
    _attention_into(q, kv[:, 0:D], kv[:, D:2 * D], ctx_ref,
                    B=B, S_q=S, S_kv=S, H=H, Dh=Dh, scale=scale, causal=False)
    ca = jnp.dot(ctx_ref[...], ca_wo_ref[...], preferred_element_type=jnp.float32) + ca_bo_ref[...]
    x = _layer_norm(x + ca, n2g_ref[...], n2b_ref[...])

    # Feed-forward (ReLU) + residual + LayerNorm.
    h = jnp.maximum(jnp.dot(x, w1_ref[...], preferred_element_type=jnp.float32) + b1_ref[...], 0.0)
    h = jnp.dot(h, w2_ref[...], preferred_element_type=jnp.float32) + b2_ref[...]
    x = _layer_norm(x + h, n3g_ref[...], n3b_ref[...])

    o_ref[...] = x.astype(o_ref.dtype)


def _final_kernel(x_ref, ng_ref, nb_ref, w_ref, b_ref, o_ref):
    # Final decoder LayerNorm fused with the fc_out projection.
    x = _layer_norm(x_ref[...].astype(jnp.float32), ng_ref[...], nb_ref[...])
    y = jnp.dot(x, w_ref[...], preferred_element_type=jnp.float32) + b_ref[...]
    o_ref[...] = y.astype(o_ref.dtype)


# --------------------------------------------------------------------------
# pallas_call wrappers (full-slab BlockSpecs; everything fits VMEM at these shapes)
# --------------------------------------------------------------------------

def _full_spec(shape):
    nd = len(shape)
    return pl.BlockSpec(shape, lambda i: (0,) * nd)


def _call_full(kernel, args, out_shape, scratch_shapes=()):
    return pl.pallas_call(
        kernel,
        out_shape=out_shape,
        grid=(1,),
        in_specs=[_full_spec(a.shape) for a in args],
        out_specs=_full_spec(out_shape.shape),
        scratch_shapes=list(scratch_shapes),
    )(*args)


def embed(x_rows, w, b, pos_rows):
    M = x_rows.shape[0]
    D = w.shape[1]
    return _call_full(_embed_kernel, [x_rows, w, b, pos_rows],
                      jax.ShapeDtypeStruct((M, D), x_rows.dtype))


def encoder_layer(x, p, final_norm, *, B, S, H, Dh, is_last):
    M, D = x.shape
    args = [x, p["w_qkv"], p["b_qkv"], p["w_o"], p["b_o"],
            p["n1g"], p["n1b"], p["w1"], p["b1"], p["w2"], p["b2"],
            p["n2g"], p["n2b"]]
    if is_last:
        args += [final_norm[0], final_norm[1]]
    kernel = functools.partial(_encoder_layer_kernel, B=B, S=S, H=H, Dh=Dh,
                               scale=1.0 / math.sqrt(Dh), apply_final_norm=is_last)
    return _call_full(kernel, args, jax.ShapeDtypeStruct((M, D), x.dtype),
                      scratch_shapes=[pltpu.VMEM((M, D), jnp.float32)])


def decoder_layer(x, memory, p, *, B, S, H, Dh):
    M, D = x.shape
    args = [x, memory,
            p["sa_w_qkv"], p["sa_b_qkv"], p["sa_w_o"], p["sa_b_o"],
            p["n1g"], p["n1b"],
            p["ca_w_qkv"], p["ca_b_qkv"], p["ca_w_o"], p["ca_b_o"],
            p["n2g"], p["n2b"],
            p["w1"], p["b1"], p["w2"], p["b2"],
            p["n3g"], p["n3b"]]
    kernel = functools.partial(_decoder_layer_kernel, B=B, S=S, H=H, Dh=Dh,
                               scale=1.0 / math.sqrt(Dh))
    return _call_full(kernel, args, jax.ShapeDtypeStruct((M, D), x.dtype),
                      scratch_shapes=[pltpu.VMEM((M, D), jnp.float32)])


def final_proj(x, ng, nb, w, b):
    M = x.shape[0]
    N = w.shape[1]
    return _call_full(_final_kernel, [x, ng, nb, w, b],
                      jax.ShapeDtypeStruct((M, N), x.dtype))


# --------------------------------------------------------------------------
# Model forward (layout plumbing is the only non-Pallas work)
# --------------------------------------------------------------------------

def audio_transformer_forward(src, tgt, params, num_heads):
    S, B, in_dim = src.shape
    D = params["emb_w"].shape[1]
    H = num_heads
    Dh = D // H
    M = B * S

    # One transpose per input into a contiguous (batch, seq) row layout so every
    # (batch, head) attention tile is a static slice inside the fused kernels.
    src_rows = jnp.transpose(src, (1, 0, 2)).reshape(M, in_dim)
    tgt_rows = jnp.transpose(tgt, (1, 0, 2)).reshape(M, in_dim)
    x_in = jnp.concatenate([src_rows, tgt_rows], axis=0)           # (2M, in_dim)

    # Intended per-position broadcast of the positional encoding.
    pos_rows = jnp.tile(params["pos"][:S], (2 * B, 1))             # (2M, D)

    emb = embed(x_in, params["emb_w"], params["emb_b"], pos_rows)  # (2M, D)
    memory, out = emb[:M], emb[M:]

    n_enc = len(params["enc_layers"])
    for li, lyr in enumerate(params["enc_layers"]):
        memory = encoder_layer(memory, lyr,
                               (params["enc_norm_g"], params["enc_norm_b"]),
                               B=B, S=S, H=H, Dh=Dh, is_last=(li == n_enc - 1))

    for lyr in params["dec_layers"]:
        out = decoder_layer(out, memory, lyr, B=B, S=S, H=H, Dh=Dh)

    out = final_proj(out, params["dec_norm_g"], params["dec_norm_b"],
                     params["out_w"], params["out_b"])             # (M, in_dim)

    return out.reshape(B, S, in_dim).transpose(1, 0, 2)            # (S, B, in_dim)


# --------------------------------------------------------------------------
# Deterministic parameter init (biases / LN params stored as (1, N) slabs)
# --------------------------------------------------------------------------

def init_params(key, *, input_dim, seq_length, d_model, num_layers, dim_ff):
    keys = iter(jax.random.split(key, 1024))

    def dense(fan_in, fan_out):
        w = jax.random.normal(next(keys), (fan_in, fan_out), jnp.float32) / math.sqrt(fan_in)
        b = jnp.zeros((1, fan_out), jnp.float32)
        return w, b

    def attn(d):
        wq, bq = dense(d, d)
        wk, bk = dense(d, d)
        wv, bv = dense(d, d)
        wo, bo = dense(d, d)
        # Packed in-proj (matches PyTorch's single in_proj_weight, sliced q|k|v).
        return dict(w_qkv=jnp.concatenate([wq, wk, wv], axis=1),
                    b_qkv=jnp.concatenate([bq, bk, bv], axis=1),
                    w_o=wo, b_o=bo)

    def ln(d):
        return jnp.ones((1, d), jnp.float32), jnp.zeros((1, d), jnp.float32)

    emb_w, emb_b = dense(input_dim, d_model)
    pos = jax.random.normal(next(keys), (seq_length, d_model), jnp.float32)

    enc_layers = []
    for _ in range(num_layers):
        a = attn(d_model)
        w1, b1 = dense(d_model, dim_ff)
        w2, b2 = dense(dim_ff, d_model)
        n1g, n1b = ln(d_model)
        n2g, n2b = ln(d_model)
        enc_layers.append(dict(w_qkv=a["w_qkv"], b_qkv=a["b_qkv"],
                               w_o=a["w_o"], b_o=a["b_o"],
                               w1=w1, b1=b1, w2=w2, b2=b2,
                               n1g=n1g, n1b=n1b, n2g=n2g, n2b=n2b))

    dec_layers = []
    for _ in range(num_layers):
        sa = attn(d_model)
        ca = attn(d_model)
        w1, b1 = dense(d_model, dim_ff)
        w2, b2 = dense(dim_ff, d_model)
        n1g, n1b = ln(d_model)
        n2g, n2b = ln(d_model)
        n3g, n3b = ln(d_model)
        dec_layers.append(dict(sa_w_qkv=sa["w_qkv"], sa_b_qkv=sa["b_qkv"],
                               sa_w_o=sa["w_o"], sa_b_o=sa["b_o"],
                               ca_w_qkv=ca["w_qkv"], ca_b_qkv=ca["b_qkv"],
                               ca_w_o=ca["w_o"], ca_b_o=ca["b_o"],
                               w1=w1, b1=b1, w2=w2, b2=b2,
                               n1g=n1g, n1b=n1b, n2g=n2g, n2b=n2b, n3g=n3g, n3b=n3b))

    enc_ng, enc_nb = ln(d_model)
    dec_ng, dec_nb = ln(d_model)
    out_w, out_b = dense(d_model, input_dim)

    return dict(emb_w=emb_w, emb_b=emb_b, pos=pos,
                enc_layers=enc_layers, dec_layers=dec_layers,
                enc_norm_g=enc_ng, enc_norm_b=enc_nb,
                dec_norm_g=dec_ng, dec_norm_b=dec_nb,
                out_w=out_w, out_b=out_b)


# --------------------------------------------------------------------------
# Main
# --------------------------------------------------------------------------

if __name__ == "__main__":
    # Small shapes consistent with the module's forward (seq, batch, input_dim).
    SEQ = 8
    BATCH = 2
    INPUT_DIM = 32
    D_MODEL = 16
    NUM_HEADS = 2
    NUM_LAYERS = 2
    DIM_FF = 32

    # TODO(synk): Dropout (p=0.1) is omitted (identity) — eval-mode semantics only.

    root = jax.random.PRNGKey(0)
    k_params, k_src, k_tgt = jax.random.split(root, 3)

    params = init_params(k_params, input_dim=INPUT_DIM, seq_length=SEQ,
                         d_model=D_MODEL, num_layers=NUM_LAYERS, dim_ff=DIM_FF)

    src = jax.random.normal(k_src, (SEQ, BATCH, INPUT_DIM), jnp.float32)
    tgt = jax.random.normal(k_tgt, (SEQ, BATCH, INPUT_DIM), jnp.float32)

    fwd = jax.jit(functools.partial(audio_transformer_forward, num_heads=NUM_HEADS))
    out = fwd(src, tgt, params=params)
    out = jax.block_until_ready(out)

    assert out.shape == (SEQ, BATCH, INPUT_DIM), out.shape
    assert bool(jnp.all(jnp.isfinite(out)))
    print("KERNEL_OK")
</pallas_src>

<mosaic_0001>
module attributes {stable_mosaic.version = 11 : i64} {
  func.func @_encoder_layer_kernel(%arg0: i32, %arg1: memref<16x16xf32, #tpu.memory_space<vmem>>, %arg2: memref<16x48xf32, #tpu.memory_space<vmem>>, %arg3: memref<1x48xf32, #tpu.memory_space<vmem>>, %arg4: memref<16x16xf32, #tpu.memory_space<vmem>>, %arg5: memref<1x16xf32, #tpu.memory_space<vmem>>, %arg6: memref<1x16xf32, #tpu.memory_space<vmem>>, %arg7: memref<1x16xf32, #tpu.memory_space<vmem>>, %arg8: memref<16x32xf32, #tpu.memory_space<vmem>>, %arg9: memref<1x32xf32, #tpu.memory_space<vmem>>, %arg10: memref<32x16xf32, #tpu.memory_space<vmem>>, %arg11: memref<1x16xf32, #tpu.memory_space<vmem>>, %arg12: memref<1x16xf32, #tpu.memory_space<vmem>>, %arg13: memref<1x16xf32, #tpu.memory_space<vmem>>, %arg14: memref<16x16xf32, #tpu.memory_space<vmem>>, %arg15: memref<16x16xf32, #tpu.memory_space<vmem>>) attributes {dimension_semantics = [#tpu.dimension_semantics<arbitrary>], iteration_bounds = array<i64: 1>, scalar_prefetch = 0 : i64, scratch_operands = 1 : i64, tpu.core_type = #tpu.core_type<tc>, window_params = [{pipeline_mode = #tpu.pipeline_mode<synchronous>, transform_indices = @transform_0, window_bounds = array<i64: 16, 16>}, {pipeline_mode = #tpu.pipeline_mode<synchronous>, transform_indices = @transform_1, window_bounds = array<i64: 16, 48>}, {pipeline_mode = #tpu.pipeline_mode<synchronous>, transform_indices = @transform_2, window_bounds = array<i64: 1, 48>}, {pipeline_mode = #tpu.pipeline_mode<synchronous>, transform_indices = @transform_3, window_bounds = array<i64: 16, 16>}, {pipeline_mode = #tpu.pipeline_mode<synchronous>, transform_indices = @transform_4, window_bounds = array<i64: 1, 16>}, {pipeline_mode = #tpu.pipeline_mode<synchronous>, transform_indices = @transform_5, window_bounds = array<i64: 1, 16>}, {pipeline_mode = #tpu.pipeline_mode<synchronous>, transform_indices = @transform_6, window_bounds = array<i64: 1, 16>}, {pipeline_mode = #tpu.pipeline_mode<synchronous>, transform_indices = @transform_7, window_bounds = array<i64: 16, 32>}, {pipeline_mode = #tpu.pipeline_mode<synchronous>, transform_indices = @transform_8, window_bounds = array<i64: 1, 32>}, {pipeline_mode = #tpu.pipeline_mode<synchronous>, transform_indices = @transform_9, window_bounds = array<i64: 32, 16>}, {pipeline_mode = #tpu.pipeline_mode<synchronous>, transform_indices = @transform_10, window_bounds = array<i64: 1, 16>}, {pipeline_mode = #tpu.pipeline_mode<synchronous>, transform_indices = @transform_11, window_bounds = array<i64: 1, 16>}, {pipeline_mode = #tpu.pipeline_mode<synchronous>, transform_indices = @transform_12, window_bounds = array<i64: 1, 16>}, {pipeline_mode = #tpu.pipeline_mode<synchronous>, transform_indices = @transform_13, window_bounds = array<i64: 16, 16>}]} {
    %c0 = arith.constant 0 : index
    %c0_0 = arith.constant 0 : index
    %0 = vector.load %arg1[%c0, %c0_0] : memref<16x16xf32, #tpu.memory_space<vmem>>, vector<16x16xf32>
    %c0_1 = arith.constant 0 : index
    %c0_2 = arith.constant 0 : index
    %1 = vector.load %arg2[%c0_1, %c0_2] : memref<16x48xf32, #tpu.memory_space<vmem>>, vector<16x48xf32>
    %cst = arith.constant dense<0.000000e+00> : vector<16x48xf32>
    %2 = tpu.matmul %0, %1, %cst {dimension_numbers = #tpu.dot_dimension_numbers<[1], [0], [0], [1], [0, 0, 1, 1], [], []>} : vector<16x16xf32>, vector<16x48xf32>, vector<16x48xf32> -> vector<16x48xf32>
    %c0_3 = arith.constant 0 : index
    %c0_4 = arith.constant 0 : index
    %3 = vector.load %arg3[%c0_3, %c0_4] : memref<1x48xf32, #tpu.memory_space<vmem>>, vector<1x48xf32>
    %4 = vector.broadcast %3 : vector<1x48xf32> to vector<16x48xf32>
    %5 = arith.addf %2, %4 : vector<16x48xf32>
    %6 = vector.extract_strided_slice %5 {offsets = [0, 0], sizes = [16, 16], strides = [1, 1]} : vector<16x48xf32> to vector<16x16xf32>
    %7 = vector.extract_strided_slice %5 {offsets = [0, 16], sizes = [16, 16], strides = [1, 1]} : vector<16x48xf32> to vector<16x16xf32>
    %8 = vector.extract_strided_slice %5 {offsets = [0, 32], sizes = [16, 16], strides = [1, 1]} : vector<16x48xf32> to vector<16x16xf32>
    %9 = vector.extract_strided_slice %6 {offsets = [0, 0], sizes = [8, 8], strides = [1, 1]} : vector<16x16xf32> to vector<8x8xf32>
    %10 = vector.extract_strided_slice %7 {offsets = [0, 0], sizes = [8, 8], strides = [1, 1]} : vector<16x16xf32> to vector<8x8xf32>
    %11 = vector.extract_strided_slice %8 {offsets = [0, 0], sizes = [8, 8], strides = [1, 1]} : vector<16x16xf32> to vector<8x8xf32>
    %12 = tpu.transpose %10, [1, 0] : vector<8x8xf32> -> vector<8x8xf32>
    %cst_5 = arith.constant dense<0.000000e+00> : vector<8x8xf32>
    %13 = tpu.matmul %9, %12, %cst_5 {dimension_numbers = #tpu.dot_dimension_numbers<[1], [0], [0], [1], [0, 0, 1, 1], [], []>} : vector<8x8xf32>, vector<8x8xf32>, vector<8x8xf32> -> vector<8x8xf32>
    %cst_6 = arith.constant 0.353553385 : f32
    %14 = vector.broadcast %cst_6 : f32 to vector<8x8xf32>
    %15 = arith.mulf %13, %14 : vector<8x8xf32>
    %cst_7 = arith.constant dense<0xFF800000> : vector<8xf32>
    %16 = vector.multi_reduction <maximumf>, %15, %cst_7 [1] : vector<8x8xf32> to vector<8xf32>
    %17 = vector.shape_cast %16 : vector<8xf32> to vector<8x1xf32>
    %18 = vector.broadcast %17 : vector<8x1xf32> to vector<8x8xf32>
    %19 = arith.subf %15, %18 : vector<8x8xf32>
    %20 = math.exp %19 : vector<8x8xf32>
    %cst_8 = arith.constant dense<0.000000e+00> : vector<8xf32>
    %21 = vector.multi_reduction <add>, %20, %cst_8 [1] : vector<8x8xf32> to vector<8xf32>
    %22 = vector.shape_cast %21 : vector<8xf32> to vector<8x1xf32>
    %23 = tpu.reciprocal %22 {approx = true} : vector<8x1xf32> -> vector<8x1xf32>
    %24 = vector.broadcast %23 : vector<8x1xf32> to vector<8x8xf32>
    %25 = arith.mulf %20, %24 : vector<8x8xf32>
    %cst_9 = arith.constant dense<0.000000e+00> : vector<8x8xf32>
    %26 = tpu.matmul %25, %11, %cst_9 {dimension_numbers = #tpu.dot_dimension_numbers<[1], [0], [0], [1], [0, 0, 1, 1], [], []>} : vector<8x8xf32>, vector<8x8xf32>, vector<8x8xf32> -> vector<8x8xf32>
    %c0_10 = arith.constant 0 : index
    %c0_11 = arith.constant 0 : index
    %27 = vector.load %arg15[%c0_10, %c0_11] : memref<16x16xf32, #tpu.memory_space<vmem>>, vector<8x8xf32>
    tpu.vector_store %arg15[%c0_10, %c0_11], %26 {strides = array<i32>} : memref<16x16xf32, #tpu.memory_space<vmem>>, vector<8x8xf32>,
    %28 = vector.extract_strided_slice %6 {offsets = [0, 8], sizes = [8, 8], strides = [1, 1]} : vector<16x16xf32> to vector<8x8xf32>
    %29 = vector.extract_strided_slice %7 {offsets = [0, 8], sizes = [8, 8], strides = [1, 1]} : vector<16x16xf32> to vector<8x8xf32>
    %30 = vector.extract_strided_slice %8 {offsets = [0, 8], sizes = [8, 8], strides = [1, 1]} : vector<16x16xf32> to vector<8x8xf32>
    %31 = tpu.transpose %29, [1, 0] : vector<8x8xf32> -> vector<8x8xf32>
    %cst_12 = arith.constant dense<0.000000e+00> : vector<8x8xf32>
    %32 = tpu.matmul %28, %31, %cst_12 {dimension_numbers = #tpu.dot_dimension_numbers<[1], [0], [0], [1], [0, 0, 1, 1], [], []>} : vector<8x8xf32>, vector<8x8xf32>, vector<8x8xf32> -> vector<8x8xf32>
    %cst_13 = arith.constant 0.353553385 : f32
    %33 = vector.broadcast %cst_13 : f32 to vector<8x8xf32>
    %34 = arith.mulf %32, %33 : vector<8x8xf32>
    %cst_14 = arith.constant dense<0xFF800000> : vector<8xf32>
    %35 = vector.multi_reduction <maximumf>, %34, %cst_14 [1] : vector<8x8xf32> to vector<8xf32>
    %36 = vector.shape_cast %35 : vector<8xf32> to vector<8x1xf32>
    %37 = vector.broadcast %36 : vector<8x1xf32> to vector<8x8xf32>
    %38 = arith.subf %34, %37 : vector<8x8xf32>
    %39 = math.exp %38 : vector<8x8xf32>
    %cst_15 = arith.constant dense<0.000000e+00> : vector<8xf32>
    %40 = vector.multi_reduction <add>, %39, %cst_15 [1] : vector<8x8xf32> to vector<8xf32>
    %41 = vector.shape_cast %40 : vector<8xf32> to vector<8x1xf32>
    %42 = tpu.reciprocal %41 {approx = true} : vector<8x1xf32> -> vector<8x1xf32>
    %43 = vector.broadcast %42 : vector<8x1xf32> to vector<8x8xf32>
    %44 = arith.mulf %39, %43 : vector<8x8xf32>
    %cst_16 = arith.constant dense<0.000000e+00> : vector<8x8xf32>
    %45 = tpu.matmul %44, %30, %cst_16 {dimension_numbers = #tpu.dot_dimension_numbers<[1], [0], [0], [1], [0, 0, 1, 1], [], []>} : vector<8x8xf32>, vector<8x8xf32>, vector<8x8xf32> -> vector<8x8xf32>
    %c0_17 = arith.constant 0 : index
    %c8 = arith.constant 8 : index
    %46 = vector.load %arg15[%c0_17, %c8] : memref<16x16xf32, #tpu.memory_space<vmem>>, vector<8x8xf32>
    tpu.vector_store %arg15[%c0_17, %c8], %45 {strides = array<i32>} : memref<16x16xf32, #tpu.memory_space<vmem>>, vector<8x8xf32>,
    %47 = vector.extract_strided_slice %6 {offsets = [8, 0], sizes = [8, 8], strides = [1, 1]} : vector<16x16xf32> to vector<8x8xf32>
    %48 = vector.extract_strided_slice %7 {offsets = [8, 0], sizes = [8, 8], strides = [1, 1]} : vector<16x16xf32> to vector<8x8xf32>
    %49 = vector.extract_strided_slice %8 {offsets = [8, 0], sizes = [8, 8], strides = [1, 1]} : vector<16x16xf32> to vector<8x8xf32>
    %50 = tpu.transpose %48, [1, 0] : vector<8x8xf32> -> vector<8x8xf32>
    %cst_18 = arith.constant dense<0.000000e+00> : vector<8x8xf32>
    %51 = tpu.matmul %47, %50, %cst_18 {dimension_numbers = #tpu.dot_dimension_numbers<[1], [0], [0], [1], [0, 0, 1, 1], [], []>} : vector<8x8xf32>, vector<8x8xf32>, vector<8x8xf32> -> vector<8x8xf32>
    %cst_19 = arith.constant 0.353553385 : f32
    %52 = vector.broadcast %cst_19 : f32 to vector<8x8xf32>
    %53 = arith.mulf %51, %52 : vector<8x8xf32>
    %cst_20 = arith.constant dense<0xFF800000> : vector<8xf32>
    %54 = vector.multi_reduction <maximumf>, %53, %cst_20 [1] : vector<8x8xf32> to vector<8xf32>
    %55 = vector.shape_cast %54 : vector<8xf32> to vector<8x1xf32>
    %56 = vector.broadcast %55 : vector<8x1xf32> to vector<8x8xf32>
    %57 = arith.subf %53, %56 : vector<8x8xf32>
    %58 = math.exp %57 : vector<8x8xf32>
    %cst_21 = arith.constant dense<0.000000e+00> : vector<8xf32>
    %59 = vector.multi_reduction <add>, %58, %cst_21 [1] : vector<8x8xf32> to vector<8xf32>
    %60 = vector.shape_cast %59 : vector<8xf32> to vector<8x1xf32>
    %61 = tpu.reciprocal %60 {approx = true} : vector<8x1xf32> -> vector<8x1xf32>
    %62 = vector.broadcast %61 : vector<8x1xf32> to vector<8x8xf32>
    %63 = arith.mulf %58, %62 : vector<8x8xf32>
    %cst_22 = arith.constant dense<0.000000e+00> : vector<8x8xf32>
    %64 = tpu.matmul %63, %49, %cst_22 {dimension_numbers = #tpu.dot_dimension_numbers<[1], [0], [0], [1], [0, 0, 1, 1], [], []>} : vector<8x8xf32>, vector<8x8xf32>, vector<8x8xf32> -> vector<8x8xf32>
    %c8_23 = arith.constant 8 : index
    %c0_24 = arith.constant 0 : index
    %65 = vector.load %arg15[%c8_23, %c0_24] : memref<16x16xf32, #tpu.memory_space<vmem>>, vector<8x8xf32>
    tpu.vector_store %arg15[%c8_23, %c0_24], %64 {strides = array<i32>} : memref<16x16xf32, #tpu.memory_space<vmem>>, vector<8x8xf32>,
    %66 = vector.extract_strided_slice %6 {offsets = [8, 8], sizes = [8, 8], strides = [1, 1]} : vector<16x16xf32> to vector<8x8xf32>
    %67 = vector.extract_strided_slice %7 {offsets = [8, 8], sizes = [8, 8], strides = [1, 1]} : vector<16x16xf32> to vector<8x8xf32>
    %68 = vector.extract_strided_slice %8 {offsets = [8, 8], sizes = [8, 8], strides = [1, 1]} : vector<16x16xf32> to vector<8x8xf32>
    %69 = tpu.transpose %67, [1, 0] : vector<8x8xf32> -> vector<8x8xf32>
    %cst_25 = arith.constant dense<0.000000e+00> : vector<8x8xf32>
    %70 = tpu.matmul %66, %69, %cst_25 {dimension_numbers = #tpu.dot_dimension_numbers<[1], [0], [0], [1], [0, 0, 1, 1], [], []>} : vector<8x8xf32>, vector<8x8xf32>, vector<8x8xf32> -> vector<8x8xf32>
    %cst_26 = arith.constant 0.353553385 : f32
    %71 = vector.broadcast %cst_26 : f32 to vector<8x8xf32>
    %72 = arith.mulf %70, %71 : vector<8x8xf32>
    %cst_27 = arith.constant dense<0xFF800000> : vector<8xf32>
    %73 = vector.multi_reduction <maximumf>, %72, %cst_27 [1] : vector<8x8xf32> to vector<8xf32>
    %74 = vector.shape_cast %73 : vector<8xf32> to vector<8x1xf32>
    %75 = vector.broadcast %74 : vector<8x1xf32> to vector<8x8xf32>
    %76 = arith.subf %72, %75 : vector<8x8xf32>
    %77 = math.exp %76 : vector<8x8xf32>
    %cst_28 = arith.constant dense<0.000000e+00> : vector<8xf32>
    %78 = vector.multi_reduction <add>, %77, %cst_28 [1] : vector<8x8xf32> to vector<8xf32>
    %79 = vector.shape_cast %78 : vector<8xf32> to vector<8x1xf32>
    %80 = tpu.reciprocal %79 {approx = true} : vector<8x1xf32> -> vector<8x1xf32>
    %81 = vector.broadcast %80 : vector<8x1xf32> to vector<8x8xf32>
    %82 = arith.mulf %77, %81 : vector<8x8xf32>
    %cst_29 = arith.constant dense<0.000000e+00> : vector<8x8xf32>
    %83 = tpu.matmul %82, %68, %cst_29 {dimension_numbers = #tpu.dot_dimension_numbers<[1], [0], [0], [1], [0, 0, 1, 1], [], []>} : vector<8x8xf32>, vector<8x8xf32>, vector<8x8xf32> -> vector<8x8xf32>
    %c8_30 = arith.constant 8 : index
    %c8_31 = arith.constant 8 : index
    %84 = vector.load %arg15[%c8_30, %c8_31] : memref<16x16xf32, #tpu.memory_space<vmem>>, vector<8x8xf32>
    tpu.vector_store %arg15[%c8_30, %c8_31], %83 {strides = array<i32>} : memref<16x16xf32, #tpu.memory_space<vmem>>, vector<8x8xf32>,
    %c0_32 = arith.constant 0 : index
    %c0_33 = arith.constant 0 : index
    %85 = vector.load %arg15[%c0_32, %c0_33] : memref<16x16xf32, #tpu.memory_space<vmem>>, vector<16x16xf32>
    %c0_34 = arith.constant 0 : index
    %c0_35 = arith.constant 0 : index
    %86 = vector.load %arg4[%c0_34, %c0_35] : memref<16x16xf32, #tpu.memory_space<vmem>>, vector<16x16xf32>
    %cst_36 = arith.constant dense<0.000000e+00> : vector<16x16xf32>
    %87 = tpu.matmul %85, %86, %cst_36 {dimension_numbers = #tpu.dot_dimension_numbers<[1], [0], [0], [1], [0, 0, 1, 1], [], []>} : vector<16x16xf32>, vector<16x16xf32>, vector<16x16xf32> -> vector<16x16xf32>
    %c0_37 = arith.constant 0 : index
    %c0_38 = arith.constant 0 : index
    %88 = vector.load %arg5[%c0_37, %c0_38] : memref<1x16xf32, #tpu.memory_space<vmem>>, vector<1x16xf32>
    %89 = vector.broadcast %88 : vector<1x16xf32> to vector<16x16xf32>
    %90 = arith.addf %87, %89 : vector<16x16xf32>
    %91 = arith.addf %0, %90 : vector<16x16xf32>
    %c0_39 = arith.constant 0 : index
    %c0_40 = arith.constant 0 : index
    %92 = vector.load %arg6[%c0_39, %c0_40] : memref<1x16xf32, #tpu.memory_space<vmem>>, vector<1x16xf32>
    %c0_41 = arith.constant 0 : index
    %c0_42 = arith.constant 0 : index
    %93 = vector.load %arg7[%c0_41, %c0_42] : memref<1x16xf32, #tpu.memory_space<vmem>>, vector<1x16xf32>
    %cst_43 = arith.constant dense<0.000000e+00> : vector<16xf32>
    %94 = vector.multi_reduction <add>, %91, %cst_43 [1] : vector<16x16xf32> to vector<16xf32>
    %95 = vector.shape_cast %94 : vector<16xf32> to vector<16x1xf32>
    %cst_44 = arith.constant 1.600000e+01 : f32
    %96 = vector.broadcast %cst_44 : f32 to vector<16x1xf32>
    %97 = arith.divf %95, %96 : vector<16x1xf32>
    %98 = vector.broadcast %97 : vector<16x1xf32> to vector<16x16xf32>
    %99 = arith.subf %91, %98 : vector<16x16xf32>
    %100 = arith.mulf %99, %99 : vector<16x16xf32>
    %cst_45 = arith.constant dense<0.000000e+00> : vector<16xf32>
    %101 = vector.multi_reduction <add>, %100, %cst_45 [1] : vector<16x16xf32> to vector<16xf32>
    %102 = vector.shape_cast %101 : vector<16xf32> to vector<16x1xf32>
    %cst_46 = arith.constant 1.600000e+01 : f32
    %103 = vector.broadcast %cst_46 : f32 to vector<16x1xf32>
    %104 = arith.divf %102, %103 : vector<16x1xf32>
    %105 = vector.broadcast %97 : vector<16x1xf32> to vector<16x16xf32>
    %106 = arith.subf %91, %105 : vector<16x16xf32>
    %cst_47 = arith.constant 9.99999974E-6 : f32
    %107 = vector.broadcast %cst_47 : f32 to vector<16x1xf32>
    %108 = arith.addf %104, %107 : vector<16x1xf32>
    %109 = math.rsqrt %108 : vector<16x1xf32>
    %110 = vector.broadcast %109 : vector<16x1xf32> to vector<16x16xf32>
    %111 = arith.mulf %106, %110 : vector<16x16xf32>
    %112 = vector.broadcast %92 : vector<1x16xf32> to vector<16x16xf32>
    %113 = arith.mulf %111, %112 : vector<16x16xf32>
    %114 = vector.broadcast %93 : vector<1x16xf32> to vector<16x16xf32>
    %115 = arith.addf %113, %114 : vector<16x16xf32>
    %c0_48 = arith.constant 0 : index
    %c0_49 = arith.constant 0 : index
    %116 = vector.load %arg8[%c0_48, %c0_49] : memref<16x32xf32, #tpu.memory_space<vmem>>, vector<16x32xf32>
    %cst_50 = arith.constant dense<0.000000e+00> : vector<16x32xf32>
    %117 = tpu.matmul %115, %116, %cst_50 {dimension_numbers = #tpu.dot_dimension_numbers<[1], [0], [0], [1], [0, 0, 1, 1], [], []>} : vector<16x16xf32>, vector<16x32xf32>, vector<16x32xf32> -> vector<16x32xf32>
    %c0_51 = arith.constant 0 : index
    %c0_52 = arith.constant 0 : index
    %118 = vector.load %arg9[%c0_51, %c0_52] : memref<1x32xf32, #tpu.memory_space<vmem>>, vector<1x32xf32>
    %119 = vector.broadcast %118 : vector<1x32xf32> to vector<16x32xf32>
    %120 = arith.addf %117, %119 : vector<16x32xf32>
    %cst_53 = arith.constant 0.000000e+00 : f32
    %121 = vector.broadcast %cst_53 : f32 to vector<16x32xf32>
    %122 = arith.maximumf %120, %121 : vector<16x32xf32>
    %c0_54 = arith.constant 0 : index
    %c0_55 = arith.constant 0 : index
    %123 = vector.load %arg10[%c0_54, %c0_55] : memref<32x16xf32, #tpu.memory_space<vmem>>, vector<32x16xf32>
    %cst_56 = arith.constant dense<0.000000e+00> : vector<16x16xf32>
    %124 = tpu.matmul %122, %123, %cst_56 {dimension_numbers = #tpu.dot_dimension_numbers<[1], [0], [0], [1], [0, 0, 1, 1], [], []>} : vector<16x32xf32>, vector<32x16xf32>, vector<16x16xf32> -> vector<16x16xf32>
    %c0_57 = arith.constant 0 : index
    %c0_58 = arith.constant 0 : index
    %125 = vector.load %arg11[%c0_57, %c0_58] : memref<1x16xf32, #tpu.memory_space<vmem>>, vector<1x16xf32>
    %126 = vector.broadcast %125 : vector<1x16xf32> to vector<16x16xf32>
    %127 = arith.addf %124, %126 : vector<16x16xf32>
    %128 = arith.addf %115, %127 : vector<16x16xf32>
    %c0_59 = arith.constant 0 : index
    %c0_60 = arith.constant 0 : index
    %129 = vector.load %arg12[%c0_59, %c0_60] : memref<1x16xf32, #tpu.memory_space<vmem>>, vector<1x16xf32>
    %c0_61 = arith.constant 0 : index
    %c0_62 = arith.constant 0 : index
    %130 = vector.load %arg13[%c0_61, %c0_62] : memref<1x16xf32, #tpu.memory_space<vmem>>, vector<1x16xf32>
    %cst_63 = arith.constant dense<0.000000e+00> : vector<16xf32>
    %131 = vector.multi_reduction <add>, %128, %cst_63 [1] : vector<16x16xf32> to vector<16xf32>
    %132 = vector.shape_cast %131 : vector<16xf32> to vector<16x1xf32>
    %cst_64 = arith.constant 1.600000e+01 : f32
    %133 = vector.broadcast %cst_64 : f32 to vector<16x1xf32>
    %134 = arith.divf %132, %133 : vector<16x1xf32>
    %135 = vector.broadcast %134 : vector<16x1xf32> to vector<16x16xf32>
    %136 = arith.subf %128, %135 : vector<16x16xf32>
    %137 = arith.mulf %136, %136 : vector<16x16xf32>
    %cst_65 = arith.constant dense<0.000000e+00> : vector<16xf32>
    %138 = vector.multi_reduction <add>, %137, %cst_65 [1] : vector<16x16xf32> to vector<16xf32>
    %139 = vector.shape_cast %138 : vector<16xf32> to vector<16x1xf32>
    %cst_66 = arith.constant 1.600000e+01 : f32
    %140 = vector.broadcast %cst_66 : f32 to vector<16x1xf32>
    %141 = arith.divf %139, %140 : vector<16x1xf32>
    %142 = vector.broadcast %134 : vector<16x1xf32> to vector<16x16xf32>
    %143 = arith.subf %128, %142 : vector<16x16xf32>
    %cst_67 = arith.constant 9.99999974E-6 : f32
    %144 = vector.broadcast %cst_67 : f32 to vector<16x1xf32>
    %145 = arith.addf %141, %144 : vector<16x1xf32>
    %146 = math.rsqrt %145 : vector<16x1xf32>
    %147 = vector.broadcast %146 : vector<16x1xf32> to vector<16x16xf32>
    %148 = arith.mulf %143, %147 : vector<16x16xf32>
    %149 = vector.broadcast %129 : vector<1x16xf32> to vector<16x16xf32>
    %150 = arith.mulf %148, %149 : vector<16x16xf32>
    %151 = vector.broadcast %130 : vector<1x16xf32> to vector<16x16xf32>
    %152 = arith.addf %150, %151 : vector<16x16xf32>
    %c0_68 = arith.constant 0 : index
    %c0_69 = arith.constant 0 : index
    %153 = vector.load %arg14[%c0_68, %c0_69] : memref<16x16xf32, #tpu.memory_space<vmem>>, vector<16x16xf32>
    tpu.vector_store %arg14[%c0_68, %c0_69], %152 {strides = array<i32>} : memref<16x16xf32, #tpu.memory_space<vmem>>, vector<16x16xf32>,
    return
  }
  func.func @transform_0(%arg0: i32) -> (i32, i32) {
    %c0_i32 = arith.constant 0 : i32
    %c0_i32_0 = arith.constant 0 : i32
    %c0_i32_1 = arith.constant 0 : i32
    return %c0_i32, %c0_i32_0 : i32, i32
  }
  func.func @transform_1(%arg0: i32) -> (i32, i32) {
    %c0_i32 = arith.constant 0 : i32
    %c0_i32_0 = arith.constant 0 : i32
    %c0_i32_1 = arith.constant 0 : i32
    return %c0_i32, %c0_i32_0 : i32, i32
  }
  func.func @transform_2(%arg0: i32) -> (i32, i32) {
    %c0_i32 = arith.constant 0 : i32
    %c0_i32_0 = arith.constant 0 : i32
    %c0_i32_1 = arith.constant 0 : i32
    return %c0_i32, %c0_i32_0 : i32, i32
  }
  func.func @transform_3(%arg0: i32) -> (i32, i32) {
    %c0_i32 = arith.constant 0 : i32
    %c0_i32_0 = arith.constant 0 : i32
    %c0_i32_1 = arith.constant 0 : i32
    return %c0_i32, %c0_i32_0 : i32, i32
  }
  func.func @transform_4(%arg0: i32) -> (i32, i32) {
    %c0_i32 = arith.constant 0 : i32
    %c0_i32_0 = arith.constant 0 : i32
    %c0_i32_1 = arith.constant 0 : i32
    return %c0_i32, %c0_i32_0 : i32, i32
  }
  func.func @transform_5(%arg0: i32) -> (i32, i32) {
    %c0_i32 = arith.constant 0 : i32
    %c0_i32_0 = arith.constant 0 : i32
    %c0_i32_1 = arith.constant 0 : i32
    return %c0_i32, %c0_i32_0 : i32, i32
  }
  func.func @transform_6(%arg0: i32) -> (i32, i32) {
    %c0_i32 = arith.constant 0 : i32
    %c0_i32_0 = arith.constant 0 : i32
    %c0_i32_1 = arith.constant 0 : i32
    return %c0_i32, %c0_i32_0 : i32, i32
  }
  func.func @transform_7(%arg0: i32) -> (i32, i32) {
    %c0_i32 = arith.constant 0 : i32
    %c0_i32_0 = arith.constant 0 : i32
    %c0_i32_1 = arith.constant 0 : i32
    return %c0_i32, %c0_i32_0 : i32, i32
  }
  func.func @transform_8(%arg0: i32) -> (i32, i32) {
    %c0_i32 = arith.constant 0 : i32
    %c0_i32_0 = arith.constant 0 : i32
    %c0_i32_1 = arith.constant 0 : i32
    return %c0_i32, %c0_i32_0 : i32, i32
  }
  func.func @transform_9(%arg0: i32) -> (i32, i32) {
    %c0_i32 = arith.constant 0 : i32
    %c0_i32_0 = arith.constant 0 : i32
    %c0_i32_1 = arith.constant 0 : i32
    return %c0_i32, %c0_i32_0 : i32, i32
  }
  func.func @transform_10(%arg0: i32) -> (i32, i32) {
    %c0_i32 = arith.constant 0 : i32
    %c0_i32_0 = arith.constant 0 : i32
    %c0_i32_1 = arith.constant 0 : i32
    return %c0_i32, %c0_i32_0 : i32, i32
  }
  func.func @transform_11(%arg0: i32) -> (i32, i32) {
    %c0_i32 = arith.constant 0 : i32
    %c0_i32_0 = arith.constant 0 : i32
    %c0_i32_1 = arith.constant 0 : i32
    return %c0_i32, %c0_i32_0 : i32, i32
  }
  func.func @transform_12(%arg0: i32) -> (i32, i32) {
    %c0_i32 = arith.constant 0 : i32
    %c0_i32_0 = arith.constant 0 : i32
    %c0_i32_1 = arith.constant 0 : i32
    return %c0_i32, %c0_i32_0 : i32, i32
  }
  func.func @transform_13(%arg0: i32) -> (i32, i32) {
    %c0_i32 = arith.constant 0 : i32
    %c0_i32_0 = arith.constant 0 : i32
    %c0_i32_1 = arith.constant 0 : i32
    return %c0_i32, %c0_i32_0 : i32, i32
  }
}

module attributes {stable_mosaic.version = 11 : i64} {
  func.func @_encoder_layer_kernel(%arg0: i32, %arg1: memref<16x16xf32, #tpu.memory_space<vmem>>, %arg2: memref<16x48xf32, #tpu.memory_space<vmem>>, %arg3: memref<1x48xf32, #tpu.memory_space<vmem>>, %arg4: memref<16x16xf32, #tpu.memory_space<vmem>>, %arg5: memref<1x16xf32, #tpu.memory_space<vmem>>, %arg6: memref<1x16xf32, #tpu.memory_space<vmem>>, %arg7: memref<1x16xf32, #tpu.memory_space<vmem>>, %arg8: memref<16x32xf32, #tpu.memory_space<vmem>>, %arg9: memref<1x32xf32, #tpu.memory_space<vmem>>, %arg10: memref<32x16xf32, #tpu.memory_space<vmem>>, %arg11: memref<1x16xf32, #tpu.memory_space<vmem>>, %arg12: memref<1x16xf32, #tpu.memory_space<vmem>>, %arg13: memref<1x16xf32, #tpu.memory_space<vmem>>, %arg14: memref<1x16xf32, #tpu.memory_space<vmem>>, %arg15: memref<1x16xf32, #tpu.memory_space<vmem>>, %arg16: memref<16x16xf32, #tpu.memory_space<vmem>>, %arg17: memref<16x16xf32, #tpu.memory_space<vmem>>) attributes {dimension_semantics = [#tpu.dimension_semantics<arbitrary>], iteration_bounds = array<i64: 1>, scalar_prefetch = 0 : i64, scratch_operands = 1 : i64, tpu.core_type = #tpu.core_type<tc>, window_params = [{pipeline_mode = #tpu.pipeline_mode<synchronous>, transform_indices = @transform_0, window_bounds = array<i64: 16, 16>}, {pipeline_mode = #tpu.pipeline_mode<synchronous>, transform_indices = @transform_1, window_bounds = array<i64: 16, 48>}, {pipeline_mode = #tpu.pipeline_mode<synchronous>, transform_indices = @transform_2, window_bounds = array<i64: 1, 48>}, {pipeline_mode = #tpu.pipeline_mode<synchronous>, transform_indices = @transform_3, window_bounds = array<i64: 16, 16>}, {pipeline_mode = #tpu.pipeline_mode<synchronous>, transform_indices = @transform_4, window_bounds = array<i64: 1, 16>}, {pipeline_mode = #tpu.pipeline_mode<synchronous>, transform_indices = @transform_5, window_bounds = array<i64: 1, 16>}, {pipeline_mode = #tpu.pipeline_mode<synchronous>, transform_indices = @transform_6, window_bounds = array<i64: 1, 16>}, {pipeline_mode = #tpu.pipeline_mode<synchronous>, transform_indices = @transform_7, window_bounds = array<i64: 16, 32>}, {pipeline_mode = #tpu.pipeline_mode<synchronous>, transform_indices = @transform_8, window_bounds = array<i64: 1, 32>}, {pipeline_mode = #tpu.pipeline_mode<synchronous>, transform_indices = @transform_9, window_bounds = array<i64: 32, 16>}, {pipeline_mode = #tpu.pipeline_mode<synchronous>, transform_indices = @transform_10, window_bounds = array<i64: 1, 16>}, {pipeline_mode = #tpu.pipeline_mode<synchronous>, transform_indices = @transform_11, window_bounds = array<i64: 1, 16>}, {pipeline_mode = #tpu.pipeline_mode<synchronous>, transform_indices = @transform_12, window_bounds = array<i64: 1, 16>}, {pipeline_mode = #tpu.pipeline_mode<synchronous>, transform_indices = @transform_13, window_bounds = array<i64: 1, 16>}, {pipeline_mode = #tpu.pipeline_mode<synchronous>, transform_indices = @transform_14, window_bounds = array<i64: 1, 16>}, {pipeline_mode = #tpu.pipeline_mode<synchronous>, transform_indices = @transform_15, window_bounds = array<i64: 16, 16>}]} {
    %c0 = arith.constant 0 : index
    %c0_0 = arith.constant 0 : index
    %0 = vector.load %arg1[%c0, %c0_0] : memref<16x16xf32, #tpu.memory_space<vmem>>, vector<16x16xf32>
    %c0_1 = arith.constant 0 : index
    %c0_2 = arith.constant 0 : index
    %1 = vector.load %arg2[%c0_1, %c0_2] : memref<16x48xf32, #tpu.memory_space<vmem>>, vector<16x48xf32>
    %cst = arith.constant dense<0.000000e+00> : vector<16x48xf32>
    %2 = tpu.matmul %0, %1, %cst {dimension_numbers = #tpu.dot_dimension_numbers<[1], [0], [0], [1], [0, 0, 1, 1], [], []>} : vector<16x16xf32>, vector<16x48xf32>, vector<16x48xf32> -> vector<16x48xf32>
    %c0_3 = arith.constant 0 : index
    %c0_4 = arith.constant 0 : index
    %3 = vector.load %arg3[%c0_3, %c0_4] : memref<1x48xf32, #tpu.memory_space<vmem>>, vector<1x48xf32>
    %4 = vector.broadcast %3 : vector<1x48xf32> to vector<16x48xf32>
    %5 = arith.addf %2, %4 : vector<16x48xf32>
    %6 = vector.extract_strided_slice %5 {offsets = [0, 0], sizes = [16, 16], strides = [1, 1]} : vector<16x48xf32> to vector<16x16xf32>
    %7 = vector.extract_strided_slice %5 {offsets = [0, 16], sizes = [16, 16], strides = [1, 1]} : vector<16x48xf32> to vector<16x16xf32>
    %8 = vector.extract_strided_slice %5 {offsets = [0, 32], sizes = [16, 16], strides = [1, 1]} : vector<16x48xf32> to vector<16x16xf32>
    %9 = vector.extract_strided_slice %6 {offsets = [0, 0], sizes = [8, 8], strides = [1, 1]} : vector<16x16xf32> to vector<8x8xf32>
    %10 = vector.extract_strided_slice %7 {offsets = [0, 0], sizes = [8, 8], strides = [1, 1]} : vector<16x16xf32> to vector<8x8xf32>
    %11 = vector.extract_strided_slice %8 {offsets = [0, 0], sizes = [8, 8], strides = [1, 1]} : vector<16x16xf32> to vector<8x8xf32>
    %12 = tpu.transpose %10, [1, 0] : vector<8x8xf32> -> vector<8x8xf32>
    %cst_5 = arith.constant dense<0.000000e+00> : vector<8x8xf32>
    %13 = tpu.matmul %9, %12, %cst_5 {dimension_numbers = #tpu.dot_dimension_numbers<[1], [0], [0], [1], [0, 0, 1, 1], [], []>} : vector<8x8xf32>, vector<8x8xf32>, vector<8x8xf32> -> vector<8x8xf32>
    %cst_6 = arith.constant 0.353553385 : f32
    %14 = vector.broadcast %cst_6 : f32 to vector<8x8xf32>
    %15 = arith.mulf %13, %14 : vector<8x8xf32>
    %cst_7 = arith.constant dense<0xFF800000> : vector<8xf32>
    %16 = vector.multi_reduction <maximumf>, %15, %cst_7 [1] : vector<8x8xf32> to vector<8xf32>
    %17 = vector.shape_cast %16 : vector<8xf32> to vector<8x1xf32>
    %18 = vector.broadcast %17 : vector<8x1xf32> to vector<8x8xf32>
    %19 = arith.subf %15, %18 : vector<8x8xf32>
    %20 = math.exp %19 : vector<8x8xf32>
    %cst_8 = arith.constant dense<0.000000e+00> : vector<8xf32>
    %21 = vector.multi_reduction <add>, %20, %cst_8 [1] : vector<8x8xf32> to vector<8xf32>
    %22 = vector.shape_cast %21 : vector<8xf32> to vector<8x1xf32>
    %23 = tpu.reciprocal %22 {approx = true} : vector<8x1xf32> -> vector<8x1xf32>
    %24 = vector.broadcast %23 : vector<8x1xf32> to vector<8x8xf32>
    %25 = arith.mulf %20, %24 : vector<8x8xf32>
    %cst_9 = arith.constant dense<0.000000e+00> : vector<8x8xf32>
    %26 = tpu.matmul %25, %11, %cst_9 {dimension_numbers = #tpu.dot_dimension_numbers<[1], [0], [0], [1], [0, 0, 1, 1], [], []>} : vector<8x8xf32>, vector<8x8xf32>, vector<8x8xf32> -> vector<8x8xf32>
    %c0_10 = arith.constant 0 : index
    %c0_11 = arith.constant 0 : index
    %27 = vector.load %arg17[%c0_10, %c0_11] : memref<16x16xf32, #tpu.memory_space<vmem>>, vector<8x8xf32>
    tpu.vector_store %arg17[%c0_10, %c0_11], %26 {strides = array<i32>} : memref<16x16xf32, #tpu.memory_space<vmem>>, vector<8x8xf32>,
    %28 = vector.extract_strided_slice %6 {offsets = [0, 8], sizes = [8, 8], strides = [1, 1]} : vector<16x16xf32> to vector<8x8xf32>
    %29 = vector.extract_strided_slice %7 {offsets = [0, 8], sizes = [8, 8], strides = [1, 1]} : vector<16x16xf32> to vector<8x8xf32>
    %30 = vector.extract_strided_slice %8 {offsets = [0, 8], sizes = [8, 8], strides = [1, 1]} : vector<16x16xf32> to vector<8x8xf32>
    %31 = tpu.transpose %29, [1, 0] : vector<8x8xf32> -> vector<8x8xf32>
    %cst_12 = arith.constant dense<0.000000e+00> : vector<8x8xf32>
    %32 = tpu.matmul %28, %31, %cst_12 {dimension_numbers = #tpu.dot_dimension_numbers<[1], [0], [0], [1], [0, 0, 1, 1], [], []>} : vector<8x8xf32>, vector<8x8xf32>, vector<8x8xf32> -> vector<8x8xf32>
    %cst_13 = arith.constant 0.353553385 : f32
    %33 = vector.broadcast %cst_13 : f32 to vector<8x8xf32>
    %34 = arith.mulf %32, %33 : vector<8x8xf32>
    %cst_14 = arith.constant dense<0xFF800000> : vector<8xf32>
    %35 = vector.multi_reduction <maximumf>, %34, %cst_14 [1] : vector<8x8xf32> to vector<8xf32>
    %36 = vector.shape_cast %35 : vector<8xf32> to vector<8x1xf32>
    %37 = vector.broadcast %36 : vector<8x1xf32> to vector<8x8xf32>
    %38 = arith.subf %34, %37 : vector<8x8xf32>
    %39 = math.exp %38 : vector<8x8xf32>
    %cst_15 = arith.constant dense<0.000000e+00> : vector<8xf32>
    %40 = vector.multi_reduction <add>, %39, %cst_15 [1] : vector<8x8xf32> to vector<8xf32>
    %41 = vector.shape_cast %40 : vector<8xf32> to vector<8x1xf32>
    %42 = tpu.reciprocal %41 {approx = true} : vector<8x1xf32> -> vector<8x1xf32>
    %43 = vector.broadcast %42 : vector<8x1xf32> to vector<8x8xf32>
    %44 = arith.mulf %39, %43 : vector<8x8xf32>
    %cst_16 = arith.constant dense<0.000000e+00> : vector<8x8xf32>
    %45 = tpu.matmul %44, %30, %cst_16 {dimension_numbers = #tpu.dot_dimension_numbers<[1], [0], [0], [1], [0, 0, 1, 1], [], []>} : vector<8x8xf32>, vector<8x8xf32>, vector<8x8xf32> -> vector<8x8xf32>
    %c0_17 = arith.constant 0 : index
    %c8 = arith.constant 8 : index
    %46 = vector.load %arg17[%c0_17, %c8] : memref<16x16xf32, #tpu.memory_space<vmem>>, vector<8x8xf32>
    tpu.vector_store %arg17[%c0_17, %c8], %45 {strides = array<i32>} : memref<16x16xf32, #tpu.memory_space<vmem>>, vector<8x8xf32>,
    %47 = vector.extract_strided_slice %6 {offsets = [8, 0], sizes = [8, 8], strides = [1, 1]} : vector<16x16xf32> to vector<8x8xf32>
    %48 = vector.extract_strided_slice %7 {offsets = [8, 0], sizes = [8, 8], strides = [1, 1]} : vector<16x16xf32> to vector<8x8xf32>
    %49 = vector.extract_strided_slice %8 {offsets = [8, 0], sizes = [8, 8], strides = [1, 1]} : vector<16x16xf32> to vector<8x8xf32>
    %50 = tpu.transpose %48, [1, 0] : vector<8x8xf32> -> vector<8x8xf32>
    %cst_18 = arith.constant dense<0.000000e+00> : vector<8x8xf32>
    %51 = tpu.matmul %47, %50, %cst_18 {dimension_numbers = #tpu.dot_dimension_numbers<[1], [0], [0], [1], [0, 0, 1, 1], [], []>} : vector<8x8xf32>, vector<8x8xf32>, vector<8x8xf32> -> vector<8x8xf32>
    %cst_19 = arith.constant 0.353553385 : f32
    %52 = vector.broadcast %cst_19 : f32 to vector<8x8xf32>
    %53 = arith.mulf %51, %52 : vector<8x8xf32>
    %cst_20 = arith.constant dense<0xFF800000> : vector<8xf32>
    %54 = vector.multi_reduction <maximumf>, %53, %cst_20 [1] : vector<8x8xf32> to vector<8xf32>
    %55 = vector.shape_cast %54 : vector<8xf32> to vector<8x1xf32>
    %56 = vector.broadcast %55 : vector<8x1xf32> to vector<8x8xf32>
    %57 = arith.subf %53, %56 : vector<8x8xf32>
    %58 = math.exp %57 : vector<8x8xf32>
    %cst_21 = arith.constant dense<0.000000e+00> : vector<8xf32>
    %59 = vector.multi_reduction <add>, %58, %cst_21 [1] : vector<8x8xf32> to vector<8xf32>
    %60 = vector.shape_cast %59 : vector<8xf32> to vector<8x1xf32>
    %61 = tpu.reciprocal %60 {approx = true} : vector<8x1xf32> -> vector<8x1xf32>
    %62 = vector.broadcast %61 : vector<8x1xf32> to vector<8x8xf32>
    %63 = arith.mulf %58, %62 : vector<8x8xf32>
    %cst_22 = arith.constant dense<0.000000e+00> : vector<8x8xf32>
    %64 = tpu.matmul %63, %49, %cst_22 {dimension_numbers = #tpu.dot_dimension_numbers<[1], [0], [0], [1], [0, 0, 1, 1], [], []>} : vector<8x8xf32>, vector<8x8xf32>, vector<8x8xf32> -> vector<8x8xf32>
    %c8_23 = arith.constant 8 : index
    %c0_24 = arith.constant 0 : index
    %65 = vector.load %arg17[%c8_23, %c0_24] : memref<16x16xf32, #tpu.memory_space<vmem>>, vector<8x8xf32>
    tpu.vector_store %arg17[%c8_23, %c0_24], %64 {strides = array<i32>} : memref<16x16xf32, #tpu.memory_space<vmem>>, vector<8x8xf32>,
    %66 = vector.extract_strided_slice %6 {offsets = [8, 8], sizes = [8, 8], strides = [1, 1]} : vector<16x16xf32> to vector<8x8xf32>
    %67 = vector.extract_strided_slice %7 {offsets = [8, 8], sizes = [8, 8], strides = [1, 1]} : vector<16x16xf32> to vector<8x8xf32>
    %68 = vector.extract_strided_slice %8 {offsets = [8, 8], sizes = [8, 8], strides = [1, 1]} : vector<16x16xf32> to vector<8x8xf32>
    %69 = tpu.transpose %67, [1, 0] : vector<8x8xf32> -> vector<8x8xf32>
    %cst_25 = arith.constant dense<0.000000e+00> : vector<8x8xf32>
    %70 = tpu.matmul %66, %69, %cst_25 {dimension_numbers = #tpu.dot_dimension_numbers<[1], [0], [0], [1], [0, 0, 1, 1], [], []>} : vector<8x8xf32>, vector<8x8xf32>, vector<8x8xf32> -> vector<8x8xf32>
    %cst_26 = arith.constant 0.353553385 : f32
    %71 = vector.broadcast %cst_26 : f32 to vector<8x8xf32>
    %72 = arith.mulf %70, %71 : vector<8x8xf32>
    %cst_27 = arith.constant dense<0xFF800000> : vector<8xf32>
    %73 = vector.multi_reduction <maximumf>, %72, %cst_27 [1] : vector<8x8xf32> to vector<8xf32>
    %74 = vector.shape_cast %73 : vector<8xf32> to vector<8x1xf32>
    %75 = vector.broadcast %74 : vector<8x1xf32> to vector<8x8xf32>
    %76 = arith.subf %72, %75 : vector<8x8xf32>
    %77 = math.exp %76 : vector<8x8xf32>
    %cst_28 = arith.constant dense<0.000000e+00> : vector<8xf32>
    %78 = vector.multi_reduction <add>, %77, %cst_28 [1] : vector<8x8xf32> to vector<8xf32>
    %79 = vector.shape_cast %78 : vector<8xf32> to vector<8x1xf32>
    %80 = tpu.reciprocal %79 {approx = true} : vector<8x1xf32> -> vector<8x1xf32>
    %81 = vector.broadcast %80 : vector<8x1xf32> to vector<8x8xf32>
    %82 = arith.mulf %77, %81 : vector<8x8xf32>
    %cst_29 = arith.constant dense<0.000000e+00> : vector<8x8xf32>
    %83 = tpu.matmul %82, %68, %cst_29 {dimension_numbers = #tpu.dot_dimension_numbers<[1], [0], [0], [1], [0, 0, 1, 1], [], []>} : vector<8x8xf32>, vector<8x8xf32>, vector<8x8xf32> -> vector<8x8xf32>
    %c8_30 = arith.constant 8 : index
    %c8_31 = arith.constant 8 : index
    %84 = vector.load %arg17[%c8_30, %c8_31] : memref<16x16xf32, #tpu.memory_space<vmem>>, vector<8x8xf32>
    tpu.vector_store %arg17[%c8_30, %c8_31], %83 {strides = array<i32>} : memref<16x16xf32, #tpu.memory_space<vmem>>, vector<8x8xf32>,
    %c0_32 = arith.constant 0 : index
    %c0_33 = arith.constant 0 : index
    %85 = vector.load %arg17[%c0_32, %c0_33] : memref<16x16xf32, #tpu.memory_space<vmem>>, vector<16x16xf32>
    %c0_34 = arith.constant 0 : index
    %c0_35 = arith.constant 0 : index
    %86 = vector.load %arg4[%c0_34, %c0_35] : memref<16x16xf32, #tpu.memory_space<vmem>>, vector<16x16xf32>
    %cst_36 = arith.constant dense<0.000000e+00> : vector<16x16xf32>
    %87 = tpu.matmul %85, %86, %cst_36 {dimension_numbers = #tpu.dot_dimension_numbers<[1], [0], [0], [1], [0, 0, 1, 1], [], []>} : vector<16x16xf32>, vector<16x16xf32>, vector<16x16xf32> -> vector<16x16xf32>
    %c0_37 = arith.constant 0 : index
    %c0_38 = arith.constant 0 : index
    %88 = vector.load %arg5[%c0_37, %c0_38] : memref<1x16xf32, #tpu.memory_space<vmem>>, vector<1x16xf32>
    %89 = vector.broadcast %88 : vector<1x16xf32> to vector<16x16xf32>
    %90 = arith.addf %87, %89 : vector<16x16xf32>
    %91 = arith.addf %0, %90 : vector<16x16xf32>
    %c0_39 = arith.constant 0 : index
    %c0_40 = arith.constant 0 : index
    %92 = vector.load %arg6[%c0_39, %c0_40] : memref<1x16xf32, #tpu.memory_space<vmem>>, vector<1x16xf32>
    %c0_41 = arith.constant 0 : index
    %c0_42 = arith.constant 0 : index
    %93 = vector.load %arg7[%c0_41, %c0_42] : memref<1x16xf32, #tpu.memory_space<vmem>>, vector<1x16xf32>
    %cst_43 = arith.constant dense<0.000000e+00> : vector<16xf32>
    %94 = vector.multi_reduction <add>, %91, %cst_43 [1] : vector<16x16xf32> to vector<16xf32>
    %95 = vector.shape_cast %94 : vector<16xf32> to vector<16x1xf32>
    %cst_44 = arith.constant 1.600000e+01 : f32
    %96 = vector.broadcast %cst_44 : f32 to vector<16x1xf32>
    %97 = arith.divf %95, %96 : vector<16x1xf32>
    %98 = vector.broadcast %97 : vector<16x1xf32> to vector<16x16xf32>
    %99 = arith.subf %91, %98 : vector<16x16xf32>
    %100 = arith.mulf %99, %99 : vector<16x16xf32>
    %cst_45 = arith.constant dense<0.000000e+00> : vector<16xf32>
    %101 = vector.multi_reduction <add>, %100, %cst_45 [1] : vector<16x16xf32> to vector<16xf32>
    %102 = vector.shape_cast %101 : vector<16xf32> to vector<16x1xf32>
    %cst_46 = arith.constant 1.600000e+01 : f32
    %103 = vector.broadcast %cst_46 : f32 to vector<16x1xf32>
    %104 = arith.divf %102, %103 : vector<16x1xf32>
    %105 = vector.broadcast %97 : vector<16x1xf32> to vector<16x16xf32>
    %106 = arith.subf %91, %105 : vector<16x16xf32>
    %cst_47 = arith.constant 9.99999974E-6 : f32
    %107 = vector.broadcast %cst_47 : f32 to vector<16x1xf32>
    %108 = arith.addf %104, %107 : vector<16x1xf32>
    %109 = math.rsqrt %108 : vector<16x1xf32>
    %110 = vector.broadcast %109 : vector<16x1xf32> to vector<16x16xf32>
    %111 = arith.mulf %106, %110 : vector<16x16xf32>
    %112 = vector.broadcast %92 : vector<1x16xf32> to vector<16x16xf32>
    %113 = arith.mulf %111, %112 : vector<16x16xf32>
    %114 = vector.broadcast %93 : vector<1x16xf32> to vector<16x16xf32>
    %115 = arith.addf %113, %114 : vector<16x16xf32>
    %c0_48 = arith.constant 0 : index
    %c0_49 = arith.constant 0 : index
    %116 = vector.load %arg8[%c0_48, %c0_49] : memref<16x32xf32, #tpu.memory_space<vmem>>, vector<16x32xf32>
    %cst_50 = arith.constant dense<0.000000e+00> : vector<16x32xf32>
    %117 = tpu.matmul %115, %116, %cst_50 {dimension_numbers = #tpu.dot_dimension_numbers<[1], [0], [0], [1], [0, 0, 1, 1], [], []>} : vector<16x16xf32>, vector<16x32xf32>, vector<16x32xf32> -> vector<16x32xf32>
    %c0_51 = arith.constant 0 : index
    %c0_52 = arith.constant 0 : index
    %118 = vector.load %arg9[%c0_51, %c0_52] : memref<1x32xf32, #tpu.memory_space<vmem>>, vector<1x32xf32>
    %119 = vector.broadcast %118 : vector<1x32xf32> to vector<16x32xf32>
    %120 = arith.addf %117, %119 : vector<16x32xf32>
    %cst_53 = arith.constant 0.000000e+00 : f32
    %121 = vector.broadcast %cst_53 : f32 to vector<16x32xf32>
    %122 = arith.maximumf %120, %121 : vector<16x32xf32>
    %c0_54 = arith.constant 0 : index
    %c0_55 = arith.constant 0 : index
    %123 = vector.load %arg10[%c0_54, %c0_55] : memref<32x16xf32, #tpu.memory_space<vmem>>, vector<32x16xf32>
    %cst_56 = arith.constant dense<0.000000e+00> : vector<16x16xf32>
    %124 = tpu.matmul %122, %123, %cst_56 {dimension_numbers = #tpu.dot_dimension_numbers<[1], [0], [0], [1], [0, 0, 1, 1], [], []>} : vector<16x32xf32>, vector<32x16xf32>, vector<16x16xf32> -> vector<16x16xf32>
    %c0_57 = arith.constant 0 : index
    %c0_58 = arith.constant 0 : index
    %125 = vector.load %arg11[%c0_57, %c0_58] : memref<1x16xf32, #tpu.memory_space<vmem>>, vector<1x16xf32>
    %126 = vector.broadcast %125 : vector<1x16xf32> to vector<16x16xf32>
    %127 = arith.addf %124, %126 : vector<16x16xf32>
    %128 = arith.addf %115, %127 : vector<16x16xf32>
    %c0_59 = arith.constant 0 : index
    %c0_60 = arith.constant 0 : index
    %129 = vector.load %arg12[%c0_59, %c0_60] : memref<1x16xf32, #tpu.memory_space<vmem>>, vector<1x16xf32>
    %c0_61 = arith.constant 0 : index
    %c0_62 = arith.constant 0 : index
    %130 = vector.load %arg13[%c0_61, %c0_62] : memref<1x16xf32, #tpu.memory_space<vmem>>, vector<1x16xf32>
    %cst_63 = arith.constant dense<0.000000e+00> : vector<16xf32>
    %131 = vector.multi_reduction <add>, %128, %cst_63 [1] : vector<16x16xf32> to vector<16xf32>
    %132 = vector.shape_cast %131 : vector<16xf32> to vector<16x1xf32>
    %cst_64 = arith.constant 1.600000e+01 : f32
    %133 = vector.broadcast %cst_64 : f32 to vector<16x1xf32>
    %134 = arith.divf %132, %133 : vector<16x1xf32>
    %135 = vector.broadcast %134 : vector<16x1xf32> to vector<16x16xf32>
    %136 = arith.subf %128, %135 : vector<16x16xf32>
    %137 = arith.mulf %136, %136 : vector<16x16xf32>
    %cst_65 = arith.constant dense<0.000000e+00> : vector<16xf32>
    %138 = vector.multi_reduction <add>, %137, %cst_65 [1] : vector<16x16xf32> to vector<16xf32>
    %139 = vector.shape_cast %138 : vector<16xf32> to vector<16x1xf32>
    %cst_66 = arith.constant 1.600000e+01 : f32
    %140 = vector.broadcast %cst_66 : f32 to vector<16x1xf32>
    %141 = arith.divf %139, %140 : vector<16x1xf32>
    %142 = vector.broadcast %134 : vector<16x1xf32> to vector<16x16xf32>
    %143 = arith.subf %128, %142 : vector<16x16xf32>
    %cst_67 = arith.constant 9.99999974E-6 : f32
    %144 = vector.broadcast %cst_67 : f32 to vector<16x1xf32>
    %145 = arith.addf %141, %144 : vector<16x1xf32>
    %146 = math.rsqrt %145 : vector<16x1xf32>
    %147 = vector.broadcast %146 : vector<16x1xf32> to vector<16x16xf32>
    %148 = arith.mulf %143, %147 : vector<16x16xf32>
    %149 = vector.broadcast %129 : vector<1x16xf32> to vector<16x16xf32>
    %150 = arith.mulf %148, %149 : vector<16x16xf32>
    %151 = vector.broadcast %130 : vector<1x16xf32> to vector<16x16xf32>
    %152 = arith.addf %150, %151 : vector<16x16xf32>
    %c0_68 = arith.constant 0 : index
    %c0_69 = arith.constant 0 : index
    %153 = vector.load %arg14[%c0_68, %c0_69] : memref<1x16xf32, #tpu.memory_space<vmem>>, vector<1x16xf32>
    %c0_70 = arith.constant 0 : index
    %c0_71 = arith.constant 0 : index
    %154 = vector.load %arg15[%c0_70, %c0_71] : memref<1x16xf32, #tpu.memory_space<vmem>>, vector<1x16xf32>
    %cst_72 = arith.constant dense<0.000000e+00> : vector<16xf32>
    %155 = vector.multi_reduction <add>, %152, %cst_72 [1] : vector<16x16xf32> to vector<16xf32>
    %156 = vector.shape_cast %155 : vector<16xf32> to vector<16x1xf32>
    %cst_73 = arith.constant 1.600000e+01 : f32
    %157 = vector.broadcast %cst_73 : f32 to vector<16x1xf32>
    %158 = arith.divf %156, %157 : vector<16x1xf32>
    %159 = vector.broadcast %158 : vector<16x1xf32> to vector<16x16xf32>
    %160 = arith.subf %152, %159 : vector<16x16xf32>
    %161 = arith.mulf %160, %160 : vector<16x16xf32>
    %cst_74 = arith.constant dense<0.000000e+00> : vector<16xf32>
    %162 = vector.multi_reduction <add>, %161, %cst_74 [1] : vector<16x16xf32> to vector<16xf32>
    %163 = vector.shape_cast %162 : vector<16xf32> to vector<16x1xf32>
    %cst_75 = arith.constant 1.600000e+01 : f32
    %164 = vector.broadcast %cst_75 : f32 to vector<16x1xf32>
    %165 = arith.divf %163, %164 : vector<16x1xf32>
    %166 = vector.broadcast %158 : vector<16x1xf32> to vector<16x16xf32>
    %167 = arith.subf %152, %166 : vector<16x16xf32>
    %cst_76 = arith.constant 9.99999974E-6 : f32
    %168 = vector.broadcast %cst_76 : f32 to vector<16x1xf32>
    %169 = arith.addf %165, %168 : vector<16x1xf32>
    %170 = math.rsqrt %169 : vector<16x1xf32>
    %171 = vector.broadcast %170 : vector<16x1xf32> to vector<16x16xf32>
    %172 = arith.mulf %167, %171 : vector<16x16xf32>
    %173 = vector.broadcast %153 : vector<1x16xf32> to vector<16x16xf32>
    %174 = arith.mulf %172, %173 : vector<16x16xf32>
    %175 = vector.broadcast %154 : vector<1x16xf32> to vector<16x16xf32>
    %176 = arith.addf %174, %175 : vector<16x16xf32>
    %c0_77 = arith.constant 0 : index
    %c0_78 = arith.constant 0 : index
    %177 = vector.load %arg16[%c0_77, %c0_78] : memref<16x16xf32, #tpu.memory_space<vmem>>, vector<16x16xf32>
    tpu.vector_store %arg16[%c0_77, %c0_78], %176 {strides = array<i32>} : memref<16x16xf32, #tpu.memory_space<vmem>>, vector<16x16xf32>,
    return
  }
  func.func @transform_0(%arg0: i32) -> (i32, i32) {
    %c0_i32 = arith.constant 0 : i32
    %c0_i32_0 = arith.constant 0 : i32
    %c0_i32_1 = arith.constant 0 : i32
    return %c0_i32, %c0_i32_0 : i32, i32
  }
  func.func @transform_1(%arg0: i32) -> (i32, i32) {
    %c0_i32 = arith.constant 0 : i32
    %c0_i32_0 = arith.constant 0 : i32
    %c0_i32_1 = arith.constant 0 : i32
    return %c0_i32, %c0_i32_0 : i32, i32
  }
  func.func @transform_2(%arg0: i32) -> (i32, i32) {
    %c0_i32 = arith.constant 0 : i32
    %c0_i32_0 = arith.constant 0 : i32
    %c0_i32_1 = arith.constant 0 : i32
    return %c0_i32, %c0_i32_0 : i32, i32
  }
  func.func @transform_3(%arg0: i32) -> (i32, i32) {
    %c0_i32 = arith.constant 0 : i32
    %c0_i32_0 = arith.constant 0 : i32
    %c0_i32_1 = arith.constant 0 : i32
    return %c0_i32, %c0_i32_0 : i32, i32
  }
  func.func @transform_4(%arg0: i32) -> (i32, i32) {
    %c0_i32 = arith.constant 0 : i32
    %c0_i32_0 = arith.constant 0 : i32
    %c0_i32_1 = arith.constant 0 : i32
    return %c0_i32, %c0_i32_0 : i32, i32
  }
  func.func @transform_5(%arg0: i32) -> (i32, i32) {
    %c0_i32 = arith.constant 0 : i32
    %c0_i32_0 = arith.constant 0 : i32
    %c0_i32_1 = arith.constant 0 : i32
    return %c0_i32, %c0_i32_0 : i32, i32
  }
  func.func @transform_6(%arg0: i32) -> (i32, i32) {
    %c0_i32 = arith.constant 0 : i32
    %c0_i32_0 = arith.constant 0 : i32
    %c0_i32_1 = arith.constant 0 : i32
    return %c0_i32, %c0_i32_0 : i32, i32
  }
  func.func @transform_7(%arg0: i32) -> (i32, i32) {
    %c0_i32 = arith.constant 0 : i32
    %c0_i32_0 = arith.constant 0 : i32
    %c0_i32_1 = arith.constant 0 : i32
    return %c0_i32, %c0_i32_0 : i32, i32
  }
  func.func @transform_8(%arg0: i32) -> (i32, i32) {
    %c0_i32 = arith.constant 0 : i32
    %c0_i32_0 = arith.constant 0 : i32
    %c0_i32_1 = arith.constant 0 : i32
    return %c0_i32, %c0_i32_0 : i32, i32
  }
  func.func @transform_9(%arg0: i32) -> (i32, i32) {
    %c0_i32 = arith.constant 0 : i32
    %c0_i32_0 = arith.constant 0 : i32
    %c0_i32_1 = arith.constant 0 : i32
    return %c0_i32, %c0_i32_0 : i32, i32
  }
  func.func @transform_10(%arg0: i32) -> (i32, i32) {
    %c0_i32 = arith.constant 0 : i32
    %c0_i32_0 = arith.constant 0 : i32
    %c0_i32_1 = arith.constant 0 : i32
    return %c0_i32, %c0_i32_0 : i32, i32
  }
  func.func @transform_11(%arg0: i32) -> (i32, i32) {
    %c0_i32 = arith.constant 0 : i32
    %c0_i32_0 = arith.constant 0 : i32
    %c0_i32_1 = arith.constant 0 : i32
    return %c0_i32, %c0_i32_0 : i32, i32
  }
  func.func @transform_12(%arg0: i32) -> (i32, i32) {
    %c0_i32 = arith.constant 0 : i32
    %c0_i32_0 = arith.constant 0 : i32
    %c0_i32_1 = arith.constant 0 : i32
    return %c0_i32, %c0_i32_0 : i32, i32
  }
  func.func @transform_13(%arg0: i32) -> (i32, i32) {
    %c0_i32 = arith.constant 0 : i32
    %c0_i32_0 = arith.constant 0 : i32
    %c0_i32_1 = arith.constant 0 : i32
    return %c0_i32, %c0_i32_0 : i32, i32
  }
  func.func @transform_14(%arg0: i32) -> (i32, i32) {
    %c0_i32 = arith.constant 0 : i32
    %c0_i32_0 = arith.constant 0 : i32
    %c0_i32_1 = arith.constant 0 : i32
    return %c0_i32, %c0_i32_0 : i32, i32
  }
  func.func @transform_15(%arg0: i32) -> (i32, i32) {
    %c0_i32 = arith.constant 0 : i32
    %c0_i32_0 = arith.constant 0 : i32
    %c0_i32_1 = arith.constant 0 : i32
    return %c0_i32, %c0_i32_0 : i32, i32
  }
}

module attributes {stable_mosaic.version = 11 : i64} {
  func.func @_embed_kernel(%arg0: i32, %arg1: memref<32x32xf32, #tpu.memory_space<vmem>>, %arg2: memref<32x16xf32, #tpu.memory_space<vmem>>, %arg3: memref<1x16xf32, #tpu.memory_space<vmem>>, %arg4: memref<32x16xf32, #tpu.memory_space<vmem>>, %arg5: memref<32x16xf32, #tpu.memory_space<vmem>>) attributes {dimension_semantics = [#tpu.dimension_semantics<arbitrary>], iteration_bounds = array<i64: 1>, scalar_prefetch = 0 : i64, scratch_operands = 0 : i64, tpu.core_type = #tpu.core_type<tc>, window_params = [{pipeline_mode = #tpu.pipeline_mode<synchronous>, transform_indices = @transform_0, window_bounds = array<i64: 32, 32>}, {pipeline_mode = #tpu.pipeline_mode<synchronous>, transform_indices = @transform_1, window_bounds = array<i64: 32, 16>}, {pipeline_mode = #tpu.pipeline_mode<synchronous>, transform_indices = @transform_2, window_bounds = array<i64: 1, 16>}, {pipeline_mode = #tpu.pipeline_mode<synchronous>, transform_indices = @transform_3, window_bounds = array<i64: 32, 16>}, {pipeline_mode = #tpu.pipeline_mode<synchronous>, transform_indices = @transform_4, window_bounds = array<i64: 32, 16>}]} {
    %c0 = arith.constant 0 : index
    %c0_0 = arith.constant 0 : index
    %0 = vector.load %arg1[%c0, %c0_0] : memref<32x32xf32, #tpu.memory_space<vmem>>, vector<32x32xf32>
    %c0_1 = arith.constant 0 : index
    %c0_2 = arith.constant 0 : index
    %1 = vector.load %arg2[%c0_1, %c0_2] : memref<32x16xf32, #tpu.memory_space<vmem>>, vector<32x16xf32>
    %cst = arith.constant dense<0.000000e+00> : vector<32x16xf32>
    %2 = tpu.matmul %0, %1, %cst {dimension_numbers = #tpu.dot_dimension_numbers<[1], [0], [0], [1], [0, 0, 1, 1], [], []>} : vector<32x32xf32>, vector<32x16xf32>, vector<32x16xf32> -> vector<32x16xf32>
    %c0_3 = arith.constant 0 : index
    %c0_4 = arith.constant 0 : index
    %3 = vector.load %arg3[%c0_3, %c0_4] : memref<1x16xf32, #tpu.memory_space<vmem>>, vector<1x16xf32>
    %4 = vector.broadcast %3 : vector<1x16xf32> to vector<32x16xf32>
    %5 = arith.addf %2, %4 : vector<32x16xf32>
    %c0_5 = arith.constant 0 : index
    %c0_6 = arith.constant 0 : index
    %6 = vector.load %arg4[%c0_5, %c0_6] : memref<32x16xf32, #tpu.memory_space<vmem>>, vector<32x16xf32>
    %7 = arith.addf %5, %6 : vector<32x16xf32>
    %c0_7 = arith.constant 0 : index
    %c0_8 = arith.constant 0 : index
    %8 = vector.load %arg5[%c0_7, %c0_8] : memref<32x16xf32, #tpu.memory_space<vmem>>, vector<32x16xf32>
    tpu.vector_store %arg5[%c0_7, %c0_8], %7 {strides = array<i32>} : memref<32x16xf32, #tpu.memory_space<vmem>>, vector<32x16xf32>,
    return
  }
  func.func @transform_0(%arg0: i32) -> (i32, i32) {
    %c0_i32 = arith.constant 0 : i32
    %c0_i32_0 = arith.constant 0 : i32
    %c0_i32_1 = arith.constant 0 : i32
    return %c0_i32, %c0_i32_0 : i32, i32
  }
  func.func @transform_1(%arg0: i32) -> (i32, i32) {
    %c0_i32 = arith.constant 0 : i32
    %c0_i32_0 = arith.constant 0 : i32
    %c0_i32_1 = arith.constant 0 : i32
    return %c0_i32, %c0_i32_0 : i32, i32
  }
  func.func @transform_2(%arg0: i32) -> (i32, i32) {
    %c0_i32 = arith.constant 0 : i32
    %c0_i32_0 = arith.constant 0 : i32
    %c0_i32_1 = arith.constant 0 : i32
    return %c0_i32, %c0_i32_0 : i32, i32
  }
  func.func @transform_3(%arg0: i32) -> (i32, i32) {
    %c0_i32 = arith.constant 0 : i32
    %c0_i32_0 = arith.constant 0 : i32
    %c0_i32_1 = arith.constant 0 : i32
    return %c0_i32, %c0_i32_0 : i32, i32
  }
  func.func @transform_4(%arg0: i32) -> (i32, i32) {
    %c0_i32 = arith.constant 0 : i32
    %c0_i32_0 = arith.constant 0 : i32
    %c0_i32_1 = arith.constant 0 : i32
    return %c0_i32, %c0_i32_0 : i32, i32
  }
}

module attributes {stable_mosaic.version = 11 : i64} {
  func.func @_decoder_layer_kernel(%arg0: i32, %arg1: memref<16x16xf32, #tpu.memory_space<vmem>>, %arg2: memref<16x16xf32, #tpu.memory_space<vmem>>, %arg3: memref<16x48xf32, #tpu.memory_space<vmem>>, %arg4: memref<1x48xf32, #tpu.memory_space<vmem>>, %arg5: memref<16x16xf32, #tpu.memory_space<vmem>>, %arg6: memref<1x16xf32, #tpu.memory_space<vmem>>, %arg7: memref<1x16xf32, #tpu.memory_space<vmem>>, %arg8: memref<1x16xf32, #tpu.memory_space<vmem>>, %arg9: memref<16x48xf32, #tpu.memory_space<vmem>>, %arg10: memref<1x48xf32, #tpu.memory_space<vmem>>, %arg11: memref<16x16xf32, #tpu.memory_space<vmem>>, %arg12: memref<1x16xf32, #tpu.memory_space<vmem>>, %arg13: memref<1x16xf32, #tpu.memory_space<vmem>>, %arg14: memref<1x16xf32, #tpu.memory_space<vmem>>, %arg15: memref<16x32xf32, #tpu.memory_space<vmem>>, %arg16: memref<1x32xf32, #tpu.memory_space<vmem>>, %arg17: memref<32x16xf32, #tpu.memory_space<vmem>>, %arg18: memref<1x16xf32, #tpu.memory_space<vmem>>, %arg19: memref<1x16xf32, #tpu.memory_space<vmem>>, %arg20: memref<1x16xf32, #tpu.memory_space<vmem>>, %arg21: memref<16x16xf32, #tpu.memory_space<vmem>>, %arg22: memref<16x16xf32, #tpu.memory_space<vmem>>) attributes {dimension_semantics = [#tpu.dimension_semantics<arbitrary>], iteration_bounds = array<i64: 1>, scalar_prefetch = 0 : i64, scratch_operands = 1 : i64, tpu.core_type = #tpu.core_type<tc>, window_params = [{pipeline_mode = #tpu.pipeline_mode<synchronous>, transform_indices = @transform_0, window_bounds = array<i64: 16, 16>}, {pipeline_mode = #tpu.pipeline_mode<synchronous>, transform_indices = @transform_1, window_bounds = array<i64: 16, 16>}, {pipeline_mode = #tpu.pipeline_mode<synchronous>, transform_indices = @transform_2, window_bounds = array<i64: 16, 48>}, {pipeline_mode = #tpu.pipeline_mode<synchronous>, transform_indices = @transform_3, window_bounds = array<i64: 1, 48>}, {pipeline_mode = #tpu.pipeline_mode<synchronous>, transform_indices = @transform_4, window_bounds = array<i64: 16, 16>}, {pipeline_mode = #tpu.pipeline_mode<synchronous>, transform_indices = @transform_5, window_bounds = array<i64: 1, 16>}, {pipeline_mode = #tpu.pipeline_mode<synchronous>, transform_indices = @transform_6, window_bounds = array<i64: 1, 16>}, {pipeline_mode = #tpu.pipeline_mode<synchronous>, transform_indices = @transform_7, window_bounds = array<i64: 1, 16>}, {pipeline_mode = #tpu.pipeline_mode<synchronous>, transform_indices = @transform_8, window_bounds = array<i64: 16, 48>}, {pipeline_mode = #tpu.pipeline_mode<synchronous>, transform_indices = @transform_9, window_bounds = array<i64: 1, 48>}, {pipeline_mode = #tpu.pipeline_mode<synchronous>, transform_indices = @transform_10, window_bounds = array<i64: 16, 16>}, {pipeline_mode = #tpu.pipeline_mode<synchronous>, transform_indices = @transform_11, window_bounds = array<i64: 1, 16>}, {pipeline_mode = #tpu.pipeline_mode<synchronous>, transform_indices = @transform_12, window_bounds = array<i64: 1, 16>}, {pipeline_mode = #tpu.pipeline_mode<synchronous>, transform_indices = @transform_13, window_bounds = array<i64: 1, 16>}, {pipeline_mode = #tpu.pipeline_mode<synchronous>, transform_indices = @transform_14, window_bounds = array<i64: 16, 32>}, {pipeline_mode = #tpu.pipeline_mode<synchronous>, transform_indices = @transform_15, window_bounds = array<i64: 1, 32>}, {pipeline_mode = #tpu.pipeline_mode<synchronous>, transform_indices = @transform_16, window_bounds = array<i64: 32, 16>}, {pipeline_mode = #tpu.pipeline_mode<synchronous>, transform_indices = @transform_17, window_bounds = array<i64: 1, 16>}, {pipeline_mode = #tpu.pipeline_mode<synchronous>, transform_indices = @transform_18, window_bounds = array<i64: 1, 16>}, {pipeline_mode = #tpu.pipeline_mode<synchronous>, transform_indices = @transform_19, window_bounds = array<i64: 1, 16>}, {pipeline_mode = #tpu.pipeline_mode<synchronous>, transform_indices = @transform_20, window_bounds = array<i64: 16, 16>}]} {
    %c0 = arith.constant 0 : index
    %c0_0 = arith.constant 0 : index
    %0 = vector.load %arg1[%c0, %c0_0] : memref<16x16xf32, #tpu.memory_space<vmem>>, vector<16x16xf32>
    %c0_1 = arith.constant 0 : index
    %c0_2 = arith.constant 0 : index
    %1 = vector.load %arg2[%c0_1, %c0_2] : memref<16x16xf32, #tpu.memory_space<vmem>>, vector<16x16xf32>
    %c0_3 = arith.constant 0 : index
    %c0_4 = arith.constant 0 : index
    %2 = vector.load %arg3[%c0_3, %c0_4] : memref<16x48xf32, #tpu.memory_space<vmem>>, vector<16x48xf32>
    %cst = arith.constant dense<0.000000e+00> : vector<16x48xf32>
    %3 = tpu.matmul %0, %2, %cst {dimension_numbers = #tpu.dot_dimension_numbers<[1], [0], [0], [1], [0, 0, 1, 1], [], []>} : vector<16x16xf32>, vector<16x48xf32>, vector<16x48xf32> -> vector<16x48xf32>
    %c0_5 = arith.constant 0 : index
    %c0_6 = arith.constant 0 : index
    %4 = vector.load %arg4[%c0_5, %c0_6] : memref<1x48xf32, #tpu.memory_space<vmem>>, vector<1x48xf32>
    %5 = vector.broadcast %4 : vector<1x48xf32> to vector<16x48xf32>
    %6 = arith.addf %3, %5 : vector<16x48xf32>
    %7 = vector.extract_strided_slice %6 {offsets = [0, 0], sizes = [16, 16], strides = [1, 1]} : vector<16x48xf32> to vector<16x16xf32>
    %8 = vector.extract_strided_slice %6 {offsets = [0, 16], sizes = [16, 16], strides = [1, 1]} : vector<16x48xf32> to vector<16x16xf32>
    %9 = vector.extract_strided_slice %6 {offsets = [0, 32], sizes = [16, 16], strides = [1, 1]} : vector<16x48xf32> to vector<16x16xf32>
    %10 = tpu.iota {dimensions = array<i32: 0>} : vector<8x8xi32>
    %11 = tpu.iota {dimensions = array<i32: 1>} : vector<8x8xi32>
    %12 = arith.cmpi sgt, %11, %10 : vector<8x8xi32>
    %cst_7 = arith.constant -1.000000e+30 : f32
    %cst_8 = arith.constant 0.000000e+00 : f32
    %13 = vector.broadcast %cst_7 : f32 to vector<8x8xf32>
    %14 = vector.broadcast %cst_8 : f32 to vector<8x8xf32>
    %15 = arith.select %12, %13, %14 : vector<8x8xi1>, vector<8x8xf32>
    %16 = vector.extract_strided_slice %7 {offsets = [0, 0], sizes = [8, 8], strides = [1, 1]} : vector<16x16xf32> to vector<8x8xf32>
    %17 = vector.extract_strided_slice %8 {offsets = [0, 0], sizes = [8, 8], strides = [1, 1]} : vector<16x16xf32> to vector<8x8xf32>
    %18 = vector.extract_strided_slice %9 {offsets = [0, 0], sizes = [8, 8], strides = [1, 1]} : vector<16x16xf32> to vector<8x8xf32>
    %19 = tpu.transpose %17, [1, 0] : vector<8x8xf32> -> vector<8x8xf32>
    %cst_9 = arith.constant dense<0.000000e+00> : vector<8x8xf32>
    %20 = tpu.matmul %16, %19, %cst_9 {dimension_numbers = #tpu.dot_dimension_numbers<[1], [0], [0], [1], [0, 0, 1, 1], [], []>} : vector<8x8xf32>, vector<8x8xf32>, vector<8x8xf32> -> vector<8x8xf32>
    %cst_10 = arith.constant 0.353553385 : f32
    %21 = vector.broadcast %cst_10 : f32 to vector<8x8xf32>
    %22 = arith.mulf %20, %21 : vector<8x8xf32>
    %23 = arith.addf %22, %15 : vector<8x8xf32>
    %cst_11 = arith.constant dense<0xFF800000> : vector<8xf32>
    %24 = vector.multi_reduction <maximumf>, %23, %cst_11 [1] : vector<8x8xf32> to vector<8xf32>
    %25 = vector.shape_cast %24 : vector<8xf32> to vector<8x1xf32>
    %26 = vector.broadcast %25 : vector<8x1xf32> to vector<8x8xf32>
    %27 = arith.subf %23, %26 : vector<8x8xf32>
    %28 = math.exp %27 : vector<8x8xf32>
    %cst_12 = arith.constant dense<0.000000e+00> : vector<8xf32>
    %29 = vector.multi_reduction <add>, %28, %cst_12 [1] : vector<8x8xf32> to vector<8xf32>
    %30 = vector.shape_cast %29 : vector<8xf32> to vector<8x1xf32>
    %31 = tpu.reciprocal %30 {approx = true} : vector<8x1xf32> -> vector<8x1xf32>
    %32 = vector.broadcast %31 : vector<8x1xf32> to vector<8x8xf32>
    %33 = arith.mulf %28, %32 : vector<8x8xf32>
    %cst_13 = arith.constant dense<0.000000e+00> : vector<8x8xf32>
    %34 = tpu.matmul %33, %18, %cst_13 {dimension_numbers = #tpu.dot_dimension_numbers<[1], [0], [0], [1], [0, 0, 1, 1], [], []>} : vector<8x8xf32>, vector<8x8xf32>, vector<8x8xf32> -> vector<8x8xf32>
    %c0_14 = arith.constant 0 : index
    %c0_15 = arith.constant 0 : index
    %35 = vector.load %arg22[%c0_14, %c0_15] : memref<16x16xf32, #tpu.memory_space<vmem>>, vector<8x8xf32>
    tpu.vector_store %arg22[%c0_14, %c0_15], %34 {strides = array<i32>} : memref<16x16xf32, #tpu.memory_space<vmem>>, vector<8x8xf32>,
    %36 = vector.extract_strided_slice %7 {offsets = [0, 8], sizes = [8, 8], strides = [1, 1]} : vector<16x16xf32> to vector<8x8xf32>
    %37 = vector.extract_strided_slice %8 {offsets = [0, 8], sizes = [8, 8], strides = [1, 1]} : vector<16x16xf32> to vector<8x8xf32>
    %38 = vector.extract_strided_slice %9 {offsets = [0, 8], sizes = [8, 8], strides = [1, 1]} : vector<16x16xf32> to vector<8x8xf32>
    %39 = tpu.transpose %37, [1, 0] : vector<8x8xf32> -> vector<8x8xf32>
    %cst_16 = arith.constant dense<0.000000e+00> : vector<8x8xf32>
    %40 = tpu.matmul %36, %39, %cst_16 {dimension_numbers = #tpu.dot_dimension_numbers<[1], [0], [0], [1], [0, 0, 1, 1], [], []>} : vector<8x8xf32>, vector<8x8xf32>, vector<8x8xf32> -> vector<8x8xf32>
    %cst_17 = arith.constant 0.353553385 : f32
    %41 = vector.broadcast %cst_17 : f32 to vector<8x8xf32>
    %42 = arith.mulf %40, %41 : vector<8x8xf32>
    %43 = arith.addf %42, %15 : vector<8x8xf32>
    %cst_18 = arith.constant dense<0xFF800000> : vector<8xf32>
    %44 = vector.multi_reduction <maximumf>, %43, %cst_18 [1] : vector<8x8xf32> to vector<8xf32>
    %45 = vector.shape_cast %44 : vector<8xf32> to vector<8x1xf32>
    %46 = vector.broadcast %45 : vector<8x1xf32> to vector<8x8xf32>
    %47 = arith.subf %43, %46 : vector<8x8xf32>
    %48 = math.exp %47 : vector<8x8xf32>
    %cst_19 = arith.constant dense<0.000000e+00> : vector<8xf32>
    %49 = vector.multi_reduction <add>, %48, %cst_19 [1] : vector<8x8xf32> to vector<8xf32>
    %50 = vector.shape_cast %49 : vector<8xf32> to vector<8x1xf32>
    %51 = tpu.reciprocal %50 {approx = true} : vector<8x1xf32> -> vector<8x1xf32>
    %52 = vector.broadcast %51 : vector<8x1xf32> to vector<8x8xf32>
    %53 = arith.mulf %48, %52 : vector<8x8xf32>
    %cst_20 = arith.constant dense<0.000000e+00> : vector<8x8xf32>
    %54 = tpu.matmul %53, %38, %cst_20 {dimension_numbers = #tpu.dot_dimension_numbers<[1], [0], [0], [1], [0, 0, 1, 1], [], []>} : vector<8x8xf32>, vector<8x8xf32>, vector<8x8xf32> -> vector<8x8xf32>
    %c0_21 = arith.constant 0 : index
    %c8 = arith.constant 8 : index
    %55 = vector.load %arg22[%c0_21, %c8] : memref<16x16xf32, #tpu.memory_space<vmem>>, vector<8x8xf32>
    tpu.vector_store %arg22[%c0_21, %c8], %54 {strides = array<i32>} : memref<16x16xf32, #tpu.memory_space<vmem>>, vector<8x8xf32>,
    %56 = vector.extract_strided_slice %7 {offsets = [8, 0], sizes = [8, 8], strides = [1, 1]} : vector<16x16xf32> to vector<8x8xf32>
    %57 = vector.extract_strided_slice %8 {offsets = [8, 0], sizes = [8, 8], strides = [1, 1]} : vector<16x16xf32> to vector<8x8xf32>
    %58 = vector.extract_strided_slice %9 {offsets = [8, 0], sizes = [8, 8], strides = [1, 1]} : vector<16x16xf32> to vector<8x8xf32>
    %59 = tpu.transpose %57, [1, 0] : vector<8x8xf32> -> vector<8x8xf32>
    %cst_22 = arith.constant dense<0.000000e+00> : vector<8x8xf32>
    %60 = tpu.matmul %56, %59, %cst_22 {dimension_numbers = #tpu.dot_dimension_numbers<[1], [0], [0], [1], [0, 0, 1, 1], [], []>} : vector<8x8xf32>, vector<8x8xf32>, vector<8x8xf32> -> vector<8x8xf32>
    %cst_23 = arith.constant 0.353553385 : f32
    %61 = vector.broadcast %cst_23 : f32 to vector<8x8xf32>
    %62 = arith.mulf %60, %61 : vector<8x8xf32>
    %63 = arith.addf %62, %15 : vector<8x8xf32>
    %cst_24 = arith.constant dense<0xFF800000> : vector<8xf32>
    %64 = vector.multi_reduction <maximumf>, %63, %cst_24 [1] : vector<8x8xf32> to vector<8xf32>
    %65 = vector.shape_cast %64 : vector<8xf32> to vector<8x1xf32>
    %66 = vector.broadcast %65 : vector<8x1xf32> to vector<8x8xf32>
    %67 = arith.subf %63, %66 : vector<8x8xf32>
    %68 = math.exp %67 : vector<8x8xf32>
    %cst_25 = arith.constant dense<0.000000e+00> : vector<8xf32>
    %69 = vector.multi_reduction <add>, %68, %cst_25 [1] : vector<8x8xf32> to vector<8xf32>
    %70 = vector.shape_cast %69 : vector<8xf32> to vector<8x1xf32>
    %71 = tpu.reciprocal %70 {approx = true} : vector<8x1xf32> -> vector<8x1xf32>
    %72 = vector.broadcast %71 : vector<8x1xf32> to vector<8x8xf32>
    %73 = arith.mulf %68, %72 : vector<8x8xf32>
    %cst_26 = arith.constant dense<0.000000e+00> : vector<8x8xf32>
    %74 = tpu.matmul %73, %58, %cst_26 {dimension_numbers = #tpu.dot_dimension_numbers<[1], [0], [0], [1], [0, 0, 1, 1], [], []>} : vector<8x8xf32>, vector<8x8xf32>, vector<8x8xf32> -> vector<8x8xf32>
    %c8_27 = arith.constant 8 : index
    %c0_28 = arith.constant 0 : index
    %75 = vector.load %arg22[%c8_27, %c0_28] : memref<16x16xf32, #tpu.memory_space<vmem>>, vector<8x8xf32>
    tpu.vector_store %arg22[%c8_27, %c0_28], %74 {strides = array<i32>} : memref<16x16xf32, #tpu.memory_space<vmem>>, vector<8x8xf32>,
    %76 = vector.extract_strided_slice %7 {offsets = [8, 8], sizes = [8, 8], strides = [1, 1]} : vector<16x16xf32> to vector<8x8xf32>
    %77 = vector.extract_strided_slice %8 {offsets = [8, 8], sizes = [8, 8], strides = [1, 1]} : vector<16x16xf32> to vector<8x8xf32>
    %78 = vector.extract_strided_slice %9 {offsets = [8, 8], sizes = [8, 8], strides = [1, 1]} : vector<16x16xf32> to vector<8x8xf32>
    %79 = tpu.transpose %77, [1, 0] : vector<8x8xf32> -> vector<8x8xf32>
    %cst_29 = arith.constant dense<0.000000e+00> : vector<8x8xf32>
    %80 = tpu.matmul %76, %79, %cst_29 {dimension_numbers = #tpu.dot_dimension_numbers<[1], [0], [0], [1], [0, 0, 1, 1], [], []>} : vector<8x8xf32>, vector<8x8xf32>, vector<8x8xf32> -> vector<8x8xf32>
    %cst_30 = arith.constant 0.353553385 : f32
    %81 = vector.broadcast %cst_30 : f32 to vector<8x8xf32>
    %82 = arith.mulf %80, %81 : vector<8x8xf32>
    %83 = arith.addf %82, %15 : vector<8x8xf32>
    %cst_31 = arith.constant dense<0xFF800000> : vector<8xf32>
    %84 = vector.multi_reduction <maximumf>, %83, %cst_31 [1] : vector<8x8xf32> to vector<8xf32>
    %85 = vector.shape_cast %84 : vector<8xf32> to vector<8x1xf32>
    %86 = vector.broadcast %85 : vector<8x1xf32> to vector<8x8xf32>
    %87 = arith.subf %83, %86 : vector<8x8xf32>
    %88 = math.exp %87 : vector<8x8xf32>
    %cst_32 = arith.constant dense<0.000000e+00> : vector<8xf32>
    %89 = vector.multi_reduction <add>, %88, %cst_32 [1] : vector<8x8xf32> to vector<8xf32>
    %90 = vector.shape_cast %89 : vector<8xf32> to vector<8x1xf32>
    %91 = tpu.reciprocal %90 {approx = true} : vector<8x1xf32> -> vector<8x1xf32>
    %92 = vector.broadcast %91 : vector<8x1xf32> to vector<8x8xf32>
    %93 = arith.mulf %88, %92 : vector<8x8xf32>
    %cst_33 = arith.constant dense<0.000000e+00> : vector<8x8xf32>
    %94 = tpu.matmul %93, %78, %cst_33 {dimension_numbers = #tpu.dot_dimension_numbers<[1], [0], [0], [1], [0, 0, 1, 1], [], []>} : vector<8x8xf32>, vector<8x8xf32>, vector<8x8xf32> -> vector<8x8xf32>
    %c8_34 = arith.constant 8 : index
    %c8_35 = arith.constant 8 : index
    %95 = vector.load %arg22[%c8_34, %c8_35] : memref<16x16xf32, #tpu.memory_space<vmem>>, vector<8x8xf32>
    tpu.vector_store %arg22[%c8_34, %c8_35], %94 {strides = array<i32>} : memref<16x16xf32, #tpu.memory_space<vmem>>, vector<8x8xf32>,
    %c0_36 = arith.constant 0 : index
    %c0_37 = arith.constant 0 : index
    %96 = vector.load %arg22[%c0_36, %c0_37] : memref<16x16xf32, #tpu.memory_space<vmem>>, vector<16x16xf32>
    %c0_38 = arith.constant 0 : index
    %c0_39 = arith.constant 0 : index
    %97 = vector.load %arg5[%c0_38, %c0_39] : memref<16x16xf32, #tpu.memory_space<vmem>>, vector<16x16xf32>
    %cst_40 = arith.constant dense<0.000000e+00> : vector<16x16xf32>
    %98 = tpu.matmul %96, %97, %cst_40 {dimension_numbers = #tpu.dot_dimension_numbers<[1], [0], [0], [1], [0, 0, 1, 1], [], []>} : vector<16x16xf32>, vector<16x16xf32>, vector<16x16xf32> -> vector<16x16xf32>
    %c0_41 = arith.constant 0 : index
    %c0_42 = arith.constant 0 : index
    %99 = vector.load %arg6[%c0_41, %c0_42] : memref<1x16xf32, #tpu.memory_space<vmem>>, vector<1x16xf32>
    %100 = vector.broadcast %99 : vector<1x16xf32> to vector<16x16xf32>
    %101 = arith.addf %98, %100 : vector<16x16xf32>
    %102 = arith.addf %0, %101 : vector<16x16xf32>
    %c0_43 = arith.constant 0 : index
    %c0_44 = arith.constant 0 : index
    %103 = vector.load %arg7[%c0_43, %c0_44] : memref<1x16xf32, #tpu.memory_space<vmem>>, vector<1x16xf32>
    %c0_45 = arith.constant 0 : index
    %c0_46 = arith.constant 0 : index
    %104 = vector.load %arg8[%c0_45, %c0_46] : memref<1x16xf32, #tpu.memory_space<vmem>>, vector<1x16xf32>
    %cst_47 = arith.constant dense<0.000000e+00> : vector<16xf32>
    %105 = vector.multi_reduction <add>, %102, %cst_47 [1] : vector<16x16xf32> to vector<16xf32>
    %106 = vector.shape_cast %105 : vector<16xf32> to vector<16x1xf32>
    %cst_48 = arith.constant 1.600000e+01 : f32
    %107 = vector.broadcast %cst_48 : f32 to vector<16x1xf32>
    %108 = arith.divf %106, %107 : vector<16x1xf32>
    %109 = vector.broadcast %108 : vector<16x1xf32> to vector<16x16xf32>
    %110 = arith.subf %102, %109 : vector<16x16xf32>
    %111 = arith.mulf %110, %110 : vector<16x16xf32>
    %cst_49 = arith.constant dense<0.000000e+00> : vector<16xf32>
    %112 = vector.multi_reduction <add>, %111, %cst_49 [1] : vector<16x16xf32> to vector<16xf32>
    %113 = vector.shape_cast %112 : vector<16xf32> to vector<16x1xf32>
    %cst_50 = arith.constant 1.600000e+01 : f32
    %114 = vector.broadcast %cst_50 : f32 to vector<16x1xf32>
    %115 = arith.divf %113, %114 : vector<16x1xf32>
    %116 = vector.broadcast %108 : vector<16x1xf32> to vector<16x16xf32>
    %117 = arith.subf %102, %116 : vector<16x16xf32>
    %cst_51 = arith.constant 9.99999974E-6 : f32
    %118 = vector.broadcast %cst_51 : f32 to vector<16x1xf32>
    %119 = arith.addf %115, %118 : vector<16x1xf32>
    %120 = math.rsqrt %119 : vector<16x1xf32>
    %121 = vector.broadcast %120 : vector<16x1xf32> to vector<16x16xf32>
    %122 = arith.mulf %117, %121 : vector<16x16xf32>
    %123 = vector.broadcast %103 : vector<1x16xf32> to vector<16x16xf32>
    %124 = arith.mulf %122, %123 : vector<16x16xf32>
    %125 = vector.broadcast %104 : vector<1x16xf32> to vector<16x16xf32>
    %126 = arith.addf %124, %125 : vector<16x16xf32>
    %c0_52 = arith.constant 0 : index
    %c0_53 = arith.constant 0 : index
    %127 = vector.load %arg9[%c0_52, %c0_53] : memref<16x48xf32, #tpu.memory_space<vmem>>, vector<16x48xf32>
    %c0_54 = arith.constant 0 : index
    %c0_55 = arith.constant 0 : index
    %128 = vector.load %arg10[%c0_54, %c0_55] : memref<1x48xf32, #tpu.memory_space<vmem>>, vector<1x48xf32>
    %129 = vector.extract_strided_slice %127 {offsets = [0, 0], sizes = [16, 16], strides = [1, 1]} : vector<16x48xf32> to vector<16x16xf32>
    %cst_56 = arith.constant dense<0.000000e+00> : vector<16x16xf32>
    %130 = tpu.matmul %126, %129, %cst_56 {dimension_numbers = #tpu.dot_dimension_numbers<[1], [0], [0], [1], [0, 0, 1, 1], [], []>} : vector<16x16xf32>, vector<16x16xf32>, vector<16x16xf32> -> vector<16x16xf32>
    %131 = vector.extract_strided_slice %128 {offsets = [0, 0], sizes = [1, 16], strides = [1, 1]} : vector<1x48xf32> to vector<1x16xf32>
    %132 = vector.broadcast %131 : vector<1x16xf32> to vector<16x16xf32>
    %133 = arith.addf %130, %132 : vector<16x16xf32>
    %134 = vector.extract_strided_slice %127 {offsets = [0, 16], sizes = [16, 32], strides = [1, 1]} : vector<16x48xf32> to vector<16x32xf32>
    %cst_57 = arith.constant dense<0.000000e+00> : vector<16x32xf32>
    %135 = tpu.matmul %1, %134, %cst_57 {dimension_numbers = #tpu.dot_dimension_numbers<[1], [0], [0], [1], [0, 0, 1, 1], [], []>} : vector<16x16xf32>, vector<16x32xf32>, vector<16x32xf32> -> vector<16x32xf32>
    %136 = vector.extract_strided_slice %128 {offsets = [0, 16], sizes = [1, 32], strides = [1, 1]} : vector<1x48xf32> to vector<1x32xf32>
    %137 = vector.broadcast %136 : vector<1x32xf32> to vector<16x32xf32>
    %138 = arith.addf %135, %137 : vector<16x32xf32>
    %139 = vector.extract_strided_slice %138 {offsets = [0, 0], sizes = [16, 16], strides = [1, 1]} : vector<16x32xf32> to vector<16x16xf32>
    %140 = vector.extract_strided_slice %138 {offsets = [0, 16], sizes = [16, 16], strides = [1, 1]} : vector<16x32xf32> to vector<16x16xf32>
    %141 = vector.extract_strided_slice %133 {offsets = [0, 0], sizes = [8, 8], strides = [1, 1]} : vector<16x16xf32> to vector<8x8xf32>
    %142 = vector.extract_strided_slice %139 {offsets = [0, 0], sizes = [8, 8], strides = [1, 1]} : vector<16x16xf32> to vector<8x8xf32>
    %143 = vector.extract_strided_slice %140 {offsets = [0, 0], sizes = [8, 8], strides = [1, 1]} : vector<16x16xf32> to vector<8x8xf32>
    %144 = tpu.transpose %142, [1, 0] : vector<8x8xf32> -> vector<8x8xf32>
    %cst_58 = arith.constant dense<0.000000e+00> : vector<8x8xf32>
    %145 = tpu.matmul %141, %144, %cst_58 {dimension_numbers = #tpu.dot_dimension_numbers<[1], [0], [0], [1], [0, 0, 1, 1], [], []>} : vector<8x8xf32>, vector<8x8xf32>, vector<8x8xf32> -> vector<8x8xf32>
    %cst_59 = arith.constant 0.353553385 : f32
    %146 = vector.broadcast %cst_59 : f32 to vector<8x8xf32>
    %147 = arith.mulf %145, %146 : vector<8x8xf32>
    %cst_60 = arith.constant dense<0xFF800000> : vector<8xf32>
    %148 = vector.multi_reduction <maximumf>, %147, %cst_60 [1] : vector<8x8xf32> to vector<8xf32>
    %149 = vector.shape_cast %148 : vector<8xf32> to vector<8x1xf32>
    %150 = vector.broadcast %149 : vector<8x1xf32> to vector<8x8xf32>
    %151 = arith.subf %147, %150 : vector<8x8xf32>
    %152 = math.exp %151 : vector<8x8xf32>
    %cst_61 = arith.constant dense<0.000000e+00> : vector<8xf32>
    %153 = vector.multi_reduction <add>, %152, %cst_61 [1] : vector<8x8xf32> to vector<8xf32>
    %154 = vector.shape_cast %153 : vector<8xf32> to vector<8x1xf32>
    %155 = tpu.reciprocal %154 {approx = true} : vector<8x1xf32> -> vector<8x1xf32>
    %156 = vector.broadcast %155 : vector<8x1xf32> to vector<8x8xf32>
    %157 = arith.mulf %152, %156 : vector<8x8xf32>
    %cst_62 = arith.constant dense<0.000000e+00> : vector<8x8xf32>
    %158 = tpu.matmul %157, %143, %cst_62 {dimension_numbers = #tpu.dot_dimension_numbers<[1], [0], [0], [1], [0, 0, 1, 1], [], []>} : vector<8x8xf32>, vector<8x8xf32>, vector<8x8xf32> -> vector<8x8xf32>
    %c0_63 = arith.constant 0 : index
    %c0_64 = arith.constant 0 : index
    %159 = vector.load %arg22[%c0_63, %c0_64] : memref<16x16xf32, #tpu.memory_space<vmem>>, vector<8x8xf32>
    tpu.vector_store %arg22[%c0_63, %c0_64], %158 {strides = array<i32>} : memref<16x16xf32, #tpu.memory_space<vmem>>, vector<8x8xf32>,
    %160 = vector.extract_strided_slice %133 {offsets = [0, 8], sizes = [8, 8], strides = [1, 1]} : vector<16x16xf32> to vector<8x8xf32>
    %161 = vector.extract_strided_slice %139 {offsets = [0, 8], sizes = [8, 8], strides = [1, 1]} : vector<16x16xf32> to vector<8x8xf32>
    %162 = vector.extract_strided_slice %140 {offsets = [0, 8], sizes = [8, 8], strides = [1, 1]} : vector<16x16xf32> to vector<8x8xf32>
    %163 = tpu.transpose %161, [1, 0] : vector<8x8xf32> -> vector<8x8xf32>
    %cst_65 = arith.constant dense<0.000000e+00> : vector<8x8xf32>
    %164 = tpu.matmul %160, %163, %cst_65 {dimension_numbers = #tpu.dot_dimension_numbers<[1], [0], [0], [1], [0, 0, 1, 1], [], []>} : vector<8x8xf32>, vector<8x8xf32>, vector<8x8xf32> -> vector<8x8xf32>
    %cst_66 = arith.constant 0.353553385 : f32
    %165 = vector.broadcast %cst_66 : f32 to vector<8x8xf32>
    %166 = arith.mulf %164, %165 : vector<8x8xf32>
    %cst_67 = arith.constant dense<0xFF800000> : vector<8xf32>
    %167 = vector.multi_reduction <maximumf>, %166, %cst_67 [1] : vector<8x8xf32> to vector<8xf32>
    %168 = vector.shape_cast %167 : vector<8xf32> to vector<8x1xf32>
    %169 = vector.broadcast %168 : vector<8x1xf32> to vector<8x8xf32>
    %170 = arith.subf %166, %169 : vector<8x8xf32>
    %171 = math.exp %170 : vector<8x8xf32>
    %cst_68 = arith.constant dense<0.000000e+00> : vector<8xf32>
    %172 = vector.multi_reduction <add>, %171, %cst_68 [1] : vector<8x8xf32> to vector<8xf32>
    %173 = vector.shape_cast %172 : vector<8xf32> to vector<8x1xf32>
    %174 = tpu.reciprocal %173 {approx = true} : vector<8x1xf32> -> vector<8x1xf32>
    %175 = vector.broadcast %174 : vector<8x1xf32> to vector<8x8xf32>
    %176 = arith.mulf %171, %175 : vector<8x8xf32>
    %cst_69 = arith.constant dense<0.000000e+00> : vector<8x8xf32>
    %177 = tpu.matmul %176, %162, %cst_69 {dimension_numbers = #tpu.dot_dimension_numbers<[1], [0], [0], [1], [0, 0, 1, 1], [], []>} : vector<8x8xf32>, vector<8x8xf32>, vector<8x8xf32> -> vector<8x8xf32>
    %c0_70 = arith.constant 0 : index
    %c8_71 = arith.constant 8 : index
    %178 = vector.load %arg22[%c0_70, %c8_71] : memref<16x16xf32, #tpu.memory_space<vmem>>, vector<8x8xf32>
    tpu.vector_store %arg22[%c0_70, %c8_71], %177 {strides = array<i32>} : memref<16x16xf32, #tpu.memory_space<vmem>>, vector<8x8xf32>,
    %179 = vector.extract_strided_slice %133 {offsets = [8, 0], sizes = [8, 8], strides = [1, 1]} : vector<16x16xf32> to vector<8x8xf32>
    %180 = vector.extract_strided_slice %139 {offsets = [8, 0], sizes = [8, 8], strides = [1, 1]} : vector<16x16xf32> to vector<8x8xf32>
    %181 = vector.extract_strided_slice %140 {offsets = [8, 0], sizes = [8, 8], strides = [1, 1]} : vector<16x16xf32> to vector<8x8xf32>
    %182 = tpu.transpose %180, [1, 0] : vector<8x8xf32> -> vector<8x8xf32>
    %cst_72 = arith.constant dense<0.000000e+00> : vector<8x8xf32>
    %183 = tpu.matmul %179, %182, %cst_72 {dimension_numbers = #tpu.dot_dimension_numbers<[1], [0], [0], [1], [0, 0, 1, 1], [], []>} : vector<8x8xf32>, vector<8x8xf32>, vector<8x8xf32> -> vector<8x8xf32>
    %cst_73 = arith.constant 0.353553385 : f32
    %184 = vector.broadcast %cst_73 : f32 to vector<8x8xf32>
    %185 = arith.mulf %183, %184 : vector<8x8xf32>
    %cst_74 = arith.constant dense<0xFF800000> : vector<8xf32>
    %186 = vector.multi_reduction <maximumf>, %185, %cst_74 [1] : vector<8x8xf32> to vector<8xf32>
    %187 = vector.shape_cast %186 : vector<8xf32> to vector<8x1xf32>
    %188 = vector.broadcast %187 : vector<8x1xf32> to vector<8x8xf32>
    %189 = arith.subf %185, %188 : vector<8x8xf32>
    %190 = math.exp %189 : vector<8x8xf32>
    %cst_75 = arith.constant dense<0.000000e+00> : vector<8xf32>
    %191 = vector.multi_reduction <add>, %190, %cst_75 [1] : vector<8x8xf32> to vector<8xf32>
    %192 = vector.shape_cast %191 : vector<8xf32> to vector<8x1xf32>
    %193 = tpu.reciprocal %192 {approx = true} : vector<8x1xf32> -> vector<8x1xf32>
    %194 = vector.broadcast %193 : vector<8x1xf32> to vector<8x8xf32>
    %195 = arith.mulf %190, %194 : vector<8x8xf32>
    %cst_76 = arith.constant dense<0.000000e+00> : vector<8x8xf32>
    %196 = tpu.matmul %195, %181, %cst_76 {dimension_numbers = #tpu.dot_dimension_numbers<[1], [0], [0], [1], [0, 0, 1, 1], [], []>} : vector<8x8xf32>, vector<8x8xf32>, vector<8x8xf32> -> vector<8x8xf32>
    %c8_77 = arith.constant 8 : index
    %c0_78 = arith.constant 0 : index
    %197 = vector.load %arg22[%c8_77, %c0_78] : memref<16x16xf32, #tpu.memory_space<vmem>>, vector<8x8xf32>
    tpu.vector_store %arg22[%c8_77, %c0_78], %196 {strides = array<i32>} : memref<16x16xf32, #tpu.memory_space<vmem>>, vector<8x8xf32>,
    %198 = vector.extract_strided_slice %133 {offsets = [8, 8], sizes = [8, 8], strides = [1, 1]} : vector<16x16xf32> to vector<8x8xf32>
    %199 = vector.extract_strided_slice %139 {offsets = [8, 8], sizes = [8, 8], strides = [1, 1]} : vector<16x16xf32> to vector<8x8xf32>
    %200 = vector.extract_strided_slice %140 {offsets = [8, 8], sizes = [8, 8], strides = [1, 1]} : vector<16x16xf32> to vector<8x8xf32>
    %201 = tpu.transpose %199, [1, 0] : vector<8x8xf32> -> vector<8x8xf32>
    %cst_79 = arith.constant dense<0.000000e+00> : vector<8x8xf32>
    %202 = tpu.matmul %198, %201, %cst_79 {dimension_numbers = #tpu.dot_dimension_numbers<[1], [0], [0], [1], [0, 0, 1, 1], [], []>} : vector<8x8xf32>, vector<8x8xf32>, vector<8x8xf32> -> vector<8x8xf32>
    %cst_80 = arith.constant 0.353553385 : f32
    %203 = vector.broadcast %cst_80 : f32 to vector<8x8xf32>
    %204 = arith.mulf %202, %203 : vector<8x8xf32>
    %cst_81 = arith.constant dense<0xFF800000> : vector<8xf32>
    %205 = vector.multi_reduction <maximumf>, %204, %cst_81 [1] : vector<8x8xf32> to vector<8xf32>
    %206 = vector.shape_cast %205 : vector<8xf32> to vector<8x1xf32>
    %207 = vector.broadcast %206 : vector<8x1xf32> to vector<8x8xf32>
    %208 = arith.subf %204, %207 : vector<8x8xf32>
    %209 = math.exp %208 : vector<8x8xf32>
    %cst_82 = arith.constant dense<0.000000e+00> : vector<8xf32>
    %210 = vector.multi_reduction <add>, %209, %cst_82 [1] : vector<8x8xf32> to vector<8xf32>
    %211 = vector.shape_cast %210 : vector<8xf32> to vector<8x1xf32>
    %212 = tpu.reciprocal %211 {approx = true} : vector<8x1xf32> -> vector<8x1xf32>
    %213 = vector.broadcast %212 : vector<8x1xf32> to vector<8x8xf32>
    %214 = arith.mulf %209, %213 : vector<8x8xf32>
    %cst_83 = arith.constant dense<0.000000e+00> : vector<8x8xf32>
    %215 = tpu.matmul %214, %200, %cst_83 {dimension_numbers = #tpu.dot_dimension_numbers<[1], [0], [0], [1], [0, 0, 1, 1], [], []>} : vector<8x8xf32>, vector<8x8xf32>, vector<8x8xf32> -> vector<8x8xf32>
    %c8_84 = arith.constant 8 : index
    %c8_85 = arith.constant 8 : index
    %216 = vector.load %arg22[%c8_84, %c8_85] : memref<16x16xf32, #tpu.memory_space<vmem>>, vector<8x8xf32>
    tpu.vector_store %arg22[%c8_84, %c8_85], %215 {strides = array<i32>} : memref<16x16xf32, #tpu.memory_space<vmem>>, vector<8x8xf32>,
    %c0_86 = arith.constant 0 : index
    %c0_87 = arith.constant 0 : index
    %217 = vector.load %arg22[%c0_86, %c0_87] : memref<16x16xf32, #tpu.memory_space<vmem>>, vector<16x16xf32>
    %c0_88 = arith.constant 0 : index
    %c0_89 = arith.constant 0 : index
    %218 = vector.load %arg11[%c0_88, %c0_89] : memref<16x16xf32, #tpu.memory_space<vmem>>, vector<16x16xf32>
    %cst_90 = arith.constant dense<0.000000e+00> : vector<16x16xf32>
    %219 = tpu.matmul %217, %218, %cst_90 {dimension_numbers = #tpu.dot_dimension_numbers<[1], [0], [0], [1], [0, 0, 1, 1], [], []>} : vector<16x16xf32>, vector<16x16xf32>, vector<16x16xf32> -> vector<16x16xf32>
    %c0_91 = arith.constant 0 : index
    %c0_92 = arith.constant 0 : index
    %220 = vector.load %arg12[%c0_91, %c0_92] : memref<1x16xf32, #tpu.memory_space<vmem>>, vector<1x16xf32>
    %221 = vector.broadcast %220 : vector<1x16xf32> to vector<16x16xf32>
    %222 = arith.addf %219, %221 : vector<16x16xf32>
    %223 = arith.addf %126, %222 : vector<16x16xf32>
    %c0_93 = arith.constant 0 : index
    %c0_94 = arith.constant 0 : index
    %224 = vector.load %arg13[%c0_93, %c0_94] : memref<1x16xf32, #tpu.memory_space<vmem>>, vector<1x16xf32>
    %c0_95 = arith.constant 0 : index
    %c0_96 = arith.constant 0 : index
    %225 = vector.load %arg14[%c0_95, %c0_96] : memref<1x16xf32, #tpu.memory_space<vmem>>, vector<1x16xf32>
    %cst_97 = arith.constant dense<0.000000e+00> : vector<16xf32>
    %226 = vector.multi_reduction <add>, %223, %cst_97 [1] : vector<16x16xf32> to vector<16xf32>
    %227 = vector.shape_cast %226 : vector<16xf32> to vector<16x1xf32>
    %cst_98 = arith.constant 1.600000e+01 : f32
    %228 = vector.broadcast %cst_98 : f32 to vector<16x1xf32>
    %229 = arith.divf %227, %228 : vector<16x1xf32>
    %230 = vector.broadcast %229 : vector<16x1xf32> to vector<16x16xf32>
    %231 = arith.subf %223, %230 : vector<16x16xf32>
    %232 = arith.mulf %231, %231 : vector<16x16xf32>
    %cst_99 = arith.constant dense<0.000000e+00> : vector<16xf32>
    %233 = vector.multi_reduction <add>, %232, %cst_99 [1] : vector<16x16xf32> to vector<16xf32>
    %234 = vector.shape_cast %233 : vector<16xf32> to vector<16x1xf32>
    %cst_100 = arith.constant 1.600000e+01 : f32
    %235 = vector.broadcast %cst_100 : f32 to vector<16x1xf32>
    %236 = arith.divf %234, %235 : vector<16x1xf32>
    %237 = vector.broadcast %229 : vector<16x1xf32> to vector<16x16xf32>
    %238 = arith.subf %223, %237 : vector<16x16xf32>
    %cst_101 = arith.constant 9.99999974E-6 : f32
    %239 = vector.broadcast %cst_101 : f32 to vector<16x1xf32>
    %240 = arith.addf %236, %239 : vector<16x1xf32>
    %241 = math.rsqrt %240 : vector<16x1xf32>
    %242 = vector.broadcast %241 : vector<16x1xf32> to vector<16x16xf32>
    %243 = arith.mulf %238, %242 : vector<16x16xf32>
    %244 = vector.broadcast %224 : vector<1x16xf32> to vector<16x16xf32>
    %245 = arith.mulf %243, %244 : vector<16x16xf32>
    %246 = vector.broadcast %225 : vector<1x16xf32> to vector<16x16xf32>
    %247 = arith.addf %245, %246 : vector<16x16xf32>
    %c0_102 = arith.constant 0 : index
    %c0_103 = arith.constant 0 : index
    %248 = vector.load %arg15[%c0_102, %c0_103] : memref<16x32xf32, #tpu.memory_space<vmem>>, vector<16x32xf32>
    %cst_104 = arith.constant dense<0.000000e+00> : vector<16x32xf32>
    %249 = tpu.matmul %247, %248, %cst_104 {dimension_numbers = #tpu.dot_dimension_numbers<[1], [0], [0], [1], [0, 0, 1, 1], [], []>} : vector<16x16xf32>, vector<16x32xf32>, vector<16x32xf32> -> vector<16x32xf32>
    %c0_105 = arith.constant 0 : index
    %c0_106 = arith.constant 0 : index
    %250 = vector.load %arg16[%c0_105, %c0_106] : memref<1x32xf32, #tpu.memory_space<vmem>>, vector<1x32xf32>
    %251 = vector.broadcast %250 : vector<1x32xf32> to vector<16x32xf32>
    %252 = arith.addf %249, %251 : vector<16x32xf32>
    %cst_107 = arith.constant 0.000000e+00 : f32
    %253 = vector.broadcast %cst_107 : f32 to vector<16x32xf32>
    %254 = arith.maximumf %252, %253 : vector<16x32xf32>
    %c0_108 = arith.constant 0 : index
    %c0_109 = arith.constant 0 : index
    %255 = vector.load %arg17[%c0_108, %c0_109] : memref<32x16xf32, #tpu.memory_space<vmem>>, vector<32x16xf32>
    %cst_110 = arith.constant dense<0.000000e+00> : vector<16x16xf32>
    %256 = tpu.matmul %254, %255, %cst_110 {dimension_numbers = #tpu.dot_dimension_numbers<[1], [0], [0], [1], [0, 0, 1, 1], [], []>} : vector<16x32xf32>, vector<32x16xf32>, vector<16x16xf32> -> vector<16x16xf32>
    %c0_111 = arith.constant 0 : index
    %c0_112 = arith.constant 0 : index
    %257 = vector.load %arg18[%c0_111, %c0_112] : memref<1x16xf32, #tpu.memory_space<vmem>>, vector<1x16xf32>
    %258 = vector.broadcast %257 : vector<1x16xf32> to vector<16x16xf32>
    %259 = arith.addf %256, %258 : vector<16x16xf32>
    %260 = arith.addf %247, %259 : vector<16x16xf32>
    %c0_113 = arith.constant 0 : index
    %c0_114 = arith.constant 0 : index
    %261 = vector.load %arg19[%c0_113, %c0_114] : memref<1x16xf32, #tpu.memory_space<vmem>>, vector<1x16xf32>
    %c0_115 = arith.constant 0 : index
    %c0_116 = arith.constant 0 : index
    %262 = vector.load %arg20[%c0_115, %c0_116] : memref<1x16xf32, #tpu.memory_space<vmem>>, vector<1x16xf32>
    %cst_117 = arith.constant dense<0.000000e+00> : vector<16xf32>
    %263 = vector.multi_reduction <add>, %260, %cst_117 [1] : vector<16x16xf32> to vector<16xf32>
    %264 = vector.shape_cast %263 : vector<16xf32> to vector<16x1xf32>
    %cst_118 = arith.constant 1.600000e+01 : f32
    %265 = vector.broadcast %cst_118 : f32 to vector<16x1xf32>
    %266 = arith.divf %264, %265 : vector<16x1xf32>
    %267 = vector.broadcast %266 : vector<16x1xf32> to vector<16x16xf32>
    %268 = arith.subf %260, %267 : vector<16x16xf32>
    %269 = arith.mulf %268, %268 : vector<16x16xf32>
    %cst_119 = arith.constant dense<0.000000e+00> : vector<16xf32>
    %270 = vector.multi_reduction <add>, %269, %cst_119 [1] : vector<16x16xf32> to vector<16xf32>
    %271 = vector.shape_cast %270 : vector<16xf32> to vector<16x1xf32>
    %cst_120 = arith.constant 1.600000e+01 : f32
    %272 = vector.broadcast %cst_120 : f32 to vector<16x1xf32>
    %273 = arith.divf %271, %272 : vector<16x1xf32>
    %274 = vector.broadcast %266 : vector<16x1xf32> to vector<16x16xf32>
    %275 = arith.subf %260, %274 : vector<16x16xf32>
    %cst_121 = arith.constant 9.99999974E-6 : f32
    %276 = vector.broadcast %cst_121 : f32 to vector<16x1xf32>
    %277 = arith.addf %273, %276 : vector<16x1xf32>
    %278 = math.rsqrt %277 : vector<16x1xf32>
    %279 = vector.broadcast %278 : vector<16x1xf32> to vector<16x16xf32>
    %280 = arith.mulf %275, %279 : vector<16x16xf32>
    %281 = vector.broadcast %261 : vector<1x16xf32> to vector<16x16xf32>
    %282 = arith.mulf %280, %281 : vector<16x16xf32>
    %283 = vector.broadcast %262 : vector<1x16xf32> to vector<16x16xf32>
    %284 = arith.addf %282, %283 : vector<16x16xf32>
    %c0_122 = arith.constant 0 : index
    %c0_123 = arith.constant 0 : index
    %285 = vector.load %arg21[%c0_122, %c0_123] : memref<16x16xf32, #tpu.memory_space<vmem>>, vector<16x16xf32>
    tpu.vector_store %arg21[%c0_122, %c0_123], %284 {strides = array<i32>} : memref<16x16xf32, #tpu.memory_space<vmem>>, vector<16x16xf32>,
    return
  }
  func.func @transform_0(%arg0: i32) -> (i32, i32) {
    %c0_i32 = arith.constant 0 : i32
    %c0_i32_0 = arith.constant 0 : i32
    %c0_i32_1 = arith.constant 0 : i32
    return %c0_i32, %c0_i32_0 : i32, i32
  }
  func.func @transform_1(%arg0: i32) -> (i32, i32) {
    %c0_i32 = arith.constant 0 : i32
    %c0_i32_0 = arith.constant 0 : i32
    %c0_i32_1 = arith.constant 0 : i32
    return %c0_i32, %c0_i32_0 : i32, i32
  }
  func.func @transform_2(%arg0: i32) -> (i32, i32) {
    %c0_i32 = arith.constant 0 : i32
    %c0_i32_0 = arith.constant 0 : i32
    %c0_i32_1 = arith.constant 0 : i32
    return %c0_i32, %c0_i32_0 : i32, i32
  }
  func.func @transform_3(%arg0: i32) -> (i32, i32) {
    %c0_i32 = arith.constant 0 : i32
    %c0_i32_0 = arith.constant 0 : i32
    %c0_i32_1 = arith.constant 0 : i32
    return %c0_i32, %c0_i32_0 : i32, i32
  }
  func.func @transform_4(%arg0: i32) -> (i32, i32) {
    %c0_i32 = arith.constant 0 : i32
    %c0_i32_0 = arith.constant 0 : i32
    %c0_i32_1 = arith.constant 0 : i32
    return %c0_i32, %c0_i32_0 : i32, i32
  }
  func.func @transform_5(%arg0: i32) -> (i32, i32) {
    %c0_i32 = arith.constant 0 : i32
    %c0_i32_0 = arith.constant 0 : i32
    %c0_i32_1 = arith.constant 0 : i32
    return %c0_i32, %c0_i32_0 : i32, i32
  }
  func.func @transform_6(%arg0: i32) -> (i32, i32) {
    %c0_i32 = arith.constant 0 : i32
    %c0_i32_0 = arith.constant 0 : i32
    %c0_i32_1 = arith.constant 0 : i32
    return %c0_i32, %c0_i32_0 : i32, i32
  }
  func.func @transform_7(%arg0: i32) -> (i32, i32) {
    %c0_i32 = arith.constant 0 : i32
    %c0_i32_0 = arith.constant 0 : i32
    %c0_i32_1 = arith.constant 0 : i32
    return %c0_i32, %c0_i32_0 : i32, i32
  }
  func.func @transform_8(%arg0: i32) -> (i32, i32) {
    %c0_i32 = arith.constant 0 : i32
    %c0_i32_0 = arith.constant 0 : i32
    %c0_i32_1 = arith.constant 0 : i32
    return %c0_i32, %c0_i32_0 : i32, i32
  }
  func.func @transform_9(%arg0: i32) -> (i32, i32) {
    %c0_i32 = arith.constant 0 : i32
    %c0_i32_0 = arith.constant 0 : i32
    %c0_i32_1 = arith.constant 0 : i32
    return %c0_i32, %c0_i32_0 : i32, i32
  }
  func.func @transform_10(%arg0: i32) -> (i32, i32) {
    %c0_i32 = arith.constant 0 : i32
    %c0_i32_0 = arith.constant 0 : i32
    %c0_i32_1 = arith.constant 0 : i32
    return %c0_i32, %c0_i32_0 : i32, i32
  }
  func.func @transform_11(%arg0: i32) -> (i32, i32) {
    %c0_i32 = arith.constant 0 : i32
    %c0_i32_0 = arith.constant 0 : i32
    %c0_i32_1 = arith.constant 0 : i32
    return %c0_i32, %c0_i32_0 : i32, i32
  }
  func.func @transform_12(%arg0: i32) -> (i32, i32) {
    %c0_i32 = arith.constant 0 : i32
    %c0_i32_0 = arith.constant 0 : i32
    %c0_i32_1 = arith.constant 0 : i32
    return %c0_i32, %c0_i32_0 : i32, i32
  }
  func.func @transform_13(%arg0: i32) -> (i32, i32) {
    %c0_i32 = arith.constant 0 : i32
    %c0_i32_0 = arith.constant 0 : i32
    %c0_i32_1 = arith.constant 0 : i32
    return %c0_i32, %c0_i32_0 : i32, i32
  }
  func.func @transform_14(%arg0: i32) -> (i32, i32) {
    %c0_i32 = arith.constant 0 : i32
    %c0_i32_0 = arith.constant 0 : i32
    %c0_i32_1 = arith.constant 0 : i32
    return %c0_i32, %c0_i32_0 : i32, i32
  }
  func.func @transform_15(%arg0: i32) -> (i32, i32) {
    %c0_i32 = arith.constant 0 : i32
    %c0_i32_0 = arith.constant 0 : i32
    %c0_i32_1 = arith.constant 0 : i32
    return %c0_i32, %c0_i32_0 : i32, i32
  }
  func.func @transform_16(%arg0: i32) -> (i32, i32) {
    %c0_i32 = arith.constant 0 : i32
    %c0_i32_0 = arith.constant 0 : i32
    %c0_i32_1 = arith.constant 0 : i32
    return %c0_i32, %c0_i32_0 : i32, i32
  }
  func.func @transform_17(%arg0: i32) -> (i32, i32) {
    %c0_i32 = arith.constant 0 : i32
    %c0_i32_0 = arith.constant 0 : i32
    %c0_i32_1 = arith.constant 0 : i32
    return %c0_i32, %c0_i32_0 : i32, i32
  }
  func.func @transform_18(%arg0: i32) -> (i32, i32) {
    %c0_i32 = arith.constant 0 : i32
    %c0_i32_0 = arith.constant 0 : i32
    %c0_i32_1 = arith.constant 0 : i32
    return %c0_i32, %c0_i32_0 : i32, i32
  }
  func.func @transform_19(%arg0: i32) -> (i32, i32) {
    %c0_i32 = arith.constant 0 : i32
    %c0_i32_0 = arith.constant 0 : i32
    %c0_i32_1 = arith.constant 0 : i32
    return %c0_i32, %c0_i32_0 : i32, i32
  }
  func.func @transform_20(%arg0: i32) -> (i32, i32) {
    %c0_i32 = arith.constant 0 : i32
    %c0_i32_0 = arith.constant 0 : i32
    %c0_i32_1 = arith.constant 0 : i32
    return %c0_i32, %c0_i32_0 : i32, i32
  }
}

module attributes {stable_mosaic.version = 11 : i64} {
  func.func @_final_kernel(%arg0: i32, %arg1: memref<16x16xf32, #tpu.memory_space<vmem>>, %arg2: memref<1x16xf32, #tpu.memory_space<vmem>>, %arg3: memref<1x16xf32, #tpu.memory_space<vmem>>, %arg4: memref<16x32xf32, #tpu.memory_space<vmem>>, %arg5: memref<1x32xf32, #tpu.memory_space<vmem>>, %arg6: memref<16x32xf32, #tpu.memory_space<vmem>>) attributes {dimension_semantics = [#tpu.dimension_semantics<arbitrary>], iteration_bounds = array<i64: 1>, scalar_prefetch = 0 : i64, scratch_operands = 0 : i64, tpu.core_type = #tpu.core_type<tc>, window_params = [{pipeline_mode = #tpu.pipeline_mode<synchronous>, transform_indices = @transform_0, window_bounds = array<i64: 16, 16>}, {pipeline_mode = #tpu.pipeline_mode<synchronous>, transform_indices = @transform_1, window_bounds = array<i64: 1, 16>}, {pipeline_mode = #tpu.pipeline_mode<synchronous>, transform_indices = @transform_2, window_bounds = array<i64: 1, 16>}, {pipeline_mode = #tpu.pipeline_mode<synchronous>, transform_indices = @transform_3, window_bounds = array<i64: 16, 32>}, {pipeline_mode = #tpu.pipeline_mode<synchronous>, transform_indices = @transform_4, window_bounds = array<i64: 1, 32>}, {pipeline_mode = #tpu.pipeline_mode<synchronous>, transform_indices = @transform_5, window_bounds = array<i64: 16, 32>}]} {
    %c0 = arith.constant 0 : index
    %c0_0 = arith.constant 0 : index
    %0 = vector.load %arg1[%c0, %c0_0] : memref<16x16xf32, #tpu.memory_space<vmem>>, vector<16x16xf32>
    %c0_1 = arith.constant 0 : index
    %c0_2 = arith.constant 0 : index
    %1 = vector.load %arg2[%c0_1, %c0_2] : memref<1x16xf32, #tpu.memory_space<vmem>>, vector<1x16xf32>
    %c0_3 = arith.constant 0 : index
    %c0_4 = arith.constant 0 : index
    %2 = vector.load %arg3[%c0_3, %c0_4] : memref<1x16xf32, #tpu.memory_space<vmem>>, vector<1x16xf32>
    %cst = arith.constant dense<0.000000e+00> : vector<16xf32>
    %3 = vector.multi_reduction <add>, %0, %cst [1] : vector<16x16xf32> to vector<16xf32>
    %4 = vector.shape_cast %3 : vector<16xf32> to vector<16x1xf32>
    %cst_5 = arith.constant 1.600000e+01 : f32
    %5 = vector.broadcast %cst_5 : f32 to vector<16x1xf32>
    %6 = arith.divf %4, %5 : vector<16x1xf32>
    %7 = vector.broadcast %6 : vector<16x1xf32> to vector<16x16xf32>
    %8 = arith.subf %0, %7 : vector<16x16xf32>
    %9 = arith.mulf %8, %8 : vector<16x16xf32>
    %cst_6 = arith.constant dense<0.000000e+00> : vector<16xf32>
    %10 = vector.multi_reduction <add>, %9, %cst_6 [1] : vector<16x16xf32> to vector<16xf32>
    %11 = vector.shape_cast %10 : vector<16xf32> to vector<16x1xf32>
    %cst_7 = arith.constant 1.600000e+01 : f32
    %12 = vector.broadcast %cst_7 : f32 to vector<16x1xf32>
    %13 = arith.divf %11, %12 : vector<16x1xf32>
    %14 = vector.broadcast %6 : vector<16x1xf32> to vector<16x16xf32>
    %15 = arith.subf %0, %14 : vector<16x16xf32>
    %cst_8 = arith.constant 9.99999974E-6 : f32
    %16 = vector.broadcast %cst_8 : f32 to vector<16x1xf32>
    %17 = arith.addf %13, %16 : vector<16x1xf32>
    %18 = math.rsqrt %17 : vector<16x1xf32>
    %19 = vector.broadcast %18 : vector<16x1xf32> to vector<16x16xf32>
    %20 = arith.mulf %15, %19 : vector<16x16xf32>
    %21 = vector.broadcast %1 : vector<1x16xf32> to vector<16x16xf32>
    %22 = arith.mulf %20, %21 : vector<16x16xf32>
    %23 = vector.broadcast %2 : vector<1x16xf32> to vector<16x16xf32>
    %24 = arith.addf %22, %23 : vector<16x16xf32>
    %c0_9 = arith.constant 0 : index
    %c0_10 = arith.constant 0 : index
    %25 = vector.load %arg4[%c0_9, %c0_10] : memref<16x32xf32, #tpu.memory_space<vmem>>, vector<16x32xf32>
    %cst_11 = arith.constant dense<0.000000e+00> : vector<16x32xf32>
    %26 = tpu.matmul %24, %25, %cst_11 {dimension_numbers = #tpu.dot_dimension_numbers<[1], [0], [0], [1], [0, 0, 1, 1], [], []>} : vector<16x16xf32>, vector<16x32xf32>, vector<16x32xf32> -> vector<16x32xf32>
    %c0_12 = arith.constant 0 : index
    %c0_13 = arith.constant 0 : index
    %27 = vector.load %arg5[%c0_12, %c0_13] : memref<1x32xf32, #tpu.memory_space<vmem>>, vector<1x32xf32>
    %28 = vector.broadcast %27 : vector<1x32xf32> to vector<16x32xf32>
    %29 = arith.addf %26, %28 : vector<16x32xf32>
    %c0_14 = arith.constant 0 : index
    %c0_15 = arith.constant 0 : index
    %30 = vector.load %arg6[%c0_14, %c0_15] : memref<16x32xf32, #tpu.memory_space<vmem>>, vector<16x32xf32>
    tpu.vector_store %arg6[%c0_14, %c0_15], %29 {strides = array<i32>} : memref<16x32xf32, #tpu.memory_space<vmem>>, vector<16x32xf32>,
    return
  }
  func.func @transform_0(%arg0: i32) -> (i32, i32) {
    %c0_i32 = arith.constant 0 : i32
    %c0_i32_0 = arith.constant 0 : i32
    %c0_i32_1 = arith.constant 0 : i32
    return %c0_i32, %c0_i32_0 : i32, i32
  }
  func.func @transform_1(%arg0: i32) -> (i32, i32) {
    %c0_i32 = arith.constant 0 : i32
    %c0_i32_0 = arith.constant 0 : i32
    %c0_i32_1 = arith.constant 0 : i32
    return %c0_i32, %c0_i32_0 : i32, i32
  }
  func.func @transform_2(%arg0: i32) -> (i32, i32) {
    %c0_i32 = arith.constant 0 : i32
    %c0_i32_0 = arith.constant 0 : i32
    %c0_i32_1 = arith.constant 0 : i32
    return %c0_i32, %c0_i32_0 : i32, i32
  }
  func.func @transform_3(%arg0: i32) -> (i32, i32) {
    %c0_i32 = arith.constant 0 : i32
    %c0_i32_0 = arith.constant 0 : i32
    %c0_i32_1 = arith.constant 0 : i32
    return %c0_i32, %c0_i32_0 : i32, i32
  }
  func.func @transform_4(%arg0: i32) -> (i32, i32) {
    %c0_i32 = arith.constant 0 : i32
    %c0_i32_0 = arith.constant 0 : i32
    %c0_i32_1 = arith.constant 0 : i32
    return %c0_i32, %c0_i32_0 : i32, i32
  }
  func.func @transform_5(%arg0: i32) -> (i32, i32) {
    %c0_i32 = arith.constant 0 : i32
    %c0_i32_0 = arith.constant 0 : i32
    %c0_i32_1 = arith.constant 0 : i32
    return %c0_i32, %c0_i32_0 : i32, i32
  }
}

</mosaic_0001>

<llo_original>
// kernel: audio_transformer_forward.6
$region0: #{audio_transformer_forward.6}
  #allocation0 [shape = 'u32[]', space=smem, size = 0x4, offset = 0x4, fixed_abs, tag = 'smem constant byte address 0x4 - core index']
  #allocation1 [shape = 'u32[144,128]{1,0:T(1,128)}', space=vmem, size = 0x12000, scoped, tag = 'internal scratch']
  %s0 = inlined_call_operand.vmem [shape: f32[32,32], index: 0, kind: input, shape index: {}]
  %s1 = inlined_call_operand.vmem [shape: f32[32,16], index: 1, kind: input, shape index: {}]
  %s2 = inlined_call_operand.vmem [shape: f32[1,16], index: 2, kind: input, shape index: {}]
  %s3 = inlined_call_operand.vmem [shape: f32[32,16], index: 3, kind: input, shape index: {}]
  %s4 = inlined_call_operand.vmem [shape: f32[32,16], index: 4, kind: output, shape index: {}]
  %s5 = sld [smem:[#allocation0]]
  $region26: #{audio_transformer_forward.6} parent=0
    _
  %s7 = ssub.s32 1, %s5
  %s8 = scalar_select 0, %s7, %s5
  // Predicated region
  $region2: #{audio_transformer_forward.6} parent=0 // pred_check
    _
  $region3: #{audio_transformer_forward.6} parent=0 // pred_check_branch
    %10 = sbr.rel (0) target = $region5
  $region4: #{audio_transformer_forward.6} parent=0 // pred_region
    _
  $region5: #{audio_transformer_forward.6} parent=0 // pred_fallthru
    _
  // Predicated region
  $region6: #{audio_transformer_forward.6} parent=0 // pred_check
    _
  $region7: #{audio_transformer_forward.6} parent=0 // pred_check_branch
    %12 = sbr.rel (0) target = $region9
  $region8: #{audio_transformer_forward.6} parent=0 // pred_region
    _
  $region9: #{audio_transformer_forward.6} parent=0 // pred_fallthru
    _
  // Predicated region
  $region10: #{audio_transformer_forward.6} parent=0 // pred_check
    _
  $region11: #{audio_transformer_forward.6} parent=0 // pred_check_branch
    %14 = sbr.rel (0) target = $region13
  $region12: #{audio_transformer_forward.6} parent=0 // pred_region
    _
  $region13: #{audio_transformer_forward.6} parent=0 // pred_fallthru
    _
  // Predicated region
  $region14: #{audio_transformer_forward.6} parent=0 // pred_check
    _
  $region15: #{audio_transformer_forward.6} parent=0 // pred_check_branch
    %16 = sbr.rel (0) target = $region17
  $region16: #{audio_transformer_forward.6} parent=0 // pred_region
    _
  $region17: #{audio_transformer_forward.6} parent=0 // pred_fallthru
    _
  %v17 = vld [vmem:[%s0] sm:$0xff]
  %v18 = vld [vmem:[%s0 + $0x8] sm:$0xff]
  %v19 = vld [vmem:[%s0 + $0x10] sm:$0xff]
  %v20 = vld [vmem:[%s0 + $0x18] sm:$0xff]
  %v21 = vld [vmem:[%s1] sm:$0xff]
  %v22 = vld [vmem:[%s1 + $0x8] sm:$0xff]
  %v23 = vld [vmem:[%s1 + $0x10] sm:$0xff]
  %v24 = vld [vmem:[%s1 + $0x18] sm:$0xff]
  %v25 = vld [vmem:[%s2] sm:$0x1]
  %v27 = vlaneseq
  %v28 = vshrl.u32 %v27, 7
  %v29 = vsub.s32 0, %v28
  %v30 = vrot.slane %v25, %v29
  %vm32 = vcmask 261120
  %v34 = vsel %vm32, %v17, 0
  %v37 = vsel %vm32, %v18, 0
  %v40 = vsel %vm32, %v19, 0
  %v43 = vsel %vm32, %v20, 0
  %45 = vmatprep.subr.mxu0 0.0
  %46 = vmatpush1.msra.mxu0 0.0
  %47 = vmatprep.subr.mxu0 0.0
  %48 = vmatpush1.msra.mxu0 0.0
  %49 = vmatprep.subr.mxu0 0.0
  %50 = vmatpush1.msra.mxu0 0.0
  %51 = vmatprep.subr.mxu0 0.0
  %52 = vmatpush1.msra.mxu0 0.0
  %53 = vmatprep.subr.mxu0 0.0
  %54 = vmatpush1.msra.mxu0 0.0
  %55 = vmatprep.subr.mxu0 0.0
  %56 = vmatpush1.msra.mxu0 0.0
  %57 = vmatprep.subr.mxu0 0.0
  %58 = vmatpush1.msra.mxu0 0.0
  %59 = vmatprep.subr.mxu0 0.0
  %60 = vmatpush1.msra.mxu0 0.0
  %61 = vmatprep.subr.mxu0 0.0
  %62 = vmatpush1.msra.mxu0 0.0
  %63 = vmatprep.subr.mxu0 0.0
  %64 = vmatpush1.msra.mxu0 0.0
  %65 = vmatprep.subr.mxu0 0.0
  %66 = vmatpush1.msra.mxu0 0.0
  %67 = vmatprep.subr.mxu0 0.0
  %68 = vmatpush1.msra.mxu0 0.0
  %69 = vmatprep.subr.mxu0 0.0
  %70 = vmatpush1.msra.mxu0 %v24
  %71 = vmatprep.subr.mxu0 0.0
  %72 = vmatpush1.msra.mxu0 %v23
  %73 = vmatprep.subr.mxu0 0.0
  %74 = vmatpush1.msra.mxu0 %v22
  %75 = vmatprep.subr.mxu0 0.0
  %76 = vmatpush1.msra.mxu0 %v21
  %77 = vmatprep.subr.mxu0 0.0
  %78 = vmatpush2.msra.mxu0 0.0
  %79 = vmatprep.subr.mxu0 0.0
  %80 = vmatpush2.msra.mxu0 0.0
  %81 = vmatprep.subr.mxu0 0.0
  %82 = vmatpush2.msra.mxu0 0.0
  %83 = vmatprep.subr.mxu0 0.0
  %84 = vmatpush2.msra.mxu0 0.0
  %85 = vmatprep.subr.mxu0 0.0
  %86 = vmatpush2.msra.mxu0 0.0
  %87 = vmatprep.subr.mxu0 0.0
  %88 = vmatpush2.msra.mxu0 0.0
  %89 = vmatprep.subr.mxu0 0.0
  %90 = vmatpush2.msra.mxu0 0.0
  %91 = vmatprep.subr.mxu0 0.0
  %92 = vmatpush2.msra.mxu0 0.0
  %93 = vmatprep.subr.mxu0 0.0
  %94 = vmatpush2.msra.mxu0 0.0
  %95 = vmatprep.subr.mxu0 0.0
  %96 = vmatpush2.msra.mxu0 0.0
  %97 = vmatprep.subr.mxu0 0.0
  %98 = vmatpush2.msra.mxu0 0.0
  %99 = vmatprep.subr.mxu0 0.0
  %100 = vmatpush2.msra.mxu0 0.0
  %101 = vmatprep.subr.mxu0 0.0
  %102 = vmatpush2.msra.mxu0 0.0
  %103 = vmatprep.subr.mxu0 0.0
  %104 = vmatpush2.msra.mxu0 0.0
  %105 = vmatprep.subr.mxu0 0.0
  %106 = vmatpush2.msra.mxu0 0.0
  %107 = vmatprep.subr.mxu0 0.0
  %108 = vmatpush2.msra.mxu0 0.0
  %109 = vmatprep.mubr.f32.mxu0 0.0
  %110 = vmatmul.mubr.f32.gmra.mxu0 %v34
  %v111 = vpop.f32.mrf.mxu0
  %v112 = vadd.f32 %v30, %v111
  %v113 = vpop.f32.mrf.mxu0
  %114 = vmatprep.mubr.f32.mxu0 0.0
  %115 = vmatmul.mubr.f32.gmra.mxu0 %v37
  %v116 = vpop.f32.mrf.mxu0
  %v117 = vadd.f32 %v30, %v116
  %v118 = vpop.f32.mrf.mxu0
  %119 = vmatprep.mubr.f32.mxu0 0.0
  %120 = vmatmul.mubr.f32.gmra.mxu0 %v40
  %v121 = vpop.f32.mrf.mxu0
  %v122 = vadd.f32 %v30, %v121
  %v123 = vpop.f32.mrf.mxu0
  %124 = vmatprep.mubr.f32.mxu0 0.0
  %125 = vmatmul.mubr.f32.gmra.mxu0 %v43
  %v126 = vpop.f32.mrf.mxu0
  %v127 = vadd.f32 %v30, %v126
  %v128 = vpop.f32.mrf.mxu0
  %129 = vdwg.mxu0
  %v130 = vld [vmem:[%s3] sm:$0xff]
  %v131 = vld [vmem:[%s3 + $0x8] sm:$0xff]
  %v132 = vld [vmem:[%s3 + $0x10] sm:$0xff]
  %v133 = vld [vmem:[%s3 + $0x18] sm:$0xff]
  %v134 = vadd.f32 %v112, %v130
  %v135 = vadd.f32 %v117, %v131
  %v136 = vadd.f32 %v122, %v132
  %v137 = vadd.f32 %v127, %v133
  %vm138 = vcmask 130048
  %139 = vst.msk [vmem:[%s4] sm:$0xff] %vm138, %v134
  %140 = vst.msk [vmem:[%s4 + $0x8] sm:$0xff] %vm138, %v135
  %141 = vst.msk [vmem:[%s4 + $0x10] sm:$0xff] %vm138, %v136
  %142 = vst.msk [vmem:[%s4 + $0x18] sm:$0xff] %vm138, %v137
  // Predicated region
  $region18: #{audio_transformer_forward.6} parent=0 // pred_check
    _
  $region19: #{audio_transformer_forward.6} parent=0 // pred_check_branch
    %144 = sbr.rel (0) target = $region21
  $region20: #{audio_transformer_forward.6} parent=0 // pred_region
    _
  $region21: #{audio_transformer_forward.6} parent=0 // pred_fallthru
    _
  // Predicated region
  $region22: #{audio_transformer_forward.6} parent=0 // pred_check
    _
  $region23: #{audio_transformer_forward.6} parent=0 // pred_check_branch
    %146 = sbr.rel (0) target = $region25
  $region24: #{audio_transformer_forward.6} parent=0 // pred_region
    _
  $region25: #{audio_transformer_forward.6} parent=0 // pred_fallthru
    _

// kernel: audio_transformer_forward.7
$region0: #{audio_transformer_forward.7}
  #allocation0 [shape = 'u32[]', space=smem, size = 0x4, offset = 0x4, fixed_abs, tag = 'smem constant byte address 0x4 - core index']
  #allocation1 [shape = 'u32[144,128]{1,0:T(1,128)}', space=vmem, size = 0x12000, scoped, tag = 'internal scratch']
  #allocation2 [shape = 'f32[16,16]{1,0:T(8,128)}', space=vmem, size = 0x2000, scoped, tag = 'scratch operand']
  %s0 = inlined_call_operand.vmem [shape: f32[16,16], index: 0, kind: input, shape index: {}]
  %s1 = inlined_call_operand.vmem [shape: f32[16,48], index: 1, kind: input, shape index: {}]
  %s2 = inlined_call_operand.vmem [shape: f32[1,48], index: 2, kind: input, shape index: {}]
  %s3 = inlined_call_operand.vmem [shape: f32[16,16], index: 3, kind: input, shape index: {}]
  %s4 = inlined_call_operand.vmem [shape: f32[1,16], index: 4, kind: input, shape index: {}]
  %s5 = inlined_call_operand.vmem [shape: f32[1,16], index: 5, kind: input, shape index: {}]
  %s6 = inlined_call_operand.vmem [shape: f32[1,16], index: 6, kind: input, shape index: {}]
  %s7 = inlined_call_operand.vmem [shape: f32[16,32], index: 7, kind: input, shape index: {}]
  %s8 = inlined_call_operand.vmem [shape: f32[1,32], index: 8, kind: input, shape index: {}]
  %s9 = inlined_call_operand.vmem [shape: f32[32,16], index: 9, kind: input, shape index: {}]
  %s10 = inlined_call_operand.vmem [shape: f32[1,16], index: 10, kind: input, shape index: {}]
  %s11 = inlined_call_operand.vmem [shape: f32[1,16], index: 11, kind: input, shape index: {}]
  %s12 = inlined_call_operand.vmem [shape: f32[1,16], index: 12, kind: input, shape index: {}]
  %s13 = inlined_call_operand.vmem [shape: f32[16,16], index: 13, kind: output, shape index: {}]
  %s14 = sld [smem:[#allocation0]]
  $region62: #{audio_transformer_forward.7} parent=0
    _
  %s16 = ssub.s32 1, %s14
  %s17 = scalar_select 0, %s16, %s14
  // Predicated region
  $region2: #{audio_transformer_forward.7} parent=0 // pred_check
    _
  $region3: #{audio_transformer_forward.7} parent=0 // pred_check_branch
    %19 = sbr.rel (0) target = $region5
  $region4: #{audio_transformer_forward.7} parent=0 // pred_region
    _
  $region5: #{audio_transformer_forward.7} parent=0 // pred_fallthru
    _
  // Predicated region
  $region6: #{audio_transformer_forward.7} parent=0 // pred_check
    _
  $region7: #{audio_transformer_forward.7} parent=0 // pred_check_branch
    %21 = sbr.rel (0) target = $region9
  $region8: #{audio_transformer_forward.7} parent=0 // pred_region
    _
  $region9: #{audio_transformer_forward.7} parent=0 // pred_fallthru
    _
  // Predicated region
  $region10: #{audio_transformer_forward.7} parent=0 // pred_check
    _
  $region11: #{audio_transformer_forward.7} parent=0 // pred_check_branch
    %23 = sbr.rel (0) target = $region13
  $region12: #{audio_transformer_forward.7} parent=0 // pred_region
    _
  $region13: #{audio_transformer_forward.7} parent=0 // pred_fallthru
    _
  // Predicated region
  $region14: #{audio_transformer_forward.7} parent=0 // pred_check
    _
  $region15: #{audio_transformer_forward.7} parent=0 // pred_check_branch
    %25 = sbr.rel (0) target = $region17
  $region16: #{audio_transformer_forward.7} parent=0 // pred_region
    _
  $region17: #{audio_transformer_forward.7} parent=0 // pred_fallthru
    _
  // Predicated region
  $region18: #{audio_transformer_forward.7} parent=0 // pred_check
    _
  $region19: #{audio_transformer_forward.7} parent=0 // pred_check_branch
    %27 = sbr.rel (0) target = $region21
  $region20: #{audio_transformer_forward.7} parent=0 // pred_region
    _
  $region21: #{audio_transformer_forward.7} parent=0 // pred_fallthru
    _
  // Predicated region
  $region22: #{audio_transformer_forward.7} parent=0 // pred_check
    _
  $region23: #{audio_transformer_forward.7} parent=0 // pred_check_branch
    %29 = sbr.rel (0) target = $region25
  $region24: #{audio_transformer_forward.7} parent=0 // pred_region
    _
  $region25: #{audio_transformer_forward.7} parent=0 // pred_fallthru
    _
  // Predicated region
  $region26: #{audio_transformer_forward.7} parent=0 // pred_check
    _
  $region27: #{audio_transformer_forward.7} parent=0 // pred_check_branch
    %31 = sbr.rel (0) target = $region29
  $region28: #{audio_transformer_forward.7} parent=0 // pred_region
    _
  $region29: #{audio_transformer_forward.7} parent=0 // pred_fallthru
    _
  // Predicated region
  $region30: #{audio_transformer_forward.7} parent=0 // pred_check
    _
  $region31: #{audio_transformer_forward.7} parent=0 // pred_check_branch
    %33 = sbr.rel (0) target = $region33
  $region32: #{audio_transformer_forward.7} parent=0 // pred_region
    _
  $region33: #{audio_transformer_forward.7} parent=0 // pred_fallthru
    _
  // Predicated region
  $region34: #{audio_transformer_forward.7} parent=0 // pred_check
    _
  $region35: #{audio_transformer_forward.7} parent=0 // pred_check_branch
    %35 = sbr.rel (0) target = $region37
  $region36: #{audio_transformer_forward.7} parent=0 // pred_region
    _
  $region37: #{audio_transformer_forward.7} parent=0 // pred_fallthru
    _
  // Predicated region
  $region38: #{audio_transformer_forward.7} parent=0 // pred_check
    _
  $region39: #{audio_transformer_forward.7} parent=0 // pred_check_branch
    %37 = sbr.rel (0) target = $region41
  $region40: #{audio_transformer_forward.7} parent=0 // pred_region
    _
  $region41: #{audio_transformer_forward.7} parent=0 // pred_fallthru
    _
  // Predicated region
  $region42: #{audio_transformer_forward.7} parent=0 // pred_check
    _
  $region43: #{audio_transformer_forward.7} parent=0 // pred_check_branch
    %39 = sbr.rel (0) target = $region45
  $region44: #{audio_transformer_forward.7} parent=0 // pred_region
    _
  $region45: #{audio_transformer_forward.7} parent=0 // pred_fallthru
    _
  // Predicated region
  $region46: #{audio_transformer_forward.7} parent=0 // pred_check
    _
  $region47: #{audio_transformer_forward.7} parent=0 // pred_check_branch
    %41 = sbr.rel (0) target = $region49
  $region48: #{audio_transformer_forward.7} parent=0 // pred_region
    _
  $region49: #{audio_transformer_forward.7} parent=0 // pred_fallthru
    _
  // Predicated region
  $region50: #{audio_transformer_forward.7} parent=0 // pred_check
    _
  $region51: #{audio_transformer_forward.7} parent=0 // pred_check_branch
    %43 = sbr.rel (0) target = $region53
  $region52: #{audio_transformer_forward.7} parent=0 // pred_region
    _
  $region53: #{audio_transformer_forward.7} parent=0 // pred_fallthru
    _
  %v44 = vld [vmem:[%s0] sm:$0xff]
  %v45 = vld [vmem:[%s0 + $0x8] sm:$0xff]
  %v46 = vld [vmem:[%s1] sm:$0xff]
  %v47 = vld [vmem:[%s1 + $0x8] sm:$0xff]
  %v48 = vld [vmem:[%s2] sm:$0x1]
  %v50 = vlaneseq
  %v51 = vshrl.u32 %v50, 7
  %v52 = vsub.s32 0, %v51
  %v53 = vrot.slane %v48, %v52
  %vm55 = vcmask 130048
  %v57 = vsel %vm55, %v44, 0
  %v60 = vsel %vm55, %v45, 0
  %62 = vmatprep.subr.mxu0 0.0
  %63 = vmatpush1.msra.mxu0 0.0
  %64 = vmatprep.subr.mxu0 0.0
  %65 = vmatpush1.msra.mxu0 0.0
  %66 = vmatprep.subr.mxu0 0.0
  %67 = vmatpush1.msra.mxu0 0.0
  %68 = vmatprep.subr.mxu0 0.0
  %69 = vmatpush1.msra.mxu0 0.0
  %70 = vmatprep.subr.mxu0 0.0
  %71 = vmatpush1.msra.mxu0 0.0
  %72 = vmatprep.subr.mxu0 0.0
  %73 = vmatpush1.msra.mxu0 0.0
  %74 = vmatprep.subr.mxu0 0.0
  %75 = vmatpush1.msra.mxu0 0.0
  %76 = vmatprep.subr.mxu0 0.0
  %77 = vmatpush1.msra.mxu0 0.0
  %78 = vmatprep.subr.mxu0 0.0
  %79 = vmatpush1.msra.mxu0 0.0
  %80 = vmatprep.subr.mxu0 0.0
  %81 = vmatpush1.msra.mxu0 0.0
  %82 = vmatprep.subr.mxu0 0.0
  %83 = vmatpush1.msra.mxu0 0.0
  %84 = vmatprep.subr.mxu0 0.0
  %85 = vmatpush1.msra.mxu0 0.0
  %86 = vmatprep.subr.mxu0 0.0
  %87 = vmatpush1.msra.mxu0 0.0
  %88 = vmatprep.subr.mxu0 0.0
  %89 = vmatpush1.msra.mxu0 0.0
  %90 = vmatprep.subr.mxu0 0.0
  %91 = vmatpush1.msra.mxu0 %v47
  %92 = vmatprep.subr.mxu0 0.0
  %93 = vmatpush1.msra.mxu0 %v46
  %94 = vmatprep.subr.mxu0 0.0
  %95 = vmatpush2.msra.mxu0 0.0
  %96 = vmatprep.subr.mxu0 0.0
  %97 = vmatpush2.msra.mxu0 0.0
  %98 = vmatprep.subr.mxu0 0.0
  %99 = vmatpush2.msra.mxu0 0.0
  %100 = vmatprep.subr.mxu0 0.0
  %101 = vmatpush2.msra.mxu0 0.0
  %102 = vmatprep.subr.mxu0 0.0
  %103 = vmatpush2.msra.mxu0 0.0
  %104 = vmatprep.subr.mxu0 0.0
  %105 = vmatpush2.msra.mxu0 0.0
  %106 = vmatprep.subr.mxu0 0.0
  %107 = vmatpush2.msra.mxu0 0.0
  %108 = vmatprep.subr.mxu0 0.0
  %109 = vmatpush2.msra.mxu0 0.0
  %110 = vmatprep.subr.mxu0 0.0
  %111 = vmatpush2.msra.mxu0 0.0
  %112 = vmatprep.subr.mxu0 0.0
  %113 = vmatpush2.msra.mxu0 0.0
  %114 = vmatprep.subr.mxu0 0.0
  %115 = vmatpush2.msra.mxu0 0.0
  %116 = vmatprep.subr.mxu0 0.0
  %117 = vmatpush2.msra.mxu0 0.0
  %118 = vmatprep.subr.mxu0 0.0
  %119 = vmatpush2.msra.mxu0 0.0
  %120 = vmatprep.subr.mxu0 0.0
  %121 = vmatpush2.msra.mxu0 0.0
  %122 = vmatprep.subr.mxu0 0.0
  %123 = vmatpush2.msra.mxu0 0.0
  %124 = vmatprep.subr.mxu0 0.0
  %125 = vmatpush2.msra.mxu0 0.0
  %126 = vmatprep.mubr.f32.mxu0 0.0
  %127 = vmatmul.mubr.f32.gmra.mxu0 %v57
  %v128 = vpop.f32.mrf.mxu0
  %v129 = vadd.f32 %v53, %v128
  %v130 = vpop.f32.mrf.mxu0
  %131 = vmatprep.mubr.f32.mxu0 0.0
  %132 = vmatmul.mubr.f32.gmra.mxu0 %v60
  %v133 = vpop.f32.mrf.mxu0
  %v134 = vadd.f32 %v53, %v133
  %v135 = vpop.f32.mrf.mxu0
  %136 = vdwg.mxu0
  %138 = vrot.lane.b32.xlu0 %v129, 112
  %v139 = vpop.permute.xlu0 %138
  %vm140 = vcmask 64512
  %v141 = vsel %vm140, %v129, 0
  %v143 = vsel %vm140, %v139, 0
  %145 = vmatprep.subr.mxu0 0.0
  %146 = vmatpush1.xpose.msra.mxu0 0.0
  %147 = vmatprep.subr.mxu0 0.0
  %148 = vmatpush1.xpose.msra.mxu0 0.0
  %149 = vmatprep.subr.mxu0 0.0
  %150 = vmatpush1.xpose.msra.mxu0 0.0
  %151 = vmatprep.subr.mxu0 0.0
  %152 = vmatpush1.xpose.msra.mxu0 0.0
  %153 = vmatprep.subr.mxu0 0.0
  %154 = vmatpush1.xpose.msra.mxu0 0.0
  %155 = vmatprep.subr.mxu0 0.0
  %156 = vmatpush1.xpose.msra.mxu0 0.0
  %157 = vmatprep.subr.mxu0 0.0
  %158 = vmatpush1.xpose.msra.mxu0 0.0
  %159 = vmatprep.subr.mxu0 0.0
  %160 = vmatpush1.xpose.msra.mxu0 0.0
  %161 = vmatprep.subr.mxu0 0.0
  %162 = vmatpush1.xpose.msra.mxu0 0.0
  %163 = vmatprep.subr.mxu0 0.0
  %164 = vmatpush1.xpose.msra.mxu0 0.0
  %165 = vmatprep.subr.mxu0 0.0
  %166 = vmatpush1.xpose.msra.mxu0 0.0
  %167 = vmatprep.subr.mxu0 0.0
  %168 = vmatpush1.xpose.msra.mxu0 0.0
  %169 = vmatprep.subr.mxu0 0.0
  %170 = vmatpush1.xpose.msra.mxu0 0.0
  %171 = vmatprep.subr.mxu0 0.0
  %172 = vmatpush1.xpose.msra.mxu0 0.0
  %173 = vmatprep.subr.mxu0 0.0
  %174 = vmatpush1.xpose.msra.mxu0 0.0
  %175 = vmatprep.subr.mxu0 0.0
  %176 = vmatpush1.xpose.msra.mxu0 %v143
  %177 = vmatprep.subr.mxu0 0.0
  %178 = vmatpush2.xpose.msra.mxu0 0.0
  %179 = vmatprep.subr.mxu0 0.0
  %180 = vmatpush2.xpose.msra.mxu0 0.0
  %181 = vmatprep.subr.mxu0 0.0
  %182 = vmatpush2.xpose.msra.mxu0 0.0
  %183 = vmatprep.subr.mxu0 0.0
  %184 = vmatpush2.xpose.msra.mxu0 0.0
  %185 = vmatprep.subr.mxu0 0.0
  %186 = vmatpush2.xpose.msra.mxu0 0.0
  %187 = vmatprep.subr.mxu0 0.0
  %188 = vmatpush2.xpose.msra.mxu0 0.0
  %189 = vmatprep.subr.mxu0 0.0
  %190 = vmatpush2.xpose.msra.mxu0 0.0
  %191 = vmatprep.subr.mxu0 0.0
  %192 = vmatpush2.xpose.msra.mxu0 0.0
  %193 = vmatprep.subr.mxu0 0.0
  %194 = vmatpush2.xpose.msra.mxu0 0.0
  %195 = vmatprep.subr.mxu0 0.0
  %196 = vmatpush2.xpose.msra.mxu0 0.0
  %197 = vmatprep.subr.mxu0 0.0
  %198 = vmatpush2.xpose.msra.mxu0 0.0
  %199 = vmatprep.subr.mxu0 0.0
  %200 = vmatpush2.xpose.msra.mxu0 0.0
  %201 = vmatprep.subr.mxu0 0.0
  %202 = vmatpush2.xpose.msra.mxu0 0.0
  %203 = vmatprep.subr.mxu0 0.0
  %204 = vmatpush2.xpose.msra.mxu0 0.0
  %205 = vmatprep.subr.mxu0 0.0
  %206 = vmatpush2.xpose.msra.mxu0 0.0
  %207 = vmatprep.subr.mxu0 0.0
  %208 = vmatpush2.xpose.msra.mxu0 0.0
  %209 = vmatprep.mubr.f32.mxu0 0.0
  %210 = vmatmul.mubr.f32.gmra.mxu0 %v141
  %v211 = vpop.f32.mrf.mxu0
  %v212 = vadd.f32 0.0, %v211
  %v213 = vpop.f32.mrf.mxu0
  %214 = vdwg.mxu0
  %v215 = vmul.f32 %v212, 0.35355338
  %v216 = vsel %vm140, %v215, -inf
  %217 = vmax.xlane.f32.xlu0 %v216
  %v218 = vpop.xlane.xlu0 %217
  %v219 = vsub.f32 %v215, %v218
  %v220 = vmul.f32 %v219, 1.442695
  %v221 = vpow.pop %v220
  %v222 = vsel %vm140, %v221, 0.0
  %223 = vadd.xlane.f32.xlu0 %v222
  %v224 = vpop.xlane.xlu0 %223
  %v225 = vrcp.pop %v224
  %v226 = vmul.f32 %v221, %v225
  %227 = vrot.lane.b32.xlu0 %v129, 96
  %v228 = vpop.permute.xlu0 %227
  %v231 = vsel %vm140, %v226, 0
  %233 = vmatprep.subr.mxu0 0.0
  %234 = vmatpush1.msra.mxu0 0.0
  %235 = vmatprep.subr.mxu0 0.0
  %236 = vmatpush1.msra.mxu0 0.0
  %237 = vmatprep.subr.mxu0 0.0
  %238 = vmatpush1.msra.mxu0 0.0
  %239 = vmatprep.subr.mxu0 0.0
  %240 = vmatpush1.msra.mxu0 0.0
  %241 = vmatprep.subr.mxu0 0.0
  %242 = vmatpush1.msra.mxu0 0.0
  %243 = vmatprep.subr.mxu0 0.0
  %244 = vmatpush1.msra.mxu0 0.0
  %245 = vmatprep.subr.mxu0 0.0
  %246 = vmatpush1.msra.mxu0 0.0
  %247 = vmatprep.subr.mxu0 0.0
  %248 = vmatpush1.msra.mxu0 0.0
  %249 = vmatprep.subr.mxu0 0.0
  %250 = vmatpush1.msra.mxu0 0.0
  %251 = vmatprep.subr.mxu0 0.0
  %252 = vmatpush1.msra.mxu0 0.0
  %253 = vmatprep.subr.mxu0 0.0
  %254 = vmatpush1.msra.mxu0 0.0
  %255 = vmatprep.subr.mxu0 0.0
  %256 = vmatpush1.msra.mxu0 0.0
  %257 = vmatprep.subr.mxu0 0.0
  %258 = vmatpush1.msra.mxu0 0.0
  %259 = vmatprep.subr.mxu0 0.0
  %260 = vmatpush1.msra.mxu0 0.0
  %261 = vmatprep.subr.mxu0 0.0
  %262 = vmatpush1.msra.mxu0 0.0
  %263 = vmatprep.subr.mxu0 0.0
  %264 = vmatpush1.msra.mxu0 %v228
  %265 = vmatprep.subr.mxu0 0.0
  %266 = vmatpush2.msra.mxu0 0.0
  %267 = vmatprep.subr.mxu0 0.0
  %268 = vmatpush2.msra.mxu0 0.0
  %269 = vmatprep.subr.mxu0 0.0
  %270 = vmatpush2.msra.mxu0 0.0
  %271 = vmatprep.subr.mxu0 0.0
  %272 = vmatpush2.msra.mxu0 0.0
  %273 = vmatprep.subr.mxu0 0.0
  %274 = vmatpush2.msra.mxu0 0.0
  %275 = vmatprep.subr.mxu0 0.0
  %276 = vmatpush2.msra.mxu0 0.0
  %277 = vmatprep.subr.mxu0 0.0
  %278 = vmatpush2.msra.mxu0 0.0
  %279 = vmatprep.subr.mxu0 0.0
  %280 = vmatpush2.msra.mxu0 0.0
  %281 = vmatprep.subr.mxu0 0.0
  %282 = vmatpush2.msra.mxu0 0.0
  %283 = vmatprep.subr.mxu0 0.0
  %284 = vmatpush2.msra.mxu0 0.0
  %285 = vmatprep.subr.mxu0 0.0
  %286 = vmatpush2.msra.mxu0 0.0
  %287 = vmatprep.subr.mxu0 0.0
  %288 = vmatpush2.msra.mxu0 0.0
  %289 = vmatprep.subr.mxu0 0.0
  %290 = vmatpush2.msra.mxu0 0.0
  %291 = vmatprep.subr.mxu0 0.0
  %292 = vmatpush2.msra.mxu0 0.0
  %293 = vmatprep.subr.mxu0 0.0
  %294 = vmatpush2.msra.mxu0 0.0
  %295 = vmatprep.subr.mxu0 0.0
  %296 = vmatpush2.msra.mxu0 0.0
  %297 = vmatprep.mubr.f32.mxu0 0.0
  %298 = vmatmul.mubr.f32.gmra.mxu0 %v231
  %v299 = vpop.f32.mrf.mxu0
  %v300 = vadd.f32 0.0, %v299
  %v301 = vpop.f32.mrf.mxu0
  %302 = vdwg.mxu0
  %303 = vst.msk [vmem:[#allocation2] sm:$0xff] %vm140, %v300
  %304 = vrot.lane.b32.xlu0 %v129, 120
  %v305 = vpop.permute.xlu0 %304
  %306 = vrot.lane.b32.xlu0 %v129, 104
  %v307 = vpop.permute.xlu0 %306
  %v308 = vsel %vm140, %v305, 0
  %v310 = vsel %vm140, %v307, 0
  %312 = vmatprep.subr.mxu0 0.0
  %313 = vmatpush1.xpose.msra.mxu0 0.0
  %314 = vmatprep.subr.mxu0 0.0
  %315 = vmatpush1.xpose.msra.mxu0 0.0
  %316 = vmatprep.subr.mxu0 0.0
  %317 = vmatpush1.xpose.msra.mxu0 0.0
  %318 = vmatprep.subr.mxu0 0.0
  %319 = vmatpush1.xpose.msra.mxu0 0.0
  %320 = vmatprep.subr.mxu0 0.0
  %321 = vmatpush1.xpose.msra.mxu0 0.0
  %322 = vmatprep.subr.mxu0 0.0
  %323 = vmatpush1.xpose.msra.mxu0 0.0
  %324 = vmatprep.subr.mxu0 0.0
  %325 = vmatpush1.xpose.msra.mxu0 0.0
  %326 = vmatprep.subr.mxu0 0.0
  %327 = vmatpush1.xpose.msra.mxu0 0.0
  %328 = vmatprep.subr.mxu0 0.0
  %329 = vmatpush1.xpose.msra.mxu0 0.0
  %330 = vmatprep.subr.mxu0 0.0
  %331 = vmatpush1.xpose.msra.mxu0 0.0
  %332 = vmatprep.subr.mxu0 0.0
  %333 = vmatpush1.xpose.msra.mxu0 0.0
  %334 = vmatprep.subr.mxu0 0.0
  %335 = vmatpush1.xpose.msra.mxu0 0.0
  %336 = vmatprep.subr.mxu0 0.0
  %337 = vmatpush1.xpose.msra.mxu0 0.0
  %338 = vmatprep.subr.mxu0 0.0
  %339 = vmatpush1.xpose.msra.mxu0 0.0
  %340 = vmatprep.subr.mxu0 0.0
  %341 = vmatpush1.xpose.msra.mxu0 0.0
  %342 = vmatprep.subr.mxu0 0.0
  %343 = vmatpush1.xpose.msra.mxu0 %v310
  %344 = vmatprep.subr.mxu0 0.0
  %345 = vmatpush2.xpose.msra.mxu0 0.0
  %346 = vmatprep.subr.mxu0 0.0
  %347 = vmatpush2.xpose.msra.mxu0 0.0
  %348 = vmatprep.subr.mxu0 0.0
  %349 = vmatpush2.xpose.msra.mxu0 0.0
  %350 = vmatprep.subr.mxu0 0.0
  %351 = vmatpush2.xpose.msra.mxu0 0.0
  %352 = vmatprep.subr.mxu0 0.0
  %353 = vmatpush2.xpose.msra.mxu0 0.0
  %354 = vmatprep.subr.mxu0 0.0
  %355 = vmatpush2.xpose.msra.mxu0 0.0
  %356 = vmatprep.subr.mxu0 0.0
  %357 = vmatpush2.xpose.msra.mxu0 0.0
  %358 = vmatprep.subr.mxu0 0.0
  %359 = vmatpush2.xpose.msra.mxu0 0.0
  %360 = vmatprep.subr.mxu0 0.0
  %361 = vmatpush2.xpose.msra.mxu0 0.0
  %362 = vmatprep.subr.mxu0 0.0
  %363 = vmatpush2.xpose.msra.mxu0 0.0
  %364 = vmatprep.subr.mxu0 0.0
  %365 = vmatpush2.xpose.msra.mxu0 0.0
  %366 = vmatprep.subr.mxu0 0.0
  %367 = vmatpush2.xpose.msra.mxu0 0.0
  %368 = vmatprep.subr.mxu0 0.0
  %369 = vmatpush2.xpose.msra.mxu0 0.0
  %370 = vmatprep.subr.mxu0 0.0
  %371 = vmatpush2.xpose.msra.mxu0 0.0
  %372 = vmatprep.subr.mxu0 0.0
  %373 = vmatpush2.xpose.msra.mxu0 0.0
  %374 = vmatprep.subr.mxu0 0.0
  %375 = vmatpush2.xpose.msra.mxu0 0.0
  %376 = vmatprep.mubr.f32.mxu0 0.0
  %377 = vmatmul.mubr.f32.gmra.mxu0 %v308
  %v378 = vpop.f32.mrf.mxu0
  %v379 = vadd.f32 0.0, %v378
  %v380 = vpop.f32.mrf.mxu0
  %381 = vdwg.mxu0
  %v382 = vmul.f32 %v379, 0.35355338
  %v383 = vsel %vm140, %v382, -inf
  %384 = vmax.xlane.f32.xlu0 %v383
  %v385 = vpop.xlane.xlu0 %384
  %v386 = vsub.f32 %v382, %v385
  %v387 = vmul.f32 %v386, 1.442695
  %v388 = vpow.pop %v387
  %v389 = vsel %vm140, %v388, 0.0
  %390 = vadd.xlane.f32.xlu0 %v389
  %v391 = vpop.xlane.xlu0 %390
  %v392 = vrcp.pop %v391
  %v393 = vmul.f32 %v388, %v392
  %394 = vrot.lane.b32.xlu0 %v129, 88
  %v395 = vpop.permute.xlu0 %394
  %v398 = vsel %vm140, %v393, 0
  %400 = vmatprep.subr.mxu0 0.0
  %401 = vmatpush1.msra.mxu0 0.0
  %402 = vmatprep.subr.mxu0 0.0
  %403 = vmatpush1.msra.mxu0 0.0
  %404 = vmatprep.subr.mxu0 0.0
  %405 = vmatpush1.msra.mxu0 0.0
  %406 = vmatprep.subr.mxu0 0.0
  %407 = vmatpush1.msra.mxu0 0.0
  %408 = vmatprep.subr.mxu0 0.0
  %409 = vmatpush1.msra.mxu0 0.0
  %410 = vmatprep.subr.mxu0 0.0
  %411 = vmatpush1.msra.mxu0 0.0
  %412 = vmatprep.subr.mxu0 0.0
  %413 = vmatpush1.msra.mxu0 0.0
  %414 = vmatprep.subr.mxu0 0.0
  %415 = vmatpush1.msra.mxu0 0.0
  %416 = vmatprep.subr.mxu0 0.0
  %417 = vmatpush1.msra.mxu0 0.0
  %418 = vmatprep.subr.mxu0 0.0
  %419 = vmatpush1.msra.mxu0 0.0
  %420 = vmatprep.subr.mxu0 0.0
  %421 = vmatpush1.msra.mxu0 0.0
  %422 = vmatprep.subr.mxu0 0.0
  %423 = vmatpush1.msra.mxu0 0.0
  %424 = vmatprep.subr.mxu0 0.0
  %425 = vmatpush1.msra.mxu0 0.0
  %426 = vmatprep.subr.mxu0 0.0
  %427 = vmatpush1.msra.mxu0 0.0
  %428 = vmatprep.subr.mxu0 0.0
  %429 = vmatpush1.msra.mxu0 0.0
  %430 = vmatprep.subr.mxu0 0.0
  %431 = vmatpush1.msra.mxu0 %v395
  %432 = vmatprep.subr.mxu0 0.0
  %433 = vmatpush2.msra.mxu0 0.0
  %434 = vmatprep.subr.mxu0 0.0
  %435 = vmatpush2.msra.mxu0 0.0
  %436 = vmatprep.subr.mxu0 0.0
  %437 = vmatpush2.msra.mxu0 0.0
  %438 = vmatprep.subr.mxu0 0.0
  %439 = vmatpush2.msra.mxu0 0.0
  %440 = vmatprep.subr.mxu0 0.0
  %441 = vmatpush2.msra.mxu0 0.0
  %442 = vmatprep.subr.mxu0 0.0
  %443 = vmatpush2.msra.mxu0 0.0
  %444 = vmatprep.subr.mxu0 0.0
  %445 = vmatpush2.msra.mxu0 0.0
  %446 = vmatprep.subr.mxu0 0.0
  %447 = vmatpush2.msra.mxu0 0.0
  %448 = vmatprep.subr.mxu0 0.0
  %449 = vmatpush2.msra.mxu0 0.0
  %450 = vmatprep.subr.mxu0 0.0
  %451 = vmatpush2.msra.mxu0 0.0
  %452 = vmatprep.subr.mxu0 0.0
  %453 = vmatpush2.msra.mxu0 0.0
  %454 = vmatprep.subr.mxu0 0.0
  %455 = vmatpush2.msra.mxu0 0.0
  %456 = vmatprep.subr.mxu0 0.0
  %457 = vmatpush2.msra.mxu0 0.0
  %458 = vmatprep.subr.mxu0 0.0
  %459 = vmatpush2.msra.mxu0 0.0
  %460 = vmatprep.subr.mxu0 0.0
  %461 = vmatpush2.msra.mxu0 0.0
  %462 = vmatprep.subr.mxu0 0.0
  %463 = vmatpush2.msra.mxu0 0.0
  %464 = vmatprep.mubr.f32.mxu0 0.0
  %465 = vmatmul.mubr.f32.gmra.mxu0 %v398
  %v466 = vpop.f32.mrf.mxu0
  %v467 = vadd.f32 0.0, %v466
  %v468 = vpop.f32.mrf.mxu0
  %469 = vdwg.mxu0
  %471 = vrot.lane.b32.xlu0 %v467, 8
  %v472 = vpop.permute.xlu0 %471
  %vm474 = vcmask 130112
  %475 = vst.msk [vmem:[#allocation2] sm:$0xff] %vm474, %v472
  %477 = vrot.lane.b32.xlu0 %v134, 112
  %v478 = vpop.permute.xlu0 %477
  %v479 = vsel %vm140, %v134, 0
  %v481 = vsel %vm140, %v478, 0
  %483 = vmatprep.subr.mxu0 0.0
  %484 = vmatpush1.xpose.msra.mxu0 0.0
  %485 = vmatprep.subr.mxu0 0.0
  %486 = vmatpush1.xpose.msra.mxu0 0.0
  %487 = vmatprep.subr.mxu0 0.0
  %488 = vmatpush1.xpose.msra.mxu0 0.0
  %489 = vmatprep.subr.mxu0 0.0
  %490 = vmatpush1.xpose.msra.mxu0 0.0
  %491 = vmatprep.subr.mxu0 0.0
  %492 = vmatpush1.xpose.msra.mxu0 0.0
  %493 = vmatprep.subr.mxu0 0.0
  %494 = vmatpush1.xpose.msra.mxu0 0.0
  %495 = vmatprep.subr.mxu0 0.0
  %496 = vmatpush1.xpose.msra.mxu0 0.0
  %497 = vmatprep.subr.mxu0 0.0
  %498 = vmatpush1.xpose.msra.mxu0 0.0
  %499 = vmatprep.subr.mxu0 0.0
  %500 = vmatpush1.xpose.msra.mxu0 0.0
  %501 = vmatprep.subr.mxu0 0.0
  %502 = vmatpush1.xpose.msra.mxu0 0.0
  %503 = vmatprep.subr.mxu0 0.0
  %504 = vmatpush1.xpose.msra.mxu0 0.0
  %505 = vmatprep.subr.mxu0 0.0
  %506 = vmatpush1.xpose.msra.mxu0 0.0
  %507 = vmatprep.subr.mxu0 0.0
  %508 = vmatpush1.xpose.msra.mxu0 0.0
  %509 = vmatprep.subr.mxu0 0.0
  %510 = vmatpush1.xpose.msra.mxu0 0.0
  %511 = vmatprep.subr.mxu0 0.0
  %512 = vmatpush1.xpose.msra.mxu0 0.0
  %513 = vmatprep.subr.mxu0 0.0
  %514 = vmatpush1.xpose.msra.mxu0 %v481
  %515 = vmatprep.subr.mxu0 0.0
  %516 = vmatpush2.xpose.msra.mxu0 0.0
  %517 = vmatprep.subr.mxu0 0.0
  %518 = vmatpush2.xpose.msra.mxu0 0.0
  %519 = vmatprep.subr.mxu0 0.0
  %520 = vmatpush2.xpose.msra.mxu0 0.0
  %521 = vmatprep.subr.mxu0 0.0
  %522 = vmatpush2.xpose.msra.mxu0 0.0
  %523 = vmatprep.subr.mxu0 0.0
  %524 = vmatpush2.xpose.msra.mxu0 0.0
  %525 = vmatprep.subr.mxu0 0.0
  %526 = vmatpush2.xpose.msra.mxu0 0.0
  %527 = vmatprep.subr.mxu0 0.0
  %528 = vmatpush2.xpose.msra.mxu0 0.0
  %529 = vmatprep.subr.mxu0 0.0
  %530 = vmatpush2.xpose.msra.mxu0 0.0
  %531 = vmatprep.subr.mxu0 0.0
  %532 = vmatpush2.xpose.msra.mxu0 0.0
  %533 = vmatprep.subr.mxu0 0.0
  %534 = vmatpush2.xpose.msra.mxu0 0.0
  %535 = vmatprep.subr.mxu0 0.0
  %536 = vmatpush2.xpose.msra.mxu0 0.0
  %537 = vmatprep.subr.mxu0 0.0
  %538 = vmatpush2.xpose.msra.mxu0 0.0
  %539 = vmatprep.subr.mxu0 0.0
  %540 = vmatpush2.xpose.msra.mxu0 0.0
  %541 = vmatprep.subr.mxu0 0.0
  %542 = vmatpush2.xpose.msra.mxu0 0.0
  %543 = vmatprep.subr.mxu0 0.0
  %544 = vmatpush2.xpose.msra.mxu0 0.0
  %545 = vmatprep.subr.mxu0 0.0
  %546 = vmatpush2.xpose.msra.mxu0 0.0
  %547 = vmatprep.mubr.f32.mxu0 0.0
  %548 = vmatmul.mubr.f32.gmra.mxu0 %v479
  %v549 = vpop.f32.mrf.mxu0
  %v550 = vadd.f32 0.0, %v549
  %v551 = vpop.f32.mrf.mxu0
  %552 = vdwg.mxu0
  %v553 = vmul.f32 %v550, 0.35355338
  %v554 = vsel %vm140, %v553, -inf
  %555 = vmax.xlane.f32.xlu0 %v554
  %v556 = vpop.xlane.xlu0 %555
  %v557 = vsub.f32 %v553, %v556
  %v558 = vmul.f32 %v557, 1.442695
  %v559 = vpow.pop %v558
  %v560 = vsel %vm140, %v559, 0.0
  %561 = vadd.xlane.f32.xlu0 %v560
  %v562 = vpop.xlane.xlu0 %561
  %v563 = vrcp.pop %v562
  %v564 = vmul.f32 %v559, %v563
  %565 = vrot.lane.b32.xlu0 %v134, 96
  %v566 = vpop.permute.xlu0 %565
  %v569 = vsel %vm140, %v564, 0
  %571 = vmatprep.subr.mxu0 0.0
  %572 = vmatpush1.msra.mxu0 0.0
  %573 = vmatprep.subr.mxu0 0.0
  %574 = vmatpush1.msra.mxu0 0.0
  %575 = vmatprep.subr.mxu0 0.0
  %576 = vmatpush1.msra.mxu0 0.0
  %577 = vmatprep.subr.mxu0 0.0
  %578 = vmatpush1.msra.mxu0 0.0
  %579 = vmatprep.subr.mxu0 0.0
  %580 = vmatpush1.msra.mxu0 0.0
  %581 = vmatprep.subr.mxu0 0.0
  %582 = vmatpush1.msra.mxu0 0.0
  %583 = vmatprep.subr.mxu0 0.0
  %584 = vmatpush1.msra.mxu0 0.0
  %585 = vmatprep.subr.mxu0 0.0
  %586 = vmatpush1.msra.mxu0 0.0
  %587 = vmatprep.subr.mxu0 0.0
  %588 = vmatpush1.msra.mxu0 0.0
  %589 = vmatprep.subr.mxu0 0.0
  %590 = vmatpush1.msra.mxu0 0.0
  %591 = vmatprep.subr.mxu0 0.0
  %592 = vmatpush1.msra.mxu0 0.0
  %593 = vmatprep.subr.mxu0 0.0
  %594 = vmatpush1.msra.mxu0 0.0
  %595 = vmatprep.subr.mxu0 0.0
  %596 = vmatpush1.msra.mxu0 0.0
  %597 = vmatprep.subr.mxu0 0.0
  %598 = vmatpush1.msra.mxu0 0.0
  %599 = vmatprep.subr.mxu0 0.0
  %600 = vmatpush1.msra.mxu0 0.0
  %601 = vmatprep.subr.mxu0 0.0
  %602 = vmatpush1.msra.mxu0 %v566
  %603 = vmatprep.subr.mxu0 0.0
  %604 = vmatpush2.msra.mxu0 0.0
  %605 = vmatprep.subr.mxu0 0.0
  %606 = vmatpush2.msra.mxu0 0.0
  %607 = vmatprep.subr.mxu0 0.0
  %608 = vmatpush2.msra.mxu0 0.0
  %609 = vmatprep.subr.mxu0 0.0
  %610 = vmatpush2.msra.mxu0 0.0
  %611 = vmatprep.subr.mxu0 0.0
  %612 = vmatpush2.msra.mxu0 0.0
  %613 = vmatprep.subr.mxu0 0.0
  %614 = vmatpush2.msra.mxu0 0.0
  %615 = vmatprep.subr.mxu0 0.0
  %616 = vmatpush2.msra.mxu0 0.0
  %617 = vmatprep.subr.mxu0 0.0
  %618 = vmatpush2.msra.mxu0 0.0
  %619 = vmatprep.subr.mxu0 0.0
  %620 = vmatpush2.msra.mxu0 0.0
  %621 = vmatprep.subr.mxu0 0.0
  %622 = vmatpush2.msra.mxu0 0.0
  %623 = vmatprep.subr.mxu0 0.0
  %624 = vmatpush2.msra.mxu0 0.0
  %625 = vmatprep.subr.mxu0 0.0
  %626 = vmatpush2.msra.mxu0 0.0
  %627 = vmatprep.subr.mxu0 0.0
  %628 = vmatpush2.msra.mxu0 0.0
  %629 = vmatprep.subr.mxu0 0.0
  %630 = vmatpush2.msra.mxu0 0.0
  %631 = vmatprep.subr.mxu0 0.0
  %632 = vmatpush2.msra.mxu0 0.0
  %633 = vmatprep.subr.mxu0 0.0
  %634 = vmatpush2.msra.mxu0 0.0
  %635 = vmatprep.mubr.f32.mxu0 0.0
  %636 = vmatmul.mubr.f32.gmra.mxu0 %v569
  %v637 = vpop.f32.mrf.mxu0
  %v638 = vadd.f32 0.0, %v637
  %v639 = vpop.f32.mrf.mxu0
  %640 = vdwg.mxu0
  %641 = vst.msk [vmem:[#allocation2 + $0x8] sm:$0xff] %vm140, %v638
  %642 = vrot.lane.b32.xlu0 %v134, 120
  %v643 = vpop.permute.xlu0 %642
  %644 = vrot.lane.b32.xlu0 %v134, 104
  %v645 = vpop.permute.xlu0 %644
  %v646 = vsel %vm140, %v643, 0
  %v648 = vsel %vm140, %v645, 0
  %650 = vmatprep.subr.mxu0 0.0
  %651 = vmatpush1.xpose.msra.mxu0 0.0
  %652 = vmatprep.subr.mxu0 0.0
  %653 = vmatpush1.xpose.msra.mxu0 0.0
  %654 = vmatprep.subr.mxu0 0.0
  %655 = vmatpush1.xpose.msra.mxu0 0.0
  %656 = vmatprep.subr.mxu0 0.0
  %657 = vmatpush1.xpose.msra.mxu0 0.0
  %658 = vmatprep.subr.mxu0 0.0
  %659 = vmatpush1.xpose.msra.mxu0 0.0
  %660 = vmatprep.subr.mxu0 0.0
  %661 = vmatpush1.xpose.msra.mxu0 0.0
  %662 = vmatprep.subr.mxu0 0.0
  %663 = vmatpush1.xpose.msra.mxu0 0.0
  %664 = vmatprep.subr.mxu0 0.0
  %665 = vmatpush1.xpose.msra.mxu0 0.0
  %666 = vmatprep.subr.mxu0 0.0
  %667 = vmatpush1.xpose.msra.mxu0 0.0
  %668 = vmatprep.subr.mxu0 0.0
  %669 = vmatpush1.xpose.msra.mxu0 0.0
  %670 = vmatprep.subr.mxu0 0.0
  %671 = vmatpush1.xpose.msra.mxu0 0.0
  %672 = vmatprep.subr.mxu0 0.0
  %673 = vmatpush1.xpose.msra.mxu0 0.0
  %674 = vmatprep.subr.mxu0 0.0
  %675 = vmatpush1.xpose.msra.mxu0 0.0
  %676 = vmatprep.subr.mxu0 0.0
  %677 = vmatpush1.xpose.msra.mxu0 0.0
  %678 = vmatprep.subr.mxu0 0.0
  %679 = vmatpush1.xpose.msra.mxu0 0.0
  %680 = vmatprep.subr.mxu0 0.0
  %681 = vmatpush1.xpose.msra.mxu0 %v648
  %682 = vmatprep.subr.mxu0 0.0
  %683 = vmatpush2.xpose.msra.mxu0 0.0
  %684 = vmatprep.subr.mxu0 0.0
  %685 = vmatpush2.xpose.msra.mxu0 0.0
  %686 = vmatprep.subr.mxu0 0.0
  %687 = vmatpush2.xpose.msra.mxu0 0.0
  %688 = vmatprep.subr.mxu0 0.0
  %689 = vmatpush2.xpose.msra.mxu0 0.0
  %690 = vmatprep.subr.mxu0 0.0
  %691 = vmatpush2.xpose.msra.mxu0 0.0
  %692 = vmatprep.subr.mxu0 0.0
  %693 = vmatpush2.xpose.msra.mxu0 0.0
  %694 = vmatprep.subr.mxu0 0.0
  %695 = vmatpush2.xpose.msra.mxu0 0.0
  %696 = vmatprep.subr.mxu0 0.0
  %697 = vmatpush2.xpose.msra.mxu0 0.0
  %698 = vmatprep.subr.mxu0 0.0
  %699 = vmatpush2.xpose.msra.mxu0 0.0
  %700 = vmatprep.subr.mxu0 0.0
  %701 = vmatpush2.xpose.msra.mxu0 0.0
  %702 = vmatprep.subr.mxu0 0.0
  %703 = vmatpush2.xpose.msra.mxu0 0.0
  %704 = vmatprep.subr.mxu0 0.0
  %705 = vmatpush2.xpose.msra.mxu0 0.0
  %706 = vmatprep.subr.mxu0 0.0
  %707 = vmatpush2.xpose.msra.mxu0 0.0
  %708 = vmatprep.subr.mxu0 0.0
  %709 = vmatpush2.xpose.msra.mxu0 0.0
  %710 = vmatprep.subr.mxu0 0.0
  %711 = vmatpush2.xpose.msra.mxu0 0.0
  %712 = vmatprep.subr.mxu0 0.0
  %713 = vmatpush2.xpose.msra.mxu0 0.0
  %714 = vmatprep.mubr.f32.mxu0 0.0
  %715 = vmatmul.mubr.f32.gmra.mxu0 %v646
  %v716 = vpop.f32.mrf.mxu0
  %v717 = vadd.f32 0.0, %v716
  %v718 = vpop.f32.mrf.mxu0
  %719 = vdwg.mxu0
  %v720 = vmul.f32 %v717, 0.35355338
  %v721 = vsel %vm140, %v720, -inf
  %722 = vmax.xlane.f32.xlu0 %v721
  %v723 = vpop.xlane.xlu0 %722
  %v724 = vsub.f32 %v720, %v723
  %v725 = vmul.f32 %v724, 1.442695
  %v726 = vpow.pop %v725
  %v727 = vsel %vm140, %v726, 0.0
  %728 = vadd.xlane.f32.xlu0 %v727
  %v729 = vpop.xlane.xlu0 %728
  %v730 = vrcp.pop %v729
  %v731 = vmul.f32 %v726, %v730
  %732 = vrot.lane.b32.xlu0 %v134, 88
  %v733 = vpop.permute.xlu0 %732
  %v736 = vsel %vm140, %v731, 0
  %738 = vmatprep.subr.mxu0 0.0
  %739 = vmatpush1.msra.mxu0 0.0
  %740 = vmatprep.subr.mxu0 0.0
  %741 = vmatpush1.msra.mxu0 0.0
  %742 = vmatprep.subr.mxu0 0.0
  %743 = vmatpush1.msra.mxu0 0.0
  %744 = vmatprep.subr.mxu0 0.0
  %745 = vmatpush1.msra.mxu0 0.0
  %746 = vmatprep.subr.mxu0 0.0
  %747 = vmatpush1.msra.mxu0 0.0
  %748 = vmatprep.subr.mxu0 0.0
  %749 = vmatpush1.msra.mxu0 0.0
  %750 = vmatprep.subr.mxu0 0.0
  %751 = vmatpush1.msra.mxu0 0.0
  %752 = vmatprep.subr.mxu0 0.0
  %753 = vmatpush1.msra.mxu0 0.0
  %754 = vmatprep.subr.mxu0 0.0
  %755 = vmatpush1.msra.mxu0 0.0
  %756 = vmatprep.subr.mxu0 0.0
  %757 = vmatpush1.msra.mxu0 0.0
  %758 = vmatprep.subr.mxu0 0.0
  %759 = vmatpush1.msra.mxu0 0.0
  %760 = vmatprep.subr.mxu0 0.0
  %761 = vmatpush1.msra.mxu0 0.0
  %762 = vmatprep.subr.mxu0 0.0
  %763 = vmatpush1.msra.mxu0 0.0
  %764 = vmatprep.subr.mxu0 0.0
  %765 = vmatpush1.msra.mxu0 0.0
  %766 = vmatprep.subr.mxu0 0.0
  %767 = vmatpush1.msra.mxu0 0.0
  %768 = vmatprep.subr.mxu0 0.0
  %769 = vmatpush1.msra.mxu0 %v733
  %770 = vmatprep.subr.mxu0 0.0
  %771 = vmatpush2.msra.mxu0 0.0
  %772 = vmatprep.subr.mxu0 0.0
  %773 = vmatpush2.msra.mxu0 0.0
  %774 = vmatprep.subr.mxu0 0.0
  %775 = vmatpush2.msra.mxu0 0.0
  %776 = vmatprep.subr.mxu0 0.0
  %777 = vmatpush2.msra.mxu0 0.0
  %778 = vmatprep.subr.mxu0 0.0
  %779 = vmatpush2.msra.mxu0 0.0
  %780 = vmatprep.subr.mxu0 0.0
  %781 = vmatpush2.msra.mxu0 0.0
  %782 = vmatprep.subr.mxu0 0.0
  %783 = vmatpush2.msra.mxu0 0.0
  %784 = vmatprep.subr.mxu0 0.0
  %785 = vmatpush2.msra.mxu0 0.0
  %786 = vmatprep.subr.mxu0 0.0
  %787 = vmatpush2.msra.mxu0 0.0
  %788 = vmatprep.subr.mxu0 0.0
  %789 = vmatpush2.msra.mxu0 0.0
  %790 = vmatprep.subr.mxu0 0.0
  %791 = vmatpush2.msra.mxu0 0.0
  %792 = vmatprep.subr.mxu0 0.0
  %793 = vmatpush2.msra.mxu0 0.0
  %794 = vmatprep.subr.mxu0 0.0
  %795 = vmatpush2.msra.mxu0 0.0
  %796 = vmatprep.subr.mxu0 0.0
  %797 = vmatpush2.msra.mxu0 0.0
  %798 = vmatprep.subr.mxu0 0.0
  %799 = vmatpush2.msra.mxu0 0.0
  %800 = vmatprep.subr.mxu0 0.0
  %801 = vmatpush2.msra.mxu0 0.0
  %802 = vmatprep.mubr.f32.mxu0 0.0
  %803 = vmatmul.mubr.f32.gmra.mxu0 %v736
  %v804 = vpop.f32.mrf.mxu0
  %v805 = vadd.f32 0.0, %v804
  %v806 = vpop.f32.mrf.mxu0
  %807 = vdwg.mxu0
  %809 = vrot.lane.b32.xlu0 %v805, 8
  %v810 = vpop.permute.xlu0 %809
  %812 = vst.msk [vmem:[#allocation2 + $0x8] sm:$0xff] %vm474, %v810
  %v813 = vld [vmem:[#allocation2] sm:$0xff]
  %v814 = vld [vmem:[#allocation2 + $0x8] sm:$0xff]
  %v815 = vld [vmem:[%s3] sm:$0xff]
  %v816 = vld [vmem:[%s3 + $0x8] sm:$0xff]
  %v817 = vld [vmem:[%s4] sm:$0x1]
  %v819 = vlaneseq
  %v820 = vshrl.u32 %v819, 7
  %v821 = vsub.s32 0, %v820
  %v822 = vrot.slane %v817, %v821
  %v825 = vsel %vm55, %v813, 0
  %v828 = vsel %vm55, %v814, 0
  %830 = vmatprep.subr.mxu0 0.0
  %831 = vmatpush1.msra.mxu0 0.0
  %832 = vmatprep.subr.mxu0 0.0
  %833 = vmatpush1.msra.mxu0 0.0
  %834 = vmatprep.subr.mxu0 0.0
  %835 = vmatpush1.msra.mxu0 0.0
  %836 = vmatprep.subr.mxu0 0.0
  %837 = vmatpush1.msra.mxu0 0.0
  %838 = vmatprep.subr.mxu0 0.0
  %839 = vmatpush1.msra.mxu0 0.0
  %840 = vmatprep.subr.mxu0 0.0
  %841 = vmatpush1.msra.mxu0 0.0
  %842 = vmatprep.subr.mxu0 0.0
  %843 = vmatpush1.msra.mxu0 0.0
  %844 = vmatprep.subr.mxu0 0.0
  %845 = vmatpush1.msra.mxu0 0.0
  %846 = vmatprep.subr.mxu0 0.0
  %847 = vmatpush1.msra.mxu0 0.0
  %848 = vmatprep.subr.mxu0 0.0
  %849 = vmatpush1.msra.mxu0 0.0
  %850 = vmatprep.subr.mxu0 0.0
  %851 = vmatpush1.msra.mxu0 0.0
  %852 = vmatprep.subr.mxu0 0.0
  %853 = vmatpush1.msra.mxu0 0.0
  %854 = vmatprep.subr.mxu0 0.0
  %855 = vmatpush1.msra.mxu0 0.0
  %856 = vmatprep.subr.mxu0 0.0
  %857 = vmatpush1.msra.mxu0 0.0
  %858 = vmatprep.subr.mxu0 0.0
  %859 = vmatpush1.msra.mxu0 %v816
  %860 = vmatprep.subr.mxu0 0.0
  %861 = vmatpush1.msra.mxu0 %v815
  %862 = vmatprep.subr.mxu0 0.0
  %863 = vmatpush2.msra.mxu0 0.0
  %864 = vmatprep.subr.mxu0 0.0
  %865 = vmatpush2.msra.mxu0 0.0
  %866 = vmatprep.subr.mxu0 0.0
  %867 = vmatpush2.msra.mxu0 0.0
  %868 = vmatprep.subr.mxu0 0.0
  %869 = vmatpush2.msra.mxu0 0.0
  %870 = vmatprep.subr.mxu0 0.0
  %871 = vmatpush2.msra.mxu0 0.0
  %872 = vmatprep.subr.mxu0 0.0
  %873 = vmatpush2.msra.mxu0 0.0
  %874 = vmatprep.subr.mxu0 0.0
  %875 = vmatpush2.msra.mxu0 0.0
  %876 = vmatprep.subr.mxu0 0.0
  %877 = vmatpush2.msra.mxu0 0.0
  %878 = vmatprep.subr.mxu0 0.0
  %879 = vmatpush2.msra.mxu0 0.0
  %880 = vmatprep.subr.mxu0 0.0
  %881 = vmatpush2.msra.mxu0 0.0
  %882 = vmatprep.subr.mxu0 0.0
  %883 = vmatpush2.msra.mxu0 0.0
  %884 = vmatprep.subr.mxu0 0.0
  %885 = vmatpush2.msra.mxu0 0.0
  %886 = vmatprep.subr.mxu0 0.0
  %887 = vmatpush2.msra.mxu0 0.0
  %888 = vmatprep.subr.mxu0 0.0
  %889 = vmatpush2.msra.mxu0 0.0
  %890 = vmatprep.subr.mxu0 0.0
  %891 = vmatpush2.msra.mxu0 0.0
  %892 = vmatprep.subr.mxu0 0.0
  %893 = vmatpush2.msra.mxu0 0.0
  %894 = vmatprep.mubr.f32.mxu0 0.0
  %895 = vmatmul.mubr.f32.gmra.mxu0 %v825
  %v896 = vpop.f32.mrf.mxu0
  %v897 = vadd.f32 %v822, %v896
  %v898 = vpop.f32.mrf.mxu0
  %899 = vmatprep.mubr.f32.mxu0 0.0
  %900 = vmatmul.mubr.f32.gmra.mxu0 %v828
  %v901 = vpop.f32.mrf.mxu0
  %v902 = vadd.f32 %v822, %v901
  %v903 = vpop.f32.mrf.mxu0
  %904 = vdwg.mxu0
  %v905 = vadd.f32 %v44, %v897
  %v906 = vadd.f32 %v45, %v902
  %v907 = vld [vmem:[%s5] sm:$0x1]
  %v908 = vld [vmem:[%s6] sm:$0x1]
  %v909 = vsel %vm55, %v905, 0.0
  %910 = vadd.xlane.f32.xlu0 %v909
  %v911 = vpop.xlane.xlu0 %910
  %v912 = vsel %vm55, %v906, 0.0
  %913 = vadd.xlane.f32.xlu0 %v912
  %v914 = vpop.xlane.xlu0 %913
  %v915 = vrcp.pop 16.0
  %v916 = vmul.f32 %v911, %v915
  %v917 = vmul.f32 %v914, %v915
  %v918 = vsub.f32 %v905, %v916
  %v919 = vsub.f32 %v906, %v917
  %v920 = vmul.f32 %v918, %v918
  %v921 = vmul.f32 %v919, %v919
  %v922 = vsel %vm55, %v920, 0.0
  %923 = vadd.xlane.f32.xlu0 %v922
  %v924 = vpop.xlane.xlu0 %923
  %v925 = vsel %vm55, %v921, 0.0
  %926 = vadd.xlane.f32.xlu0 %v925
  %v927 = vpop.xlane.xlu0 %926
  %v928 = vmul.f32 %v924, %v915
  %v929 = vmul.f32 %v927, %v915
  %v930 = vadd.f32 %v928, 1e-05
  %v931 = vadd.f32 %v929, 1e-05
  %v932 = vrsqrt.pop %v930
  %v933 = vrsqrt.pop %v931
  %v934 = vmul.f32 %v918, %v932
  %v935 = vmul.f32 %v919, %v933
  %v937 = vlaneseq
  %v938 = vshrl.u32 %v937, 7
  %v939 = vsub.s32 0, %v938
  %v940 = vrot.slane %v907, %v939
  %v942 = vmul.f32 %v934, %v940
  %v943 = vmul.f32 %v935, %v940
  %v945 = vlaneseq
  %v946 = vshrl.u32 %v945, 7
  %v947 = vsub.s32 0, %v946
  %v948 = vrot.slane %v908, %v947
  %v950 = vadd.f32 %v942, %v948
  %v951 = vadd.f32 %v943, %v948
  %v952 = vld [vmem:[%s7] sm:$0xff]
  %v953 = vld [vmem:[%s7 + $0x8] sm:$0xff]
  %v954 = vld [vmem:[%s8] sm:$0x1]
  %v956 = vlaneseq
  %v957 = vshrl.u32 %v956, 7
  %v958 = vsub.s32 0, %v957
  %v959 = vrot.slane %v954, %v958
  %v962 = vsel %vm55, %v950, 0
  %v965 = vsel %vm55, %v951, 0
  %967 = vmatprep.subr.mxu0 0.0
  %968 = vmatpush1.msra.mxu0 0.0
  %969 = vmatprep.subr.mxu0 0.0
  %970 = vmatpush1.msra.mxu0 0.0
  %971 = vmatprep.subr.mxu0 0.0
  %972 = vmatpush1.msra.mxu0 0.0
  %973 = vmatprep.subr.mxu0 0.0
  %974 = vmatpush1.msra.mxu0 0.0
  %975 = vmatprep.subr.mxu0 0.0
  %976 = vmatpush1.msra.mxu0 0.0
  %977 = vmatprep.subr.mxu0 0.0
  %978 = vmatpush1.msra.mxu0 0.0
  %979 = vmatprep.subr.mxu0 0.0
  %980 = vmatpush1.msra.mxu0 0.0
  %981 = vmatprep.subr.mxu0 0.0
  %982 = vmatpush1.msra.mxu0 0.0
  %983 = vmatprep.subr.mxu0 0.0
  %984 = vmatpush1.msra.mxu0 0.0
  %985 = vmatprep.subr.mxu0 0.0
  %986 = vmatpush1.msra.mxu0 0.0
  %987 = vmatprep.subr.mxu0 0.0
  %988 = vmatpush1.msra.mxu0 0.0
  %989 = vmatprep.subr.mxu0 0.0
  %990 = vmatpush1.msra.mxu0 0.0
  %991 = vmatprep.subr.mxu0 0.0
  %992 = vmatpush1.msra.mxu0 0.0
  %993 = vmatprep.subr.mxu0 0.0
  %994 = vmatpush1.msra.mxu0 0.0
  %995 = vmatprep.subr.mxu0 0.0
  %996 = vmatpush1.msra.mxu0 %v953
  %997 = vmatprep.subr.mxu0 0.0
  %998 = vmatpush1.msra.mxu0 %v952
  %999 = vmatprep.subr.mxu0 0.0
  %1000 = vmatpush2.msra.mxu0 0.0
  %1001 = vmatprep.subr.mxu0 0.0
  %1002 = vmatpush2.msra.mxu0 0.0
  %1003 = vmatprep.subr.mxu0 0.0
  %1004 = vmatpush2.msra.mxu0 0.0
  %1005 = vmatprep.subr.mxu0 0.0
  %1006 = vmatpush2.msra.mxu0 0.0
  %1007 = vmatprep.subr.mxu0 0.0
  %1008 = vmatpush2.msra.mxu0 0.0
  %1009 = vmatprep.subr.mxu0 0.0
  %1010 = vmatpush2.msra.mxu0 0.0
  %1011 = vmatprep.subr.mxu0 0.0
  %1012 = vmatpush2.msra.mxu0 0.0
  %1013 = vmatprep.subr.mxu0 0.0
  %1014 = vmatpush2.msra.mxu0 0.0
  %1015 = vmatprep.subr.mxu0 0.0
  %1016 = vmatpush2.msra.mxu0 0.0
  %1017 = vmatprep.subr.mxu0 0.0
  %1018 = vmatpush2.msra.mxu0 0.0
  %1019 = vmatprep.subr.mxu0 0.0
  %1020 = vmatpush2.msra.mxu0 0.0
  %1021 = vmatprep.subr.mxu0 0.0
  %1022 = vmatpush2.msra.mxu0 0.0
  %1023 = vmatprep.subr.mxu0 0.0
  %1024 = vmatpush2.msra.mxu0 0.0
  %1025 = vmatprep.subr.mxu0 0.0
  %1026 = vmatpush2.msra.mxu0 0.0
  %1027 = vmatprep.subr.mxu0 0.0
  %1028 = vmatpush2.msra.mxu0 0.0
  %1029 = vmatprep.subr.mxu0 0.0
  %1030 = vmatpush2.msra.mxu0 0.0
  %1031 = vmatprep.mubr.f32.mxu0 0.0
  %1032 = vmatmul.mubr.f32.gmra.mxu0 %v962
  %v1033 = vpop.f32.mrf.mxu0
  %v1034 = vadd.f32 %v959, %v1033
  %v1035 = vpop.f32.mrf.mxu0
  %1036 = vmatprep.mubr.f32.mxu0 0.0
  %1037 = vmatmul.mubr.f32.gmra.mxu0 %v965
  %v1038 = vpop.f32.mrf.mxu0
  %v1039 = vadd.f32 %v959, %v1038
  %v1040 = vpop.f32.mrf.mxu0
  %1041 = vdwg.mxu0
  %v1042 = vmax.f32 %v1034, 0.0
  %v1043 = vmax.f32 %v1039, 0.0
  %v1044 = vld [vmem:[%s9] sm:$0xff]
  %v1045 = vld [vmem:[%s9 + $0x8] sm:$0xff]
  %v1046 = vld [vmem:[%s9 + $0x10] sm:$0xff]
  %v1047 = vld [vmem:[%s9 + $0x18] sm:$0xff]
  %v1048 = vld [vmem:[%s10] sm:$0x1]
  %v1050 = vlaneseq
  %v1051 = vshrl.u32 %v1050, 7
  %v1052 = vsub.s32 0, %v1051
  %v1053 = vrot.slane %v1048, %v1052
  %vm1055 = vcmask 261120
  %v1057 = vsel %vm1055, %v1042, 0
  %v1060 = vsel %vm1055, %v1043, 0
  %1062 = vmatprep.subr.mxu0 0.0
  %1063 = vmatpush1.msra.mxu0 0.0
  %1064 = vmatprep.subr.mxu0 0.0
  %1065 = vmatpush1.msra.mxu0 0.0
  %1066 = vmatprep.subr.mxu0 0.0
  %1067 = vmatpush1.msra.mxu0 0.0
  %1068 = vmatprep.subr.mxu0 0.0
  %1069 = vmatpush1.msra.mxu0 0.0
  %1070 = vmatprep.subr.mxu0 0.0
  %1071 = vmatpush1.msra.mxu0 0.0
  %1072 = vmatprep.subr.mxu0 0.0
  %1073 = vmatpush1.msra.mxu0 0.0
  %1074 = vmatprep.subr.mxu0 0.0
  %1075 = vmatpush1.msra.mxu0 0.0
  %1076 = vmatprep.subr.mxu0 0.0
  %1077 = vmatpush1.msra.mxu0 0.0
  %1078 = vmatprep.subr.mxu0 0.0
  %1079 = vmatpush1.msra.mxu0 0.0
  %1080 = vmatprep.subr.mxu0 0.0
  %1081 = vmatpush1.msra.mxu0 0.0
  %1082 = vmatprep.subr.mxu0 0.0
  %1083 = vmatpush1.msra.mxu0 0.0
  %1084 = vmatprep.subr.mxu0 0.0
  %1085 = vmatpush1.msra.mxu0 0.0
  %1086 = vmatprep.subr.mxu0 0.0
  %1087 = vmatpush1.msra.mxu0 %v1047
  %1088 = vmatprep.subr.mxu0 0.0
  %1089 = vmatpush1.msra.mxu0 %v1046
  %1090 = vmatprep.subr.mxu0 0.0
  %1091 = vmatpush1.msra.mxu0 %v1045
  %1092 = vmatprep.subr.mxu0 0.0
  %1093 = vmatpush1.msra.mxu0 %v1044
  %1094 = vmatprep.subr.mxu0 0.0
  %1095 = vmatpush2.msra.mxu0 0.0
  %1096 = vmatprep.subr.mxu0 0.0
  %1097 = vmatpush2.msra.mxu0 0.0
  %1098 = vmatprep.subr.mxu0 0.0
  %1099 = vmatpush2.msra.mxu0 0.0
  %1100 = vmatprep.subr.mxu0 0.0
  %1101 = vmatpush2.msra.mxu0 0.0
  %1102 = vmatprep.subr.mxu0 0.0
  %1103 = vmatpush2.msra.mxu0 0.0
  %1104 = vmatprep.subr.mxu0 0.0
  %1105 = vmatpush2.msra.mxu0 0.0
  %1106 = vmatprep.subr.mxu0 0.0
  %1107 = vmatpush2.msra.mxu0 0.0
  %1108 = vmatprep.subr.mxu0 0.0
  %1109 = vmatpush2.msra.mxu0 0.0
  %1110 = vmatprep.subr.mxu0 0.0
  %1111 = vmatpush2.msra.mxu0 0.0
  %1112 = vmatprep.subr.mxu0 0.0
  %1113 = vmatpush2.msra.mxu0 0.0
  %1114 = vmatprep.subr.mxu0 0.0
  %1115 = vmatpush2.msra.mxu0 0.0
  %1116 = vmatprep.subr.mxu0 0.0
  %1117 = vmatpush2.msra.mxu0 0.0
  %1118 = vmatprep.subr.mxu0 0.0
  %1119 = vmatpush2.msra.mxu0 0.0
  %1120 = vmatprep.subr.mxu0 0.0
  %1121 = vmatpush2.msra.mxu0 0.0
  %1122 = vmatprep.subr.mxu0 0.0
  %1123 = vmatpush2.msra.mxu0 0.0
  %1124 = vmatprep.subr.mxu0 0.0
  %1125 = vmatpush2.msra.mxu0 0.0
  %1126 = vmatprep.mubr.f32.mxu0 0.0
  %1127 = vmatmul.mubr.f32.gmra.mxu0 %v1057
  %v1128 = vpop.f32.mrf.mxu0
  %v1129 = vadd.f32 %v1053, %v1128
  %v1130 = vpop.f32.mrf.mxu0
  %1131 = vmatprep.mubr.f32.mxu0 0.0
  %1132 = vmatmul.mubr.f32.gmra.mxu0 %v1060
  %v1133 = vpop.f32.mrf.mxu0
  %v1134 = vadd.f32 %v1053, %v1133
  %v1135 = vpop.f32.mrf.mxu0
  %1136 = vdwg.mxu0
  %v1137 = vadd.f32 %v950, %v1129
  %v1138 = vadd.f32 %v951, %v1134
  %v1139 = vld [vmem:[%s11] sm:$0x1]
  %v1140 = vld [vmem:[%s12] sm:$0x1]
  %v1141 = vsel %vm55, %v1137, 0.0
  %1142 = vadd.xlane.f32.xlu0 %v1141
  %v1143 = vpop.xlane.xlu0 %1142
  %v1144 = vsel %vm55, %v1138, 0.0
  %1145 = vadd.xlane.f32.xlu0 %v1144
  %v1146 = vpop.xlane.xlu0 %1145
  %v1147 = vmul.f32 %v1143, %v915
  %v1148 = vmul.f32 %v1146, %v915
  %v1149 = vsub.f32 %v1137, %v1147
  %v1150 = vsub.f32 %v1138, %v1148
  %v1151 = vmul.f32 %v1149, %v1149
  %v1152 = vmul.f32 %v1150, %v1150
  %v1153 = vsel %vm55, %v1151, 0.0
  %1154 = vadd.xlane.f32.xlu0 %v1153
  %v1155 = vpop.xlane.xlu0 %1154
  %v1156 = vsel %vm55, %v1152, 0.0
  %1157 = vadd.xlane.f32.xlu0 %v1156
  %v1158 = vpop.xlane.xlu0 %1157
  %v1159 = vmul.f32 %v1155, %v915
  %v1160 = vmul.f32 %v1158, %v915
  %v1161 = vadd.f32 %v1159, 1e-05
  %v1162 = vadd.f32 %v1160, 1e-05
  %v1163 = vrsqrt.pop %v1161
  %v1164 = vrsqrt.pop %v1162
  %v1165 = vmul.f32 %v1149, %v1163
  %v1166 = vmul.f32 %v1150, %v1164
  %v1168 = vlaneseq
  %v1169 = vshrl.u32 %v1168, 7
  %v1170 = vsub.s32 0, %v1169
  %v1171 = vrot.slane %v1139, %v1170
  %v1173 = vmul.f32 %v1165, %v1171
  %v1174 = vmul.f32 %v1166, %v1171
  %v1176 = vlaneseq
  %v1177 = vshrl.u32 %v1176, 7
  %v1178 = vsub.s32 0, %v1177
  %v1179 = vrot.slane %v1140, %v1178
  %v1181 = vadd.f32 %v1173, %v1179
  %v1182 = vadd.f32 %v1174, %v1179
  %1183 = vst.msk [vmem:[%s13] sm:$0xff] %vm55, %v1181
  %1184 = vst.msk [vmem:[%s13 + $0x8] sm:$0xff] %vm55, %v1182
  // Predicated region
  $region54: #{audio_transformer_forward.7} parent=0 // pred_check
    _
  $region55: #{audio_transformer_forward.7} parent=0 // pred_check_branch
    %1186 = sbr.rel (0) target = $region57
  $region56: #{audio_transformer_forward.7} parent=0 // pred_region
    _
  $region57: #{audio_transformer_forward.7} parent=0 // pred_fallthru
    _
  // Predicated region
  $region58: #{audio_transformer_forward.7} parent=0 // pred_check
    _
  $region59: #{audio_transformer_forward.7} parent=0 // pred_check_branch
    %1188 = sbr.rel (0) target = $region61
  $region60: #{audio_transformer_forward.7} parent=0 // pred_region
    _
  $region61: #{audio_transformer_forward.7} parent=0 // pred_fallthru
    _

// kernel: audio_transformer_forward.11
$region0: #{audio_transformer_forward.11}
  #allocation0 [shape = 'u32[]', space=smem, size = 0x4, offset = 0x4, fixed_abs, tag = 'smem constant byte address 0x4 - core index']
  #allocation1 [shape = 'u32[144,128]{1,0:T(1,128)}', space=vmem, size = 0x12000, scoped, tag = 'internal scratch']
  %s0 = inlined_call_operand.vmem [shape: f32[16,16], index: 0, kind: input, shape index: {}]
  %s1 = inlined_call_operand.vmem [shape: f32[1,16], index: 1, kind: input, shape index: {}]
  %s2 = inlined_call_operand.vmem [shape: f32[1,16], index: 2, kind: input, shape index: {}]
  %s3 = inlined_call_operand.vmem [shape: f32[16,32], index: 3, kind: input, shape index: {}]
  %s4 = inlined_call_operand.vmem [shape: f32[1,32], index: 4, kind: input, shape index: {}]
  %s5 = inlined_call_operand.vmem [shape: f32[16,32], index: 5, kind: output, shape index: {}]
  %s6 = sld [smem:[#allocation0]]
  $region30: #{audio_transformer_forward.11} parent=0
    _
  %s8 = ssub.s32 1, %s6
  %s9 = scalar_select 0, %s8, %s6
  // Predicated region
  $region2: #{audio_transformer_forward.11} parent=0 // pred_check
    _
  $region3: #{audio_transformer_forward.11} parent=0 // pred_check_branch
    %11 = sbr.rel (0) target = $region5
  $region4: #{audio_transformer_forward.11} parent=0 // pred_region
    _
  $region5: #{audio_transformer_forward.11} parent=0 // pred_fallthru
    _
  // Predicated region
  $region6: #{audio_transformer_forward.11} parent=0 // pred_check
    _
  $region7: #{audio_transformer_forward.11} parent=0 // pred_check_branch
    %13 = sbr.rel (0) target = $region9
  $region8: #{audio_transformer_forward.11} parent=0 // pred_region
    _
  $region9: #{audio_transformer_forward.11} parent=0 // pred_fallthru
    _
  // Predicated region
  $region10: #{audio_transformer_forward.11} parent=0 // pred_check
    _
  $region11: #{audio_transformer_forward.11} parent=0 // pred_check_branch
    %15 = sbr.rel (0) target = $region13
  $region12: #{audio_transformer_forward.11} parent=0 // pred_region
    _
  $region13: #{audio_transformer_forward.11} parent=0 // pred_fallthru
    _
  // Predicated region
  $region14: #{audio_transformer_forward.11} parent=0 // pred_check
    _
  $region15: #{audio_transformer_forward.11} parent=0 // pred_check_branch
    %17 = sbr.rel (0) target = $region17
  $region16: #{audio_transformer_forward.11} parent=0 // pred_region
    _
  $region17: #{audio_transformer_forward.11} parent=0 // pred_fallthru
    _
  // Predicated region
  $region18: #{audio_transformer_forward.11} parent=0 // pred_check
    _
  $region19: #{audio_transformer_forward.11} parent=0 // pred_check_branch
    %19 = sbr.rel (0) target = $region21
  $region20: #{audio_transformer_forward.11} parent=0 // pred_region
    _
  $region21: #{audio_transformer_forward.11} parent=0 // pred_fallthru
    _
  %v20 = vld [vmem:[%s0] sm:$0xff]
  %v21 = vld [vmem:[%s0 + $0x8] sm:$0xff]
  %v22 = vld [vmem:[%s1] sm:$0x1]
  %v23 = vld [vmem:[%s2] sm:$0x1]
  %vm24 = vcmask 130048
  %v25 = vsel %vm24, %v20, 0.0
  %26 = vadd.xlane.f32.xlu0 %v25
  %v27 = vpop.xlane.xlu0 %26
  %v28 = vsel %vm24, %v21, 0.0
  %29 = vadd.xlane.f32.xlu0 %v28
  %v30 = vpop.xlane.xlu0 %29
  %v31 = vrcp.pop 16.0
  %v32 = vmul.f32 %v27, %v31
  %v33 = vmul.f32 %v30, %v31
  %v34 = vsub.f32 %v20, %v32
  %v35 = vsub.f32 %v21, %v33
  %v36 = vmul.f32 %v34, %v34
  %v37 = vmul.f32 %v35, %v35
  %v38 = vsel %vm24, %v36, 0.0
  %39 = vadd.xlane.f32.xlu0 %v38
  %v40 = vpop.xlane.xlu0 %39
  %v41 = vsel %vm24, %v37, 0.0
  %42 = vadd.xlane.f32.xlu0 %v41
  %v43 = vpop.xlane.xlu0 %42
  %v44 = vmul.f32 %v40, %v31
  %v45 = vmul.f32 %v43, %v31
  %v46 = vadd.f32 %v44, 1e-05
  %v47 = vadd.f32 %v45, 1e-05
  %v48 = vrsqrt.pop %v46
  %v49 = vrsqrt.pop %v47
  %v50 = vmul.f32 %v34, %v48
  %v51 = vmul.f32 %v35, %v49
  %v53 = vlaneseq
  %v54 = vshrl.u32 %v53, 7
  %v55 = vsub.s32 0, %v54
  %v56 = vrot.slane %v22, %v55
  %v58 = vmul.f32 %v50, %v56
  %v59 = vmul.f32 %v51, %v56
  %v61 = vlaneseq
  %v62 = vshrl.u32 %v61, 7
  %v63 = vsub.s32 0, %v62
  %v64 = vrot.slane %v23, %v63
  %v66 = vadd.f32 %v58, %v64
  %v67 = vadd.f32 %v59, %v64
  %v68 = vld [vmem:[%s3] sm:$0xff]
  %v69 = vld [vmem:[%s3 + $0x8] sm:$0xff]
  %v70 = vld [vmem:[%s4] sm:$0x1]
  %v72 = vlaneseq
  %v73 = vshrl.u32 %v72, 7
  %v74 = vsub.s32 0, %v73
  %v75 = vrot.slane %v70, %v74
  %v78 = vsel %vm24, %v66, 0
  %v81 = vsel %vm24, %v67, 0
  %83 = vmatprep.subr.mxu0 0.0
  %84 = vmatpush1.msra.mxu0 0.0
  %85 = vmatprep.subr.mxu0 0.0
  %86 = vmatpush1.msra.mxu0 0.0
  %87 = vmatprep.subr.mxu0 0.0
  %88 = vmatpush1.msra.mxu0 0.0
  %89 = vmatprep.subr.mxu0 0.0
  %90 = vmatpush1.msra.mxu0 0.0
  %91 = vmatprep.subr.mxu0 0.0
  %92 = vmatpush1.msra.mxu0 0.0
  %93 = vmatprep.subr.mxu0 0.0
  %94 = vmatpush1.msra.mxu0 0.0
  %95 = vmatprep.subr.mxu0 0.0
  %96 = vmatpush1.msra.mxu0 0.0
  %97 = vmatprep.subr.mxu0 0.0
  %98 = vmatpush1.msra.mxu0 0.0
  %99 = vmatprep.subr.mxu0 0.0
  %100 = vmatpush1.msra.mxu0 0.0
  %101 = vmatprep.subr.mxu0 0.0
  %102 = vmatpush1.msra.mxu0 0.0
  %103 = vmatprep.subr.mxu0 0.0
  %104 = vmatpush1.msra.mxu0 0.0
  %105 = vmatprep.subr.mxu0 0.0
  %106 = vmatpush1.msra.mxu0 0.0
  %107 = vmatprep.subr.mxu0 0.0
  %108 = vmatpush1.msra.mxu0 0.0
  %109 = vmatprep.subr.mxu0 0.0
  %110 = vmatpush1.msra.mxu0 0.0
  %111 = vmatprep.subr.mxu0 0.0
  %112 = vmatpush1.msra.mxu0 %v69
  %113 = vmatprep.subr.mxu0 0.0
  %114 = vmatpush1.msra.mxu0 %v68
  %115 = vmatprep.subr.mxu0 0.0
  %116 = vmatpush2.msra.mxu0 0.0
  %117 = vmatprep.subr.mxu0 0.0
  %118 = vmatpush2.msra.mxu0 0.0
  %119 = vmatprep.subr.mxu0 0.0
  %120 = vmatpush2.msra.mxu0 0.0
  %121 = vmatprep.subr.mxu0 0.0
  %122 = vmatpush2.msra.mxu0 0.0
  %123 = vmatprep.subr.mxu0 0.0
  %124 = vmatpush2.msra.mxu0 0.0
  %125 = vmatprep.subr.mxu0 0.0
  %126 = vmatpush2.msra.mxu0 0.0
  %127 = vmatprep.subr.mxu0 0.0
  %128 = vmatpush2.msra.mxu0 0.0
  %129 = vmatprep.subr.mxu0 0.0
  %130 = vmatpush2.msra.mxu0 0.0
  %131 = vmatprep.subr.mxu0 0.0
  %132 = vmatpush2.msra.mxu0 0.0
  %133 = vmatprep.subr.mxu0 0.0
  %134 = vmatpush2.msra.mxu0 0.0
  %135 = vmatprep.subr.mxu0 0.0
  %136 = vmatpush2.msra.mxu0 0.0
  %137 = vmatprep.subr.mxu0 0.0
  %138 = vmatpush2.msra.mxu0 0.0
  %139 = vmatprep.subr.mxu0 0.0
  %140 = vmatpush2.msra.mxu0 0.0
  %141 = vmatprep.subr.mxu0 0.0
  %142 = vmatpush2.msra.mxu0 0.0
  %143 = vmatprep.subr.mxu0 0.0
  %144 = vmatpush2.msra.mxu0 0.0
  %145 = vmatprep.subr.mxu0 0.0
  %146 = vmatpush2.msra.mxu0 0.0
  %147 = vmatprep.mubr.f32.mxu0 0.0
  %148 = vmatmul.mubr.f32.gmra.mxu0 %v78
  %v149 = vpop.f32.mrf.mxu0
  %v150 = vadd.f32 %v75, %v149
  %v151 = vpop.f32.mrf.mxu0
  %152 = vmatprep.mubr.f32.mxu0 0.0
  %153 = vmatmul.mubr.f32.gmra.mxu0 %v81
  %v154 = vpop.f32.mrf.mxu0
  %v155 = vadd.f32 %v75, %v154
  %v156 = vpop.f32.mrf.mxu0
  %157 = vdwg.mxu0
  %vm158 = vcmask 261120
  %159 = vst.msk [vmem:[%s5] sm:$0xff] %vm158, %v150
  %160 = vst.msk [vmem:[%s5 + $0x8] sm:$0xff] %vm158, %v155
  // Predicated region
  $region22: #{audio_transformer_forward.11} parent=0 // pred_check
    _
  $region23: #{audio_transformer_forward.11} parent=0 // pred_check_branch
    %162 = sbr.rel (0) target = $region25
  $region24: #{audio_transformer_forward.11} parent=0 // pred_region
    _
  $region25: #{audio_transformer_forward.11} parent=0 // pred_fallthru
    _
  // Predicated region
  $region26: #{audio_transformer_forward.11} parent=0 // pred_check
    _
  $region27: #{audio_transformer_forward.11} parent=0 // pred_check_branch
    %164 = sbr.rel (0) target = $region29
  $region28: #{audio_transformer_forward.11} parent=0 // pred_region
    _
  $region29: #{audio_transformer_forward.11} parent=0 // pred_fallthru
    _

// kernel: audio_transformer_forward.8
$region0: #{audio_transformer_forward.8}
  #allocation0 [shape = 'u32[]', space=smem, size = 0x4, offset = 0x4, fixed_abs, tag = 'smem constant byte address 0x4 - core index']
  #allocation1 [shape = 'u32[144,128]{1,0:T(1,128)}', space=vmem, size = 0x12000, scoped, tag = 'internal scratch']
  #allocation2 [shape = 'f32[16,16]{1,0:T(8,128)}', space=vmem, size = 0x2000, scoped, tag = 'scratch operand']
  %s0 = inlined_call_operand.vmem [shape: f32[16,16], index: 0, kind: input, shape index: {}]
  %s1 = inlined_call_operand.vmem [shape: f32[16,48], index: 1, kind: input, shape index: {}]
  %s2 = inlined_call_operand.vmem [shape: f32[1,48], index: 2, kind: input, shape index: {}]
  %s3 = inlined_call_operand.vmem [shape: f32[16,16], index: 3, kind: input, shape index: {}]
  %s4 = inlined_call_operand.vmem [shape: f32[1,16], index: 4, kind: input, shape index: {}]
  %s5 = inlined_call_operand.vmem [shape: f32[1,16], index: 5, kind: input, shape index: {}]
  %s6 = inlined_call_operand.vmem [shape: f32[1,16], index: 6, kind: input, shape index: {}]
  %s7 = inlined_call_operand.vmem [shape: f32[16,32], index: 7, kind: input, shape index: {}]
  %s8 = inlined_call_operand.vmem [shape: f32[1,32], index: 8, kind: input, shape index: {}]
  %s9 = inlined_call_operand.vmem [shape: f32[32,16], index: 9, kind: input, shape index: {}]
  %s10 = inlined_call_operand.vmem [shape: f32[1,16], index: 10, kind: input, shape index: {}]
  %s11 = inlined_call_operand.vmem [shape: f32[1,16], index: 11, kind: input, shape index: {}]
  %s12 = inlined_call_operand.vmem [shape: f32[1,16], index: 12, kind: input, shape index: {}]
  %s13 = inlined_call_operand.vmem [shape: f32[1,16], index: 13, kind: input, shape index: {}]
  %s14 = inlined_call_operand.hbm [shape: f32[1,16], index: 14, kind: input, shape index: {}]
  %s15 = inlined_call_operand.vmem [shape: f32[16,16], index: 15, kind: output, shape index: {}]
  %s16 = sld [smem:[#allocation0]]
  $region74: #{audio_transformer_forward.8} parent=0
    _
  %s18 = ssub.s32 1, %s16
  %s19 = scalar_select 0, %s18, %s16
  $region1: #{audio_transformer_forward.8} parent=0
    #allocation3 [shape = 'u8[512]{0}', space=vmem, size = 0x400, scoped, tag = 'input window, operand 14, single buffered']
    #allocation4 [shape = 's32[1]{0}', space=sflag, size = 0x4, scoped, tag = 'scoped memory for audio_transformer_forward.8']
    %20 = vsyncpa [#allocation4], 0
    // Predicated region
    $region2: #{audio_transformer_forward.8} parent=1 // pred_check
      _
    $region3: #{audio_transformer_forward.8} parent=1 // pred_check_branch
      %22 = sbr.rel (0) target = $region5
    $region4: #{audio_transformer_forward.8} parent=1 // pred_region
      _
    $region5: #{audio_transformer_forward.8} parent=1 // pred_fallthru
      _
    // Predicated region
    $region6: #{audio_transformer_forward.8} parent=1 // pred_check
      _
    $region7: #{audio_transformer_forward.8} parent=1 // pred_check_branch
      %24 = sbr.rel (0) target = $region9
    $region8: #{audio_transformer_forward.8} parent=1 // pred_region
      _
    $region9: #{audio_transformer_forward.8} parent=1 // pred_fallthru
      _
    // Predicated region
    $region10: #{audio_transformer_forward.8} parent=1 // pred_check
      _
    $region11: #{audio_transformer_forward.8} parent=1 // pred_check_branch
      %26 = sbr.rel (0) target = $region13
    $region12: #{audio_transformer_forward.8} parent=1 // pred_region
      _
    $region13: #{audio_transformer_forward.8} parent=1 // pred_fallthru
      _
    // Predicated region
    $region14: #{audio_transformer_forward.8} parent=1 // pred_check
      _
    $region15: #{audio_transformer_forward.8} parent=1 // pred_check_branch
      %28 = sbr.rel (0) target = $region17
    $region16: #{audio_transformer_forward.8} parent=1 // pred_region
      _
    $region17: #{audio_transformer_forward.8} parent=1 // pred_fallthru
      _
    // Predicated region
    $region18: #{audio_transformer_forward.8} parent=1 // pred_check
      _
    $region19: #{audio_transformer_forward.8} parent=1 // pred_check_branch
      %30 = sbr.rel (0) target = $region21
    $region20: #{audio_transformer_forward.8} parent=1 // pred_region
      _
    $region21: #{audio_transformer_forward.8} parent=1 // pred_fallthru
      _
    // Predicated region
    $region22: #{audio_transformer_forward.8} parent=1 // pred_check
      _
    $region23: #{audio_transformer_forward.8} parent=1 // pred_check_branch
      %32 = sbr.rel (0) target = $region25
    $region24: #{audio_transformer_forward.8} parent=1 // pred_region
      _
    $region25: #{audio_transformer_forward.8} parent=1 // pred_fallthru
      _
    // Predicated region
    $region26: #{audio_transformer_forward.8} parent=1 // pred_check
      _
    $region27: #{audio_transformer_forward.8} parent=1 // pred_check_branch
      %34 = sbr.rel (0) target = $region29
    $region28: #{audio_transformer_forward.8} parent=1 // pred_region
      _
    $region29: #{audio_transformer_forward.8} parent=1 // pred_fallthru
      _
    // Predicated region
    $region30: #{audio_transformer_forward.8} parent=1 // pred_check
      _
    $region31: #{audio_transformer_forward.8} parent=1 // pred_check_branch
      %36 = sbr.rel (0) target = $region33
    $region32: #{audio_transformer_forward.8} parent=1 // pred_region
      _
    $region33: #{audio_transformer_forward.8} parent=1 // pred_fallthru
      _
    // Predicated region
    $region34: #{audio_transformer_forward.8} parent=1 // pred_check
      _
    $region35: #{audio_transformer_forward.8} parent=1 // pred_check_branch
      %38 = sbr.rel (0) target = $region37
    $region36: #{audio_transformer_forward.8} parent=1 // pred_region
      _
    $region37: #{audio_transformer_forward.8} parent=1 // pred_fallthru
      _
    // Predicated region
    $region38: #{audio_transformer_forward.8} parent=1 // pred_check
      _
    $region39: #{audio_transformer_forward.8} parent=1 // pred_check_branch
      %40 = sbr.rel (0) target = $region41
    $region40: #{audio_transformer_forward.8} parent=1 // pred_region
      _
    $region41: #{audio_transformer_forward.8} parent=1 // pred_fallthru
      _
    // Predicated region
    $region42: #{audio_transformer_forward.8} parent=1 // pred_check
      _
    $region43: #{audio_transformer_forward.8} parent=1 // pred_check_branch
      %42 = sbr.rel (0) target = $region45
    $region44: #{audio_transformer_forward.8} parent=1 // pred_region
      _
    $region45: #{audio_transformer_forward.8} parent=1 // pred_fallthru
      _
    // Predicated region
    $region46: #{audio_transformer_forward.8} parent=1 // pred_check
      _
    $region47: #{audio_transformer_forward.8} parent=1 // pred_check_branch
      %44 = sbr.rel (0) target = $region49
    $region48: #{audio_transformer_forward.8} parent=1 // pred_region
      _
    $region49: #{audio_transformer_forward.8} parent=1 // pred_fallthru
      _
    // Predicated region
    $region50: #{audio_transformer_forward.8} parent=1 // pred_check
      _
    $region51: #{audio_transformer_forward.8} parent=1 // pred_check_branch
      %46 = sbr.rel (0) target = $region53
    $region52: #{audio_transformer_forward.8} parent=1 // pred_region
      _
    $region53: #{audio_transformer_forward.8} parent=1 // pred_fallthru
      _
    // Predicated region
    $region54: #{audio_transformer_forward.8} parent=1 // pred_check
      _
    $region55: #{audio_transformer_forward.8} parent=1 // pred_check_branch
      %48 = sbr.rel (0) target = $region57
    $region56: #{audio_transformer_forward.8} parent=1 // pred_region
      _
    $region57: #{audio_transformer_forward.8} parent=1 // pred_fallthru
      _
    // Predicated region
    $region58: #{audio_transformer_forward.8} parent=1 // pred_check
      _
    $region59: #{audio_transformer_forward.8} parent=1 // pred_check_branch
      %50 = sbr.rel (0) target = $region61
    $region60: #{audio_transformer_forward.8} parent=1 // pred_region
      %s52 = ssub.s32 16, 16
      %53 = vsyncadd [#allocation4], %s52
      %s55 = sshll.u32 [#allocation3], 4
      %s56 = int_to_ptr.vmem [resolvable:$true] %s55
      %58 = dma.hbm_to_vmem [thread:$0]  %s14, 16, %s56, [#allocation4]
    $region61: #{audio_transformer_forward.8} parent=1 // pred_fallthru
      _
    // Predicated region
    $region62: #{audio_transformer_forward.8} parent=1 // pred_check
      _
    $region63: #{audio_transformer_forward.8} parent=1 // pred_check_branch
      %60 = sbr.rel (0) target = $region65
    $region64: #{audio_transformer_forward.8} parent=1 // pred_region
      %61 = dma.done [#allocation4], 16
    $region65: #{audio_transformer_forward.8} parent=1 // pred_fallthru
      _
    %v62 = vld [vmem:[%s0] sm:$0xff]
    %v63 = vld [vmem:[%s0 + $0x8] sm:$0xff]
    %v64 = vld [vmem:[%s1] sm:$0xff]
    %v65 = vld [vmem:[%s1 + $0x8] sm:$0xff]
    %v66 = vld [vmem:[%s2] sm:$0x1]
    %v68 = vlaneseq
    %v69 = vshrl.u32 %v68, 7
    %v70 = vsub.s32 0, %v69
    %v71 = vrot.slane %v66, %v70
    %vm73 = vcmask 130048
    %v75 = vsel %vm73, %v62, 0
    %v78 = vsel %vm73, %v63, 0
    %80 = vmatprep.subr.mxu0 0.0
    %81 = vmatpush1.msra.mxu0 0.0
    %82 = vmatprep.subr.mxu0 0.0
    %83 = vmatpush1.msra.mxu0 0.0
    %84 = vmatprep.subr.mxu0 0.0
    %85 = vmatpush1.msra.mxu0 0.0
    %86 = vmatprep.subr.mxu0 0.0
    %87 = vmatpush1.msra.mxu0 0.0
    %88 = vmatprep.subr.mxu0 0.0
    %89 = vmatpush1.msra.mxu0 0.0
    %90 = vmatprep.subr.mxu0 0.0
    %91 = vmatpush1.msra.mxu0 0.0
    %92 = vmatprep.subr.mxu0 0.0
    %93 = vmatpush1.msra.mxu0 0.0
    %94 = vmatprep.subr.mxu0 0.0
    %95 = vmatpush1.msra.mxu0 0.0
    %96 = vmatprep.subr.mxu0 0.0
    %97 = vmatpush1.msra.mxu0 0.0
    %98 = vmatprep.subr.mxu0 0.0
    %99 = vmatpush1.msra.mxu0 0.0
    %100 = vmatprep.subr.mxu0 0.0
    %101 = vmatpush1.msra.mxu0 0.0
    %102 = vmatprep.subr.mxu0 0.0
    %103 = vmatpush1.msra.mxu0 0.0
    %104 = vmatprep.subr.mxu0 0.0
    %105 = vmatpush1.msra.mxu0 0.0
    %106 = vmatprep.subr.mxu0 0.0
    %107 = vmatpush1.msra.mxu0 0.0
    %108 = vmatprep.subr.mxu0 0.0
    %109 = vmatpush1.msra.mxu0 %v65
    %110 = vmatprep.subr.mxu0 0.0
    %111 = vmatpush1.msra.mxu0 %v64
    %112 = vmatprep.subr.mxu0 0.0
    %113 = vmatpush2.msra.mxu0 0.0
    %114 = vmatprep.subr.mxu0 0.0
    %115 = vmatpush2.msra.mxu0 0.0
    %116 = vmatprep.subr.mxu0 0.0
    %117 = vmatpush2.msra.mxu0 0.0
    %118 = vmatprep.subr.mxu0 0.0
    %119 = vmatpush2.msra.mxu0 0.0
    %120 = vmatprep.subr.mxu0 0.0
    %121 = vmatpush2.msra.mxu0 0.0
    %122 = vmatprep.subr.mxu0 0.0
    %123 = vmatpush2.msra.mxu0 0.0
    %124 = vmatprep.subr.mxu0 0.0
    %125 = vmatpush2.msra.mxu0 0.0
    %126 = vmatprep.subr.mxu0 0.0
    %127 = vmatpush2.msra.mxu0 0.0
    %128 = vmatprep.subr.mxu0 0.0
    %129 = vmatpush2.msra.mxu0 0.0
    %130 = vmatprep.subr.mxu0 0.0
    %131 = vmatpush2.msra.mxu0 0.0
    %132 = vmatprep.subr.mxu0 0.0
    %133 = vmatpush2.msra.mxu0 0.0
    %134 = vmatprep.subr.mxu0 0.0
    %135 = vmatpush2.msra.mxu0 0.0
    %136 = vmatprep.subr.mxu0 0.0
    %137 = vmatpush2.msra.mxu0 0.0
    %138 = vmatprep.subr.mxu0 0.0
    %139 = vmatpush2.msra.mxu0 0.0
    %140 = vmatprep.subr.mxu0 0.0
    %141 = vmatpush2.msra.mxu0 0.0
    %142 = vmatprep.subr.mxu0 0.0
    %143 = vmatpush2.msra.mxu0 0.0
    %144 = vmatprep.mubr.f32.mxu0 0.0
    %145 = vmatmul.mubr.f32.gmra.mxu0 %v75
    %v146 = vpop.f32.mrf.mxu0
    %v147 = vadd.f32 %v71, %v146
    %v148 = vpop.f32.mrf.mxu0
    %149 = vmatprep.mubr.f32.mxu0 0.0
    %150 = vmatmul.mubr.f32.gmra.mxu0 %v78
    %v151 = vpop.f32.mrf.mxu0
    %v152 = vadd.f32 %v71, %v151
    %v153 = vpop.f32.mrf.mxu0
    %154 = vdwg.mxu0
    %156 = vrot.lane.b32.xlu0 %v147, 112
    %v157 = vpop.permute.xlu0 %156
    %vm158 = vcmask 64512
    %v159 = vsel %vm158, %v147, 0
    %v161 = vsel %vm158, %v157, 0
    %163 = vmatprep.subr.mxu0 0.0
    %164 = vmatpush1.xpose.msra.mxu0 0.0
    %165 = vmatprep.subr.mxu0 0.0
    %166 = vmatpush1.xpose.msra.mxu0 0.0
    %167 = vmatprep.subr.mxu0 0.0
    %168 = vmatpush1.xpose.msra.mxu0 0.0
    %169 = vmatprep.subr.mxu0 0.0
    %170 = vmatpush1.xpose.msra.mxu0 0.0
    %171 = vmatprep.subr.mxu0 0.0
    %172 = vmatpush1.xpose.msra.mxu0 0.0
    %173 = vmatprep.subr.mxu0 0.0
    %174 = vmatpush1.xpose.msra.mxu0 0.0
    %175 = vmatprep.subr.mxu0 0.0
    %176 = vmatpush1.xpose.msra.mxu0 0.0
    %177 = vmatprep.subr.mxu0 0.0
    %178 = vmatpush1.xpose.msra.mxu0 0.0
    %179 = vmatprep.subr.mxu0 0.0
    %180 = vmatpush1.xpose.msra.mxu0 0.0
    %181 = vmatprep.subr.mxu0 0.0
    %182 = vmatpush1.xpose.msra.mxu0 0.0
    %183 = vmatprep.subr.mxu0 0.0
    %184 = vmatpush1.xpose.msra.mxu0 0.0
    %185 = vmatprep.subr.mxu0 0.0
    %186 = vmatpush1.xpose.msra.mxu0 0.0
    %187 = vmatprep.subr.mxu0 0.0
    %188 = vmatpush1.xpose.msra.mxu0 0.0
    %189 = vmatprep.subr.mxu0 0.0
    %190 = vmatpush1.xpose.msra.mxu0 0.0
    %191 = vmatprep.subr.mxu0 0.0
    %192 = vmatpush1.xpose.msra.mxu0 0.0
    %193 = vmatprep.subr.mxu0 0.0
    %194 = vmatpush1.xpose.msra.mxu0 %v161
    %195 = vmatprep.subr.mxu0 0.0
    %196 = vmatpush2.xpose.msra.mxu0 0.0
    %197 = vmatprep.subr.mxu0 0.0
    %198 = vmatpush2.xpose.msra.mxu0 0.0
    %199 = vmatprep.subr.mxu0 0.0
    %200 = vmatpush2.xpose.msra.mxu0 0.0
    %201 = vmatprep.subr.mxu0 0.0
    %202 = vmatpush2.xpose.msra.mxu0 0.0
    %203 = vmatprep.subr.mxu0 0.0
    %204 = vmatpush2.xpose.msra.mxu0 0.0
    %205 = vmatprep.subr.mxu0 0.0
    %206 = vmatpush2.xpose.msra.mxu0 0.0
    %207 = vmatprep.subr.mxu0 0.0
    %208 = vmatpush2.xpose.msra.mxu0 0.0
    %209 = vmatprep.subr.mxu0 0.0
    %210 = vmatpush2.xpose.msra.mxu0 0.0
    %211 = vmatprep.subr.mxu0 0.0
    %212 = vmatpush2.xpose.msra.mxu0 0.0
    %213 = vmatprep.subr.mxu0 0.0
    %214 = vmatpush2.xpose.msra.mxu0 0.0
    %215 = vmatprep.subr.mxu0 0.0
    %216 = vmatpush2.xpose.msra.mxu0 0.0
    %217 = vmatprep.subr.mxu0 0.0
    %218 = vmatpush2.xpose.msra.mxu0 0.0
    %219 = vmatprep.subr.mxu0 0.0
    %220 = vmatpush2.xpose.msra.mxu0 0.0
    %221 = vmatprep.subr.mxu0 0.0
    %222 = vmatpush2.xpose.msra.mxu0 0.0
    %223 = vmatprep.subr.mxu0 0.0
    %224 = vmatpush2.xpose.msra.mxu0 0.0
    %225 = vmatprep.subr.mxu0 0.0
    %226 = vmatpush2.xpose.msra.mxu0 0.0
    %227 = vmatprep.mubr.f32.mxu0 0.0
    %228 = vmatmul.mubr.f32.gmra.mxu0 %v159
    %v229 = vpop.f32.mrf.mxu0
    %v230 = vadd.f32 0.0, %v229
    %v231 = vpop.f32.mrf.mxu0
    %232 = vdwg.mxu0
    %v233 = vmul.f32 %v230, 0.35355338
    %v234 = vsel %vm158, %v233, -inf
    %235 = vmax.xlane.f32.xlu0 %v234
    %v236 = vpop.xlane.xlu0 %235
    %v237 = vsub.f32 %v233, %v236
    %v238 = vmul.f32 %v237, 1.442695
    %v239 = vpow.pop %v238
    %v240 = vsel %vm158, %v239, 0.0
    %241 = vadd.xlane.f32.xlu0 %v240
    %v242 = vpop.xlane.xlu0 %241
    %v243 = vrcp.pop %v242
    %v244 = vmul.f32 %v239, %v243
    %245 = vrot.lane.b32.xlu0 %v147, 96
    %v246 = vpop.permute.xlu0 %245
    %v249 = vsel %vm158, %v244, 0
    %251 = vmatprep.subr.mxu0 0.0
    %252 = vmatpush1.msra.mxu0 0.0
    %253 = vmatprep.subr.mxu0 0.0
    %254 = vmatpush1.msra.mxu0 0.0
    %255 = vmatprep.subr.mxu0 0.0
    %256 = vmatpush1.msra.mxu0 0.0
    %257 = vmatprep.subr.mxu0 0.0
    %258 = vmatpush1.msra.mxu0 0.0
    %259 = vmatprep.subr.mxu0 0.0
    %260 = vmatpush1.msra.mxu0 0.0
    %261 = vmatprep.subr.mxu0 0.0
    %262 = vmatpush1.msra.mxu0 0.0
    %263 = vmatprep.subr.mxu0 0.0
    %264 = vmatpush1.msra.mxu0 0.0
    %265 = vmatprep.subr.mxu0 0.0
    %266 = vmatpush1.msra.mxu0 0.0
    %267 = vmatprep.subr.mxu0 0.0
    %268 = vmatpush1.msra.mxu0 0.0
    %269 = vmatprep.subr.mxu0 0.0
    %270 = vmatpush1.msra.mxu0 0.0
    %271 = vmatprep.subr.mxu0 0.0
    %272 = vmatpush1.msra.mxu0 0.0
    %273 = vmatprep.subr.mxu0 0.0
    %274 = vmatpush1.msra.mxu0 0.0
    %275 = vmatprep.subr.mxu0 0.0
    %276 = vmatpush1.msra.mxu0 0.0
    %277 = vmatprep.subr.mxu0 0.0
    %278 = vmatpush1.msra.mxu0 0.0
    %279 = vmatprep.subr.mxu0 0.0
    %280 = vmatpush1.msra.mxu0 0.0
    %281 = vmatprep.subr.mxu0 0.0
    %282 = vmatpush1.msra.mxu0 %v246
    %283 = vmatprep.subr.mxu0 0.0
    %284 = vmatpush2.msra.mxu0 0.0
    %285 = vmatprep.subr.mxu0 0.0
    %286 = vmatpush2.msra.mxu0 0.0
    %287 = vmatprep.subr.mxu0 0.0
    %288 = vmatpush2.msra.mxu0 0.0
    %289 = vmatprep.subr.mxu0 0.0
    %290 = vmatpush2.msra.mxu0 0.0
    %291 = vmatprep.subr.mxu0 0.0
    %292 = vmatpush2.msra.mxu0 0.0
    %293 = vmatprep.subr.mxu0 0.0
    %294 = vmatpush2.msra.mxu0 0.0
    %295 = vmatprep.subr.mxu0 0.0
    %296 = vmatpush2.msra.mxu0 0.0
    %297 = vmatprep.subr.mxu0 0.0
    %298 = vmatpush2.msra.mxu0 0.0
    %299 = vmatprep.subr.mxu0 0.0
    %300 = vmatpush2.msra.mxu0 0.0
    %301 = vmatprep.subr.mxu0 0.0
    %302 = vmatpush2.msra.mxu0 0.0
    %303 = vmatprep.subr.mxu0 0.0
    %304 = vmatpush2.msra.mxu0 0.0
    %305 = vmatprep.subr.mxu0 0.0
    %306 = vmatpush2.msra.mxu0 0.0
    %307 = vmatprep.subr.mxu0 0.0
    %308 = vmatpush2.msra.mxu0 0.0
    %309 = vmatprep.subr.mxu0 0.0
    %310 = vmatpush2.msra.mxu0 0.0
    %311 = vmatprep.subr.mxu0 0.0
    %312 = vmatpush2.msra.mxu0 0.0
    %313 = vmatprep.subr.mxu0 0.0
    %314 = vmatpush2.msra.mxu0 0.0
    %315 = vmatprep.mubr.f32.mxu0 0.0
    %316 = vmatmul.mubr.f32.gmra.mxu0 %v249
    %v317 = vpop.f32.mrf.mxu0
    %v318 = vadd.f32 0.0, %v317
    %v319 = vpop.f32.mrf.mxu0
    %320 = vdwg.mxu0
    %321 = vst.msk [vmem:[#allocation2] sm:$0xff] %vm158, %v318
    %322 = vrot.lane.b32.xlu0 %v147, 120
    %v323 = vpop.permute.xlu0 %322
    %324 = vrot.lane.b32.xlu0 %v147, 104
    %v325 = vpop.permute.xlu0 %324
    %v326 = vsel %vm158, %v323, 0
    %v328 = vsel %vm158, %v325, 0
    %330 = vmatprep.subr.mxu0 0.0
    %331 = vmatpush1.xpose.msra.mxu0 0.0
    %332 = vmatprep.subr.mxu0 0.0
    %333 = vmatpush1.xpose.msra.mxu0 0.0
    %334 = vmatprep.subr.mxu0 0.0
    %335 = vmatpush1.xpose.msra.mxu0 0.0
    %336 = vmatprep.subr.mxu0 0.0
    %337 = vmatpush1.xpose.msra.mxu0 0.0
    %338 = vmatprep.subr.mxu0 0.0
    %339 = vmatpush1.xpose.msra.mxu0 0.0
    %340 = vmatprep.subr.mxu0 0.0
    %341 = vmatpush1.xpose.msra.mxu0 0.0
    %342 = vmatprep.subr.mxu0 0.0
    %343 = vmatpush1.xpose.msra.mxu0 0.0
    %344 = vmatprep.subr.mxu0 0.0
    %345 = vmatpush1.xpose.msra.mxu0 0.0
    %346 = vmatprep.subr.mxu0 0.0
    %347 = vmatpush1.xpose.msra.mxu0 0.0
    %348 = vmatprep.subr.mxu0 0.0
    %349 = vmatpush1.xpose.msra.mxu0 0.0
    %350 = vmatprep.subr.mxu0 0.0
    %351 = vmatpush1.xpose.msra.mxu0 0.0
    %352 = vmatprep.subr.mxu0 0.0
    %353 = vmatpush1.xpose.msra.mxu0 0.0
    %354 = vmatprep.subr.mxu0 0.0
    %355 = vmatpush1.xpose.msra.mxu0 0.0
    %356 = vmatprep.subr.mxu0 0.0
    %357 = vmatpush1.xpose.msra.mxu0 0.0
    %358 = vmatprep.subr.mxu0 0.0
    %359 = vmatpush1.xpose.msra.mxu0 0.0
    %360 = vmatprep.subr.mxu0 0.0
    %361 = vmatpush1.xpose.msra.mxu0 %v328
    %362 = vmatprep.subr.mxu0 0.0
    %363 = vmatpush2.xpose.msra.mxu0 0.0
    %364 = vmatprep.subr.mxu0 0.0
    %365 = vmatpush2.xpose.msra.mxu0 0.0
    %366 = vmatprep.subr.mxu0 0.0
    %367 = vmatpush2.xpose.msra.mxu0 0.0
    %368 = vmatprep.subr.mxu0 0.0
    %369 = vmatpush2.xpose.msra.mxu0 0.0
    %370 = vmatprep.subr.mxu0 0.0
    %371 = vmatpush2.xpose.msra.mxu0 0.0
    %372 = vmatprep.subr.mxu0 0.0
    %373 = vmatpush2.xpose.msra.mxu0 0.0
    %374 = vmatprep.subr.mxu0 0.0
    %375 = vmatpush2.xpose.msra.mxu0 0.0
    %376 = vmatprep.subr.mxu0 0.0
    %377 = vmatpush2.xpose.msra.mxu0 0.0
    %378 = vmatprep.subr.mxu0 0.0
    %379 = vmatpush2.xpose.msra.mxu0 0.0
    %380 = vmatprep.subr.mxu0 0.0
    %381 = vmatpush2.xpose.msra.mxu0 0.0
    %382 = vmatprep.subr.mxu0 0.0
    %383 = vmatpush2.xpose.msra.mxu0 0.0
    %384 = vmatprep.subr.mxu0 0.0
    %385 = vmatpush2.xpose.msra.mxu0 0.0
    %386 = vmatprep.subr.mxu0 0.0
    %387 = vmatpush2.xpose.msra.mxu0 0.0
    %388 = vmatprep.subr.mxu0 0.0
    %389 = vmatpush2.xpose.msra.mxu0 0.0
    %390 = vmatprep.subr.mxu0 0.0
    %391 = vmatpush2.xpose.msra.mxu0 0.0
    %392 = vmatprep.subr.mxu0 0.0
    %393 = vmatpush2.xpose.msra.mxu0 0.0
    %394 = vmatprep.mubr.f32.mxu0 0.0
    %395 = vmatmul.mubr.f32.gmra.mxu0 %v326
    %v396 = vpop.f32.mrf.mxu0
    %v397 = vadd.f32 0.0, %v396
    %v398 = vpop.f32.mrf.mxu0
    %399 = vdwg.mxu0
    %v400 = vmul.f32 %v397, 0.35355338
    %v401 = vsel %vm158, %v400, -inf
    %402 = vmax.xlane.f32.xlu0 %v401
    %v403 = vpop.xlane.xlu0 %402
    %v404 = vsub.f32 %v400, %v403
    %v405 = vmul.f32 %v404, 1.442695
    %v406 = vpow.pop %v405
    %v407 = vsel %vm158, %v406, 0.0
    %408 = vadd.xlane.f32.xlu0 %v407
    %v409 = vpop.xlane.xlu0 %408
    %v410 = vrcp.pop %v409
    %v411 = vmul.f32 %v406, %v410
    %412 = vrot.lane.b32.xlu0 %v147, 88
    %v413 = vpop.permute.xlu0 %412
    %v416 = vsel %vm158, %v411, 0
    %418 = vmatprep.subr.mxu0 0.0
    %419 = vmatpush1.msra.mxu0 0.0
    %420 = vmatprep.subr.mxu0 0.0
    %421 = vmatpush1.msra.mxu0 0.0
    %422 = vmatprep.subr.mxu0 0.0
    %423 = vmatpush1.msra.mxu0 0.0
    %424 = vmatprep.subr.mxu0 0.0
    %425 = vmatpush1.msra.mxu0 0.0
    %426 = vmatprep.subr.mxu0 0.0
    %427 = vmatpush1.msra.mxu0 0.0
    %428 = vmatprep.subr.mxu0 0.0
    %429 = vmatpush1.msra.mxu0 0.0
    %430 = vmatprep.subr.mxu0 0.0
    %431 = vmatpush1.msra.mxu0 0.0
    %432 = vmatprep.subr.mxu0 0.0
    %433 = vmatpush1.msra.mxu0 0.0
    %434 = vmatprep.subr.mxu0 0.0
    %435 = vmatpush1.msra.mxu0 0.0
    %436 = vmatprep.subr.mxu0 0.0
    %437 = vmatpush1.msra.mxu0 0.0
    %438 = vmatprep.subr.mxu0 0.0
    %439 = vmatpush1.msra.mxu0 0.0
    %440 = vmatprep.subr.mxu0 0.0
    %441 = vmatpush1.msra.mxu0 0.0
    %442 = vmatprep.subr.mxu0 0.0
    %443 = vmatpush1.msra.mxu0 0.0
    %444 = vmatprep.subr.mxu0 0.0
    %445 = vmatpush1.msra.mxu0 0.0
    %446 = vmatprep.subr.mxu0 0.0
    %447 = vmatpush1.msra.mxu0 0.0
    %448 = vmatprep.subr.mxu0 0.0
    %449 = vmatpush1.msra.mxu0 %v413
    %450 = vmatprep.subr.mxu0 0.0
    %451 = vmatpush2.msra.mxu0 0.0
    %452 = vmatprep.subr.mxu0 0.0
    %453 = vmatpush2.msra.mxu0 0.0
    %454 = vmatprep.subr.mxu0 0.0
    %455 = vmatpush2.msra.mxu0 0.0
    %456 = vmatprep.subr.mxu0 0.0
    %457 = vmatpush2.msra.mxu0 0.0
    %458 = vmatprep.subr.mxu0 0.0
    %459 = vmatpush2.msra.mxu0 0.0
    %460 = vmatprep.subr.mxu0 0.0
    %461 = vmatpush2.msra.mxu0 0.0
    %462 = vmatprep.subr.mxu0 0.0
    %463 = vmatpush2.msra.mxu0 0.0
    %464 = vmatprep.subr.mxu0 0.0
    %465 = vmatpush2.msra.mxu0 0.0
    %466 = vmatprep.subr.mxu0 0.0
    %467 = vmatpush2.msra.mxu0 0.0
    %468 = vmatprep.subr.mxu0 0.0
    %469 = vmatpush2.msra.mxu0 0.0
    %470 = vmatprep.subr.mxu0 0.0
    %471 = vmatpush2.msra.mxu0 0.0
    %472 = vmatprep.subr.mxu0 0.0
    %473 = vmatpush2.msra.mxu0 0.0
    %474 = vmatprep.subr.mxu0 0.0
    %475 = vmatpush2.msra.mxu0 0.0
    %476 = vmatprep.subr.mxu0 0.0
    %477 = vmatpush2.msra.mxu0 0.0
    %478 = vmatprep.subr.mxu0 0.0
    %479 = vmatpush2.msra.mxu0 0.0
    %480 = vmatprep.subr.mxu0 0.0
    %481 = vmatpush2.msra.mxu0 0.0
    %482 = vmatprep.mubr.f32.mxu0 0.0
    %483 = vmatmul.mubr.f32.gmra.mxu0 %v416
    %v484 = vpop.f32.mrf.mxu0
    %v485 = vadd.f32 0.0, %v484
    %v486 = vpop.f32.mrf.mxu0
    %487 = vdwg.mxu0
    %489 = vrot.lane.b32.xlu0 %v485, 8
    %v490 = vpop.permute.xlu0 %489
    %vm492 = vcmask 130112
    %493 = vst.msk [vmem:[#allocation2] sm:$0xff] %vm492, %v490
    %495 = vrot.lane.b32.xlu0 %v152, 112
    %v496 = vpop.permute.xlu0 %495
    %v497 = vsel %vm158, %v152, 0
    %v499 = vsel %vm158, %v496, 0
    %501 = vmatprep.subr.mxu0 0.0
    %502 = vmatpush1.xpose.msra.mxu0 0.0
    %503 = vmatprep.subr.mxu0 0.0
    %504 = vmatpush1.xpose.msra.mxu0 0.0
    %505 = vmatprep.subr.mxu0 0.0
    %506 = vmatpush1.xpose.msra.mxu0 0.0
    %507 = vmatprep.subr.mxu0 0.0
    %508 = vmatpush1.xpose.msra.mxu0 0.0
    %509 = vmatprep.subr.mxu0 0.0
    %510 = vmatpush1.xpose.msra.mxu0 0.0
    %511 = vmatprep.subr.mxu0 0.0
    %512 = vmatpush1.xpose.msra.mxu0 0.0
    %513 = vmatprep.subr.mxu0 0.0
    %514 = vmatpush1.xpose.msra.mxu0 0.0
    %515 = vmatprep.subr.mxu0 0.0
    %516 = vmatpush1.xpose.msra.mxu0 0.0
    %517 = vmatprep.subr.mxu0 0.0
    %518 = vmatpush1.xpose.msra.mxu0 0.0
    %519 = vmatprep.subr.mxu0 0.0
    %520 = vmatpush1.xpose.msra.mxu0 0.0
    %521 = vmatprep.subr.mxu0 0.0
    %522 = vmatpush1.xpose.msra.mxu0 0.0
    %523 = vmatprep.subr.mxu0 0.0
    %524 = vmatpush1.xpose.msra.mxu0 0.0
    %525 = vmatprep.subr.mxu0 0.0
    %526 = vmatpush1.xpose.msra.mxu0 0.0
    %527 = vmatprep.subr.mxu0 0.0
    %528 = vmatpush1.xpose.msra.mxu0 0.0
    %529 = vmatprep.subr.mxu0 0.0
    %530 = vmatpush1.xpose.msra.mxu0 0.0
    %531 = vmatprep.subr.mxu0 0.0
    %532 = vmatpush1.xpose.msra.mxu0 %v499
    %533 = vmatprep.subr.mxu0 0.0
    %534 = vmatpush2.xpose.msra.mxu0 0.0
    %535 = vmatprep.subr.mxu0 0.0
    %536 = vmatpush2.xpose.msra.mxu0 0.0
    %537 = vmatprep.subr.mxu0 0.0
    %538 = vmatpush2.xpose.msra.mxu0 0.0
    %539 = vmatprep.subr.mxu0 0.0
    %540 = vmatpush2.xpose.msra.mxu0 0.0
    %541 = vmatprep.subr.mxu0 0.0
    %542 = vmatpush2.xpose.msra.mxu0 0.0
    %543 = vmatprep.subr.mxu0 0.0
    %544 = vmatpush2.xpose.msra.mxu0 0.0
    %545 = vmatprep.subr.mxu0 0.0
    %546 = vmatpush2.xpose.msra.mxu0 0.0
    %547 = vmatprep.subr.mxu0 0.0
    %548 = vmatpush2.xpose.msra.mxu0 0.0
    %549 = vmatprep.subr.mxu0 0.0
    %550 = vmatpush2.xpose.msra.mxu0 0.0
    %551 = vmatprep.subr.mxu0 0.0
    %552 = vmatpush2.xpose.msra.mxu0 0.0
    %553 = vmatprep.subr.mxu0 0.0
    %554 = vmatpush2.xpose.msra.mxu0 0.0
    %555 = vmatprep.subr.mxu0 0.0
    %556 = vmatpush2.xpose.msra.mxu0 0.0
    %557 = vmatprep.subr.mxu0 0.0
    %558 = vmatpush2.xpose.msra.mxu0 0.0
    %559 = vmatprep.subr.mxu0 0.0
    %560 = vmatpush2.xpose.msra.mxu0 0.0
    %561 = vmatprep.subr.mxu0 0.0
    %562 = vmatpush2.xpose.msra.mxu0 0.0
    %563 = vmatprep.subr.mxu0 0.0
    %564 = vmatpush2.xpose.msra.mxu0 0.0
    %565 = vmatprep.mubr.f32.mxu0 0.0
    %566 = vmatmul.mubr.f32.gmra.mxu0 %v497
    %v567 = vpop.f32.mrf.mxu0
    %v568 = vadd.f32 0.0, %v567
    %v569 = vpop.f32.mrf.mxu0
    %570 = vdwg.mxu0
    %v571 = vmul.f32 %v568, 0.35355338
    %v572 = vsel %vm158, %v571, -inf
    %573 = vmax.xlane.f32.xlu0 %v572
    %v574 = vpop.xlane.xlu0 %573
    %v575 = vsub.f32 %v571, %v574
    %v576 = vmul.f32 %v575, 1.442695
    %v577 = vpow.pop %v576
    %v578 = vsel %vm158, %v577, 0.0
    %579 = vadd.xlane.f32.xlu0 %v578
    %v580 = vpop.xlane.xlu0 %579
    %v581 = vrcp.pop %v580
    %v582 = vmul.f32 %v577, %v581
    %583 = vrot.lane.b32.xlu0 %v152, 96
    %v584 = vpop.permute.xlu0 %583
    %v587 = vsel %vm158, %v582, 0
    %589 = vmatprep.subr.mxu0 0.0
    %590 = vmatpush1.msra.mxu0 0.0
    %591 = vmatprep.subr.mxu0 0.0
    %592 = vmatpush1.msra.mxu0 0.0
    %593 = vmatprep.subr.mxu0 0.0
    %594 = vmatpush1.msra.mxu0 0.0
    %595 = vmatprep.subr.mxu0 0.0
    %596 = vmatpush1.msra.mxu0 0.0
    %597 = vmatprep.subr.mxu0 0.0
    %598 = vmatpush1.msra.mxu0 0.0
    %599 = vmatprep.subr.mxu0 0.0
    %600 = vmatpush1.msra.mxu0 0.0
    %601 = vmatprep.subr.mxu0 0.0
    %602 = vmatpush1.msra.mxu0 0.0
    %603 = vmatprep.subr.mxu0 0.0
    %604 = vmatpush1.msra.mxu0 0.0
    %605 = vmatprep.subr.mxu0 0.0
    %606 = vmatpush1.msra.mxu0 0.0
    %607 = vmatprep.subr.mxu0 0.0
    %608 = vmatpush1.msra.mxu0 0.0
    %609 = vmatprep.subr.mxu0 0.0
    %610 = vmatpush1.msra.mxu0 0.0
    %611 = vmatprep.subr.mxu0 0.0
    %612 = vmatpush1.msra.mxu0 0.0
    %613 = vmatprep.subr.mxu0 0.0
    %614 = vmatpush1.msra.mxu0 0.0
    %615 = vmatprep.subr.mxu0 0.0
    %616 = vmatpush1.msra.mxu0 0.0
    %617 = vmatprep.subr.mxu0 0.0
    %618 = vmatpush1.msra.mxu0 0.0
    %619 = vmatprep.subr.mxu0 0.0
    %620 = vmatpush1.msra.mxu0 %v584
    %621 = vmatprep.subr.mxu0 0.0
    %622 = vmatpush2.msra.mxu0 0.0
    %623 = vmatprep.subr.mxu0 0.0
    %624 = vmatpush2.msra.mxu0 0.0
    %625 = vmatprep.subr.mxu0 0.0
    %626 = vmatpush2.msra.mxu0 0.0
    %627 = vmatprep.subr.mxu0 0.0
    %628 = vmatpush2.msra.mxu0 0.0
    %629 = vmatprep.subr.mxu0 0.0
    %630 = vmatpush2.msra.mxu0 0.0
    %631 = vmatprep.subr.mxu0 0.0
    %632 = vmatpush2.msra.mxu0 0.0
    %633 = vmatprep.subr.mxu0 0.0
    %634 = vmatpush2.msra.mxu0 0.0
    %635 = vmatprep.subr.mxu0 0.0
    %636 = vmatpush2.msra.mxu0 0.0
    %637 = vmatprep.subr.mxu0 0.0
    %638 = vmatpush2.msra.mxu0 0.0
    %639 = vmatprep.subr.mxu0 0.0
    %640 = vmatpush2.msra.mxu0 0.0
    %641 = vmatprep.subr.mxu0 0.0
    %642 = vmatpush2.msra.mxu0 0.0
    %643 = vmatprep.subr.mxu0 0.0
    %644 = vmatpush2.msra.mxu0 0.0
    %645 = vmatprep.subr.mxu0 0.0
    %646 = vmatpush2.msra.mxu0 0.0
    %647 = vmatprep.subr.mxu0 0.0
    %648 = vmatpush2.msra.mxu0 0.0
    %649 = vmatprep.subr.mxu0 0.0
    %650 = vmatpush2.msra.mxu0 0.0
    %651 = vmatprep.subr.mxu0 0.0
    %652 = vmatpush2.msra.mxu0 0.0
    %653 = vmatprep.mubr.f32.mxu0 0.0
    %654 = vmatmul.mubr.f32.gmra.mxu0 %v587
    %v655 = vpop.f32.mrf.mxu0
    %v656 = vadd.f32 0.0, %v655
    %v657 = vpop.f32.mrf.mxu0
    %658 = vdwg.mxu0
    %659 = vst.msk [vmem:[#allocation2 + $0x8] sm:$0xff] %vm158, %v656
    %660 = vrot.lane.b32.xlu0 %v152, 120
    %v661 = vpop.permute.xlu0 %660
    %662 = vrot.lane.b32.xlu0 %v152, 104
    %v663 = vpop.permute.xlu0 %662
    %v664 = vsel %vm158, %v661, 0
    %v666 = vsel %vm158, %v663, 0
    %668 = vmatprep.subr.mxu0 0.0
    %669 = vmatpush1.xpose.msra.mxu0 0.0
    %670 = vmatprep.subr.mxu0 0.0
    %671 = vmatpush1.xpose.msra.mxu0 0.0
    %672 = vmatprep.subr.mxu0 0.0
    %673 = vmatpush1.xpose.msra.mxu0 0.0
    %674 = vmatprep.subr.mxu0 0.0
    %675 = vmatpush1.xpose.msra.mxu0 0.0
    %676 = vmatprep.subr.mxu0 0.0
    %677 = vmatpush1.xpose.msra.mxu0 0.0
    %678 = vmatprep.subr.mxu0 0.0
    %679 = vmatpush1.xpose.msra.mxu0 0.0
    %680 = vmatprep.subr.mxu0 0.0
    %681 = vmatpush1.xpose.msra.mxu0 0.0
    %682 = vmatprep.subr.mxu0 0.0
    %683 = vmatpush1.xpose.msra.mxu0 0.0
    %684 = vmatprep.subr.mxu0 0.0
    %685 = vmatpush1.xpose.msra.mxu0 0.0
    %686 = vmatprep.subr.mxu0 0.0
    %687 = vmatpush1.xpose.msra.mxu0 0.0
    %688 = vmatprep.subr.mxu0 0.0
    %689 = vmatpush1.xpose.msra.mxu0 0.0
    %690 = vmatprep.subr.mxu0 0.0
    %691 = vmatpush1.xpose.msra.mxu0 0.0
    %692 = vmatprep.subr.mxu0 0.0
    %693 = vmatpush1.xpose.msra.mxu0 0.0
    %694 = vmatprep.subr.mxu0 0.0
    %695 = vmatpush1.xpose.msra.mxu0 0.0
    %696 = vmatprep.subr.mxu0 0.0
    %697 = vmatpush1.xpose.msra.mxu0 0.0
    %698 = vmatprep.subr.mxu0 0.0
    %699 = vmatpush1.xpose.msra.mxu0 %v666
    %700 = vmatprep.subr.mxu0 0.0
    %701 = vmatpush2.xpose.msra.mxu0 0.0
    %702 = vmatprep.subr.mxu0 0.0
    %703 = vmatpush2.xpose.msra.mxu0 0.0
    %704 = vmatprep.subr.mxu0 0.0
    %705 = vmatpush2.xpose.msra.mxu0 0.0
    %706 = vmatprep.subr.mxu0 0.0
    %707 = vmatpush2.xpose.msra.mxu0 0.0
    %708 = vmatprep.subr.mxu0 0.0
    %709 = vmatpush2.xpose.msra.mxu0 0.0
    %710 = vmatprep.subr.mxu0 0.0
    %711 = vmatpush2.xpose.msra.mxu0 0.0
    %712 = vmatprep.subr.mxu0 0.0
    %713 = vmatpush2.xpose.msra.mxu0 0.0
    %714 = vmatprep.subr.mxu0 0.0
    %715 = vmatpush2.xpose.msra.mxu0 0.0
    %716 = vmatprep.subr.mxu0 0.0
    %717 = vmatpush2.xpose.msra.mxu0 0.0
    %718 = vmatprep.subr.mxu0 0.0
    %719 = vmatpush2.xpose.msra.mxu0 0.0
    %720 = vmatprep.subr.mxu0 0.0
    %721 = vmatpush2.xpose.msra.mxu0 0.0
    %722 = vmatprep.subr.mxu0 0.0
    %723 = vmatpush2.xpose.msra.mxu0 0.0
    %724 = vmatprep.subr.mxu0 0.0
    %725 = vmatpush2.xpose.msra.mxu0 0.0
    %726 = vmatprep.subr.mxu0 0.0
    %727 = vmatpush2.xpose.msra.mxu0 0.0
    %728 = vmatprep.subr.mxu0 0.0
    %729 = vmatpush2.xpose.msra.mxu0 0.0
    %730 = vmatprep.subr.mxu0 0.0
    %731 = vmatpush2.xpose.msra.mxu0 0.0
    %732 = vmatprep.mubr.f32.mxu0 0.0
    %733 = vmatmul.mubr.f32.gmra.mxu0 %v664
    %v734 = vpop.f32.mrf.mxu0
    %v735 = vadd.f32 0.0, %v734
    %v736 = vpop.f32.mrf.mxu0
    %737 = vdwg.mxu0
    %v738 = vmul.f32 %v735, 0.35355338
    %v739 = vsel %vm158, %v738, -inf
    %740 = vmax.xlane.f32.xlu0 %v739
    %v741 = vpop.xlane.xlu0 %740
    %v742 = vsub.f32 %v738, %v741
    %v743 = vmul.f32 %v742, 1.442695
    %v744 = vpow.pop %v743
    %v745 = vsel %vm158, %v744, 0.0
    %746 = vadd.xlane.f32.xlu0 %v745
    %v747 = vpop.xlane.xlu0 %746
    %v748 = vrcp.pop %v747
    %v749 = vmul.f32 %v744, %v748
    %750 = vrot.lane.b32.xlu0 %v152, 88
    %v751 = vpop.permute.xlu0 %750
    %v754 = vsel %vm158, %v749, 0
    %756 = vmatprep.subr.mxu0 0.0
    %757 = vmatpush1.msra.mxu0 0.0
    %758 = vmatprep.subr.mxu0 0.0
    %759 = vmatpush1.msra.mxu0 0.0
    %760 = vmatprep.subr.mxu0 0.0
    %761 = vmatpush1.msra.mxu0 0.0
    %762 = vmatprep.subr.mxu0 0.0
    %763 = vmatpush1.msra.mxu0 0.0
    %764 = vmatprep.subr.mxu0 0.0
    %765 = vmatpush1.msra.mxu0 0.0
    %766 = vmatprep.subr.mxu0 0.0
    %767 = vmatpush1.msra.mxu0 0.0
    %768 = vmatprep.subr.mxu0 0.0
    %769 = vmatpush1.msra.mxu0 0.0
    %770 = vmatprep.subr.mxu0 0.0
    %771 = vmatpush1.msra.mxu0 0.0
    %772 = vmatprep.subr.mxu0 0.0
    %773 = vmatpush1.msra.mxu0 0.0
    %774 = vmatprep.subr.mxu0 0.0
    %775 = vmatpush1.msra.mxu0 0.0
    %776 = vmatprep.subr.mxu0 0.0
    %777 = vmatpush1.msra.mxu0 0.0
    %778 = vmatprep.subr.mxu0 0.0
    %779 = vmatpush1.msra.mxu0 0.0
    %780 = vmatprep.subr.mxu0 0.0
    %781 = vmatpush1.msra.mxu0 0.0
    %782 = vmatprep.subr.mxu0 0.0
    %783 = vmatpush1.msra.mxu0 0.0
    %784 = vmatprep.subr.mxu0 0.0
    %785 = vmatpush1.msra.mxu0 0.0
    %786 = vmatprep.subr.mxu0 0.0
    %787 = vmatpush1.msra.mxu0 %v751
    %788 = vmatprep.subr.mxu0 0.0
    %789 = vmatpush2.msra.mxu0 0.0
    %790 = vmatprep.subr.mxu0 0.0
    %791 = vmatpush2.msra.mxu0 0.0
    %792 = vmatprep.subr.mxu0 0.0
    %793 = vmatpush2.msra.mxu0 0.0
    %794 = vmatprep.subr.mxu0 0.0
    %795 = vmatpush2.msra.mxu0 0.0
    %796 = vmatprep.subr.mxu0 0.0
    %797 = vmatpush2.msra.mxu0 0.0
    %798 = vmatprep.subr.mxu0 0.0
    %799 = vmatpush2.msra.mxu0 0.0
    %800 = vmatprep.subr.mxu0 0.0
    %801 = vmatpush2.msra.mxu0 0.0
    %802 = vmatprep.subr.mxu0 0.0
    %803 = vmatpush2.msra.mxu0 0.0
    %804 = vmatprep.subr.mxu0 0.0
    %805 = vmatpush2.msra.mxu0 0.0
    %806 = vmatprep.subr.mxu0 0.0
    %807 = vmatpush2.msra.mxu0 0.0
    %808 = vmatprep.subr.mxu0 0.0
    %809 = vmatpush2.msra.mxu0 0.0
    %810 = vmatprep.subr.mxu0 0.0
    %811 = vmatpush2.msra.mxu0 0.0
    %812 = vmatprep.subr.mxu0 0.0
    %813 = vmatpush2.msra.mxu0 0.0
    %814 = vmatprep.subr.mxu0 0.0
    %815 = vmatpush2.msra.mxu0 0.0
    %816 = vmatprep.subr.mxu0 0.0
    %817 = vmatpush2.msra.mxu0 0.0
    %818 = vmatprep.subr.mxu0 0.0
    %819 = vmatpush2.msra.mxu0 0.0
    %820 = vmatprep.mubr.f32.mxu0 0.0
    %821 = vmatmul.mubr.f32.gmra.mxu0 %v754
    %v822 = vpop.f32.mrf.mxu0
    %v823 = vadd.f32 0.0, %v822
    %v824 = vpop.f32.mrf.mxu0
    %825 = vdwg.mxu0
    %827 = vrot.lane.b32.xlu0 %v823, 8
    %v828 = vpop.permute.xlu0 %827
    %830 = vst.msk [vmem:[#allocation2 + $0x8] sm:$0xff] %vm492, %v828
    %v831 = vld [vmem:[#allocation2] sm:$0xff]
    %v832 = vld [vmem:[#allocation2 + $0x8] sm:$0xff]
    %v833 = vld [vmem:[%s3] sm:$0xff]
    %v834 = vld [vmem:[%s3 + $0x8] sm:$0xff]
    %v835 = vld [vmem:[%s4] sm:$0x1]
    %v837 = vlaneseq
    %v838 = vshrl.u32 %v837, 7
    %v839 = vsub.s32 0, %v838
    %v840 = vrot.slane %v835, %v839
    %v843 = vsel %vm73, %v831, 0
    %v846 = vsel %vm73, %v832, 0
    %848 = vmatprep.subr.mxu0 0.0
    %849 = vmatpush1.msra.mxu0 0.0
    %850 = vmatprep.subr.mxu0 0.0
    %851 = vmatpush1.msra.mxu0 0.0
    %852 = vmatprep.subr.mxu0 0.0
    %853 = vmatpush1.msra.mxu0 0.0
    %854 = vmatprep.subr.mxu0 0.0
    %855 = vmatpush1.msra.mxu0 0.0
    %856 = vmatprep.subr.mxu0 0.0
    %857 = vmatpush1.msra.mxu0 0.0
    %858 = vmatprep.subr.mxu0 0.0
    %859 = vmatpush1.msra.mxu0 0.0
    %860 = vmatprep.subr.mxu0 0.0
    %861 = vmatpush1.msra.mxu0 0.0
    %862 = vmatprep.subr.mxu0 0.0
    %863 = vmatpush1.msra.mxu0 0.0
    %864 = vmatprep.subr.mxu0 0.0
    %865 = vmatpush1.msra.mxu0 0.0
    %866 = vmatprep.subr.mxu0 0.0
    %867 = vmatpush1.msra.mxu0 0.0
    %868 = vmatprep.subr.mxu0 0.0
    %869 = vmatpush1.msra.mxu0 0.0
    %870 = vmatprep.subr.mxu0 0.0
    %871 = vmatpush1.msra.mxu0 0.0
    %872 = vmatprep.subr.mxu0 0.0
    %873 = vmatpush1.msra.mxu0 0.0
    %874 = vmatprep.subr.mxu0 0.0
    %875 = vmatpush1.msra.mxu0 0.0
    %876 = vmatprep.subr.mxu0 0.0
    %877 = vmatpush1.msra.mxu0 %v834
    %878 = vmatprep.subr.mxu0 0.0
    %879 = vmatpush1.msra.mxu0 %v833
    %880 = vmatprep.subr.mxu0 0.0
    %881 = vmatpush2.msra.mxu0 0.0
    %882 = vmatprep.subr.mxu0 0.0
    %883 = vmatpush2.msra.mxu0 0.0
    %884 = vmatprep.subr.mxu0 0.0
    %885 = vmatpush2.msra.mxu0 0.0
    %886 = vmatprep.subr.mxu0 0.0
    %887 = vmatpush2.msra.mxu0 0.0
    %888 = vmatprep.subr.mxu0 0.0
    %889 = vmatpush2.msra.mxu0 0.0
    %890 = vmatprep.subr.mxu0 0.0
    %891 = vmatpush2.msra.mxu0 0.0
    %892 = vmatprep.subr.mxu0 0.0
    %893 = vmatpush2.msra.mxu0 0.0
    %894 = vmatprep.subr.mxu0 0.0
    %895 = vmatpush2.msra.mxu0 0.0
    %896 = vmatprep.subr.mxu0 0.0
    %897 = vmatpush2.msra.mxu0 0.0
    %898 = vmatprep.subr.mxu0 0.0
    %899 = vmatpush2.msra.mxu0 0.0
    %900 = vmatprep.subr.mxu0 0.0
    %901 = vmatpush2.msra.mxu0 0.0
    %902 = vmatprep.subr.mxu0 0.0
    %903 = vmatpush2.msra.mxu0 0.0
    %904 = vmatprep.subr.mxu0 0.0
    %905 = vmatpush2.msra.mxu0 0.0
    %906 = vmatprep.subr.mxu0 0.0
    %907 = vmatpush2.msra.mxu0 0.0
    %908 = vmatprep.subr.mxu0 0.0
    %909 = vmatpush2.msra.mxu0 0.0
    %910 = vmatprep.subr.mxu0 0.0
    %911 = vmatpush2.msra.mxu0 0.0
    %912 = vmatprep.mubr.f32.mxu0 0.0
    %913 = vmatmul.mubr.f32.gmra.mxu0 %v843
    %v914 = vpop.f32.mrf.mxu0
    %v915 = vadd.f32 %v840, %v914
    %v916 = vpop.f32.mrf.mxu0
    %917 = vmatprep.mubr.f32.mxu0 0.0
    %918 = vmatmul.mubr.f32.gmra.mxu0 %v846
    %v919 = vpop.f32.mrf.mxu0
    %v920 = vadd.f32 %v840, %v919
    %v921 = vpop.f32.mrf.mxu0
    %922 = vdwg.mxu0
    %v923 = vadd.f32 %v62, %v915
    %v924 = vadd.f32 %v63, %v920
    %v925 = vld [vmem:[%s5] sm:$0x1]
    %v926 = vld [vmem:[%s6] sm:$0x1]
    %v927 = vsel %vm73, %v923, 0.0
    %928 = vadd.xlane.f32.xlu0 %v927
    %v929 = vpop.xlane.xlu0 %928
    %v930 = vsel %vm73, %v924, 0.0
    %931 = vadd.xlane.f32.xlu0 %v930
    %v932 = vpop.xlane.xlu0 %931
    %v933 = vrcp.pop 16.0
    %v934 = vmul.f32 %v929, %v933
    %v935 = vmul.f32 %v932, %v933
    %v936 = vsub.f32 %v923, %v934
    %v937 = vsub.f32 %v924, %v935
    %v938 = vmul.f32 %v936, %v936
    %v939 = vmul.f32 %v937, %v937
    %v940 = vsel %vm73, %v938, 0.0
    %941 = vadd.xlane.f32.xlu0 %v940
    %v942 = vpop.xlane.xlu0 %941
    %v943 = vsel %vm73, %v939, 0.0
    %944 = vadd.xlane.f32.xlu0 %v943
    %v945 = vpop.xlane.xlu0 %944
    %v946 = vmul.f32 %v942, %v933
    %v947 = vmul.f32 %v945, %v933
    %v948 = vadd.f32 %v946, 1e-05
    %v949 = vadd.f32 %v947, 1e-05
    %v950 = vrsqrt.pop %v948
    %v951 = vrsqrt.pop %v949
    %v952 = vmul.f32 %v936, %v950
    %v953 = vmul.f32 %v937, %v951
    %v955 = vlaneseq
    %v956 = vshrl.u32 %v955, 7
    %v957 = vsub.s32 0, %v956
    %v958 = vrot.slane %v925, %v957
    %v960 = vmul.f32 %v952, %v958
    %v961 = vmul.f32 %v953, %v958
    %v963 = vlaneseq
    %v964 = vshrl.u32 %v963, 7
    %v965 = vsub.s32 0, %v964
    %v966 = vrot.slane %v926, %v965
    %v968 = vadd.f32 %v960, %v966
    %v969 = vadd.f32 %v961, %v966
    %v970 = vld [vmem:[%s7] sm:$0xff]
    %v971 = vld [vmem:[%s7 + $0x8] sm:$0xff]
    %v972 = vld [vmem:[%s8] sm:$0x1]
    %v974 = vlaneseq
    %v975 = vshrl.u32 %v974, 7
    %v976 = vsub.s32 0, %v975
    %v977 = vrot.slane %v972, %v976
    %v980 = vsel %vm73, %v968, 0
    %v983 = vsel %vm73, %v969, 0
    %985 = vmatprep.subr.mxu0 0.0
    %986 = vmatpush1.msra.mxu0 0.0
    %987 = vmatprep.subr.mxu0 0.0
    %988 = vmatpush1.msra.mxu0 0.0
    %989 = vmatprep.subr.mxu0 0.0
    %990 = vmatpush1.msra.mxu0 0.0
    %991 = vmatprep.subr.mxu0 0.0
    %992 = vmatpush1.msra.mxu0 0.0
    %993 = vmatprep.subr.mxu0 0.0
    %994 = vmatpush1.msra.mxu0 0.0
    %995 = vmatprep.subr.mxu0 0.0
    %996 = vmatpush1.msra.mxu0 0.0
    %997 = vmatprep.subr.mxu0 0.0
    %998 = vmatpush1.msra.mxu0 0.0
    %999 = vmatprep.subr.mxu0 0.0
    %1000 = vmatpush1.msra.mxu0 0.0
    %1001 = vmatprep.subr.mxu0 0.0
    %1002 = vmatpush1.msra.mxu0 0.0
    %1003 = vmatprep.subr.mxu0 0.0
    %1004 = vmatpush1.msra.mxu0 0.0
    %1005 = vmatprep.subr.mxu0 0.0
    %1006 = vmatpush1.msra.mxu0 0.0
    %1007 = vmatprep.subr.mxu0 0.0
    %1008 = vmatpush1.msra.mxu0 0.0
    %1009 = vmatprep.subr.mxu0 0.0
    %1010 = vmatpush1.msra.mxu0 0.0
    %1011 = vmatprep.subr.mxu0 0.0
    %1012 = vmatpush1.msra.mxu0 0.0
    %1013 = vmatprep.subr.mxu0 0.0
    %1014 = vmatpush1.msra.mxu0 %v971
    %1015 = vmatprep.subr.mxu0 0.0
    %1016 = vmatpush1.msra.mxu0 %v970
    %1017 = vmatprep.subr.mxu0 0.0
    %1018 = vmatpush2.msra.mxu0 0.0
    %1019 = vmatprep.subr.mxu0 0.0
    %1020 = vmatpush2.msra.mxu0 0.0
    %1021 = vmatprep.subr.mxu0 0.0
    %1022 = vmatpush2.msra.mxu0 0.0
    %1023 = vmatprep.subr.mxu0 0.0
    %1024 = vmatpush2.msra.mxu0 0.0
    %1025 = vmatprep.subr.mxu0 0.0
    %1026 = vmatpush2.msra.mxu0 0.0
    %1027 = vmatprep.subr.mxu0 0.0
    %1028 = vmatpush2.msra.mxu0 0.0
    %1029 = vmatprep.subr.mxu0 0.0
    %1030 = vmatpush2.msra.mxu0 0.0
    %1031 = vmatprep.subr.mxu0 0.0
    %1032 = vmatpush2.msra.mxu0 0.0
    %1033 = vmatprep.subr.mxu0 0.0
    %1034 = vmatpush2.msra.mxu0 0.0
    %1035 = vmatprep.subr.mxu0 0.0
    %1036 = vmatpush2.msra.mxu0 0.0
    %1037 = vmatprep.subr.mxu0 0.0
    %1038 = vmatpush2.msra.mxu0 0.0
    %1039 = vmatprep.subr.mxu0 0.0
    %1040 = vmatpush2.msra.mxu0 0.0
    %1041 = vmatprep.subr.mxu0 0.0
    %1042 = vmatpush2.msra.mxu0 0.0
    %1043 = vmatprep.subr.mxu0 0.0
    %1044 = vmatpush2.msra.mxu0 0.0
    %1045 = vmatprep.subr.mxu0 0.0
    %1046 = vmatpush2.msra.mxu0 0.0
    %1047 = vmatprep.subr.mxu0 0.0
    %1048 = vmatpush2.msra.mxu0 0.0
    %1049 = vmatprep.mubr.f32.mxu0 0.0
    %1050 = vmatmul.mubr.f32.gmra.mxu0 %v980
    %v1051 = vpop.f32.mrf.mxu0
    %v1052 = vadd.f32 %v977, %v1051
    %v1053 = vpop.f32.mrf.mxu0
    %1054 = vmatprep.mubr.f32.mxu0 0.0
    %1055 = vmatmul.mubr.f32.gmra.mxu0 %v983
    %v1056 = vpop.f32.mrf.mxu0
    %v1057 = vadd.f32 %v977, %v1056
    %v1058 = vpop.f32.mrf.mxu0
    %1059 = vdwg.mxu0
    %v1060 = vmax.f32 %v1052, 0.0
    %v1061 = vmax.f32 %v1057, 0.0
    %v1062 = vld [vmem:[%s9] sm:$0xff]
    %v1063 = vld [vmem:[%s9 + $0x8] sm:$0xff]
    %v1064 = vld [vmem:[%s9 + $0x10] sm:$0xff]
    %v1065 = vld [vmem:[%s9 + $0x18] sm:$0xff]
    %v1066 = vld [vmem:[%s10] sm:$0x1]
    %v1068 = vlaneseq
    %v1069 = vshrl.u32 %v1068, 7
    %v1070 = vsub.s32 0, %v1069
    %v1071 = vrot.slane %v1066, %v1070
    %vm1073 = vcmask 261120
    %v1075 = vsel %vm1073, %v1060, 0
    %v1078 = vsel %vm1073, %v1061, 0
    %1080 = vmatprep.subr.mxu0 0.0
    %1081 = vmatpush1.msra.mxu0 0.0
    %1082 = vmatprep.subr.mxu0 0.0
    %1083 = vmatpush1.msra.mxu0 0.0
    %1084 = vmatprep.subr.mxu0 0.0
    %1085 = vmatpush1.msra.mxu0 0.0
    %1086 = vmatprep.subr.mxu0 0.0
    %1087 = vmatpush1.msra.mxu0 0.0
    %1088 = vmatprep.subr.mxu0 0.0
    %1089 = vmatpush1.msra.mxu0 0.0
    %1090 = vmatprep.subr.mxu0 0.0
    %1091 = vmatpush1.msra.mxu0 0.0
    %1092 = vmatprep.subr.mxu0 0.0
    %1093 = vmatpush1.msra.mxu0 0.0
    %1094 = vmatprep.subr.mxu0 0.0
    %1095 = vmatpush1.msra.mxu0 0.0
    %1096 = vmatprep.subr.mxu0 0.0
    %1097 = vmatpush1.msra.mxu0 0.0
    %1098 = vmatprep.subr.mxu0 0.0
    %1099 = vmatpush1.msra.mxu0 0.0
    %1100 = vmatprep.subr.mxu0 0.0
    %1101 = vmatpush1.msra.mxu0 0.0
    %1102 = vmatprep.subr.mxu0 0.0
    %1103 = vmatpush1.msra.mxu0 0.0
    %1104 = vmatprep.subr.mxu0 0.0
    %1105 = vmatpush1.msra.mxu0 %v1065
    %1106 = vmatprep.subr.mxu0 0.0
    %1107 = vmatpush1.msra.mxu0 %v1064
    %1108 = vmatprep.subr.mxu0 0.0
    %1109 = vmatpush1.msra.mxu0 %v1063
    %1110 = vmatprep.subr.mxu0 0.0
    %1111 = vmatpush1.msra.mxu0 %v1062
    %1112 = vmatprep.subr.mxu0 0.0
    %1113 = vmatpush2.msra.mxu0 0.0
    %1114 = vmatprep.subr.mxu0 0.0
    %1115 = vmatpush2.msra.mxu0 0.0
    %1116 = vmatprep.subr.mxu0 0.0
    %1117 = vmatpush2.msra.mxu0 0.0
    %1118 = vmatprep.subr.mxu0 0.0
    %1119 = vmatpush2.msra.mxu0 0.0
    %1120 = vmatprep.subr.mxu0 0.0
    %1121 = vmatpush2.msra.mxu0 0.0
    %1122 = vmatprep.subr.mxu0 0.0
    %1123 = vmatpush2.msra.mxu0 0.0
    %1124 = vmatprep.subr.mxu0 0.0
    %1125 = vmatpush2.msra.mxu0 0.0
    %1126 = vmatprep.subr.mxu0 0.0
    %1127 = vmatpush2.msra.mxu0 0.0
    %1128 = vmatprep.subr.mxu0 0.0
    %1129 = vmatpush2.msra.mxu0 0.0
    %1130 = vmatprep.subr.mxu0 0.0
    %1131 = vmatpush2.msra.mxu0 0.0
    %1132 = vmatprep.subr.mxu0 0.0
    %1133 = vmatpush2.msra.mxu0 0.0
    %1134 = vmatprep.subr.mxu0 0.0
    %1135 = vmatpush2.msra.mxu0 0.0
    %1136 = vmatprep.subr.mxu0 0.0
    %1137 = vmatpush2.msra.mxu0 0.0
    %1138 = vmatprep.subr.mxu0 0.0
    %1139 = vmatpush2.msra.mxu0 0.0
    %1140 = vmatprep.subr.mxu0 0.0
    %1141 = vmatpush2.msra.mxu0 0.0
    %1142 = vmatprep.subr.mxu0 0.0
    %1143 = vmatpush2.msra.mxu0 0.0
    %1144 = vmatprep.mubr.f32.mxu0 0.0
    %1145 = vmatmul.mubr.f32.gmra.mxu0 %v1075
    %v1146 = vpop.f32.mrf.mxu0
    %v1147 = vadd.f32 %v1071, %v1146
    %v1148 = vpop.f32.mrf.mxu0
    %1149 = vmatprep.mubr.f32.mxu0 0.0
    %1150 = vmatmul.mubr.f32.gmra.mxu0 %v1078
    %v1151 = vpop.f32.mrf.mxu0
    %v1152 = vadd.f32 %v1071, %v1151
    %v1153 = vpop.f32.mrf.mxu0
    %1154 = vdwg.mxu0
    %v1155 = vadd.f32 %v968, %v1147
    %v1156 = vadd.f32 %v969, %v1152
    %v1157 = vld [vmem:[%s11] sm:$0x1]
    %v1158 = vld [vmem:[%s12] sm:$0x1]
    %v1159 = vsel %vm73, %v1155, 0.0
    %1160 = vadd.xlane.f32.xlu0 %v1159
    %v1161 = vpop.xlane.xlu0 %1160
    %v1162 = vsel %vm73, %v1156, 0.0
    %1163 = vadd.xlane.f32.xlu0 %v1162
    %v1164 = vpop.xlane.xlu0 %1163
    %v1165 = vmul.f32 %v1161, %v933
    %v1166 = vmul.f32 %v1164, %v933
    %v1167 = vsub.f32 %v1155, %v1165
    %v1168 = vsub.f32 %v1156, %v1166
    %v1169 = vmul.f32 %v1167, %v1167
    %v1170 = vmul.f32 %v1168, %v1168
    %v1171 = vsel %vm73, %v1169, 0.0
    %1172 = vadd.xlane.f32.xlu0 %v1171
    %v1173 = vpop.xlane.xlu0 %1172
    %v1174 = vsel %vm73, %v1170, 0.0
    %1175 = vadd.xlane.f32.xlu0 %v1174
    %v1176 = vpop.xlane.xlu0 %1175
    %v1177 = vmul.f32 %v1173, %v933
    %v1178 = vmul.f32 %v1176, %v933
    %v1179 = vadd.f32 %v1177, 1e-05
    %v1180 = vadd.f32 %v1178, 1e-05
    %v1181 = vrsqrt.pop %v1179
    %v1182 = vrsqrt.pop %v1180
    %v1183 = vmul.f32 %v1167, %v1181
    %v1184 = vmul.f32 %v1168, %v1182
    %v1186 = vlaneseq
    %v1187 = vshrl.u32 %v1186, 7
    %v1188 = vsub.s32 0, %v1187
    %v1189 = vrot.slane %v1157, %v1188
    %v1191 = vmul.f32 %v1183, %v1189
    %v1192 = vmul.f32 %v1184, %v1189
    %v1194 = vlaneseq
    %v1195 = vshrl.u32 %v1194, 7
    %v1196 = vsub.s32 0, %v1195
    %v1197 = vrot.slane %v1158, %v1196
    %v1199 = vadd.f32 %v1191, %v1197
    %v1200 = vadd.f32 %v1192, %v1197
    %v1201 = vld [vmem:[%s13] sm:$0x1]
    %v1202 = vld [vmem:[#allocation3] sm:$0x1]
    %v1203 = vsel %vm73, %v1199, 0.0
    %1204 = vadd.xlane.f32.xlu0 %v1203
    %v1205 = vpop.xlane.xlu0 %1204
    %v1206 = vsel %vm73, %v1200, 0.0
    %1207 = vadd.xlane.f32.xlu0 %v1206
    %v1208 = vpop.xlane.xlu0 %1207
    %v1209 = vmul.f32 %v1205, %v933
    %v1210 = vmul.f32 %v1208, %v933
    %v1211 = vsub.f32 %v1199, %v1209
    %v1212 = vsub.f32 %v1200, %v1210
    %v1213 = vmul.f32 %v1211, %v1211
    %v1214 = vmul.f32 %v1212, %v1212
    %v1215 = vsel %vm73, %v1213, 0.0
    %1216 = vadd.xlane.f32.xlu0 %v1215
    %v1217 = vpop.xlane.xlu0 %1216
    %v1218 = vsel %vm73, %v1214, 0.0
    %1219 = vadd.xlane.f32.xlu0 %v1218
    %v1220 = vpop.xlane.xlu0 %1219
    %v1221 = vmul.f32 %v1217, %v933
    %v1222 = vmul.f32 %v1220, %v933
    %v1223 = vadd.f32 %v1221, 1e-05
    %v1224 = vadd.f32 %v1222, 1e-05
    %v1225 = vrsqrt.pop %v1223
    %v1226 = vrsqrt.pop %v1224
    %v1227 = vmul.f32 %v1211, %v1225
    %v1228 = vmul.f32 %v1212, %v1226
    %v1230 = vlaneseq
    %v1231 = vshrl.u32 %v1230, 7
    %v1232 = vsub.s32 0, %v1231
    %v1233 = vrot.slane %v1201, %v1232
    %v1235 = vmul.f32 %v1227, %v1233
    %v1236 = vmul.f32 %v1228, %v1233
    %v1238 = vlaneseq
    %v1239 = vshrl.u32 %v1238, 7
    %v1240 = vsub.s32 0, %v1239
    %v1241 = vrot.slane %v1202, %v1240
    %v1243 = vadd.f32 %v1235, %v1241
    %v1244 = vadd.f32 %v1236, %v1241
    %1245 = vst.msk [vmem:[%s15] sm:$0xff] %vm73, %v1243
    %1246 = vst.msk [vmem:[%s15 + $0x8] sm:$0xff] %vm73, %v1244
    // Predicated region
    $region66: #{audio_transformer_forward.8} parent=1 // pred_check
      _
    $region67: #{audio_transformer_forward.8} parent=1 // pred_check_branch
      %1248 = sbr.rel (0) target = $region69
    $region68: #{audio_transformer_forward.8} parent=1 // pred_region
      _
    $region69: #{audio_transformer_forward.8} parent=1 // pred_fallthru
      _
    // Predicated region
    $region70: #{audio_transformer_forward.8} parent=1 // pred_check
      _
    $region71: #{audio_transformer_forward.8} parent=1 // pred_check_branch
      %1250 = sbr.rel (0) target = $region73
    $region72: #{audio_transformer_forward.8} parent=1 // pred_region
      _
    $region73: #{audio_transformer_forward.8} parent=1 // pred_fallthru
      _
    %1251 = vsyncpa [#allocation4], 1

// kernel: audio_transformer_forward.9
$region0: #{audio_transformer_forward.9}
  #allocation0 [shape = 'u32[]', space=smem, size = 0x4, offset = 0x4, fixed_abs, tag = 'smem constant byte address 0x4 - core index']
  #allocation1 [shape = 'u32[144,128]{1,0:T(1,128)}', space=vmem, size = 0x12000, scoped, tag = 'internal scratch']
  #allocation2 [shape = 'f32[16,16]{1,0:T(8,128)}', space=vmem, size = 0x2000, scoped, tag = 'scratch operand']
  %s0 = inlined_call_operand.vmem [shape: f32[16,16], index: 0, kind: input, shape index: {}]
  %s1 = inlined_call_operand.vmem [shape: f32[16,16], index: 1, kind: input, shape index: {}]
  %s2 = inlined_call_operand.vmem [shape: f32[16,48], index: 2, kind: input, shape index: {}]
  %s3 = inlined_call_operand.vmem [shape: f32[1,48], index: 3, kind: input, shape index: {}]
  %s4 = inlined_call_operand.vmem [shape: f32[16,16], index: 4, kind: input, shape index: {}]
  %s5 = inlined_call_operand.vmem [shape: f32[1,16], index: 5, kind: input, shape index: {}]
  %s6 = inlined_call_operand.vmem [shape: f32[1,16], index: 6, kind: input, shape index: {}]
  %s7 = inlined_call_operand.vmem [shape: f32[1,16], index: 7, kind: input, shape index: {}]
  %s8 = inlined_call_operand.vmem [shape: f32[16,48], index: 8, kind: input, shape index: {}]
  %s9 = inlined_call_operand.vmem [shape: f32[1,48], index: 9, kind: input, shape index: {}]
  %s10 = inlined_call_operand.vmem [shape: f32[16,16], index: 10, kind: input, shape index: {}]
  %s11 = inlined_call_operand.vmem [shape: f32[1,16], index: 11, kind: input, shape index: {}]
  %s12 = inlined_call_operand.vmem [shape: f32[1,16], index: 12, kind: input, shape index: {}]
  %s13 = inlined_call_operand.vmem [shape: f32[1,16], index: 13, kind: input, shape index: {}]
  %s14 = inlined_call_operand.vmem [shape: f32[16,32], index: 14, kind: input, shape index: {}]
  %s15 = inlined_call_operand.vmem [shape: f32[1,32], index: 15, kind: input, shape index: {}]
  %s16 = inlined_call_operand.vmem [shape: f32[32,16], index: 16, kind: input, shape index: {}]
  %s17 = inlined_call_operand.vmem [shape: f32[1,16], index: 17, kind: input, shape index: {}]
  %s18 = inlined_call_operand.vmem [shape: f32[1,16], index: 18, kind: input, shape index: {}]
  %s19 = inlined_call_operand.vmem [shape: f32[1,16], index: 19, kind: input, shape index: {}]
  %s20 = inlined_call_operand.vmem [shape: f32[16,16], index: 20, kind: output, shape index: {}]
  %s21 = sld [smem:[#allocation0]]
  $region90: #{audio_transformer_forward.9} parent=0
    _
  %s23 = ssub.s32 1, %s21
  %s24 = scalar_select 0, %s23, %s21
  // Predicated region
  $region2: #{audio_transformer_forward.9} parent=0 // pred_check
    _
  $region3: #{audio_transformer_forward.9} parent=0 // pred_check_branch
    %26 = sbr.rel (0) target = $region5
  $region4: #{audio_transformer_forward.9} parent=0 // pred_region
    _
  $region5: #{audio_transformer_forward.9} parent=0 // pred_fallthru
    _
  // Predicated region
  $region6: #{audio_transformer_forward.9} parent=0 // pred_check
    _
  $region7: #{audio_transformer_forward.9} parent=0 // pred_check_branch
    %28 = sbr.rel (0) target = $region9
  $region8: #{audio_transformer_forward.9} parent=0 // pred_region
    _
  $region9: #{audio_transformer_forward.9} parent=0 // pred_fallthru
    _
  // Predicated region
  $region10: #{audio_transformer_forward.9} parent=0 // pred_check
    _
  $region11: #{audio_transformer_forward.9} parent=0 // pred_check_branch
    %30 = sbr.rel (0) target = $region13
  $region12: #{audio_transformer_forward.9} parent=0 // pred_region
    _
  $region13: #{audio_transformer_forward.9} parent=0 // pred_fallthru
    _
  // Predicated region
  $region14: #{audio_transformer_forward.9} parent=0 // pred_check
    _
  $region15: #{audio_transformer_forward.9} parent=0 // pred_check_branch
    %32 = sbr.rel (0) target = $region17
  $region16: #{audio_transformer_forward.9} parent=0 // pred_region
    _
  $region17: #{audio_transformer_forward.9} parent=0 // pred_fallthru
    _
  // Predicated region
  $region18: #{audio_transformer_forward.9} parent=0 // pred_check
    _
  $region19: #{audio_transformer_forward.9} parent=0 // pred_check_branch
    %34 = sbr.rel (0) target = $region21
  $region20: #{audio_transformer_forward.9} parent=0 // pred_region
    _
  $region21: #{audio_transformer_forward.9} parent=0 // pred_fallthru
    _
  // Predicated region
  $region22: #{audio_transformer_forward.9} parent=0 // pred_check
    _
  $region23: #{audio_transformer_forward.9} parent=0 // pred_check_branch
    %36 = sbr.rel (0) target = $region25
  $region24: #{audio_transformer_forward.9} parent=0 // pred_region
    _
  $region25: #{audio_transformer_forward.9} parent=0 // pred_fallthru
    _
  // Predicated region
  $region26: #{audio_transformer_forward.9} parent=0 // pred_check
    _
  $region27: #{audio_transformer_forward.9} parent=0 // pred_check_branch
    %38 = sbr.rel (0) target = $region29
  $region28: #{audio_transformer_forward.9} parent=0 // pred_region
    _
  $region29: #{audio_transformer_forward.9} parent=0 // pred_fallthru
    _
  // Predicated region
  $region30: #{audio_transformer_forward.9} parent=0 // pred_check
    _
  $region31: #{audio_transformer_forward.9} parent=0 // pred_check_branch
    %40 = sbr.rel (0) target = $region33
  $region32: #{audio_transformer_forward.9} parent=0 // pred_region
    _
  $region33: #{audio_transformer_forward.9} parent=0 // pred_fallthru
    _
  // Predicated region
  $region34: #{audio_transformer_forward.9} parent=0 // pred_check
    _
  $region35: #{audio_transformer_forward.9} parent=0 // pred_check_branch
    %42 = sbr.rel (0) target = $region37
  $region36: #{audio_transformer_forward.9} parent=0 // pred_region
    _
  $region37: #{audio_transformer_forward.9} parent=0 // pred_fallthru
    _
  // Predicated region
  $region38: #{audio_transformer_forward.9} parent=0 // pred_check
    _
  $region39: #{audio_transformer_forward.9} parent=0 // pred_check_branch
    %44 = sbr.rel (0) target = $region41
  $region40: #{audio_transformer_forward.9} parent=0 // pred_region
    _
  $region41: #{audio_transformer_forward.9} parent=0 // pred_fallthru
    _
  // Predicated region
  $region42: #{audio_transformer_forward.9} parent=0 // pred_check
    _
  $region43: #{audio_transformer_forward.9} parent=0 // pred_check_branch
    %46 = sbr.rel (0) target = $region45
  $region44: #{audio_transformer_forward.9} parent=0 // pred_region
    _
  $region45: #{audio_transformer_forward.9} parent=0 // pred_fallthru
    _
  // Predicated region
  $region46: #{audio_transformer_forward.9} parent=0 // pred_check
    _
  $region47: #{audio_transformer_forward.9} parent=0 // pred_check_branch
    %48 = sbr.rel (0) target = $region49
  $region48: #{audio_transformer_forward.9} parent=0 // pred_region
    _
  $region49: #{audio_transformer_forward.9} parent=0 // pred_fallthru
    _
  // Predicated region
  $region50: #{audio_transformer_forward.9} parent=0 // pred_check
    _
  $region51: #{audio_transformer_forward.9} parent=0 // pred_check_branch
    %50 = sbr.rel (0) target = $region53
  $region52: #{audio_transformer_forward.9} parent=0 // pred_region
    _
  $region53: #{audio_transformer_forward.9} parent=0 // pred_fallthru
    _
  // Predicated region
  $region54: #{audio_transformer_forward.9} parent=0 // pred_check
    _
  $region55: #{audio_transformer_forward.9} parent=0 // pred_check_branch
    %52 = sbr.rel (0) target = $region57
  $region56: #{audio_transformer_forward.9} parent=0 // pred_region
    _
  $region57: #{audio_transformer_forward.9} parent=0 // pred_fallthru
    _
  // Predicated region
  $region58: #{audio_transformer_forward.9} parent=0 // pred_check
    _
  $region59: #{audio_transformer_forward.9} parent=0 // pred_check_branch
    %54 = sbr.rel (0) target = $region61
  $region60: #{audio_transformer_forward.9} parent=0 // pred_region
    _
  $region61: #{audio_transformer_forward.9} parent=0 // pred_fallthru
    _
  // Predicated region
  $region62: #{audio_transformer_forward.9} parent=0 // pred_check
    _
  $region63: #{audio_transformer_forward.9} parent=0 // pred_check_branch
    %56 = sbr.rel (0) target = $region65
  $region64: #{audio_transformer_forward.9} parent=0 // pred_region
    _
  $region65: #{audio_transformer_forward.9} parent=0 // pred_fallthru
    _
  // Predicated region
  $region66: #{audio_transformer_forward.9} parent=0 // pred_check
    _
  $region67: #{audio_transformer_forward.9} parent=0 // pred_check_branch
    %58 = sbr.rel (0) target = $region69
  $region68: #{audio_transformer_forward.9} parent=0 // pred_region
    _
  $region69: #{audio_transformer_forward.9} parent=0 // pred_fallthru
    _
  // Predicated region
  $region70: #{audio_transformer_forward.9} parent=0 // pred_check
    _
  $region71: #{audio_transformer_forward.9} parent=0 // pred_check_branch
    %60 = sbr.rel (0) target = $region73
  $region72: #{audio_transformer_forward.9} parent=0 // pred_region
    _
  $region73: #{audio_transformer_forward.9} parent=0 // pred_fallthru
    _
  // Predicated region
  $region74: #{audio_transformer_forward.9} parent=0 // pred_check
    _
  $region75: #{audio_transformer_forward.9} parent=0 // pred_check_branch
    %62 = sbr.rel (0) target = $region77
  $region76: #{audio_transformer_forward.9} parent=0 // pred_region
    _
  $region77: #{audio_transformer_forward.9} parent=0 // pred_fallthru
    _
  // Predicated region
  $region78: #{audio_transformer_forward.9} parent=0 // pred_check
    _
  $region79: #{audio_transformer_forward.9} parent=0 // pred_check_branch
    %64 = sbr.rel (0) target = $region81
  $region80: #{audio_transformer_forward.9} parent=0 // pred_region
    _
  $region81: #{audio_transformer_forward.9} parent=0 // pred_fallthru
    _
  %v65 = vld [vmem:[%s0] sm:$0xff]
  %v66 = vld [vmem:[%s0 + $0x8] sm:$0xff]
  %v67 = vld [vmem:[%s1] sm:$0xff]
  %v68 = vld [vmem:[%s1 + $0x8] sm:$0xff]
  %v69 = vld [vmem:[%s2] sm:$0xff]
  %v70 = vld [vmem:[%s2 + $0x8] sm:$0xff]
  %v71 = vld [vmem:[%s3] sm:$0x1]
  %v73 = vlaneseq
  %v74 = vshrl.u32 %v73, 7
  %v75 = vsub.s32 0, %v74
  %v76 = vrot.slane %v71, %v75
  %vm78 = vcmask 130048
  %v80 = vsel %vm78, %v65, 0
  %v83 = vsel %vm78, %v66, 0
  %85 = vmatprep.subr.mxu0 0.0
  %86 = vmatpush1.msra.mxu0 0.0
  %87 = vmatprep.subr.mxu0 0.0
  %88 = vmatpush1.msra.mxu0 0.0
  %89 = vmatprep.subr.mxu0 0.0
  %90 = vmatpush1.msra.mxu0 0.0
  %91 = vmatprep.subr.mxu0 0.0
  %92 = vmatpush1.msra.mxu0 0.0
  %93 = vmatprep.subr.mxu0 0.0
  %94 = vmatpush1.msra.mxu0 0.0
  %95 = vmatprep.subr.mxu0 0.0
  %96 = vmatpush1.msra.mxu0 0.0
  %97 = vmatprep.subr.mxu0 0.0
  %98 = vmatpush1.msra.mxu0 0.0
  %99 = vmatprep.subr.mxu0 0.0
  %100 = vmatpush1.msra.mxu0 0.0
  %101 = vmatprep.subr.mxu0 0.0
  %102 = vmatpush1.msra.mxu0 0.0
  %103 = vmatprep.subr.mxu0 0.0
  %104 = vmatpush1.msra.mxu0 0.0
  %105 = vmatprep.subr.mxu0 0.0
  %106 = vmatpush1.msra.mxu0 0.0
  %107 = vmatprep.subr.mxu0 0.0
  %108 = vmatpush1.msra.mxu0 0.0
  %109 = vmatprep.subr.mxu0 0.0
  %110 = vmatpush1.msra.mxu0 0.0
  %111 = vmatprep.subr.mxu0 0.0
  %112 = vmatpush1.msra.mxu0 0.0
  %113 = vmatprep.subr.mxu0 0.0
  %114 = vmatpush1.msra.mxu0 %v70
  %115 = vmatprep.subr.mxu0 0.0
  %116 = vmatpush1.msra.mxu0 %v69
  %117 = vmatprep.subr.mxu0 0.0
  %118 = vmatpush2.msra.mxu0 0.0
  %119 = vmatprep.subr.mxu0 0.0
  %120 = vmatpush2.msra.mxu0 0.0
  %121 = vmatprep.subr.mxu0 0.0
  %122 = vmatpush2.msra.mxu0 0.0
  %123 = vmatprep.subr.mxu0 0.0
  %124 = vmatpush2.msra.mxu0 0.0
  %125 = vmatprep.subr.mxu0 0.0
  %126 = vmatpush2.msra.mxu0 0.0
  %127 = vmatprep.subr.mxu0 0.0
  %128 = vmatpush2.msra.mxu0 0.0
  %129 = vmatprep.subr.mxu0 0.0
  %130 = vmatpush2.msra.mxu0 0.0
  %131 = vmatprep.subr.mxu0 0.0
  %132 = vmatpush2.msra.mxu0 0.0
  %133 = vmatprep.subr.mxu0 0.0
  %134 = vmatpush2.msra.mxu0 0.0
  %135 = vmatprep.subr.mxu0 0.0
  %136 = vmatpush2.msra.mxu0 0.0
  %137 = vmatprep.subr.mxu0 0.0
  %138 = vmatpush2.msra.mxu0 0.0
  %139 = vmatprep.subr.mxu0 0.0
  %140 = vmatpush2.msra.mxu0 0.0
  %141 = vmatprep.subr.mxu0 0.0
  %142 = vmatpush2.msra.mxu0 0.0
  %143 = vmatprep.subr.mxu0 0.0
  %144 = vmatpush2.msra.mxu0 0.0
  %145 = vmatprep.subr.mxu0 0.0
  %146 = vmatpush2.msra.mxu0 0.0
  %147 = vmatprep.subr.mxu0 0.0
  %148 = vmatpush2.msra.mxu0 0.0
  %149 = vmatprep.mubr.f32.mxu0 0.0
  %150 = vmatmul.mubr.f32.gmra.mxu0 %v80
  %v151 = vpop.f32.mrf.mxu0
  %v152 = vadd.f32 %v76, %v151
  %v153 = vpop.f32.mrf.mxu0
  %154 = vmatprep.mubr.f32.mxu0 0.0
  %155 = vmatmul.mubr.f32.gmra.mxu0 %v83
  %v156 = vpop.f32.mrf.mxu0
  %v157 = vadd.f32 %v76, %v156
  %v158 = vpop.f32.mrf.mxu0
  %159 = vdwg.mxu0
  %v160 = vlaneseq
  %v161 = vshrl.u32 %v160, 7
  %v162 = vlaneseq
  %v163 = vand.u32 %v162, 127
  %vm164 = vcmp.gt.s32.totalorder %v163, %v161
  %v165 = vsel %vm164, -1e+30, 0.0
  %167 = vrot.lane.b32.xlu0 %v152, 112
  %v168 = vpop.permute.xlu0 %167
  %vm169 = vcmask 64512
  %v170 = vsel %vm169, %v152, 0
  %v172 = vsel %vm169, %v168, 0
  %174 = vmatprep.subr.mxu0 0.0
  %175 = vmatpush1.xpose.msra.mxu0 0.0
  %176 = vmatprep.subr.mxu0 0.0
  %177 = vmatpush1.xpose.msra.mxu0 0.0
  %178 = vmatprep.subr.mxu0 0.0
  %179 = vmatpush1.xpose.msra.mxu0 0.0
  %180 = vmatprep.subr.mxu0 0.0
  %181 = vmatpush1.xpose.msra.mxu0 0.0
  %182 = vmatprep.subr.mxu0 0.0
  %183 = vmatpush1.xpose.msra.mxu0 0.0
  %184 = vmatprep.subr.mxu0 0.0
  %185 = vmatpush1.xpose.msra.mxu0 0.0
  %186 = vmatprep.subr.mxu0 0.0
  %187 = vmatpush1.xpose.msra.mxu0 0.0
  %188 = vmatprep.subr.mxu0 0.0
  %189 = vmatpush1.xpose.msra.mxu0 0.0
  %190 = vmatprep.subr.mxu0 0.0
  %191 = vmatpush1.xpose.msra.mxu0 0.0
  %192 = vmatprep.subr.mxu0 0.0
  %193 = vmatpush1.xpose.msra.mxu0 0.0
  %194 = vmatprep.subr.mxu0 0.0
  %195 = vmatpush1.xpose.msra.mxu0 0.0
  %196 = vmatprep.subr.mxu0 0.0
  %197 = vmatpush1.xpose.msra.mxu0 0.0
  %198 = vmatprep.subr.mxu0 0.0
  %199 = vmatpush1.xpose.msra.mxu0 0.0
  %200 = vmatprep.subr.mxu0 0.0
  %201 = vmatpush1.xpose.msra.mxu0 0.0
  %202 = vmatprep.subr.mxu0 0.0
  %203 = vmatpush1.xpose.msra.mxu0 0.0
  %204 = vmatprep.subr.mxu0 0.0
  %205 = vmatpush1.xpose.msra.mxu0 %v172
  %206 = vmatprep.subr.mxu0 0.0
  %207 = vmatpush2.xpose.msra.mxu0 0.0
  %208 = vmatprep.subr.mxu0 0.0
  %209 = vmatpush2.xpose.msra.mxu0 0.0
  %210 = vmatprep.subr.mxu0 0.0
  %211 = vmatpush2.xpose.msra.mxu0 0.0
  %212 = vmatprep.subr.mxu0 0.0
  %213 = vmatpush2.xpose.msra.mxu0 0.0
  %214 = vmatprep.subr.mxu0 0.0
  %215 = vmatpush2.xpose.msra.mxu0 0.0
  %216 = vmatprep.subr.mxu0 0.0
  %217 = vmatpush2.xpose.msra.mxu0 0.0
  %218 = vmatprep.subr.mxu0 0.0
  %219 = vmatpush2.xpose.msra.mxu0 0.0
  %220 = vmatprep.subr.mxu0 0.0
  %221 = vmatpush2.xpose.msra.mxu0 0.0
  %222 = vmatprep.subr.mxu0 0.0
  %223 = vmatpush2.xpose.msra.mxu0 0.0
  %224 = vmatprep.subr.mxu0 0.0
  %225 = vmatpush2.xpose.msra.mxu0 0.0
  %226 = vmatprep.subr.mxu0 0.0
  %227 = vmatpush2.xpose.msra.mxu0 0.0
  %228 = vmatprep.subr.mxu0 0.0
  %229 = vmatpush2.xpose.msra.mxu0 0.0
  %230 = vmatprep.subr.mxu0 0.0
  %231 = vmatpush2.xpose.msra.mxu0 0.0
  %232 = vmatprep.subr.mxu0 0.0
  %233 = vmatpush2.xpose.msra.mxu0 0.0
  %234 = vmatprep.subr.mxu0 0.0
  %235 = vmatpush2.xpose.msra.mxu0 0.0
  %236 = vmatprep.subr.mxu0 0.0
  %237 = vmatpush2.xpose.msra.mxu0 0.0
  %238 = vmatprep.mubr.f32.mxu0 0.0
  %239 = vmatmul.mubr.f32.gmra.mxu0 %v170
  %v240 = vpop.f32.mrf.mxu0
  %v241 = vadd.f32 0.0, %v240
  %v242 = vpop.f32.mrf.mxu0
  %243 = vdwg.mxu0
  %v244 = vmul.f32 %v241, 0.35355338
  %v245 = vadd.f32 %v244, %v165
  %v246 = vsel %vm169, %v245, -inf
  %247 = vmax.xlane.f32.xlu0 %v246
  %v248 = vpop.xlane.xlu0 %247
  %v249 = vsub.f32 %v245, %v248
  %v250 = vmul.f32 %v249, 1.442695
  %v251 = vpow.pop %v250
  %v252 = vsel %vm169, %v251, 0.0
  %253 = vadd.xlane.f32.xlu0 %v252
  %v254 = vpop.xlane.xlu0 %253
  %v255 = vrcp.pop %v254
  %v256 = vmul.f32 %v251, %v255
  %257 = vrot.lane.b32.xlu0 %v152, 96
  %v258 = vpop.permute.xlu0 %257
  %v261 = vsel %vm169, %v256, 0
  %263 = vmatprep.subr.mxu0 0.0
  %264 = vmatpush1.msra.mxu0 0.0
  %265 = vmatprep.subr.mxu0 0.0
  %266 = vmatpush1.msra.mxu0 0.0
  %267 = vmatprep.subr.mxu0 0.0
  %268 = vmatpush1.msra.mxu0 0.0
  %269 = vmatprep.subr.mxu0 0.0
  %270 = vmatpush1.msra.mxu0 0.0
  %271 = vmatprep.subr.mxu0 0.0
  %272 = vmatpush1.msra.mxu0 0.0
  %273 = vmatprep.subr.mxu0 0.0
  %274 = vmatpush1.msra.mxu0 0.0
  %275 = vmatprep.subr.mxu0 0.0
  %276 = vmatpush1.msra.mxu0 0.0
  %277 = vmatprep.subr.mxu0 0.0
  %278 = vmatpush1.msra.mxu0 0.0
  %279 = vmatprep.subr.mxu0 0.0
  %280 = vmatpush1.msra.mxu0 0.0
  %281 = vmatprep.subr.mxu0 0.0
  %282 = vmatpush1.msra.mxu0 0.0
  %283 = vmatprep.subr.mxu0 0.0
  %284 = vmatpush1.msra.mxu0 0.0
  %285 = vmatprep.subr.mxu0 0.0
  %286 = vmatpush1.msra.mxu0 0.0
  %287 = vmatprep.subr.mxu0 0.0
  %288 = vmatpush1.msra.mxu0 0.0
  %289 = vmatprep.subr.mxu0 0.0
  %290 = vmatpush1.msra.mxu0 0.0
  %291 = vmatprep.subr.mxu0 0.0
  %292 = vmatpush1.msra.mxu0 0.0
  %293 = vmatprep.subr.mxu0 0.0
  %294 = vmatpush1.msra.mxu0 %v258
  %295 = vmatprep.subr.mxu0 0.0
  %296 = vmatpush2.msra.mxu0 0.0
  %297 = vmatprep.subr.mxu0 0.0
  %298 = vmatpush2.msra.mxu0 0.0
  %299 = vmatprep.subr.mxu0 0.0
  %300 = vmatpush2.msra.mxu0 0.0
  %301 = vmatprep.subr.mxu0 0.0
  %302 = vmatpush2.msra.mxu0 0.0
  %303 = vmatprep.subr.mxu0 0.0
  %304 = vmatpush2.msra.mxu0 0.0
  %305 = vmatprep.subr.mxu0 0.0
  %306 = vmatpush2.msra.mxu0 0.0
  %307 = vmatprep.subr.mxu0 0.0
  %308 = vmatpush2.msra.mxu0 0.0
  %309 = vmatprep.subr.mxu0 0.0
  %310 = vmatpush2.msra.mxu0 0.0
  %311 = vmatprep.subr.mxu0 0.0
  %312 = vmatpush2.msra.mxu0 0.0
  %313 = vmatprep.subr.mxu0 0.0
  %314 = vmatpush2.msra.mxu0 0.0
  %315 = vmatprep.subr.mxu0 0.0
  %316 = vmatpush2.msra.mxu0 0.0
  %317 = vmatprep.subr.mxu0 0.0
  %318 = vmatpush2.msra.mxu0 0.0
  %319 = vmatprep.subr.mxu0 0.0
  %320 = vmatpush2.msra.mxu0 0.0
  %321 = vmatprep.subr.mxu0 0.0
  %322 = vmatpush2.msra.mxu0 0.0
  %323 = vmatprep.subr.mxu0 0.0
  %324 = vmatpush2.msra.mxu0 0.0
  %325 = vmatprep.subr.mxu0 0.0
  %326 = vmatpush2.msra.mxu0 0.0
  %327 = vmatprep.mubr.f32.mxu0 0.0
  %328 = vmatmul.mubr.f32.gmra.mxu0 %v261
  %v329 = vpop.f32.mrf.mxu0
  %v330 = vadd.f32 0.0, %v329
  %v331 = vpop.f32.mrf.mxu0
  %332 = vdwg.mxu0
  %333 = vst.msk [vmem:[#allocation2] sm:$0xff] %vm169, %v330
  %334 = vrot.lane.b32.xlu0 %v152, 120
  %v335 = vpop.permute.xlu0 %334
  %336 = vrot.lane.b32.xlu0 %v152, 104
  %v337 = vpop.permute.xlu0 %336
  %v338 = vsel %vm169, %v335, 0
  %v340 = vsel %vm169, %v337, 0
  %342 = vmatprep.subr.mxu0 0.0
  %343 = vmatpush1.xpose.msra.mxu0 0.0
  %344 = vmatprep.subr.mxu0 0.0
  %345 = vmatpush1.xpose.msra.mxu0 0.0
  %346 = vmatprep.subr.mxu0 0.0
  %347 = vmatpush1.xpose.msra.mxu0 0.0
  %348 = vmatprep.subr.mxu0 0.0
  %349 = vmatpush1.xpose.msra.mxu0 0.0
  %350 = vmatprep.subr.mxu0 0.0
  %351 = vmatpush1.xpose.msra.mxu0 0.0
  %352 = vmatprep.subr.mxu0 0.0
  %353 = vmatpush1.xpose.msra.mxu0 0.0
  %354 = vmatprep.subr.mxu0 0.0
  %355 = vmatpush1.xpose.msra.mxu0 0.0
  %356 = vmatprep.subr.mxu0 0.0
  %357 = vmatpush1.xpose.msra.mxu0 0.0
  %358 = vmatprep.subr.mxu0 0.0
  %359 = vmatpush1.xpose.msra.mxu0 0.0
  %360 = vmatprep.subr.mxu0 0.0
  %361 = vmatpush1.xpose.msra.mxu0 0.0
  %362 = vmatprep.subr.mxu0 0.0
  %363 = vmatpush1.xpose.msra.mxu0 0.0
  %364 = vmatprep.subr.mxu0 0.0
  %365 = vmatpush1.xpose.msra.mxu0 0.0
  %366 = vmatprep.subr.mxu0 0.0
  %367 = vmatpush1.xpose.msra.mxu0 0.0
  %368 = vmatprep.subr.mxu0 0.0
  %369 = vmatpush1.xpose.msra.mxu0 0.0
  %370 = vmatprep.subr.mxu0 0.0
  %371 = vmatpush1.xpose.msra.mxu0 0.0
  %372 = vmatprep.subr.mxu0 0.0
  %373 = vmatpush1.xpose.msra.mxu0 %v340
  %374 = vmatprep.subr.mxu0 0.0
  %375 = vmatpush2.xpose.msra.mxu0 0.0
  %376 = vmatprep.subr.mxu0 0.0
  %377 = vmatpush2.xpose.msra.mxu0 0.0
  %378 = vmatprep.subr.mxu0 0.0
  %379 = vmatpush2.xpose.msra.mxu0 0.0
  %380 = vmatprep.subr.mxu0 0.0
  %381 = vmatpush2.xpose.msra.mxu0 0.0
  %382 = vmatprep.subr.mxu0 0.0
  %383 = vmatpush2.xpose.msra.mxu0 0.0
  %384 = vmatprep.subr.mxu0 0.0
  %385 = vmatpush2.xpose.msra.mxu0 0.0
  %386 = vmatprep.subr.mxu0 0.0
  %387 = vmatpush2.xpose.msra.mxu0 0.0
  %388 = vmatprep.subr.mxu0 0.0
  %389 = vmatpush2.xpose.msra.mxu0 0.0
  %390 = vmatprep.subr.mxu0 0.0
  %391 = vmatpush2.xpose.msra.mxu0 0.0
  %392 = vmatprep.subr.mxu0 0.0
  %393 = vmatpush2.xpose.msra.mxu0 0.0
  %394 = vmatprep.subr.mxu0 0.0
  %395 = vmatpush2.xpose.msra.mxu0 0.0
  %396 = vmatprep.subr.mxu0 0.0
  %397 = vmatpush2.xpose.msra.mxu0 0.0
  %398 = vmatprep.subr.mxu0 0.0
  %399 = vmatpush2.xpose.msra.mxu0 0.0
  %400 = vmatprep.subr.mxu0 0.0
  %401 = vmatpush2.xpose.msra.mxu0 0.0
  %402 = vmatprep.subr.mxu0 0.0
  %403 = vmatpush2.xpose.msra.mxu0 0.0
  %404 = vmatprep.subr.mxu0 0.0
  %405 = vmatpush2.xpose.msra.mxu0 0.0
  %406 = vmatprep.mubr.f32.mxu0 0.0
  %407 = vmatmul.mubr.f32.gmra.mxu0 %v338
  %v408 = vpop.f32.mrf.mxu0
  %v409 = vadd.f32 0.0, %v408
  %v410 = vpop.f32.mrf.mxu0
  %411 = vdwg.mxu0
  %v412 = vmul.f32 %v409, 0.35355338
  %v413 = vadd.f32 %v412, %v165
  %v414 = vsel %vm169, %v413, -inf
  %415 = vmax.xlane.f32.xlu0 %v414
  %v416 = vpop.xlane.xlu0 %415
  %v417 = vsub.f32 %v413, %v416
  %v418 = vmul.f32 %v417, 1.442695
  %v419 = vpow.pop %v418
  %v420 = vsel %vm169, %v419, 0.0
  %421 = vadd.xlane.f32.xlu0 %v420
  %v422 = vpop.xlane.xlu0 %421
  %v423 = vrcp.pop %v422
  %v424 = vmul.f32 %v419, %v423
  %425 = vrot.lane.b32.xlu0 %v152, 88
  %v426 = vpop.permute.xlu0 %425
  %v429 = vsel %vm169, %v424, 0
  %431 = vmatprep.subr.mxu0 0.0
  %432 = vmatpush1.msra.mxu0 0.0
  %433 = vmatprep.subr.mxu0 0.0
  %434 = vmatpush1.msra.mxu0 0.0
  %435 = vmatprep.subr.mxu0 0.0
  %436 = vmatpush1.msra.mxu0 0.0
  %437 = vmatprep.subr.mxu0 0.0
  %438 = vmatpush1.msra.mxu0 0.0
  %439 = vmatprep.subr.mxu0 0.0
  %440 = vmatpush1.msra.mxu0 0.0
  %441 = vmatprep.subr.mxu0 0.0
  %442 = vmatpush1.msra.mxu0 0.0
  %443 = vmatprep.subr.mxu0 0.0
  %444 = vmatpush1.msra.mxu0 0.0
  %445 = vmatprep.subr.mxu0 0.0
  %446 = vmatpush1.msra.mxu0 0.0
  %447 = vmatprep.subr.mxu0 0.0
  %448 = vmatpush1.msra.mxu0 0.0
  %449 = vmatprep.subr.mxu0 0.0
  %450 = vmatpush1.msra.mxu0 0.0
  %451 = vmatprep.subr.mxu0 0.0
  %452 = vmatpush1.msra.mxu0 0.0
  %453 = vmatprep.subr.mxu0 0.0
  %454 = vmatpush1.msra.mxu0 0.0
  %455 = vmatprep.subr.mxu0 0.0
  %456 = vmatpush1.msra.mxu0 0.0
  %457 = vmatprep.subr.mxu0 0.0
  %458 = vmatpush1.msra.mxu0 0.0
  %459 = vmatprep.subr.mxu0 0.0
  %460 = vmatpush1.msra.mxu0 0.0
  %461 = vmatprep.subr.mxu0 0.0
  %462 = vmatpush1.msra.mxu0 %v426
  %463 = vmatprep.subr.mxu0 0.0
  %464 = vmatpush2.msra.mxu0 0.0
  %465 = vmatprep.subr.mxu0 0.0
  %466 = vmatpush2.msra.mxu0 0.0
  %467 = vmatprep.subr.mxu0 0.0
  %468 = vmatpush2.msra.mxu0 0.0
  %469 = vmatprep.subr.mxu0 0.0
  %470 = vmatpush2.msra.mxu0 0.0
  %471 = vmatprep.subr.mxu0 0.0
  %472 = vmatpush2.msra.mxu0 0.0
  %473 = vmatprep.subr.mxu0 0.0
  %474 = vmatpush2.msra.mxu0 0.0
  %475 = vmatprep.subr.mxu0 0.0
  %476 = vmatpush2.msra.mxu0 0.0
  %477 = vmatprep.subr.mxu0 0.0
  %478 = vmatpush2.msra.mxu0 0.0
  %479 = vmatprep.subr.mxu0 0.0
  %480 = vmatpush2.msra.mxu0 0.0
  %481 = vmatprep.subr.mxu0 0.0
  %482 = vmatpush2.msra.mxu0 0.0
  %483 = vmatprep.subr.mxu0 0.0
  %484 = vmatpush2.msra.mxu0 0.0
  %485 = vmatprep.subr.mxu0 0.0
  %486 = vmatpush2.msra.mxu0 0.0
  %487 = vmatprep.subr.mxu0 0.0
  %488 = vmatpush2.msra.mxu0 0.0
  %489 = vmatprep.subr.mxu0 0.0
  %490 = vmatpush2.msra.mxu0 0.0
  %491 = vmatprep.subr.mxu0 0.0
  %492 = vmatpush2.msra.mxu0 0.0
  %493 = vmatprep.subr.mxu0 0.0
  %494 = vmatpush2.msra.mxu0 0.0
  %495 = vmatprep.mubr.f32.mxu0 0.0
  %496 = vmatmul.mubr.f32.gmra.mxu0 %v429
  %v497 = vpop.f32.mrf.mxu0
  %v498 = vadd.f32 0.0, %v497
  %v499 = vpop.f32.mrf.mxu0
  %500 = vdwg.mxu0
  %502 = vrot.lane.b32.xlu0 %v498, 8
  %v503 = vpop.permute.xlu0 %502
  %vm505 = vcmask 130112
  %506 = vst.msk [vmem:[#allocation2] sm:$0xff] %vm505, %v503
  %508 = vrot.lane.b32.xlu0 %v157, 112
  %v509 = vpop.permute.xlu0 %508
  %v510 = vsel %vm169, %v157, 0
  %v512 = vsel %vm169, %v509, 0
  %514 = vmatprep.subr.mxu0 0.0
  %515 = vmatpush1.xpose.msra.mxu0 0.0
  %516 = vmatprep.subr.mxu0 0.0
  %517 = vmatpush1.xpose.msra.mxu0 0.0
  %518 = vmatprep.subr.mxu0 0.0
  %519 = vmatpush1.xpose.msra.mxu0 0.0
  %520 = vmatprep.subr.mxu0 0.0
  %521 = vmatpush1.xpose.msra.mxu0 0.0
  %522 = vmatprep.subr.mxu0 0.0
  %523 = vmatpush1.xpose.msra.mxu0 0.0
  %524 = vmatprep.subr.mxu0 0.0
  %525 = vmatpush1.xpose.msra.mxu0 0.0
  %526 = vmatprep.subr.mxu0 0.0
  %527 = vmatpush1.xpose.msra.mxu0 0.0
  %528 = vmatprep.subr.mxu0 0.0
  %529 = vmatpush1.xpose.msra.mxu0 0.0
  %530 = vmatprep.subr.mxu0 0.0
  %531 = vmatpush1.xpose.msra.mxu0 0.0
  %532 = vmatprep.subr.mxu0 0.0
  %533 = vmatpush1.xpose.msra.mxu0 0.0
  %534 = vmatprep.subr.mxu0 0.0
  %535 = vmatpush1.xpose.msra.mxu0 0.0
  %536 = vmatprep.subr.mxu0 0.0
  %537 = vmatpush1.xpose.msra.mxu0 0.0
  %538 = vmatprep.subr.mxu0 0.0
  %539 = vmatpush1.xpose.msra.mxu0 0.0
  %540 = vmatprep.subr.mxu0 0.0
  %541 = vmatpush1.xpose.msra.mxu0 0.0
  %542 = vmatprep.subr.mxu0 0.0
  %543 = vmatpush1.xpose.msra.mxu0 0.0
  %544 = vmatprep.subr.mxu0 0.0
  %545 = vmatpush1.xpose.msra.mxu0 %v512
  %546 = vmatprep.subr.mxu0 0.0
  %547 = vmatpush2.xpose.msra.mxu0 0.0
  %548 = vmatprep.subr.mxu0 0.0
  %549 = vmatpush2.xpose.msra.mxu0 0.0
  %550 = vmatprep.subr.mxu0 0.0
  %551 = vmatpush2.xpose.msra.mxu0 0.0
  %552 = vmatprep.subr.mxu0 0.0
  %553 = vmatpush2.xpose.msra.mxu0 0.0
  %554 = vmatprep.subr.mxu0 0.0
  %555 = vmatpush2.xpose.msra.mxu0 0.0
  %556 = vmatprep.subr.mxu0 0.0
  %557 = vmatpush2.xpose.msra.mxu0 0.0
  %558 = vmatprep.subr.mxu0 0.0
  %559 = vmatpush2.xpose.msra.mxu0 0.0
  %560 = vmatprep.subr.mxu0 0.0
  %561 = vmatpush2.xpose.msra.mxu0 0.0
  %562 = vmatprep.subr.mxu0 0.0
  %563 = vmatpush2.xpose.msra.mxu0 0.0
  %564 = vmatprep.subr.mxu0 0.0
  %565 = vmatpush2.xpose.msra.mxu0 0.0
  %566 = vmatprep.subr.mxu0 0.0
  %567 = vmatpush2.xpose.msra.mxu0 0.0
  %568 = vmatprep.subr.mxu0 0.0
  %569 = vmatpush2.xpose.msra.mxu0 0.0
  %570 = vmatprep.subr.mxu0 0.0
  %571 = vmatpush2.xpose.msra.mxu0 0.0
  %572 = vmatprep.subr.mxu0 0.0
  %573 = vmatpush2.xpose.msra.mxu0 0.0
  %574 = vmatprep.subr.mxu0 0.0
  %575 = vmatpush2.xpose.msra.mxu0 0.0
  %576 = vmatprep.subr.mxu0 0.0
  %577 = vmatpush2.xpose.msra.mxu0 0.0
  %578 = vmatprep.mubr.f32.mxu0 0.0
  %579 = vmatmul.mubr.f32.gmra.mxu0 %v510
  %v580 = vpop.f32.mrf.mxu0
  %v581 = vadd.f32 0.0, %v580
  %v582 = vpop.f32.mrf.mxu0
  %583 = vdwg.mxu0
  %v584 = vmul.f32 %v581, 0.35355338
  %v585 = vadd.f32 %v584, %v165
  %v586 = vsel %vm169, %v585, -inf
  %587 = vmax.xlane.f32.xlu0 %v586
  %v588 = vpop.xlane.xlu0 %587
  %v589 = vsub.f32 %v585, %v588
  %v590 = vmul.f32 %v589, 1.442695
  %v591 = vpow.pop %v590
  %v592 = vsel %vm169, %v591, 0.0
  %593 = vadd.xlane.f32.xlu0 %v592
  %v594 = vpop.xlane.xlu0 %593
  %v595 = vrcp.pop %v594
  %v596 = vmul.f32 %v591, %v595
  %597 = vrot.lane.b32.xlu0 %v157, 96
  %v598 = vpop.permute.xlu0 %597
  %v601 = vsel %vm169, %v596, 0
  %603 = vmatprep.subr.mxu0 0.0
  %604 = vmatpush1.msra.mxu0 0.0
  %605 = vmatprep.subr.mxu0 0.0
  %606 = vmatpush1.msra.mxu0 0.0
  %607 = vmatprep.subr.mxu0 0.0
  %608 = vmatpush1.msra.mxu0 0.0
  %609 = vmatprep.subr.mxu0 0.0
  %610 = vmatpush1.msra.mxu0 0.0
  %611 = vmatprep.subr.mxu0 0.0
  %612 = vmatpush1.msra.mxu0 0.0
  %613 = vmatprep.subr.mxu0 0.0
  %614 = vmatpush1.msra.mxu0 0.0
  %615 = vmatprep.subr.mxu0 0.0
  %616 = vmatpush1.msra.mxu0 0.0
  %617 = vmatprep.subr.mxu0 0.0
  %618 = vmatpush1.msra.mxu0 0.0
  %619 = vmatprep.subr.mxu0 0.0
  %620 = vmatpush1.msra.mxu0 0.0
  %621 = vmatprep.subr.mxu0 0.0
  %622 = vmatpush1.msra.mxu0 0.0
  %623 = vmatprep.subr.mxu0 0.0
  %624 = vmatpush1.msra.mxu0 0.0
  %625 = vmatprep.subr.mxu0 0.0
  %626 = vmatpush1.msra.mxu0 0.0
  %627 = vmatprep.subr.mxu0 0.0
  %628 = vmatpush1.msra.mxu0 0.0
  %629 = vmatprep.subr.mxu0 0.0
  %630 = vmatpush1.msra.mxu0 0.0
  %631 = vmatprep.subr.mxu0 0.0
  %632 = vmatpush1.msra.mxu0 0.0
  %633 = vmatprep.subr.mxu0 0.0
  %634 = vmatpush1.msra.mxu0 %v598
  %635 = vmatprep.subr.mxu0 0.0
  %636 = vmatpush2.msra.mxu0 0.0
  %637 = vmatprep.subr.mxu0 0.0
  %638 = vmatpush2.msra.mxu0 0.0
  %639 = vmatprep.subr.mxu0 0.0
  %640 = vmatpush2.msra.mxu0 0.0
  %641 = vmatprep.subr.mxu0 0.0
  %642 = vmatpush2.msra.mxu0 0.0
  %643 = vmatprep.subr.mxu0 0.0
  %644 = vmatpush2.msra.mxu0 0.0
  %645 = vmatprep.subr.mxu0 0.0
  %646 = vmatpush2.msra.mxu0 0.0
  %647 = vmatprep.subr.mxu0 0.0
  %648 = vmatpush2.msra.mxu0 0.0
  %649 = vmatprep.subr.mxu0 0.0
  %650 = vmatpush2.msra.mxu0 0.0
  %651 = vmatprep.subr.mxu0 0.0
  %652 = vmatpush2.msra.mxu0 0.0
  %653 = vmatprep.subr.mxu0 0.0
  %654 = vmatpush2.msra.mxu0 0.0
  %655 = vmatprep.subr.mxu0 0.0
  %656 = vmatpush2.msra.mxu0 0.0
  %657 = vmatprep.subr.mxu0 0.0
  %658 = vmatpush2.msra.mxu0 0.0
  %659 = vmatprep.subr.mxu0 0.0
  %660 = vmatpush2.msra.mxu0 0.0
  %661 = vmatprep.subr.mxu0 0.0
  %662 = vmatpush2.msra.mxu0 0.0
  %663 = vmatprep.subr.mxu0 0.0
  %664 = vmatpush2.msra.mxu0 0.0
  %665 = vmatprep.subr.mxu0 0.0
  %666 = vmatpush2.msra.mxu0 0.0
  %667 = vmatprep.mubr.f32.mxu0 0.0
  %668 = vmatmul.mubr.f32.gmra.mxu0 %v601
  %v669 = vpop.f32.mrf.mxu0
  %v670 = vadd.f32 0.0, %v669
  %v671 = vpop.f32.mrf.mxu0
  %672 = vdwg.mxu0
  %673 = vst.msk [vmem:[#allocation2 + $0x8] sm:$0xff] %vm169, %v670
  %674 = vrot.lane.b32.xlu0 %v157, 120
  %v675 = vpop.permute.xlu0 %674
  %676 = vrot.lane.b32.xlu0 %v157, 104
  %v677 = vpop.permute.xlu0 %676
  %v678 = vsel %vm169, %v675, 0
  %v680 = vsel %vm169, %v677, 0
  %682 = vmatprep.subr.mxu0 0.0
  %683 = vmatpush1.xpose.msra.mxu0 0.0
  %684 = vmatprep.subr.mxu0 0.0
  %685 = vmatpush1.xpose.msra.mxu0 0.0
  %686 = vmatprep.subr.mxu0 0.0
  %687 = vmatpush1.xpose.msra.mxu0 0.0
  %688 = vmatprep.subr.mxu0 0.0
  %689 = vmatpush1.xpose.msra.mxu0 0.0
  %690 = vmatprep.subr.mxu0 0.0
  %691 = vmatpush1.xpose.msra.mxu0 0.0
  %692 = vmatprep.subr.mxu0 0.0
  %693 = vmatpush1.xpose.msra.mxu0 0.0
  %694 = vmatprep.subr.mxu0 0.0
  %695 = vmatpush1.xpose.msra.mxu0 0.0
  %696 = vmatprep.subr.mxu0 0.0
  %697 = vmatpush1.xpose.msra.mxu0 0.0
  %698 = vmatprep.subr.mxu0 0.0
  %699 = vmatpush1.xpose.msra.mxu0 0.0
  %700 = vmatprep.subr.mxu0 0.0
  %701 = vmatpush1.xpose.msra.mxu0 0.0
  %702 = vmatprep.subr.mxu0 0.0
  %703 = vmatpush1.xpose.msra.mxu0 0.0
  %704 = vmatprep.subr.mxu0 0.0
  %705 = vmatpush1.xpose.msra.mxu0 0.0
  %706 = vmatprep.subr.mxu0 0.0
  %707 = vmatpush1.xpose.msra.mxu0 0.0
  %708 = vmatprep.subr.mxu0 0.0
  %709 = vmatpush1.xpose.msra.mxu0 0.0
  %710 = vmatprep.subr.mxu0 0.0
  %711 = vmatpush1.xpose.msra.mxu0 0.0
  %712 = vmatprep.subr.mxu0 0.0
  %713 = vmatpush1.xpose.msra.mxu0 %v680
  %714 = vmatprep.subr.mxu0 0.0
  %715 = vmatpush2.xpose.msra.mxu0 0.0
  %716 = vmatprep.subr.mxu0 0.0
  %717 = vmatpush2.xpose.msra.mxu0 0.0
  %718 = vmatprep.subr.mxu0 0.0
  %719 = vmatpush2.xpose.msra.mxu0 0.0
  %720 = vmatprep.subr.mxu0 0.0
  %721 = vmatpush2.xpose.msra.mxu0 0.0
  %722 = vmatprep.subr.mxu0 0.0
  %723 = vmatpush2.xpose.msra.mxu0 0.0
  %724 = vmatprep.subr.mxu0 0.0
  %725 = vmatpush2.xpose.msra.mxu0 0.0
  %726 = vmatprep.subr.mxu0 0.0
  %727 = vmatpush2.xpose.msra.mxu0 0.0
  %728 = vmatprep.subr.mxu0 0.0
  %729 = vmatpush2.xpose.msra.mxu0 0.0
  %730 = vmatprep.subr.mxu0 0.0
  %731 = vmatpush2.xpose.msra.mxu0 0.0
  %732 = vmatprep.subr.mxu0 0.0
  %733 = vmatpush2.xpose.msra.mxu0 0.0
  %734 = vmatprep.subr.mxu0 0.0
  %735 = vmatpush2.xpose.msra.mxu0 0.0
  %736 = vmatprep.subr.mxu0 0.0
  %737 = vmatpush2.xpose.msra.mxu0 0.0
  %738 = vmatprep.subr.mxu0 0.0
  %739 = vmatpush2.xpose.msra.mxu0 0.0
  %740 = vmatprep.subr.mxu0 0.0
  %741 = vmatpush2.xpose.msra.mxu0 0.0
  %742 = vmatprep.subr.mxu0 0.0
  %743 = vmatpush2.xpose.msra.mxu0 0.0
  %744 = vmatprep.subr.mxu0 0.0
  %745 = vmatpush2.xpose.msra.mxu0 0.0
  %746 = vmatprep.mubr.f32.mxu0 0.0
  %747 = vmatmul.mubr.f32.gmra.mxu0 %v678
  %v748 = vpop.f32.mrf.mxu0
  %v749 = vadd.f32 0.0, %v748
  %v750 = vpop.f32.mrf.mxu0
  %751 = vdwg.mxu0
  %v752 = vmul.f32 %v749, 0.35355338
  %v753 = vadd.f32 %v752, %v165
  %v754 = vsel %vm169, %v753, -inf
  %755 = vmax.xlane.f32.xlu0 %v754
  %v756 = vpop.xlane.xlu0 %755
  %v757 = vsub.f32 %v753, %v756
  %v758 = vmul.f32 %v757, 1.442695
  %v759 = vpow.pop %v758
  %v760 = vsel %vm169, %v759, 0.0
  %761 = vadd.xlane.f32.xlu0 %v760
  %v762 = vpop.xlane.xlu0 %761
  %v763 = vrcp.pop %v762
  %v764 = vmul.f32 %v759, %v763
  %765 = vrot.lane.b32.xlu0 %v157, 88
  %v766 = vpop.permute.xlu0 %765
  %v769 = vsel %vm169, %v764, 0
  %771 = vmatprep.subr.mxu0 0.0
  %772 = vmatpush1.msra.mxu0 0.0
  %773 = vmatprep.subr.mxu0 0.0
  %774 = vmatpush1.msra.mxu0 0.0
  %775 = vmatprep.subr.mxu0 0.0
  %776 = vmatpush1.msra.mxu0 0.0
  %777 = vmatprep.subr.mxu0 0.0
  %778 = vmatpush1.msra.mxu0 0.0
  %779 = vmatprep.subr.mxu0 0.0
  %780 = vmatpush1.msra.mxu0 0.0
  %781 = vmatprep.subr.mxu0 0.0
  %782 = vmatpush1.msra.mxu0 0.0
  %783 = vmatprep.subr.mxu0 0.0
  %784 = vmatpush1.msra.mxu0 0.0
  %785 = vmatprep.subr.mxu0 0.0
  %786 = vmatpush1.msra.mxu0 0.0
  %787 = vmatprep.subr.mxu0 0.0
  %788 = vmatpush1.msra.mxu0 0.0
  %789 = vmatprep.subr.mxu0 0.0
  %790 = vmatpush1.msra.mxu0 0.0
  %791 = vmatprep.subr.mxu0 0.0
  %792 = vmatpush1.msra.mxu0 0.0
  %793 = vmatprep.subr.mxu0 0.0
  %794 = vmatpush1.msra.mxu0 0.0
  %795 = vmatprep.subr.mxu0 0.0
  %796 = vmatpush1.msra.mxu0 0.0
  %797 = vmatprep.subr.mxu0 0.0
  %798 = vmatpush1.msra.mxu0 0.0
  %799 = vmatprep.subr.mxu0 0.0
  %800 = vmatpush1.msra.mxu0 0.0
  %801 = vmatprep.subr.mxu0 0.0
  %802 = vmatpush1.msra.mxu0 %v766
  %803 = vmatprep.subr.mxu0 0.0
  %804 = vmatpush2.msra.mxu0 0.0
  %805 = vmatprep.subr.mxu0 0.0
  %806 = vmatpush2.msra.mxu0 0.0
  %807 = vmatprep.subr.mxu0 0.0
  %808 = vmatpush2.msra.mxu0 0.0
  %809 = vmatprep.subr.mxu0 0.0
  %810 = vmatpush2.msra.mxu0 0.0
  %811 = vmatprep.subr.mxu0 0.0
  %812 = vmatpush2.msra.mxu0 0.0
  %813 = vmatprep.subr.mxu0 0.0
  %814 = vmatpush2.msra.mxu0 0.0
  %815 = vmatprep.subr.mxu0 0.0
  %816 = vmatpush2.msra.mxu0 0.0
  %817 = vmatprep.subr.mxu0 0.0
  %818 = vmatpush2.msra.mxu0 0.0
  %819 = vmatprep.subr.mxu0 0.0
  %820 = vmatpush2.msra.mxu0 0.0
  %821 = vmatprep.subr.mxu0 0.0
  %822 = vmatpush2.msra.mxu0 0.0
  %823 = vmatprep.subr.mxu0 0.0
  %824 = vmatpush2.msra.mxu0 0.0
  %825 = vmatprep.subr.mxu0 0.0
  %826 = vmatpush2.msra.mxu0 0.0
  %827 = vmatprep.subr.mxu0 0.0
  %828 = vmatpush2.msra.mxu0 0.0
  %829 = vmatprep.subr.mxu0 0.0
  %830 = vmatpush2.msra.mxu0 0.0
  %831 = vmatprep.subr.mxu0 0.0
  %832 = vmatpush2.msra.mxu0 0.0
  %833 = vmatprep.subr.mxu0 0.0
  %834 = vmatpush2.msra.mxu0 0.0
  %835 = vmatprep.mubr.f32.mxu0 0.0
  %836 = vmatmul.mubr.f32.gmra.mxu0 %v769
  %v837 = vpop.f32.mrf.mxu0
  %v838 = vadd.f32 0.0, %v837
  %v839 = vpop.f32.mrf.mxu0
  %840 = vdwg.mxu0
  %842 = vrot.lane.b32.xlu0 %v838, 8
  %v843 = vpop.permute.xlu0 %842
  %845 = vst.msk [vmem:[#allocation2 + $0x8] sm:$0xff] %vm505, %v843
  %v846 = vld [vmem:[#allocation2] sm:$0xff]
  %v847 = vld [vmem:[#allocation2 + $0x8] sm:$0xff]
  %v848 = vld [vmem:[%s4] sm:$0xff]
  %v849 = vld [vmem:[%s4 + $0x8] sm:$0xff]
  %v850 = vld [vmem:[%s5] sm:$0x1]
  %v852 = vlaneseq
  %v853 = vshrl.u32 %v852, 7
  %v854 = vsub.s32 0, %v853
  %v855 = vrot.slane %v850, %v854
  %v858 = vsel %vm78, %v846, 0
  %v861 = vsel %vm78, %v847, 0
  %863 = vmatprep.subr.mxu0 0.0
  %864 = vmatpush1.msra.mxu0 0.0
  %865 = vmatprep.subr.mxu0 0.0
  %866 = vmatpush1.msra.mxu0 0.0
  %867 = vmatprep.subr.mxu0 0.0
  %868 = vmatpush1.msra.mxu0 0.0
  %869 = vmatprep.subr.mxu0 0.0
  %870 = vmatpush1.msra.mxu0 0.0
  %871 = vmatprep.subr.mxu0 0.0
  %872 = vmatpush1.msra.mxu0 0.0
  %873 = vmatprep.subr.mxu0 0.0
  %874 = vmatpush1.msra.mxu0 0.0
  %875 = vmatprep.subr.mxu0 0.0
  %876 = vmatpush1.msra.mxu0 0.0
  %877 = vmatprep.subr.mxu0 0.0
  %878 = vmatpush1.msra.mxu0 0.0
  %879 = vmatprep.subr.mxu0 0.0
  %880 = vmatpush1.msra.mxu0 0.0
  %881 = vmatprep.subr.mxu0 0.0
  %882 = vmatpush1.msra.mxu0 0.0
  %883 = vmatprep.subr.mxu0 0.0
  %884 = vmatpush1.msra.mxu0 0.0
  %885 = vmatprep.subr.mxu0 0.0
  %886 = vmatpush1.msra.mxu0 0.0
  %887 = vmatprep.subr.mxu0 0.0
  %888 = vmatpush1.msra.mxu0 0.0
  %889 = vmatprep.subr.mxu0 0.0
  %890 = vmatpush1.msra.mxu0 0.0
  %891 = vmatprep.subr.mxu0 0.0
  %892 = vmatpush1.msra.mxu0 %v849
  %893 = vmatprep.subr.mxu0 0.0
  %894 = vmatpush1.msra.mxu0 %v848
  %895 = vmatprep.subr.mxu0 0.0
  %896 = vmatpush2.msra.mxu0 0.0
  %897 = vmatprep.subr.mxu0 0.0
  %898 = vmatpush2.msra.mxu0 0.0
  %899 = vmatprep.subr.mxu0 0.0
  %900 = vmatpush2.msra.mxu0 0.0
  %901 = vmatprep.subr.mxu0 0.0
  %902 = vmatpush2.msra.mxu0 0.0
  %903 = vmatprep.subr.mxu0 0.0
  %904 = vmatpush2.msra.mxu0 0.0
  %905 = vmatprep.subr.mxu0 0.0
  %906 = vmatpush2.msra.mxu0 0.0
  %907 = vmatprep.subr.mxu0 0.0
  %908 = vmatpush2.msra.mxu0 0.0
  %909 = vmatprep.subr.mxu0 0.0
  %910 = vmatpush2.msra.mxu0 0.0
  %911 = vmatprep.subr.mxu0 0.0
  %912 = vmatpush2.msra.mxu0 0.0
  %913 = vmatprep.subr.mxu0 0.0
  %914 = vmatpush2.msra.mxu0 0.0
  %915 = vmatprep.subr.mxu0 0.0
  %916 = vmatpush2.msra.mxu0 0.0
  %917 = vmatprep.subr.mxu0 0.0
  %918 = vmatpush2.msra.mxu0 0.0
  %919 = vmatprep.subr.mxu0 0.0
  %920 = vmatpush2.msra.mxu0 0.0
  %921 = vmatprep.subr.mxu0 0.0
  %922 = vmatpush2.msra.mxu0 0.0
  %923 = vmatprep.subr.mxu0 0.0
  %924 = vmatpush2.msra.mxu0 0.0
  %925 = vmatprep.subr.mxu0 0.0
  %926 = vmatpush2.msra.mxu0 0.0
  %927 = vmatprep.mubr.f32.mxu0 0.0
  %928 = vmatmul.mubr.f32.gmra.mxu0 %v858
  %v929 = vpop.f32.mrf.mxu0
  %v930 = vadd.f32 %v855, %v929
  %v931 = vpop.f32.mrf.mxu0
  %932 = vmatprep.mubr.f32.mxu0 0.0
  %933 = vmatmul.mubr.f32.gmra.mxu0 %v861
  %v934 = vpop.f32.mrf.mxu0
  %v935 = vadd.f32 %v855, %v934
  %v936 = vpop.f32.mrf.mxu0
  %937 = vdwg.mxu0
  %v938 = vadd.f32 %v65, %v930
  %v939 = vadd.f32 %v66, %v935
  %v940 = vld [vmem:[%s6] sm:$0x1]
  %v941 = vld [vmem:[%s7] sm:$0x1]
  %v942 = vsel %vm78, %v938, 0.0
  %943 = vadd.xlane.f32.xlu0 %v942
  %v944 = vpop.xlane.xlu0 %943
  %v945 = vsel %vm78, %v939, 0.0
  %946 = vadd.xlane.f32.xlu0 %v945
  %v947 = vpop.xlane.xlu0 %946
  %v948 = vrcp.pop 16.0
  %v949 = vmul.f32 %v944, %v948
  %v950 = vmul.f32 %v947, %v948
  %v951 = vsub.f32 %v938, %v949
  %v952 = vsub.f32 %v939, %v950
  %v953 = vmul.f32 %v951, %v951
  %v954 = vmul.f32 %v952, %v952
  %v955 = vsel %vm78, %v953, 0.0
  %956 = vadd.xlane.f32.xlu0 %v955
  %v957 = vpop.xlane.xlu0 %956
  %v958 = vsel %vm78, %v954, 0.0
  %959 = vadd.xlane.f32.xlu0 %v958
  %v960 = vpop.xlane.xlu0 %959
  %v961 = vmul.f32 %v957, %v948
  %v962 = vmul.f32 %v960, %v948
  %v963 = vadd.f32 %v961, 1e-05
  %v964 = vadd.f32 %v962, 1e-05
  %v965 = vrsqrt.pop %v963
  %v966 = vrsqrt.pop %v964
  %v967 = vmul.f32 %v951, %v965
  %v968 = vmul.f32 %v952, %v966
  %v970 = vlaneseq
  %v971 = vshrl.u32 %v970, 7
  %v972 = vsub.s32 0, %v971
  %v973 = vrot.slane %v940, %v972
  %v975 = vmul.f32 %v967, %v973
  %v976 = vmul.f32 %v968, %v973
  %v978 = vlaneseq
  %v979 = vshrl.u32 %v978, 7
  %v980 = vsub.s32 0, %v979
  %v981 = vrot.slane %v941, %v980
  %v983 = vadd.f32 %v975, %v981
  %v984 = vadd.f32 %v976, %v981
  %v985 = vld [vmem:[%s8] sm:$0xff]
  %v986 = vld [vmem:[%s8 + $0x8] sm:$0xff]
  %v987 = vld [vmem:[%s9] sm:$0x1]
  %v989 = vlaneseq
  %v990 = vshrl.u32 %v989, 7
  %v991 = vsub.s32 0, %v990
  %v992 = vrot.slane %v987, %v991
  %v995 = vsel %vm78, %v983, 0
  %v998 = vsel %vm78, %v984, 0
  %1000 = vmatprep.subr.mxu0 0.0
  %1001 = vmatpush1.msra.mxu0 0.0
  %1002 = vmatprep.subr.mxu0 0.0
  %1003 = vmatpush1.msra.mxu0 0.0
  %1004 = vmatprep.subr.mxu0 0.0
  %1005 = vmatpush1.msra.mxu0 0.0
  %1006 = vmatprep.subr.mxu0 0.0
  %1007 = vmatpush1.msra.mxu0 0.0
  %1008 = vmatprep.subr.mxu0 0.0
  %1009 = vmatpush1.msra.mxu0 0.0
  %1010 = vmatprep.subr.mxu0 0.0
  %1011 = vmatpush1.msra.mxu0 0.0
  %1012 = vmatprep.subr.mxu0 0.0
  %1013 = vmatpush1.msra.mxu0 0.0
  %1014 = vmatprep.subr.mxu0 0.0
  %1015 = vmatpush1.msra.mxu0 0.0
  %1016 = vmatprep.subr.mxu0 0.0
  %1017 = vmatpush1.msra.mxu0 0.0
  %1018 = vmatprep.subr.mxu0 0.0
  %1019 = vmatpush1.msra.mxu0 0.0
  %1020 = vmatprep.subr.mxu0 0.0
  %1021 = vmatpush1.msra.mxu0 0.0
  %1022 = vmatprep.subr.mxu0 0.0
  %1023 = vmatpush1.msra.mxu0 0.0
  %1024 = vmatprep.subr.mxu0 0.0
  %1025 = vmatpush1.msra.mxu0 0.0
  %1026 = vmatprep.subr.mxu0 0.0
  %1027 = vmatpush1.msra.mxu0 0.0
  %1028 = vmatprep.subr.mxu0 0.0
  %1029 = vmatpush1.msra.mxu0 %v986
  %1030 = vmatprep.subr.mxu0 0.0
  %1031 = vmatpush1.msra.mxu0 %v985
  %1032 = vmatprep.subr.mxu0 0.0
  %1033 = vmatpush2.msra.mxu0 0.0
  %1034 = vmatprep.subr.mxu0 0.0
  %1035 = vmatpush2.msra.mxu0 0.0
  %1036 = vmatprep.subr.mxu0 0.0
  %1037 = vmatpush2.msra.mxu0 0.0
  %1038 = vmatprep.subr.mxu0 0.0
  %1039 = vmatpush2.msra.mxu0 0.0
  %1040 = vmatprep.subr.mxu0 0.0
  %1041 = vmatpush2.msra.mxu0 0.0
  %1042 = vmatprep.subr.mxu0 0.0
  %1043 = vmatpush2.msra.mxu0 0.0
  %1044 = vmatprep.subr.mxu0 0.0
  %1045 = vmatpush2.msra.mxu0 0.0
  %1046 = vmatprep.subr.mxu0 0.0
  %1047 = vmatpush2.msra.mxu0 0.0
  %1048 = vmatprep.subr.mxu0 0.0
  %1049 = vmatpush2.msra.mxu0 0.0
  %1050 = vmatprep.subr.mxu0 0.0
  %1051 = vmatpush2.msra.mxu0 0.0
  %1052 = vmatprep.subr.mxu0 0.0
  %1053 = vmatpush2.msra.mxu0 0.0
  %1054 = vmatprep.subr.mxu0 0.0
  %1055 = vmatpush2.msra.mxu0 0.0
  %1056 = vmatprep.subr.mxu0 0.0
  %1057 = vmatpush2.msra.mxu0 0.0
  %1058 = vmatprep.subr.mxu0 0.0
  %1059 = vmatpush2.msra.mxu0 0.0
  %1060 = vmatprep.subr.mxu0 0.0
  %1061 = vmatpush2.msra.mxu0 0.0
  %1062 = vmatprep.subr.mxu0 0.0
  %1063 = vmatpush2.msra.mxu0 0.0
  %1064 = vmatprep.mubr.f32.mxu0 0.0
  %1065 = vmatmul.mubr.f32.gmra.mxu0 %v995
  %v1066 = vpop.f32.mrf.mxu0
  %v1067 = vadd.f32 %v992, %v1066
  %v1068 = vpop.f32.mrf.mxu0
  %1069 = vmatprep.mubr.f32.mxu0 0.0
  %1070 = vmatmul.mubr.f32.gmra.mxu0 %v998
  %v1071 = vpop.f32.mrf.mxu0
  %v1072 = vadd.f32 %v992, %v1071
  %v1073 = vpop.f32.mrf.mxu0
  %1074 = vdwg.mxu0
  %1077 = vrot.lane.b32.xlu0 %v985, 112
  %v1078 = vpop.permute.xlu0 %1077
  %1079 = vrot.lane.b32.xlu0 %v986, 112
  %v1080 = vpop.permute.xlu0 %1079
  %1083 = vrot.lane.b32.xlu0 %v992, 112
  %v1084 = vpop.permute.xlu0 %1083
  %v1087 = vsel %vm78, %v67, 0
  %v1090 = vsel %vm78, %v68, 0
  %1092 = vmatprep.subr.mxu0 0.0
  %1093 = vmatpush1.msra.mxu0 0.0
  %1094 = vmatprep.subr.mxu0 0.0
  %1095 = vmatpush1.msra.mxu0 0.0
  %1096 = vmatprep.subr.mxu0 0.0
  %1097 = vmatpush1.msra.mxu0 0.0
  %1098 = vmatprep.subr.mxu0 0.0
  %1099 = vmatpush1.msra.mxu0 0.0
  %1100 = vmatprep.subr.mxu0 0.0
  %1101 = vmatpush1.msra.mxu0 0.0
  %1102 = vmatprep.subr.mxu0 0.0
  %1103 = vmatpush1.msra.mxu0 0.0
  %1104 = vmatprep.subr.mxu0 0.0
  %1105 = vmatpush1.msra.mxu0 0.0
  %1106 = vmatprep.subr.mxu0 0.0
  %1107 = vmatpush1.msra.mxu0 0.0
  %1108 = vmatprep.subr.mxu0 0.0
  %1109 = vmatpush1.msra.mxu0 0.0
  %1110 = vmatprep.subr.mxu0 0.0
  %1111 = vmatpush1.msra.mxu0 0.0
  %1112 = vmatprep.subr.mxu0 0.0
  %1113 = vmatpush1.msra.mxu0 0.0
  %1114 = vmatprep.subr.mxu0 0.0
  %1115 = vmatpush1.msra.mxu0 0.0
  %1116 = vmatprep.subr.mxu0 0.0
  %1117 = vmatpush1.msra.mxu0 0.0
  %1118 = vmatprep.subr.mxu0 0.0
  %1119 = vmatpush1.msra.mxu0 0.0
  %1120 = vmatprep.subr.mxu0 0.0
  %1121 = vmatpush1.msra.mxu0 %v1080
  %1122 = vmatprep.subr.mxu0 0.0
  %1123 = vmatpush1.msra.mxu0 %v1078
  %1124 = vmatprep.subr.mxu0 0.0
  %1125 = vmatpush2.msra.mxu0 0.0
  %1126 = vmatprep.subr.mxu0 0.0
  %1127 = vmatpush2.msra.mxu0 0.0
  %1128 = vmatprep.subr.mxu0 0.0
  %1129 = vmatpush2.msra.mxu0 0.0
  %1130 = vmatprep.subr.mxu0 0.0
  %1131 = vmatpush2.msra.mxu0 0.0
  %1132 = vmatprep.subr.mxu0 0.0
  %1133 = vmatpush2.msra.mxu0 0.0
  %1134 = vmatprep.subr.mxu0 0.0
  %1135 = vmatpush2.msra.mxu0 0.0
  %1136 = vmatprep.subr.mxu0 0.0
  %1137 = vmatpush2.msra.mxu0 0.0
  %1138 = vmatprep.subr.mxu0 0.0
  %1139 = vmatpush2.msra.mxu0 0.0
  %1140 = vmatprep.subr.mxu0 0.0
  %1141 = vmatpush2.msra.mxu0 0.0
  %1142 = vmatprep.subr.mxu0 0.0
  %1143 = vmatpush2.msra.mxu0 0.0
  %1144 = vmatprep.subr.mxu0 0.0
  %1145 = vmatpush2.msra.mxu0 0.0
  %1146 = vmatprep.subr.mxu0 0.0
  %1147 = vmatpush2.msra.mxu0 0.0
  %1148 = vmatprep.subr.mxu0 0.0
  %1149 = vmatpush2.msra.mxu0 0.0
  %1150 = vmatprep.subr.mxu0 0.0
  %1151 = vmatpush2.msra.mxu0 0.0
  %1152 = vmatprep.subr.mxu0 0.0
  %1153 = vmatpush2.msra.mxu0 0.0
  %1154 = vmatprep.subr.mxu0 0.0
  %1155 = vmatpush2.msra.mxu0 0.0
  %1156 = vmatprep.mubr.f32.mxu0 0.0
  %1157 = vmatmul.mubr.f32.gmra.mxu0 %v1087
  %v1158 = vpop.f32.mrf.mxu0
  %v1159 = vadd.f32 %v1084, %v1158
  %v1160 = vpop.f32.mrf.mxu0
  %1161 = vmatprep.mubr.f32.mxu0 0.0
  %1162 = vmatmul.mubr.f32.gmra.mxu0 %v1090
  %v1163 = vpop.f32.mrf.mxu0
  %v1164 = vadd.f32 %v1084, %v1163
  %v1165 = vpop.f32.mrf.mxu0
  %1166 = vdwg.mxu0
  %v1168 = vsel %vm169, %v1067, 0
  %v1171 = vsel %vm169, %v1159, 0
  %1173 = vmatprep.subr.mxu0 0.0
  %1174 = vmatpush1.xpose.msra.mxu0 0.0
  %1175 = vmatprep.subr.mxu0 0.0
  %1176 = vmatpush1.xpose.msra.mxu0 0.0
  %1177 = vmatprep.subr.mxu0 0.0
  %1178 = vmatpush1.xpose.msra.mxu0 0.0
  %1179 = vmatprep.subr.mxu0 0.0
  %1180 = vmatpush1.xpose.msra.mxu0 0.0
  %1181 = vmatprep.subr.mxu0 0.0
  %1182 = vmatpush1.xpose.msra.mxu0 0.0
  %1183 = vmatprep.subr.mxu0 0.0
  %1184 = vmatpush1.xpose.msra.mxu0 0.0
  %1185 = vmatprep.subr.mxu0 0.0
  %1186 = vmatpush1.xpose.msra.mxu0 0.0
  %1187 = vmatprep.subr.mxu0 0.0
  %1188 = vmatpush1.xpose.msra.mxu0 0.0
  %1189 = vmatprep.subr.mxu0 0.0
  %1190 = vmatpush1.xpose.msra.mxu0 0.0
  %1191 = vmatprep.subr.mxu0 0.0
  %1192 = vmatpush1.xpose.msra.mxu0 0.0
  %1193 = vmatprep.subr.mxu0 0.0
  %1194 = vmatpush1.xpose.msra.mxu0 0.0
  %1195 = vmatprep.subr.mxu0 0.0
  %1196 = vmatpush1.xpose.msra.mxu0 0.0
  %1197 = vmatprep.subr.mxu0 0.0
  %1198 = vmatpush1.xpose.msra.mxu0 0.0
  %1199 = vmatprep.subr.mxu0 0.0
  %1200 = vmatpush1.xpose.msra.mxu0 0.0
  %1201 = vmatprep.subr.mxu0 0.0
  %1202 = vmatpush1.xpose.msra.mxu0 0.0
  %1203 = vmatprep.subr.mxu0 0.0
  %1204 = vmatpush1.xpose.msra.mxu0 %v1171
  %1205 = vmatprep.subr.mxu0 0.0
  %1206 = vmatpush2.xpose.msra.mxu0 0.0
  %1207 = vmatprep.subr.mxu0 0.0
  %1208 = vmatpush2.xpose.msra.mxu0 0.0
  %1209 = vmatprep.subr.mxu0 0.0
  %1210 = vmatpush2.xpose.msra.mxu0 0.0
  %1211 = vmatprep.subr.mxu0 0.0
  %1212 = vmatpush2.xpose.msra.mxu0 0.0
  %1213 = vmatprep.subr.mxu0 0.0
  %1214 = vmatpush2.xpose.msra.mxu0 0.0
  %1215 = vmatprep.subr.mxu0 0.0
  %1216 = vmatpush2.xpose.msra.mxu0 0.0
  %1217 = vmatprep.subr.mxu0 0.0
  %1218 = vmatpush2.xpose.msra.mxu0 0.0
  %1219 = vmatprep.subr.mxu0 0.0
  %1220 = vmatpush2.xpose.msra.mxu0 0.0
  %1221 = vmatprep.subr.mxu0 0.0
  %1222 = vmatpush2.xpose.msra.mxu0 0.0
  %1223 = vmatprep.subr.mxu0 0.0
  %1224 = vmatpush2.xpose.msra.mxu0 0.0
  %1225 = vmatprep.subr.mxu0 0.0
  %1226 = vmatpush2.xpose.msra.mxu0 0.0
  %1227 = vmatprep.subr.mxu0 0.0
  %1228 = vmatpush2.xpose.msra.mxu0 0.0
  %1229 = vmatprep.subr.mxu0 0.0
  %1230 = vmatpush2.xpose.msra.mxu0 0.0
  %1231 = vmatprep.subr.mxu0 0.0
  %1232 = vmatpush2.xpose.msra.mxu0 0.0
  %1233 = vmatprep.subr.mxu0 0.0
  %1234 = vmatpush2.xpose.msra.mxu0 0.0
  %1235 = vmatprep.subr.mxu0 0.0
  %1236 = vmatpush2.xpose.msra.mxu0 0.0
  %1237 = vmatprep.mubr.f32.mxu0 0.0
  %1238 = vmatmul.mubr.f32.gmra.mxu0 %v1168
  %v1239 = vpop.f32.mrf.mxu0
  %v1240 = vadd.f32 0.0, %v1239
  %v1241 = vpop.f32.mrf.mxu0
  %1242 = vdwg.mxu0
  %v1243 = vmul.f32 %v1240, 0.35355338
  %v1244 = vsel %vm169, %v1243, -inf
  %1245 = vmax.xlane.f32.xlu0 %v1244
  %v1246 = vpop.xlane.xlu0 %1245
  %v1247 = vsub.f32 %v1243, %v1246
  %v1248 = vmul.f32 %v1247, 1.442695
  %v1249 = vpow.pop %v1248
  %v1250 = vsel %vm169, %v1249, 0.0
  %1251 = vadd.xlane.f32.xlu0 %v1250
  %v1252 = vpop.xlane.xlu0 %1251
  %v1253 = vrcp.pop %v1252
  %v1254 = vmul.f32 %v1249, %v1253
  %1255 = vrot.lane.b32.xlu0 %v1159, 112
  %v1256 = vpop.permute.xlu0 %1255
  %v1259 = vsel %vm169, %v1254, 0
  %1261 = vmatprep.subr.mxu0 0.0
  %1262 = vmatpush1.msra.mxu0 0.0
  %1263 = vmatprep.subr.mxu0 0.0
  %1264 = vmatpush1.msra.mxu0 0.0
  %1265 = vmatprep.subr.mxu0 0.0
  %1266 = vmatpush1.msra.mxu0 0.0
  %1267 = vmatprep.subr.mxu0 0.0
  %1268 = vmatpush1.msra.mxu0 0.0
  %1269 = vmatprep.subr.mxu0 0.0
  %1270 = vmatpush1.msra.mxu0 0.0
  %1271 = vmatprep.subr.mxu0 0.0
  %1272 = vmatpush1.msra.mxu0 0.0
  %1273 = vmatprep.subr.mxu0 0.0
  %1274 = vmatpush1.msra.mxu0 0.0
  %1275 = vmatprep.subr.mxu0 0.0
  %1276 = vmatpush1.msra.mxu0 0.0
  %1277 = vmatprep.subr.mxu0 0.0
  %1278 = vmatpush1.msra.mxu0 0.0
  %1279 = vmatprep.subr.mxu0 0.0
  %1280 = vmatpush1.msra.mxu0 0.0
  %1281 = vmatprep.subr.mxu0 0.0
  %1282 = vmatpush1.msra.mxu0 0.0
  %1283 = vmatprep.subr.mxu0 0.0
  %1284 = vmatpush1.msra.mxu0 0.0
  %1285 = vmatprep.subr.mxu0 0.0
  %1286 = vmatpush1.msra.mxu0 0.0
  %1287 = vmatprep.subr.mxu0 0.0
  %1288 = vmatpush1.msra.mxu0 0.0
  %1289 = vmatprep.subr.mxu0 0.0
  %1290 = vmatpush1.msra.mxu0 0.0
  %1291 = vmatprep.subr.mxu0 0.0
  %1292 = vmatpush1.msra.mxu0 %v1256
  %1293 = vmatprep.subr.mxu0 0.0
  %1294 = vmatpush2.msra.mxu0 0.0
  %1295 = vmatprep.subr.mxu0 0.0
  %1296 = vmatpush2.msra.mxu0 0.0
  %1297 = vmatprep.subr.mxu0 0.0
  %1298 = vmatpush2.msra.mxu0 0.0
  %1299 = vmatprep.subr.mxu0 0.0
  %1300 = vmatpush2.msra.mxu0 0.0
  %1301 = vmatprep.subr.mxu0 0.0
  %1302 = vmatpush2.msra.mxu0 0.0
  %1303 = vmatprep.subr.mxu0 0.0
  %1304 = vmatpush2.msra.mxu0 0.0
  %1305 = vmatprep.subr.mxu0 0.0
  %1306 = vmatpush2.msra.mxu0 0.0
  %1307 = vmatprep.subr.mxu0 0.0
  %1308 = vmatpush2.msra.mxu0 0.0
  %1309 = vmatprep.subr.mxu0 0.0
  %1310 = vmatpush2.msra.mxu0 0.0
  %1311 = vmatprep.subr.mxu0 0.0
  %1312 = vmatpush2.msra.mxu0 0.0
  %1313 = vmatprep.subr.mxu0 0.0
  %1314 = vmatpush2.msra.mxu0 0.0
  %1315 = vmatprep.subr.mxu0 0.0
  %1316 = vmatpush2.msra.mxu0 0.0
  %1317 = vmatprep.subr.mxu0 0.0
  %1318 = vmatpush2.msra.mxu0 0.0
  %1319 = vmatprep.subr.mxu0 0.0
  %1320 = vmatpush2.msra.mxu0 0.0
  %1321 = vmatprep.subr.mxu0 0.0
  %1322 = vmatpush2.msra.mxu0 0.0
  %1323 = vmatprep.subr.mxu0 0.0
  %1324 = vmatpush2.msra.mxu0 0.0
  %1325 = vmatprep.mubr.f32.mxu0 0.0
  %1326 = vmatmul.mubr.f32.gmra.mxu0 %v1259
  %v1327 = vpop.f32.mrf.mxu0
  %v1328 = vadd.f32 0.0, %v1327
  %v1329 = vpop.f32.mrf.mxu0
  %1330 = vdwg.mxu0
  %1331 = vst.msk [vmem:[#allocation2] sm:$0xff] %vm169, %v1328
  %1332 = vrot.lane.b32.xlu0 %v1067, 120
  %v1333 = vpop.permute.xlu0 %1332
  %1334 = vrot.lane.b32.xlu0 %v1159, 120
  %v1335 = vpop.permute.xlu0 %1334
  %v1336 = vsel %vm169, %v1333, 0
  %v1338 = vsel %vm169, %v1335, 0
  %1340 = vmatprep.subr.mxu0 0.0
  %1341 = vmatpush1.xpose.msra.mxu0 0.0
  %1342 = vmatprep.subr.mxu0 0.0
  %1343 = vmatpush1.xpose.msra.mxu0 0.0
  %1344 = vmatprep.subr.mxu0 0.0
  %1345 = vmatpush1.xpose.msra.mxu0 0.0
  %1346 = vmatprep.subr.mxu0 0.0
  %1347 = vmatpush1.xpose.msra.mxu0 0.0
  %1348 = vmatprep.subr.mxu0 0.0
  %1349 = vmatpush1.xpose.msra.mxu0 0.0
  %1350 = vmatprep.subr.mxu0 0.0
  %1351 = vmatpush1.xpose.msra.mxu0 0.0
  %1352 = vmatprep.subr.mxu0 0.0
  %1353 = vmatpush1.xpose.msra.mxu0 0.0
  %1354 = vmatprep.subr.mxu0 0.0
  %1355 = vmatpush1.xpose.msra.mxu0 0.0
  %1356 = vmatprep.subr.mxu0 0.0
  %1357 = vmatpush1.xpose.msra.mxu0 0.0
  %1358 = vmatprep.subr.mxu0 0.0
  %1359 = vmatpush1.xpose.msra.mxu0 0.0
  %1360 = vmatprep.subr.mxu0 0.0
  %1361 = vmatpush1.xpose.msra.mxu0 0.0
  %1362 = vmatprep.subr.mxu0 0.0
  %1363 = vmatpush1.xpose.msra.mxu0 0.0
  %1364 = vmatprep.subr.mxu0 0.0
  %1365 = vmatpush1.xpose.msra.mxu0 0.0
  %1366 = vmatprep.subr.mxu0 0.0
  %1367 = vmatpush1.xpose.msra.mxu0 0.0
  %1368 = vmatprep.subr.mxu0 0.0
  %1369 = vmatpush1.xpose.msra.mxu0 0.0
  %1370 = vmatprep.subr.mxu0 0.0
  %1371 = vmatpush1.xpose.msra.mxu0 %v1338
  %1372 = vmatprep.subr.mxu0 0.0
  %1373 = vmatpush2.xpose.msra.mxu0 0.0
  %1374 = vmatprep.subr.mxu0 0.0
  %1375 = vmatpush2.xpose.msra.mxu0 0.0
  %1376 = vmatprep.subr.mxu0 0.0
  %1377 = vmatpush2.xpose.msra.mxu0 0.0
  %1378 = vmatprep.subr.mxu0 0.0
  %1379 = vmatpush2.xpose.msra.mxu0 0.0
  %1380 = vmatprep.subr.mxu0 0.0
  %1381 = vmatpush2.xpose.msra.mxu0 0.0
  %1382 = vmatprep.subr.mxu0 0.0
  %1383 = vmatpush2.xpose.msra.mxu0 0.0
  %1384 = vmatprep.subr.mxu0 0.0
  %1385 = vmatpush2.xpose.msra.mxu0 0.0
  %1386 = vmatprep.subr.mxu0 0.0
  %1387 = vmatpush2.xpose.msra.mxu0 0.0
  %1388 = vmatprep.subr.mxu0 0.0
  %1389 = vmatpush2.xpose.msra.mxu0 0.0
  %1390 = vmatprep.subr.mxu0 0.0
  %1391 = vmatpush2.xpose.msra.mxu0 0.0
  %1392 = vmatprep.subr.mxu0 0.0
  %1393 = vmatpush2.xpose.msra.mxu0 0.0
  %1394 = vmatprep.subr.mxu0 0.0
  %1395 = vmatpush2.xpose.msra.mxu0 0.0
  %1396 = vmatprep.subr.mxu0 0.0
  %1397 = vmatpush2.xpose.msra.mxu0 0.0
  %1398 = vmatprep.subr.mxu0 0.0
  %1399 = vmatpush2.xpose.msra.mxu0 0.0
  %1400 = vmatprep.subr.mxu0 0.0
  %1401 = vmatpush2.xpose.msra.mxu0 0.0
  %1402 = vmatprep.subr.mxu0 0.0
  %1403 = vmatpush2.xpose.msra.mxu0 0.0
  %1404 = vmatprep.mubr.f32.mxu0 0.0
  %1405 = vmatmul.mubr.f32.gmra.mxu0 %v1336
  %v1406 = vpop.f32.mrf.mxu0
  %v1407 = vadd.f32 0.0, %v1406
  %v1408 = vpop.f32.mrf.mxu0
  %1409 = vdwg.mxu0
  %v1410 = vmul.f32 %v1407, 0.35355338
  %v1411 = vsel %vm169, %v1410, -inf
  %1412 = vmax.xlane.f32.xlu0 %v1411
  %v1413 = vpop.xlane.xlu0 %1412
  %v1414 = vsub.f32 %v1410, %v1413
  %v1415 = vmul.f32 %v1414, 1.442695
  %v1416 = vpow.pop %v1415
  %v1417 = vsel %vm169, %v1416, 0.0
  %1418 = vadd.xlane.f32.xlu0 %v1417
  %v1419 = vpop.xlane.xlu0 %1418
  %v1420 = vrcp.pop %v1419
  %v1421 = vmul.f32 %v1416, %v1420
  %1422 = vrot.lane.b32.xlu0 %v1159, 104
  %v1423 = vpop.permute.xlu0 %1422
  %v1426 = vsel %vm169, %v1421, 0
  %1428 = vmatprep.subr.mxu0 0.0
  %1429 = vmatpush1.msra.mxu0 0.0
  %1430 = vmatprep.subr.mxu0 0.0
  %1431 = vmatpush1.msra.mxu0 0.0
  %1432 = vmatprep.subr.mxu0 0.0
  %1433 = vmatpush1.msra.mxu0 0.0
  %1434 = vmatprep.subr.mxu0 0.0
  %1435 = vmatpush1.msra.mxu0 0.0
  %1436 = vmatprep.subr.mxu0 0.0
  %1437 = vmatpush1.msra.mxu0 0.0
  %1438 = vmatprep.subr.mxu0 0.0
  %1439 = vmatpush1.msra.mxu0 0.0
  %1440 = vmatprep.subr.mxu0 0.0
  %1441 = vmatpush1.msra.mxu0 0.0
  %1442 = vmatprep.subr.mxu0 0.0
  %1443 = vmatpush1.msra.mxu0 0.0
  %1444 = vmatprep.subr.mxu0 0.0
  %1445 = vmatpush1.msra.mxu0 0.0
  %1446 = vmatprep.subr.mxu0 0.0
  %1447 = vmatpush1.msra.mxu0 0.0
  %1448 = vmatprep.subr.mxu0 0.0
  %1449 = vmatpush1.msra.mxu0 0.0
  %1450 = vmatprep.subr.mxu0 0.0
  %1451 = vmatpush1.msra.mxu0 0.0
  %1452 = vmatprep.subr.mxu0 0.0
  %1453 = vmatpush1.msra.mxu0 0.0
  %1454 = vmatprep.subr.mxu0 0.0
  %1455 = vmatpush1.msra.mxu0 0.0
  %1456 = vmatprep.subr.mxu0 0.0
  %1457 = vmatpush1.msra.mxu0 0.0
  %1458 = vmatprep.subr.mxu0 0.0
  %1459 = vmatpush1.msra.mxu0 %v1423
  %1460 = vmatprep.subr.mxu0 0.0
  %1461 = vmatpush2.msra.mxu0 0.0
  %1462 = vmatprep.subr.mxu0 0.0
  %1463 = vmatpush2.msra.mxu0 0.0
  %1464 = vmatprep.subr.mxu0 0.0
  %1465 = vmatpush2.msra.mxu0 0.0
  %1466 = vmatprep.subr.mxu0 0.0
  %1467 = vmatpush2.msra.mxu0 0.0
  %1468 = vmatprep.subr.mxu0 0.0
  %1469 = vmatpush2.msra.mxu0 0.0
  %1470 = vmatprep.subr.mxu0 0.0
  %1471 = vmatpush2.msra.mxu0 0.0
  %1472 = vmatprep.subr.mxu0 0.0
  %1473 = vmatpush2.msra.mxu0 0.0
  %1474 = vmatprep.subr.mxu0 0.0
  %1475 = vmatpush2.msra.mxu0 0.0
  %1476 = vmatprep.subr.mxu0 0.0
  %1477 = vmatpush2.msra.mxu0 0.0
  %1478 = vmatprep.subr.mxu0 0.0
  %1479 = vmatpush2.msra.mxu0 0.0
  %1480 = vmatprep.subr.mxu0 0.0
  %1481 = vmatpush2.msra.mxu0 0.0
  %1482 = vmatprep.subr.mxu0 0.0
  %1483 = vmatpush2.msra.mxu0 0.0
  %1484 = vmatprep.subr.mxu0 0.0
  %1485 = vmatpush2.msra.mxu0 0.0
  %1486 = vmatprep.subr.mxu0 0.0
  %1487 = vmatpush2.msra.mxu0 0.0
  %1488 = vmatprep.subr.mxu0 0.0
  %1489 = vmatpush2.msra.mxu0 0.0
  %1490 = vmatprep.subr.mxu0 0.0
  %1491 = vmatpush2.msra.mxu0 0.0
  %1492 = vmatprep.mubr.f32.mxu0 0.0
  %1493 = vmatmul.mubr.f32.gmra.mxu0 %v1426
  %v1494 = vpop.f32.mrf.mxu0
  %v1495 = vadd.f32 0.0, %v1494
  %v1496 = vpop.f32.mrf.mxu0
  %1497 = vdwg.mxu0
  %1499 = vrot.lane.b32.xlu0 %v1495, 8
  %v1500 = vpop.permute.xlu0 %1499
  %1502 = vst.msk [vmem:[#allocation2] sm:$0xff] %vm505, %v1500
  %v1504 = vsel %vm169, %v1072, 0
  %v1507 = vsel %vm169, %v1164, 0
  %1509 = vmatprep.subr.mxu0 0.0
  %1510 = vmatpush1.xpose.msra.mxu0 0.0
  %1511 = vmatprep.subr.mxu0 0.0
  %1512 = vmatpush1.xpose.msra.mxu0 0.0
  %1513 = vmatprep.subr.mxu0 0.0
  %1514 = vmatpush1.xpose.msra.mxu0 0.0
  %1515 = vmatprep.subr.mxu0 0.0
  %1516 = vmatpush1.xpose.msra.mxu0 0.0
  %1517 = vmatprep.subr.mxu0 0.0
  %1518 = vmatpush1.xpose.msra.mxu0 0.0
  %1519 = vmatprep.subr.mxu0 0.0
  %1520 = vmatpush1.xpose.msra.mxu0 0.0
  %1521 = vmatprep.subr.mxu0 0.0
  %1522 = vmatpush1.xpose.msra.mxu0 0.0
  %1523 = vmatprep.subr.mxu0 0.0
  %1524 = vmatpush1.xpose.msra.mxu0 0.0
  %1525 = vmatprep.subr.mxu0 0.0
  %1526 = vmatpush1.xpose.msra.mxu0 0.0
  %1527 = vmatprep.subr.mxu0 0.0
  %1528 = vmatpush1.xpose.msra.mxu0 0.0
  %1529 = vmatprep.subr.mxu0 0.0
  %1530 = vmatpush1.xpose.msra.mxu0 0.0
  %1531 = vmatprep.subr.mxu0 0.0
  %1532 = vmatpush1.xpose.msra.mxu0 0.0
  %1533 = vmatprep.subr.mxu0 0.0
  %1534 = vmatpush1.xpose.msra.mxu0 0.0
  %1535 = vmatprep.subr.mxu0 0.0
  %1536 = vmatpush1.xpose.msra.mxu0 0.0
  %1537 = vmatprep.subr.mxu0 0.0
  %1538 = vmatpush1.xpose.msra.mxu0 0.0
  %1539 = vmatprep.subr.mxu0 0.0
  %1540 = vmatpush1.xpose.msra.mxu0 %v1507
  %1541 = vmatprep.subr.mxu0 0.0
  %1542 = vmatpush2.xpose.msra.mxu0 0.0
  %1543 = vmatprep.subr.mxu0 0.0
  %1544 = vmatpush2.xpose.msra.mxu0 0.0
  %1545 = vmatprep.subr.mxu0 0.0
  %1546 = vmatpush2.xpose.msra.mxu0 0.0
  %1547 = vmatprep.subr.mxu0 0.0
  %1548 = vmatpush2.xpose.msra.mxu0 0.0
  %1549 = vmatprep.subr.mxu0 0.0
  %1550 = vmatpush2.xpose.msra.mxu0 0.0
  %1551 = vmatprep.subr.mxu0 0.0
  %1552 = vmatpush2.xpose.msra.mxu0 0.0
  %1553 = vmatprep.subr.mxu0 0.0
  %1554 = vmatpush2.xpose.msra.mxu0 0.0
  %1555 = vmatprep.subr.mxu0 0.0
  %1556 = vmatpush2.xpose.msra.mxu0 0.0
  %1557 = vmatprep.subr.mxu0 0.0
  %1558 = vmatpush2.xpose.msra.mxu0 0.0
  %1559 = vmatprep.subr.mxu0 0.0
  %1560 = vmatpush2.xpose.msra.mxu0 0.0
  %1561 = vmatprep.subr.mxu0 0.0
  %1562 = vmatpush2.xpose.msra.mxu0 0.0
  %1563 = vmatprep.subr.mxu0 0.0
  %1564 = vmatpush2.xpose.msra.mxu0 0.0
  %1565 = vmatprep.subr.mxu0 0.0
  %1566 = vmatpush2.xpose.msra.mxu0 0.0
  %1567 = vmatprep.subr.mxu0 0.0
  %1568 = vmatpush2.xpose.msra.mxu0 0.0
  %1569 = vmatprep.subr.mxu0 0.0
  %1570 = vmatpush2.xpose.msra.mxu0 0.0
  %1571 = vmatprep.subr.mxu0 0.0
  %1572 = vmatpush2.xpose.msra.mxu0 0.0
  %1573 = vmatprep.mubr.f32.mxu0 0.0
  %1574 = vmatmul.mubr.f32.gmra.mxu0 %v1504
  %v1575 = vpop.f32.mrf.mxu0
  %v1576 = vadd.f32 0.0, %v1575
  %v1577 = vpop.f32.mrf.mxu0
  %1578 = vdwg.mxu0
  %v1579 = vmul.f32 %v1576, 0.35355338
  %v1580 = vsel %vm169, %v1579, -inf
  %1581 = vmax.xlane.f32.xlu0 %v1580
  %v1582 = vpop.xlane.xlu0 %1581
  %v1583 = vsub.f32 %v1579, %v1582
  %v1584 = vmul.f32 %v1583, 1.442695
  %v1585 = vpow.pop %v1584
  %v1586 = vsel %vm169, %v1585, 0.0
  %1587 = vadd.xlane.f32.xlu0 %v1586
  %v1588 = vpop.xlane.xlu0 %1587
  %v1589 = vrcp.pop %v1588
  %v1590 = vmul.f32 %v1585, %v1589
  %1591 = vrot.lane.b32.xlu0 %v1164, 112
  %v1592 = vpop.permute.xlu0 %1591
  %v1595 = vsel %vm169, %v1590, 0
  %1597 = vmatprep.subr.mxu0 0.0
  %1598 = vmatpush1.msra.mxu0 0.0
  %1599 = vmatprep.subr.mxu0 0.0
  %1600 = vmatpush1.msra.mxu0 0.0
  %1601 = vmatprep.subr.mxu0 0.0
  %1602 = vmatpush1.msra.mxu0 0.0
  %1603 = vmatprep.subr.mxu0 0.0
  %1604 = vmatpush1.msra.mxu0 0.0
  %1605 = vmatprep.subr.mxu0 0.0
  %1606 = vmatpush1.msra.mxu0 0.0
  %1607 = vmatprep.subr.mxu0 0.0
  %1608 = vmatpush1.msra.mxu0 0.0
  %1609 = vmatprep.subr.mxu0 0.0
  %1610 = vmatpush1.msra.mxu0 0.0
  %1611 = vmatprep.subr.mxu0 0.0
  %1612 = vmatpush1.msra.mxu0 0.0
  %1613 = vmatprep.subr.mxu0 0.0
  %1614 = vmatpush1.msra.mxu0 0.0
  %1615 = vmatprep.subr.mxu0 0.0
  %1616 = vmatpush1.msra.mxu0 0.0
  %1617 = vmatprep.subr.mxu0 0.0
  %1618 = vmatpush1.msra.mxu0 0.0
  %1619 = vmatprep.subr.mxu0 0.0
  %1620 = vmatpush1.msra.mxu0 0.0
  %1621 = vmatprep.subr.mxu0 0.0
  %1622 = vmatpush1.msra.mxu0 0.0
  %1623 = vmatprep.subr.mxu0 0.0
  %1624 = vmatpush1.msra.mxu0 0.0
  %1625 = vmatprep.subr.mxu0 0.0
  %1626 = vmatpush1.msra.mxu0 0.0
  %1627 = vmatprep.subr.mxu0 0.0
  %1628 = vmatpush1.msra.mxu0 %v1592
  %1629 = vmatprep.subr.mxu0 0.0
  %1630 = vmatpush2.msra.mxu0 0.0
  %1631 = vmatprep.subr.mxu0 0.0
  %1632 = vmatpush2.msra.mxu0 0.0
  %1633 = vmatprep.subr.mxu0 0.0
  %1634 = vmatpush2.msra.mxu0 0.0
  %1635 = vmatprep.subr.mxu0 0.0
  %1636 = vmatpush2.msra.mxu0 0.0
  %1637 = vmatprep.subr.mxu0 0.0
  %1638 = vmatpush2.msra.mxu0 0.0
  %1639 = vmatprep.subr.mxu0 0.0
  %1640 = vmatpush2.msra.mxu0 0.0
  %1641 = vmatprep.subr.mxu0 0.0
  %1642 = vmatpush2.msra.mxu0 0.0
  %1643 = vmatprep.subr.mxu0 0.0
  %1644 = vmatpush2.msra.mxu0 0.0
  %1645 = vmatprep.subr.mxu0 0.0
  %1646 = vmatpush2.msra.mxu0 0.0
  %1647 = vmatprep.subr.mxu0 0.0
  %1648 = vmatpush2.msra.mxu0 0.0
  %1649 = vmatprep.subr.mxu0 0.0
  %1650 = vmatpush2.msra.mxu0 0.0
  %1651 = vmatprep.subr.mxu0 0.0
  %1652 = vmatpush2.msra.mxu0 0.0
  %1653 = vmatprep.subr.mxu0 0.0
  %1654 = vmatpush2.msra.mxu0 0.0
  %1655 = vmatprep.subr.mxu0 0.0
  %1656 = vmatpush2.msra.mxu0 0.0
  %1657 = vmatprep.subr.mxu0 0.0
  %1658 = vmatpush2.msra.mxu0 0.0
  %1659 = vmatprep.subr.mxu0 0.0
  %1660 = vmatpush2.msra.mxu0 0.0
  %1661 = vmatprep.mubr.f32.mxu0 0.0
  %1662 = vmatmul.mubr.f32.gmra.mxu0 %v1595
  %v1663 = vpop.f32.mrf.mxu0
  %v1664 = vadd.f32 0.0, %v1663
  %v1665 = vpop.f32.mrf.mxu0
  %1666 = vdwg.mxu0
  %1667 = vst.msk [vmem:[#allocation2 + $0x8] sm:$0xff] %vm169, %v1664
  %1668 = vrot.lane.b32.xlu0 %v1072, 120
  %v1669 = vpop.permute.xlu0 %1668
  %1670 = vrot.lane.b32.xlu0 %v1164, 120
  %v1671 = vpop.permute.xlu0 %1670
  %v1672 = vsel %vm169, %v1669, 0
  %v1674 = vsel %vm169, %v1671, 0
  %1676 = vmatprep.subr.mxu0 0.0
  %1677 = vmatpush1.xpose.msra.mxu0 0.0
  %1678 = vmatprep.subr.mxu0 0.0
  %1679 = vmatpush1.xpose.msra.mxu0 0.0
  %1680 = vmatprep.subr.mxu0 0.0
  %1681 = vmatpush1.xpose.msra.mxu0 0.0
  %1682 = vmatprep.subr.mxu0 0.0
  %1683 = vmatpush1.xpose.msra.mxu0 0.0
  %1684 = vmatprep.subr.mxu0 0.0
  %1685 = vmatpush1.xpose.msra.mxu0 0.0
  %1686 = vmatprep.subr.mxu0 0.0
  %1687 = vmatpush1.xpose.msra.mxu0 0.0
  %1688 = vmatprep.subr.mxu0 0.0
  %1689 = vmatpush1.xpose.msra.mxu0 0.0
  %1690 = vmatprep.subr.mxu0 0.0
  %1691 = vmatpush1.xpose.msra.mxu0 0.0
  %1692 = vmatprep.subr.mxu0 0.0
  %1693 = vmatpush1.xpose.msra.mxu0 0.0
  %1694 = vmatprep.subr.mxu0 0.0
  %1695 = vmatpush1.xpose.msra.mxu0 0.0
  %1696 = vmatprep.subr.mxu0 0.0
  %1697 = vmatpush1.xpose.msra.mxu0 0.0
  %1698 = vmatprep.subr.mxu0 0.0
  %1699 = vmatpush1.xpose.msra.mxu0 0.0
  %1700 = vmatprep.subr.mxu0 0.0
  %1701 = vmatpush1.xpose.msra.mxu0 0.0
  %1702 = vmatprep.subr.mxu0 0.0
  %1703 = vmatpush1.xpose.msra.mxu0 0.0
  %1704 = vmatprep.subr.mxu0 0.0
  %1705 = vmatpush1.xpose.msra.mxu0 0.0
  %1706 = vmatprep.subr.mxu0 0.0
  %1707 = vmatpush1.xpose.msra.mxu0 %v1674
  %1708 = vmatprep.subr.mxu0 0.0
  %1709 = vmatpush2.xpose.msra.mxu0 0.0
  %1710 = vmatprep.subr.mxu0 0.0
  %1711 = vmatpush2.xpose.msra.mxu0 0.0
  %1712 = vmatprep.subr.mxu0 0.0
  %1713 = vmatpush2.xpose.msra.mxu0 0.0
  %1714 = vmatprep.subr.mxu0 0.0
  %1715 = vmatpush2.xpose.msra.mxu0 0.0
  %1716 = vmatprep.subr.mxu0 0.0
  %1717 = vmatpush2.xpose.msra.mxu0 0.0
  %1718 = vmatprep.subr.mxu0 0.0
  %1719 = vmatpush2.xpose.msra.mxu0 0.0
  %1720 = vmatprep.subr.mxu0 0.0
  %1721 = vmatpush2.xpose.msra.mxu0 0.0
  %1722 = vmatprep.subr.mxu0 0.0
  %1723 = vmatpush2.xpose.msra.mxu0 0.0
  %1724 = vmatprep.subr.mxu0 0.0
  %1725 = vmatpush2.xpose.msra.mxu0 0.0
  %1726 = vmatprep.subr.mxu0 0.0
  %1727 = vmatpush2.xpose.msra.mxu0 0.0
  %1728 = vmatprep.subr.mxu0 0.0
  %1729 = vmatpush2.xpose.msra.mxu0 0.0
  %1730 = vmatprep.subr.mxu0 0.0
  %1731 = vmatpush2.xpose.msra.mxu0 0.0
  %1732 = vmatprep.subr.mxu0 0.0
  %1733 = vmatpush2.xpose.msra.mxu0 0.0
  %1734 = vmatprep.subr.mxu0 0.0
  %1735 = vmatpush2.xpose.msra.mxu0 0.0
  %1736 = vmatprep.subr.mxu0 0.0
  %1737 = vmatpush2.xpose.msra.mxu0 0.0
  %1738 = vmatprep.subr.mxu0 0.0
  %1739 = vmatpush2.xpose.msra.mxu0 0.0
  %1740 = vmatprep.mubr.f32.mxu0 0.0
  %1741 = vmatmul.mubr.f32.gmra.mxu0 %v1672
  %v1742 = vpop.f32.mrf.mxu0
  %v1743 = vadd.f32 0.0, %v1742
  %v1744 = vpop.f32.mrf.mxu0
  %1745 = vdwg.mxu0
  %v1746 = vmul.f32 %v1743, 0.35355338
  %v1747 = vsel %vm169, %v1746, -inf
  %1748 = vmax.xlane.f32.xlu0 %v1747
  %v1749 = vpop.xlane.xlu0 %1748
  %v1750 = vsub.f32 %v1746, %v1749
  %v1751 = vmul.f32 %v1750, 1.442695
  %v1752 = vpow.pop %v1751
  %v1753 = vsel %vm169, %v1752, 0.0
  %1754 = vadd.xlane.f32.xlu0 %v1753
  %v1755 = vpop.xlane.xlu0 %1754
  %v1756 = vrcp.pop %v1755
  %v1757 = vmul.f32 %v1752, %v1756
  %1758 = vrot.lane.b32.xlu0 %v1164, 104
  %v1759 = vpop.permute.xlu0 %1758
  %v1762 = vsel %vm169, %v1757, 0
  %1764 = vmatprep.subr.mxu0 0.0
  %1765 = vmatpush1.msra.mxu0 0.0
  %1766 = vmatprep.subr.mxu0 0.0
  %1767 = vmatpush1.msra.mxu0 0.0
  %1768 = vmatprep.subr.mxu0 0.0
  %1769 = vmatpush1.msra.mxu0 0.0
  %1770 = vmatprep.subr.mxu0 0.0
  %1771 = vmatpush1.msra.mxu0 0.0
  %1772 = vmatprep.subr.mxu0 0.0
  %1773 = vmatpush1.msra.mxu0 0.0
  %1774 = vmatprep.subr.mxu0 0.0
  %1775 = vmatpush1.msra.mxu0 0.0
  %1776 = vmatprep.subr.mxu0 0.0
  %1777 = vmatpush1.msra.mxu0 0.0
  %1778 = vmatprep.subr.mxu0 0.0
  %1779 = vmatpush1.msra.mxu0 0.0
  %1780 = vmatprep.subr.mxu0 0.0
  %1781 = vmatpush1.msra.mxu0 0.0
  %1782 = vmatprep.subr.mxu0 0.0
  %1783 = vmatpush1.msra.mxu0 0.0
  %1784 = vmatprep.subr.mxu0 0.0
  %1785 = vmatpush1.msra.mxu0 0.0
  %1786 = vmatprep.subr.mxu0 0.0
  %1787 = vmatpush1.msra.mxu0 0.0
  %1788 = vmatprep.subr.mxu0 0.0
  %1789 = vmatpush1.msra.mxu0 0.0
  %1790 = vmatprep.subr.mxu0 0.0
  %1791 = vmatpush1.msra.mxu0 0.0
  %1792 = vmatprep.subr.mxu0 0.0
  %1793 = vmatpush1.msra.mxu0 0.0
  %1794 = vmatprep.subr.mxu0 0.0
  %1795 = vmatpush1.msra.mxu0 %v1759
  %1796 = vmatprep.subr.mxu0 0.0
  %1797 = vmatpush2.msra.mxu0 0.0
  %1798 = vmatprep.subr.mxu0 0.0
  %1799 = vmatpush2.msra.mxu0 0.0
  %1800 = vmatprep.subr.mxu0 0.0
  %1801 = vmatpush2.msra.mxu0 0.0
  %1802 = vmatprep.subr.mxu0 0.0
  %1803 = vmatpush2.msra.mxu0 0.0
  %1804 = vmatprep.subr.mxu0 0.0
  %1805 = vmatpush2.msra.mxu0 0.0
  %1806 = vmatprep.subr.mxu0 0.0
  %1807 = vmatpush2.msra.mxu0 0.0
  %1808 = vmatprep.subr.mxu0 0.0
  %1809 = vmatpush2.msra.mxu0 0.0
  %1810 = vmatprep.subr.mxu0 0.0
  %1811 = vmatpush2.msra.mxu0 0.0
  %1812 = vmatprep.subr.mxu0 0.0
  %1813 = vmatpush2.msra.mxu0 0.0
  %1814 = vmatprep.subr.mxu0 0.0
  %1815 = vmatpush2.msra.mxu0 0.0
  %1816 = vmatprep.subr.mxu0 0.0
  %1817 = vmatpush2.msra.mxu0 0.0
  %1818 = vmatprep.subr.mxu0 0.0
  %1819 = vmatpush2.msra.mxu0 0.0
  %1820 = vmatprep.subr.mxu0 0.0
  %1821 = vmatpush2.msra.mxu0 0.0
  %1822 = vmatprep.subr.mxu0 0.0
  %1823 = vmatpush2.msra.mxu0 0.0
  %1824 = vmatprep.subr.mxu0 0.0
  %1825 = vmatpush2.msra.mxu0 0.0
  %1826 = vmatprep.subr.mxu0 0.0
  %1827 = vmatpush2.msra.mxu0 0.0
  %1828 = vmatprep.mubr.f32.mxu0 0.0
  %1829 = vmatmul.mubr.f32.gmra.mxu0 %v1762
  %v1830 = vpop.f32.mrf.mxu0
  %v1831 = vadd.f32 0.0, %v1830
  %v1832 = vpop.f32.mrf.mxu0
  %1833 = vdwg.mxu0
  %1835 = vrot.lane.b32.xlu0 %v1831, 8
  %v1836 = vpop.permute.xlu0 %1835
  %1838 = vst.msk [vmem:[#allocation2 + $0x8] sm:$0xff] %vm505, %v1836
  %v1839 = vld [vmem:[#allocation2] sm:$0xff]
  %v1840 = vld [vmem:[#allocation2 + $0x8] sm:$0xff]
  %v1841 = vld [vmem:[%s10] sm:$0xff]
  %v1842 = vld [vmem:[%s10 + $0x8] sm:$0xff]
  %v1843 = vld [vmem:[%s11] sm:$0x1]
  %v1845 = vlaneseq
  %v1846 = vshrl.u32 %v1845, 7
  %v1847 = vsub.s32 0, %v1846
  %v1848 = vrot.slane %v1843, %v1847
  %v1851 = vsel %vm78, %v1839, 0
  %v1854 = vsel %vm78, %v1840, 0
  %1856 = vmatprep.subr.mxu0 0.0
  %1857 = vmatpush1.msra.mxu0 0.0
  %1858 = vmatprep.subr.mxu0 0.0
  %1859 = vmatpush1.msra.mxu0 0.0
  %1860 = vmatprep.subr.mxu0 0.0
  %1861 = vmatpush1.msra.mxu0 0.0
  %1862 = vmatprep.subr.mxu0 0.0
  %1863 = vmatpush1.msra.mxu0 0.0
  %1864 = vmatprep.subr.mxu0 0.0
  %1865 = vmatpush1.msra.mxu0 0.0
  %1866 = vmatprep.subr.mxu0 0.0
  %1867 = vmatpush1.msra.mxu0 0.0
  %1868 = vmatprep.subr.mxu0 0.0
  %1869 = vmatpush1.msra.mxu0 0.0
  %1870 = vmatprep.subr.mxu0 0.0
  %1871 = vmatpush1.msra.mxu0 0.0
  %1872 = vmatprep.subr.mxu0 0.0
  %1873 = vmatpush1.msra.mxu0 0.0
  %1874 = vmatprep.subr.mxu0 0.0
  %1875 = vmatpush1.msra.mxu0 0.0
  %1876 = vmatprep.subr.mxu0 0.0
  %1877 = vmatpush1.msra.mxu0 0.0
  %1878 = vmatprep.subr.mxu0 0.0
  %1879 = vmatpush1.msra.mxu0 0.0
  %1880 = vmatprep.subr.mxu0 0.0
  %1881 = vmatpush1.msra.mxu0 0.0
  %1882 = vmatprep.subr.mxu0 0.0
  %1883 = vmatpush1.msra.mxu0 0.0
  %1884 = vmatprep.subr.mxu0 0.0
  %1885 = vmatpush1.msra.mxu0 %v1842
  %1886 = vmatprep.subr.mxu0 0.0
  %1887 = vmatpush1.msra.mxu0 %v1841
  %1888 = vmatprep.subr.mxu0 0.0
  %1889 = vmatpush2.msra.mxu0 0.0
  %1890 = vmatprep.subr.mxu0 0.0
  %1891 = vmatpush2.msra.mxu0 0.0
  %1892 = vmatprep.subr.mxu0 0.0
  %1893 = vmatpush2.msra.mxu0 0.0
  %1894 = vmatprep.subr.mxu0 0.0
  %1895 = vmatpush2.msra.mxu0 0.0
  %1896 = vmatprep.subr.mxu0 0.0
  %1897 = vmatpush2.msra.mxu0 0.0
  %1898 = vmatprep.subr.mxu0 0.0
  %1899 = vmatpush2.msra.mxu0 0.0
  %1900 = vmatprep.subr.mxu0 0.0
  %1901 = vmatpush2.msra.mxu0 0.0
  %1902 = vmatprep.subr.mxu0 0.0
  %1903 = vmatpush2.msra.mxu0 0.0
  %1904 = vmatprep.subr.mxu0 0.0
  %1905 = vmatpush2.msra.mxu0 0.0
  %1906 = vmatprep.subr.mxu0 0.0
  %1907 = vmatpush2.msra.mxu0 0.0
  %1908 = vmatprep.subr.mxu0 0.0
  %1909 = vmatpush2.msra.mxu0 0.0
  %1910 = vmatprep.subr.mxu0 0.0
  %1911 = vmatpush2.msra.mxu0 0.0
  %1912 = vmatprep.subr.mxu0 0.0
  %1913 = vmatpush2.msra.mxu0 0.0
  %1914 = vmatprep.subr.mxu0 0.0
  %1915 = vmatpush2.msra.mxu0 0.0
  %1916 = vmatprep.subr.mxu0 0.0
  %1917 = vmatpush2.msra.mxu0 0.0
  %1918 = vmatprep.subr.mxu0 0.0
  %1919 = vmatpush2.msra.mxu0 0.0
  %1920 = vmatprep.mubr.f32.mxu0 0.0
  %1921 = vmatmul.mubr.f32.gmra.mxu0 %v1851
  %v1922 = vpop.f32.mrf.mxu0
  %v1923 = vadd.f32 %v1848, %v1922
  %v1924 = vpop.f32.mrf.mxu0
  %1925 = vmatprep.mubr.f32.mxu0 0.0
  %1926 = vmatmul.mubr.f32.gmra.mxu0 %v1854
  %v1927 = vpop.f32.mrf.mxu0
  %v1928 = vadd.f32 %v1848, %v1927
  %v1929 = vpop.f32.mrf.mxu0
  %1930 = vdwg.mxu0
  %v1931 = vadd.f32 %v983, %v1923
  %v1932 = vadd.f32 %v984, %v1928
  %v1933 = vld [vmem:[%s12] sm:$0x1]
  %v1934 = vld [vmem:[%s13] sm:$0x1]
  %v1935 = vsel %vm78, %v1931, 0.0
  %1936 = vadd.xlane.f32.xlu0 %v1935
  %v1937 = vpop.xlane.xlu0 %1936
  %v1938 = vsel %vm78, %v1932, 0.0
  %1939 = vadd.xlane.f32.xlu0 %v1938
  %v1940 = vpop.xlane.xlu0 %1939
  %v1941 = vmul.f32 %v1937, %v948
  %v1942 = vmul.f32 %v1940, %v948
  %v1943 = vsub.f32 %v1931, %v1941
  %v1944 = vsub.f32 %v1932, %v1942
  %v1945 = vmul.f32 %v1943, %v1943
  %v1946 = vmul.f32 %v1944, %v1944
  %v1947 = vsel %vm78, %v1945, 0.0
  %1948 = vadd.xlane.f32.xlu0 %v1947
  %v1949 = vpop.xlane.xlu0 %1948
  %v1950 = vsel %vm78, %v1946, 0.0
  %1951 = vadd.xlane.f32.xlu0 %v1950
  %v1952 = vpop.xlane.xlu0 %1951
  %v1953 = vmul.f32 %v1949, %v948
  %v1954 = vmul.f32 %v1952, %v948
  %v1955 = vadd.f32 %v1953, 1e-05
  %v1956 = vadd.f32 %v1954, 1e-05
  %v1957 = vrsqrt.pop %v1955
  %v1958 = vrsqrt.pop %v1956
  %v1959 = vmul.f32 %v1943, %v1957
  %v1960 = vmul.f32 %v1944, %v1958
  %v1962 = vlaneseq
  %v1963 = vshrl.u32 %v1962, 7
  %v1964 = vsub.s32 0, %v1963
  %v1965 = vrot.slane %v1933, %v1964
  %v1967 = vmul.f32 %v1959, %v1965
  %v1968 = vmul.f32 %v1960, %v1965
  %v1970 = vlaneseq
  %v1971 = vshrl.u32 %v1970, 7
  %v1972 = vsub.s32 0, %v1971
  %v1973 = vrot.slane %v1934, %v1972
  %v1975 = vadd.f32 %v1967, %v1973
  %v1976 = vadd.f32 %v1968, %v1973
  %v1977 = vld [vmem:[%s14] sm:$0xff]
  %v1978 = vld [vmem:[%s14 + $0x8] sm:$0xff]
  %v1979 = vld [vmem:[%s15] sm:$0x1]
  %v1981 = vlaneseq
  %v1982 = vshrl.u32 %v1981, 7
  %v1983 = vsub.s32 0, %v1982
  %v1984 = vrot.slane %v1979, %v1983
  %v1987 = vsel %vm78, %v1975, 0
  %v1990 = vsel %vm78, %v1976, 0
  %1992 = vmatprep.subr.mxu0 0.0
  %1993 = vmatpush1.msra.mxu0 0.0
  %1994 = vmatprep.subr.mxu0 0.0
  %1995 = vmatpush1.msra.mxu0 0.0
  %1996 = vmatprep.subr.mxu0 0.0
  %1997 = vmatpush1.msra.mxu0 0.0
  %1998 = vmatprep.subr.mxu0 0.0
  %1999 = vmatpush1.msra.mxu0 0.0
  %2000 = vmatprep.subr.mxu0 0.0
  %2001 = vmatpush1.msra.mxu0 0.0
  %2002 = vmatprep.subr.mxu0 0.0
  %2003 = vmatpush1.msra.mxu0 0.0
  %2004 = vmatprep.subr.mxu0 0.0
  %2005 = vmatpush1.msra.mxu0 0.0
  %2006 = vmatprep.subr.mxu0 0.0
  %2007 = vmatpush1.msra.mxu0 0.0
  %2008 = vmatprep.subr.mxu0 0.0
  %2009 = vmatpush1.msra.mxu0 0.0
  %2010 = vmatprep.subr.mxu0 0.0
  %2011 = vmatpush1.msra.mxu0 0.0
  %2012 = vmatprep.subr.mxu0 0.0
  %2013 = vmatpush1.msra.mxu0 0.0
  %2014 = vmatprep.subr.mxu0 0.0
  %2015 = vmatpush1.msra.mxu0 0.0
  %2016 = vmatprep.subr.mxu0 0.0
  %2017 = vmatpush1.msra.mxu0 0.0
  %2018 = vmatprep.subr.mxu0 0.0
  %2019 = vmatpush1.msra.mxu0 0.0
  %2020 = vmatprep.subr.mxu0 0.0
  %2021 = vmatpush1.msra.mxu0 %v1978
  %2022 = vmatprep.subr.mxu0 0.0
  %2023 = vmatpush1.msra.mxu0 %v1977
  %2024 = vmatprep.subr.mxu0 0.0
  %2025 = vmatpush2.msra.mxu0 0.0
  %2026 = vmatprep.subr.mxu0 0.0
  %2027 = vmatpush2.msra.mxu0 0.0
  %2028 = vmatprep.subr.mxu0 0.0
  %2029 = vmatpush2.msra.mxu0 0.0
  %2030 = vmatprep.subr.mxu0 0.0
  %2031 = vmatpush2.msra.mxu0 0.0
  %2032 = vmatprep.subr.mxu0 0.0
  %2033 = vmatpush2.msra.mxu0 0.0
  %2034 = vmatprep.subr.mxu0 0.0
  %2035 = vmatpush2.msra.mxu0 0.0
  %2036 = vmatprep.subr.mxu0 0.0
  %2037 = vmatpush2.msra.mxu0 0.0
  %2038 = vmatprep.subr.mxu0 0.0
  %2039 = vmatpush2.msra.mxu0 0.0
  %2040 = vmatprep.subr.mxu0 0.0
  %2041 = vmatpush2.msra.mxu0 0.0
  %2042 = vmatprep.subr.mxu0 0.0
  %2043 = vmatpush2.msra.mxu0 0.0
  %2044 = vmatprep.subr.mxu0 0.0
  %2045 = vmatpush2.msra.mxu0 0.0
  %2046 = vmatprep.subr.mxu0 0.0
  %2047 = vmatpush2.msra.mxu0 0.0
  %2048 = vmatprep.subr.mxu0 0.0
  %2049 = vmatpush2.msra.mxu0 0.0
  %2050 = vmatprep.subr.mxu0 0.0
  %2051 = vmatpush2.msra.mxu0 0.0
  %2052 = vmatprep.subr.mxu0 0.0
  %2053 = vmatpush2.msra.mxu0 0.0
  %2054 = vmatprep.subr.mxu0 0.0
  %2055 = vmatpush2.msra.mxu0 0.0
  %2056 = vmatprep.mubr.f32.mxu0 0.0
  %2057 = vmatmul.mubr.f32.gmra.mxu0 %v1987
  %v2058 = vpop.f32.mrf.mxu0
  %v2059 = vadd.f32 %v1984, %v2058
  %v2060 = vpop.f32.mrf.mxu0
  %2061 = vmatprep.mubr.f32.mxu0 0.0
  %2062 = vmatmul.mubr.f32.gmra.mxu0 %v1990
  %v2063 = vpop.f32.mrf.mxu0
  %v2064 = vadd.f32 %v1984, %v2063
  %v2065 = vpop.f32.mrf.mxu0
  %2066 = vdwg.mxu0
  %v2067 = vmax.f32 %v2059, 0.0
  %v2068 = vmax.f32 %v2064, 0.0
  %v2069 = vld [vmem:[%s16] sm:$0xff]
  %v2070 = vld [vmem:[%s16 + $0x8] sm:$0xff]
  %v2071 = vld [vmem:[%s16 + $0x10] sm:$0xff]
  %v2072 = vld [vmem:[%s16 + $0x18] sm:$0xff]
  %v2073 = vld [vmem:[%s17] sm:$0x1]
  %v2075 = vlaneseq
  %v2076 = vshrl.u32 %v2075, 7
  %v2077 = vsub.s32 0, %v2076
  %v2078 = vrot.slane %v2073, %v2077
  %vm2080 = vcmask 261120
  %v2082 = vsel %vm2080, %v2067, 0
  %v2085 = vsel %vm2080, %v2068, 0
  %2087 = vmatprep.subr.mxu0 0.0
  %2088 = vmatpush1.msra.mxu0 0.0
  %2089 = vmatprep.subr.mxu0 0.0
  %2090 = vmatpush1.msra.mxu0 0.0
  %2091 = vmatprep.subr.mxu0 0.0
  %2092 = vmatpush1.msra.mxu0 0.0
  %2093 = vmatprep.subr.mxu0 0.0
  %2094 = vmatpush1.msra.mxu0 0.0
  %2095 = vmatprep.subr.mxu0 0.0
  %2096 = vmatpush1.msra.mxu0 0.0
  %2097 = vmatprep.subr.mxu0 0.0
  %2098 = vmatpush1.msra.mxu0 0.0
  %2099 = vmatprep.subr.mxu0 0.0
  %2100 = vmatpush1.msra.mxu0 0.0
  %2101 = vmatprep.subr.mxu0 0.0
  %2102 = vmatpush1.msra.mxu0 0.0
  %2103 = vmatprep.subr.mxu0 0.0
  %2104 = vmatpush1.msra.mxu0 0.0
  %2105 = vmatprep.subr.mxu0 0.0
  %2106 = vmatpush1.msra.mxu0 0.0
  %2107 = vmatprep.subr.mxu0 0.0
  %2108 = vmatpush1.msra.mxu0 0.0
  %2109 = vmatprep.subr.mxu0 0.0
  %2110 = vmatpush1.msra.mxu0 0.0
  %2111 = vmatprep.subr.mxu0 0.0
  %2112 = vmatpush1.msra.mxu0 %v2072
  %2113 = vmatprep.subr.mxu0 0.0
  %2114 = vmatpush1.msra.mxu0 %v2071
  %2115 = vmatprep.subr.mxu0 0.0
  %2116 = vmatpush1.msra.mxu0 %v2070
  %2117 = vmatprep.subr.mxu0 0.0
  %2118 = vmatpush1.msra.mxu0 %v2069
  %2119 = vmatprep.subr.mxu0 0.0
  %2120 = vmatpush2.msra.mxu0 0.0
  %2121 = vmatprep.subr.mxu0 0.0
  %2122 = vmatpush2.msra.mxu0 0.0
  %2123 = vmatprep.subr.mxu0 0.0
  %2124 = vmatpush2.msra.mxu0 0.0
  %2125 = vmatprep.subr.mxu0 0.0
  %2126 = vmatpush2.msra.mxu0 0.0
  %2127 = vmatprep.subr.mxu0 0.0
  %2128 = vmatpush2.msra.mxu0 0.0
  %2129 = vmatprep.subr.mxu0 0.0
  %2130 = vmatpush2.msra.mxu0 0.0
  %2131 = vmatprep.subr.mxu0 0.0
  %2132 = vmatpush2.msra.mxu0 0.0
  %2133 = vmatprep.subr.mxu0 0.0
  %2134 = vmatpush2.msra.mxu0 0.0
  %2135 = vmatprep.subr.mxu0 0.0
  %2136 = vmatpush2.msra.mxu0 0.0
  %2137 = vmatprep.subr.mxu0 0.0
  %2138 = vmatpush2.msra.mxu0 0.0
  %2139 = vmatprep.subr.mxu0 0.0
  %2140 = vmatpush2.msra.mxu0 0.0
  %2141 = vmatprep.subr.mxu0 0.0
  %2142 = vmatpush2.msra.mxu0 0.0
  %2143 = vmatprep.subr.mxu0 0.0
  %2144 = vmatpush2.msra.mxu0 0.0
  %2145 = vmatprep.subr.mxu0 0.0
  %2146 = vmatpush2.msra.mxu0 0.0
  %2147 = vmatprep.subr.mxu0 0.0
  %2148 = vmatpush2.msra.mxu0 0.0
  %2149 = vmatprep.subr.mxu0 0.0
  %2150 = vmatpush2.msra.mxu0 0.0
  %2151 = vmatprep.mubr.f32.mxu0 0.0
  %2152 = vmatmul.mubr.f32.gmra.mxu0 %v2082
  %v2153 = vpop.f32.mrf.mxu0
  %v2154 = vadd.f32 %v2078, %v2153
  %v2155 = vpop.f32.mrf.mxu0
  %2156 = vmatprep.mubr.f32.mxu0 0.0
  %2157 = vmatmul.mubr.f32.gmra.mxu0 %v2085
  %v2158 = vpop.f32.mrf.mxu0
  %v2159 = vadd.f32 %v2078, %v2158
  %v2160 = vpop.f32.mrf.mxu0
  %2161 = vdwg.mxu0
  %v2162 = vadd.f32 %v1975, %v2154
  %v2163 = vadd.f32 %v1976, %v2159
  %v2164 = vld [vmem:[%s18] sm:$0x1]
  %v2165 = vld [vmem:[%s19] sm:$0x1]
  %v2166 = vsel %vm78, %v2162, 0.0
  %2167 = vadd.xlane.f32.xlu0 %v2166
  %v2168 = vpop.xlane.xlu0 %2167
  %v2169 = vsel %vm78, %v2163, 0.0
  %2170 = vadd.xlane.f32.xlu0 %v2169
  %v2171 = vpop.xlane.xlu0 %2170
  %v2172 = vmul.f32 %v2168, %v948
  %v2173 = vmul.f32 %v2171, %v948
  %v2174 = vsub.f32 %v2162, %v2172
  %v2175 = vsub.f32 %v2163, %v2173
  %v2176 = vmul.f32 %v2174, %v2174
  %v2177 = vmul.f32 %v2175, %v2175
  %v2178 = vsel %vm78, %v2176, 0.0
  %2179 = vadd.xlane.f32.xlu0 %v2178
  %v2180 = vpop.xlane.xlu0 %2179
  %v2181 = vsel %vm78, %v2177, 0.0
  %2182 = vadd.xlane.f32.xlu0 %v2181
  %v2183 = vpop.xlane.xlu0 %2182
  %v2184 = vmul.f32 %v2180, %v948
  %v2185 = vmul.f32 %v2183, %v948
  %v2186 = vadd.f32 %v2184, 1e-05
  %v2187 = vadd.f32 %v2185, 1e-05
  %v2188 = vrsqrt.pop %v2186
  %v2189 = vrsqrt.pop %v2187
  %v2190 = vmul.f32 %v2174, %v2188
  %v2191 = vmul.f32 %v2175, %v2189
  %v2193 = vlaneseq
  %v2194 = vshrl.u32 %v2193, 7
  %v2195 = vsub.s32 0, %v2194
  %v2196 = vrot.slane %v2164, %v2195
  %v2198 = vmul.f32 %v2190, %v2196
  %v2199 = vmul.f32 %v2191, %v2196
  %v2201 = vlaneseq
  %v2202 = vshrl.u32 %v2201, 7
  %v2203 = vsub.s32 0, %v2202
  %v2204 = vrot.slane %v2165, %v2203
  %v2206 = vadd.f32 %v2198, %v2204
  %v2207 = vadd.f32 %v2199, %v2204
  %2208 = vst.msk [vmem:[%s20] sm:$0xff] %vm78, %v2206
  %2209 = vst.msk [vmem:[%s20 + $0x8] sm:$0xff] %vm78, %v2207
  // Predicated region
  $region82: #{audio_transformer_forward.9} parent=0 // pred_check
    _
  $region83: #{audio_transformer_forward.9} parent=0 // pred_check_branch
    %2211 = sbr.rel (0) target = $region85
  $region84: #{audio_transformer_forward.9} parent=0 // pred_region
    _
  $region85: #{audio_transformer_forward.9} parent=0 // pred_fallthru
    _
  // Predicated region
  $region86: #{audio_transformer_forward.9} parent=0 // pred_check
    _
  $region87: #{audio_transformer_forward.9} parent=0 // pred_check_branch
    %2213 = sbr.rel (0) target = $region89
  $region88: #{audio_transformer_forward.9} parent=0 // pred_region
    _
  $region89: #{audio_transformer_forward.9} parent=0 // pred_fallthru
    _

</llo_original>
